<compile_context>
chip_gen: v5e
topology: v5e:2x2
jax: 0.10.0
libtpu: 0.0.40
codegen_flags: <defaults>
</compile_context>

<pallas_src>
import functools

import jax
import jax.numpy as jnp
from jax.experimental import pallas as pl
from jax.experimental.pallas import tpu as pltpu

SPLIT_LAYER = 2  # 1 <= split_layer <= 4 (2 exercises both identity and conv shortcuts)
BN_EPS = 1e-5


# ----------------------------------------------------------------------------
# In-kernel im2col helpers (3x3 conv, pad=1).
# All W (sublane-axis) shifts / strided loads are done in f32 and cast to bf16
# right away; the H padding, row-slab slicing and the wide 9*C lane concat --
# the bulk of the data movement -- are done in bf16.
# ----------------------------------------------------------------------------
def _patches(cols_bf, Hin, Wo, C, stride):
    """cols_bf: 3 bf16 arrays (Hin, Wo, C); cols_bf[dx][h, ox] = x[h, ox*stride+dx-1].

    Returns (Ho*Wo, 9*C) bf16 patches with K ordered (dy, dx, c) (c minor),
    matching w.reshape(9*C, Cout) of a (3, 3, C, Cout) weight.
    """
    Ho = Hin // stride
    zrow = jnp.zeros((1, Wo, C), jnp.bfloat16)
    padded = [jnp.concatenate([zrow, cs, zrow], axis=0) for cs in cols_bf]
    slabs = []
    for dy in range(3):
        for dx in range(3):
            s = padded[dx][dy:dy + stride * Ho]          # leading-dim slice (free)
            if stride == 2:
                s = s.reshape(Ho, 2, Wo, C)[:, 0]        # rows dy, dy+2, ... (free)
            slabs.append(s)
    return jnp.concatenate(slabs, axis=-1).reshape(Ho * Wo, 9 * C)


def _im2col_s1(x_f32, Hc, Wc, C):
    """x_f32: (Hc, Wc, C) -> (Hc*Wc, 9*C) bf16 patches for stride-1 / pad-1 conv."""
    z = jnp.zeros((Hc, 1, C), jnp.float32)
    xm1 = jnp.concatenate([z, x_f32[:, :Wc - 1, :]], axis=1)   # x[h, w-1]
    xp1 = jnp.concatenate([x_f32[:, 1:, :], z], axis=1)        # x[h, w+1]
    cols = [c.astype(jnp.bfloat16) for c in (xm1, x_f32, xp1)]
    return _patches(cols, Hc, Wc, C, 1)


def _im2col_s2(x_ref, Hc, Wc, C):
    """x_ref: (Hc, Wc, C) f32 VMEM scratch holding the conv input.

    Returns (patches (Ho*Wo, 9*C) bf16 for the stride-2 3x3 conv,
             xs      (Ho*Wo, C)   bf16 = x[2*oy, 2*ox] for the 1x1 stride-2 shortcut).
    Even/odd column planes come from native strided sublane loads; the row
    subsample is a free leading-dim reshape + index.
    """
    Ho, Wo = Hc // 2, Wc // 2
    xe = x_ref[:, pl.ds(0, Wo, 2), :]                          # cols 0, 2, ...
    xo = x_ref[:, pl.ds(1, Wo, 2), :]                          # cols 1, 3, ...
    z = jnp.zeros((Hc, 1, C), jnp.float32)
    c0 = jnp.concatenate([z, xo[:, :Wo - 1, :]], axis=1)       # col 2*ox - 1
    cols = [c.astype(jnp.bfloat16) for c in (c0, xe, xo)]
    p = _patches(cols, Hc, Wo, C, 2)
    xs = cols[1].reshape(Ho, 2, Wo, C)[:, 0].reshape(Ho * Wo, C)
    return p, xs


# ----------------------------------------------------------------------------
# Fused whole-model kernel (one grid step = one image)
# ----------------------------------------------------------------------------
def _client_kernel(*refs, cfgs, H, W):
    refs = list(refs)
    xp_ref = refs.pop(0)                     # (1, H*W, 27) bf16 stem patches
    w0_ref = refs.pop(0)                     # (27, 64) bf16 (BN scale folded)
    b0_ref = refs.pop(0)                     # (1, 64) f32 folded BN bias
    blk_refs = []
    for _ in cfgs:
        blk_refs.append(tuple(refs[:4]))     # w1, b1, w2(+shortcut), b2(+bsc)
        del refs[:4]
    out_ref = refs.pop(0)
    scr_refs = refs                          # one f32 scratch per stride-2 block

    # ----- stem: conv1 (3x3, Cin=3) + BN + ReLU as one K=27 MXU matmul -----
    x = jnp.dot(xp_ref[0], w0_ref[...], preferred_element_type=jnp.float32)
    x = jnp.maximum(x + b0_ref[...], 0.0)    # (H*W, 64) f32

    Hc, Wc = H, W
    scr_i = 0
    for cfg, (w1_ref, b1_ref, w2_ref, b2_ref) in zip(cfgs, blk_refs):
        Cin, Cout = cfg["cin"], cfg["cout"]
        stride, has_sc = cfg["stride"], cfg["has_sc"]
        Ho, Wo = Hc // stride, Wc // stride

        # -- left branch: conv1 (3x3, stride s) + BN + ReLU --
        if stride == 1:
            x3 = x.reshape(Hc, Wc, Cin)
            p1 = _im2col_s1(x3, Hc, Wc, Cin)
            xs = x3.astype(jnp.bfloat16).reshape(Hc * Wc, Cin) if has_sc else None
        else:
            scr = scr_refs[scr_i]
            scr_i += 1
            scr[...] = x.reshape(Hc, Wc, Cin)
            p1, xs = _im2col_s2(scr, Hc, Wc, Cin)
        h = jnp.dot(p1, w1_ref[...], preferred_element_type=jnp.float32)
        h = jnp.maximum(h + b1_ref[...], 0.0)                  # (Ho*Wo, Cout) f32

        # -- left branch: conv2 (3x3, stride 1) + BN, shortcut conv folded in --
        p2 = _im2col_s1(h.reshape(Ho, Wo, Cout), Ho, Wo, Cout)
        if has_sc:
            p2 = jnp.concatenate([p2, xs], axis=-1)            # K = 9*Cout + Cin
        y = jnp.dot(p2, w2_ref[...], preferred_element_type=jnp.float32) + b2_ref[...]

        # -- residual add + ReLU (f32) --
        x = jnp.maximum(y, 0.0) if has_sc else jnp.maximum(y + x, 0.0)
        Hc, Wc = Ho, Wo

    out_ref[...] = x.reshape(1, Hc, Wc, cfgs[-1]["cout"])


# ----------------------------------------------------------------------------
# Parameters (deterministic in-script init; BN folded into weights)
# ----------------------------------------------------------------------------
def _init_conv_bn(key, cin, cout, k):
    k1, k2, k3, k4, k5 = jax.random.split(key, 5)
    w = jax.random.normal(k1, (k, k, cin, cout), jnp.float32) / jnp.sqrt(
        jnp.float32(k * k * cin))
    gamma = 1.0 + 0.1 * jax.random.normal(k2, (cout,), jnp.float32)
    beta = 0.1 * jax.random.normal(k3, (cout,), jnp.float32)
    run_mean = 0.1 * jax.random.normal(k4, (cout,), jnp.float32)
    run_var = 1.0 + 0.1 * jnp.abs(jax.random.normal(k5, (cout,), jnp.float32))
    scale = gamma / jnp.sqrt(run_var + BN_EPS)     # fold inference-mode BN
    bias = beta - run_mean * scale
    return (w * scale).reshape(k * k * cin, cout), bias.reshape(1, cout)


def init_params(key, split_layer):
    assert 1 <= split_layer <= 4
    key, k0 = jax.random.split(key)
    w0, b0 = _init_conv_bn(k0, 3, 64, 3)
    params = {"stem_w": w0.astype(jnp.bfloat16), "stem_b": b0}

    inchannel = 64
    blocks = []
    for channels, stride0 in [(64, 1), (128, 2), (256, 2), (512, 2)][:split_layer]:
        for s in [stride0, 1]:               # num_blocks = 2 per layer
            key, ka, kb, kc = jax.random.split(key, 4)
            w1, b1 = _init_conv_bn(ka, inchannel, channels, 3)
            w2, b2 = _init_conv_bn(kb, channels, channels, 3)
            has_sc = (s != 1) or (inchannel != channels)
            if has_sc:
                # Fold the 1x1 shortcut conv + BN into the conv2 matmul (K concat).
                wsc, bsc = _init_conv_bn(kc, inchannel, channels, 1)
                w2 = jnp.concatenate([w2, wsc], axis=0)
                b2 = b2 + bsc
            blocks.append(dict(cin=inchannel, cout=channels, stride=s, has_sc=has_sc,
                               w1=w1.astype(jnp.bfloat16), b1=b1,
                               w2=w2.astype(jnp.bfloat16), b2=b2))
            inchannel = channels
    params["blocks"] = blocks
    return params


def _stem_patches(x_nhwc):
    """Tiny one-time XLA im2col of the 3-channel input -> (N, H*W, 27) bf16."""
    N, H, W, C = x_nhwc.shape
    xp = jnp.pad(x_nhwc, ((0, 0), (1, 1), (1, 1), (0, 0)))
    slabs = [xp[:, dy:dy + H, dx:dx + W, :] for dy in range(3) for dx in range(3)]
    return jnp.concatenate(slabs, axis=-1).reshape(N, H * W, 9 * C).astype(jnp.bfloat16)


# ----------------------------------------------------------------------------
# Wrapper: ONE pallas_call for the whole client model
# ----------------------------------------------------------------------------
def resnet18_client_forward(x_nchw, params):
    x = jnp.transpose(x_nchw, (0, 2, 3, 1)).astype(jnp.float32)   # NCHW -> NHWC
    N, H, W, _ = x.shape
    xp = _stem_patches(x)

    blocks = params["blocks"]
    cfgs = tuple(dict(cin=b["cin"], cout=b["cout"], stride=b["stride"],
                      has_sc=b["has_sc"]) for b in blocks)

    inputs = [xp, params["stem_w"], params["stem_b"]]
    for b in blocks:
        inputs += [b["w1"], b["b1"], b["w2"], b["b2"]]

    scratch_shapes = []
    Hc, Wc = H, W
    for b in blocks:
        if b["stride"] != 1:
            scratch_shapes.append(pltpu.VMEM((Hc, Wc, b["cin"]), jnp.float32))
        Hc //= b["stride"]
        Wc //= b["stride"]
    Cf = blocks[-1]["cout"]

    def _full_spec(a):
        return pl.BlockSpec(a.shape, lambda n, _z=(0,) * a.ndim: _z)

    in_specs = [pl.BlockSpec((1, H * W, xp.shape[-1]), lambda n: (n, 0, 0))]
    in_specs += [_full_spec(a) for a in inputs[1:]]

    out = pl.pallas_call(
        functools.partial(_client_kernel, cfgs=cfgs, H=H, W=W),
        out_shape=jax.ShapeDtypeStruct((N, Hc, Wc, Cf), jnp.float32),
        grid=(N,),                                   # batch axis; parallel over v7x cores
        in_specs=in_specs,
        out_specs=pl.BlockSpec((1, Hc, Wc, Cf), lambda n: (n, 0, 0, 0)),
        scratch_shapes=scratch_shapes,
        compiler_params=pltpu.CompilerParams(
            dimension_semantics=("parallel",),
            vmem_limit_bytes=32 * 1024 * 1024),      # above v5e's 16 MiB scoped default
    )(*inputs)

    return jnp.transpose(out, (0, 3, 1, 2))          # NHWC -> NCHW


# ----------------------------------------------------------------------------
if __name__ == "__main__":
    key = jax.random.PRNGKey(0)
    key_params, key_x = jax.random.split(key)

    params = init_params(key_params, SPLIT_LAYER)

    # PyTorch-style NCHW input: batch=2, channels=3 (RGB), spatial=16x16
    x = jax.random.normal(key_x, (2, 3, 16, 16), jnp.float32)

    fwd = jax.jit(lambda inp: resnet18_client_forward(inp, params))
    out = jax.block_until_ready(fwd(x))

    # split_layer=2: conv1 (64ch, 16x16) -> layer1 (64ch, 16x16) -> layer2 (128ch, 8x8)
    assert out.shape == (2, 128, 8, 8), out.shape
    assert bool(jnp.all(jnp.isfinite(out)))

    print("KERNEL_OK")
</pallas_src>

<mosaic_0001>
module attributes {stable_mosaic.version = 11 : i64} {
  func.func @_client_kernel(%arg0: i32, %arg1: memref<1x256x27xbf16, #tpu.memory_space<vmem>>, %arg2: memref<27x64xbf16, #tpu.memory_space<vmem>>, %arg3: memref<1x64xf32, #tpu.memory_space<vmem>>, %arg4: memref<576x64xbf16, #tpu.memory_space<vmem>>, %arg5: memref<1x64xf32, #tpu.memory_space<vmem>>, %arg6: memref<576x64xbf16, #tpu.memory_space<vmem>>, %arg7: memref<1x64xf32, #tpu.memory_space<vmem>>, %arg8: memref<576x64xbf16, #tpu.memory_space<vmem>>, %arg9: memref<1x64xf32, #tpu.memory_space<vmem>>, %arg10: memref<576x64xbf16, #tpu.memory_space<vmem>>, %arg11: memref<1x64xf32, #tpu.memory_space<vmem>>, %arg12: memref<576x128xbf16, #tpu.memory_space<vmem>>, %arg13: memref<1x128xf32, #tpu.memory_space<vmem>>, %arg14: memref<1216x128xbf16, #tpu.memory_space<vmem>>, %arg15: memref<1x128xf32, #tpu.memory_space<vmem>>, %arg16: memref<1152x128xbf16, #tpu.memory_space<vmem>>, %arg17: memref<1x128xf32, #tpu.memory_space<vmem>>, %arg18: memref<1152x128xbf16, #tpu.memory_space<vmem>>, %arg19: memref<1x128xf32, #tpu.memory_space<vmem>>, %arg20: memref<1x8x8x128xf32, #tpu.memory_space<vmem>>, %arg21: memref<16x16x64xf32, #tpu.memory_space<vmem>>) attributes {dimension_semantics = [#tpu.dimension_semantics<parallel>], iteration_bounds = array<i64: 2>, scalar_prefetch = 0 : i64, scratch_operands = 1 : i64, tpu.core_type = #tpu.core_type<tc>, window_params = [{transform_indices = @transform_0, window_bounds = array<i64: 1, 256, 27>}, {pipeline_mode = #tpu.pipeline_mode<synchronous>, transform_indices = @transform_1, window_bounds = array<i64: 27, 64>}, {pipeline_mode = #tpu.pipeline_mode<synchronous>, transform_indices = @transform_2, window_bounds = array<i64: 1, 64>}, {pipeline_mode = #tpu.pipeline_mode<synchronous>, transform_indices = @transform_3, window_bounds = array<i64: 576, 64>}, {pipeline_mode = #tpu.pipeline_mode<synchronous>, transform_indices = @transform_4, window_bounds = array<i64: 1, 64>}, {pipeline_mode = #tpu.pipeline_mode<synchronous>, transform_indices = @transform_5, window_bounds = array<i64: 576, 64>}, {pipeline_mode = #tpu.pipeline_mode<synchronous>, transform_indices = @transform_6, window_bounds = array<i64: 1, 64>}, {pipeline_mode = #tpu.pipeline_mode<synchronous>, transform_indices = @transform_7, window_bounds = array<i64: 576, 64>}, {pipeline_mode = #tpu.pipeline_mode<synchronous>, transform_indices = @transform_8, window_bounds = array<i64: 1, 64>}, {pipeline_mode = #tpu.pipeline_mode<synchronous>, transform_indices = @transform_9, window_bounds = array<i64: 576, 64>}, {pipeline_mode = #tpu.pipeline_mode<synchronous>, transform_indices = @transform_10, window_bounds = array<i64: 1, 64>}, {pipeline_mode = #tpu.pipeline_mode<synchronous>, transform_indices = @transform_11, window_bounds = array<i64: 576, 128>}, {pipeline_mode = #tpu.pipeline_mode<synchronous>, transform_indices = @transform_12, window_bounds = array<i64: 1, 128>}, {pipeline_mode = #tpu.pipeline_mode<synchronous>, transform_indices = @transform_13, window_bounds = array<i64: 1216, 128>}, {pipeline_mode = #tpu.pipeline_mode<synchronous>, transform_indices = @transform_14, window_bounds = array<i64: 1, 128>}, {pipeline_mode = #tpu.pipeline_mode<synchronous>, transform_indices = @transform_15, window_bounds = array<i64: 1152, 128>}, {pipeline_mode = #tpu.pipeline_mode<synchronous>, transform_indices = @transform_16, window_bounds = array<i64: 1, 128>}, {pipeline_mode = #tpu.pipeline_mode<synchronous>, transform_indices = @transform_17, window_bounds = array<i64: 1152, 128>}, {pipeline_mode = #tpu.pipeline_mode<synchronous>, transform_indices = @transform_18, window_bounds = array<i64: 1, 128>}, {transform_indices = @transform_19, window_bounds = array<i64: 1, 8, 8, 128>}]} {
    %c0 = arith.constant 0 : index
    %c0_0 = arith.constant 0 : index
    %c0_1 = arith.constant 0 : index
    %0 = vector.load %arg1[%c0, %c0_0, %c0_1] : memref<1x256x27xbf16, #tpu.memory_space<vmem>>, vector<1x256x27xbf16>
    %1 = vector.shape_cast %0 : vector<1x256x27xbf16> to vector<256x27xbf16>
    %c0_2 = arith.constant 0 : index
    %c0_3 = arith.constant 0 : index
    %2 = vector.load %arg2[%c0_2, %c0_3] : memref<27x64xbf16, #tpu.memory_space<vmem>>, vector<27x64xbf16>
    %cst = arith.constant dense<0.000000e+00> : vector<256x64xf32>
    %3 = tpu.matmul %1, %2, %cst {dimension_numbers = #tpu.dot_dimension_numbers<[1], [0], [0], [1], [0, 0, 1, 1], [], []>} : vector<256x27xbf16>, vector<27x64xbf16>, vector<256x64xf32> -> vector<256x64xf32>
    %c0_4 = arith.constant 0 : index
    %c0_5 = arith.constant 0 : index
    %4 = vector.load %arg3[%c0_4, %c0_5] : memref<1x64xf32, #tpu.memory_space<vmem>>, vector<1x64xf32>
    %5 = vector.broadcast %4 : vector<1x64xf32> to vector<256x64xf32>
    %6 = arith.addf %3, %5 : vector<256x64xf32>
    %cst_6 = arith.constant 0.000000e+00 : f32
    %7 = vector.broadcast %cst_6 : f32 to vector<256x64xf32>
    %8 = arith.maximumf %6, %7 : vector<256x64xf32>
    %9 = vector.shape_cast %8 : vector<256x64xf32> to vector<16x16x64xf32>
    %cst_7 = arith.constant 0.000000e+00 : f32
    %10 = vector.broadcast %cst_7 : f32 to vector<16x1x64xf32>
    %11 = vector.extract_strided_slice %9 {offsets = [0, 0, 0], sizes = [16, 15, 64], strides = [1, 1, 1]} : vector<16x16x64xf32> to vector<16x15x64xf32>
    %12 = tpu.concatenate %10, %11 in 1 : vector<16x1x64xf32>, vector<16x15x64xf32> -> vector<16x16x64xf32>
    %13 = vector.extract_strided_slice %9 {offsets = [0, 1, 0], sizes = [16, 15, 64], strides = [1, 1, 1]} : vector<16x16x64xf32> to vector<16x15x64xf32>
    %14 = tpu.concatenate %13, %10 in 1 : vector<16x15x64xf32>, vector<16x1x64xf32> -> vector<16x16x64xf32>
    %15 = arith.truncf %12 : vector<16x16x64xf32> to vector<16x16x64xbf16>
    %16 = arith.truncf %9 : vector<16x16x64xf32> to vector<16x16x64xbf16>
    %17 = arith.truncf %14 : vector<16x16x64xf32> to vector<16x16x64xbf16>
    %cst_8 = arith.constant 0.000000e+00 : bf16
    %18 = vector.broadcast %cst_8 : bf16 to vector<1x16x64xbf16>
    %19 = tpu.concatenate %18, %15, %18 in 0 : vector<1x16x64xbf16>, vector<16x16x64xbf16>, vector<1x16x64xbf16> -> vector<18x16x64xbf16>
    %20 = tpu.concatenate %18, %16, %18 in 0 : vector<1x16x64xbf16>, vector<16x16x64xbf16>, vector<1x16x64xbf16> -> vector<18x16x64xbf16>
    %21 = tpu.concatenate %18, %17, %18 in 0 : vector<1x16x64xbf16>, vector<16x16x64xbf16>, vector<1x16x64xbf16> -> vector<18x16x64xbf16>
    %22 = vector.extract_strided_slice %19 {offsets = [0, 0, 0], sizes = [16, 16, 64], strides = [1, 1, 1]} : vector<18x16x64xbf16> to vector<16x16x64xbf16>
    %23 = vector.extract_strided_slice %20 {offsets = [0, 0, 0], sizes = [16, 16, 64], strides = [1, 1, 1]} : vector<18x16x64xbf16> to vector<16x16x64xbf16>
    %24 = vector.extract_strided_slice %21 {offsets = [0, 0, 0], sizes = [16, 16, 64], strides = [1, 1, 1]} : vector<18x16x64xbf16> to vector<16x16x64xbf16>
    %25 = vector.extract_strided_slice %19 {offsets = [1, 0, 0], sizes = [16, 16, 64], strides = [1, 1, 1]} : vector<18x16x64xbf16> to vector<16x16x64xbf16>
    %26 = vector.extract_strided_slice %20 {offsets = [1, 0, 0], sizes = [16, 16, 64], strides = [1, 1, 1]} : vector<18x16x64xbf16> to vector<16x16x64xbf16>
    %27 = vector.extract_strided_slice %21 {offsets = [1, 0, 0], sizes = [16, 16, 64], strides = [1, 1, 1]} : vector<18x16x64xbf16> to vector<16x16x64xbf16>
    %28 = vector.extract_strided_slice %19 {offsets = [2, 0, 0], sizes = [16, 16, 64], strides = [1, 1, 1]} : vector<18x16x64xbf16> to vector<16x16x64xbf16>
    %29 = vector.extract_strided_slice %20 {offsets = [2, 0, 0], sizes = [16, 16, 64], strides = [1, 1, 1]} : vector<18x16x64xbf16> to vector<16x16x64xbf16>
    %30 = vector.extract_strided_slice %21 {offsets = [2, 0, 0], sizes = [16, 16, 64], strides = [1, 1, 1]} : vector<18x16x64xbf16> to vector<16x16x64xbf16>
    %31 = tpu.concatenate %22, %23, %24, %25, %26, %27, %28, %29, %30 in 2 : vector<16x16x64xbf16>, vector<16x16x64xbf16>, vector<16x16x64xbf16>, vector<16x16x64xbf16>, vector<16x16x64xbf16>, vector<16x16x64xbf16>, vector<16x16x64xbf16>, vector<16x16x64xbf16>, vector<16x16x64xbf16> -> vector<16x16x576xbf16>
    %32 = vector.shape_cast %31 : vector<16x16x576xbf16> to vector<256x576xbf16>
    %c0_9 = arith.constant 0 : index
    %c0_10 = arith.constant 0 : index
    %33 = vector.load %arg4[%c0_9, %c0_10] : memref<576x64xbf16, #tpu.memory_space<vmem>>, vector<576x64xbf16>
    %cst_11 = arith.constant dense<0.000000e+00> : vector<256x64xf32>
    %34 = tpu.matmul %32, %33, %cst_11 {dimension_numbers = #tpu.dot_dimension_numbers<[1], [0], [0], [1], [0, 0, 1, 1], [], []>} : vector<256x576xbf16>, vector<576x64xbf16>, vector<256x64xf32> -> vector<256x64xf32>
    %c0_12 = arith.constant 0 : index
    %c0_13 = arith.constant 0 : index
    %35 = vector.load %arg5[%c0_12, %c0_13] : memref<1x64xf32, #tpu.memory_space<vmem>>, vector<1x64xf32>
    %36 = vector.broadcast %35 : vector<1x64xf32> to vector<256x64xf32>
    %37 = arith.addf %34, %36 : vector<256x64xf32>
    %cst_14 = arith.constant 0.000000e+00 : f32
    %38 = vector.broadcast %cst_14 : f32 to vector<256x64xf32>
    %39 = arith.maximumf %37, %38 : vector<256x64xf32>
    %40 = vector.shape_cast %39 : vector<256x64xf32> to vector<16x16x64xf32>
    %cst_15 = arith.constant 0.000000e+00 : f32
    %41 = vector.broadcast %cst_15 : f32 to vector<16x1x64xf32>
    %42 = vector.extract_strided_slice %40 {offsets = [0, 0, 0], sizes = [16, 15, 64], strides = [1, 1, 1]} : vector<16x16x64xf32> to vector<16x15x64xf32>
    %43 = tpu.concatenate %41, %42 in 1 : vector<16x1x64xf32>, vector<16x15x64xf32> -> vector<16x16x64xf32>
    %44 = vector.extract_strided_slice %40 {offsets = [0, 1, 0], sizes = [16, 15, 64], strides = [1, 1, 1]} : vector<16x16x64xf32> to vector<16x15x64xf32>
    %45 = tpu.concatenate %44, %41 in 1 : vector<16x15x64xf32>, vector<16x1x64xf32> -> vector<16x16x64xf32>
    %46 = arith.truncf %43 : vector<16x16x64xf32> to vector<16x16x64xbf16>
    %47 = arith.truncf %40 : vector<16x16x64xf32> to vector<16x16x64xbf16>
    %48 = arith.truncf %45 : vector<16x16x64xf32> to vector<16x16x64xbf16>
    %cst_16 = arith.constant 0.000000e+00 : bf16
    %49 = vector.broadcast %cst_16 : bf16 to vector<1x16x64xbf16>
    %50 = tpu.concatenate %49, %46, %49 in 0 : vector<1x16x64xbf16>, vector<16x16x64xbf16>, vector<1x16x64xbf16> -> vector<18x16x64xbf16>
    %51 = tpu.concatenate %49, %47, %49 in 0 : vector<1x16x64xbf16>, vector<16x16x64xbf16>, vector<1x16x64xbf16> -> vector<18x16x64xbf16>
    %52 = tpu.concatenate %49, %48, %49 in 0 : vector<1x16x64xbf16>, vector<16x16x64xbf16>, vector<1x16x64xbf16> -> vector<18x16x64xbf16>
    %53 = vector.extract_strided_slice %50 {offsets = [0, 0, 0], sizes = [16, 16, 64], strides = [1, 1, 1]} : vector<18x16x64xbf16> to vector<16x16x64xbf16>
    %54 = vector.extract_strided_slice %51 {offsets = [0, 0, 0], sizes = [16, 16, 64], strides = [1, 1, 1]} : vector<18x16x64xbf16> to vector<16x16x64xbf16>
    %55 = vector.extract_strided_slice %52 {offsets = [0, 0, 0], sizes = [16, 16, 64], strides = [1, 1, 1]} : vector<18x16x64xbf16> to vector<16x16x64xbf16>
    %56 = vector.extract_strided_slice %50 {offsets = [1, 0, 0], sizes = [16, 16, 64], strides = [1, 1, 1]} : vector<18x16x64xbf16> to vector<16x16x64xbf16>
    %57 = vector.extract_strided_slice %51 {offsets = [1, 0, 0], sizes = [16, 16, 64], strides = [1, 1, 1]} : vector<18x16x64xbf16> to vector<16x16x64xbf16>
    %58 = vector.extract_strided_slice %52 {offsets = [1, 0, 0], sizes = [16, 16, 64], strides = [1, 1, 1]} : vector<18x16x64xbf16> to vector<16x16x64xbf16>
    %59 = vector.extract_strided_slice %50 {offsets = [2, 0, 0], sizes = [16, 16, 64], strides = [1, 1, 1]} : vector<18x16x64xbf16> to vector<16x16x64xbf16>
    %60 = vector.extract_strided_slice %51 {offsets = [2, 0, 0], sizes = [16, 16, 64], strides = [1, 1, 1]} : vector<18x16x64xbf16> to vector<16x16x64xbf16>
    %61 = vector.extract_strided_slice %52 {offsets = [2, 0, 0], sizes = [16, 16, 64], strides = [1, 1, 1]} : vector<18x16x64xbf16> to vector<16x16x64xbf16>
    %62 = tpu.concatenate %53, %54, %55, %56, %57, %58, %59, %60, %61 in 2 : vector<16x16x64xbf16>, vector<16x16x64xbf16>, vector<16x16x64xbf16>, vector<16x16x64xbf16>, vector<16x16x64xbf16>, vector<16x16x64xbf16>, vector<16x16x64xbf16>, vector<16x16x64xbf16>, vector<16x16x64xbf16> -> vector<16x16x576xbf16>
    %63 = vector.shape_cast %62 : vector<16x16x576xbf16> to vector<256x576xbf16>
    %c0_17 = arith.constant 0 : index
    %c0_18 = arith.constant 0 : index
    %64 = vector.load %arg6[%c0_17, %c0_18] : memref<576x64xbf16, #tpu.memory_space<vmem>>, vector<576x64xbf16>
    %cst_19 = arith.constant dense<0.000000e+00> : vector<256x64xf32>
    %65 = tpu.matmul %63, %64, %cst_19 {dimension_numbers = #tpu.dot_dimension_numbers<[1], [0], [0], [1], [0, 0, 1, 1], [], []>} : vector<256x576xbf16>, vector<576x64xbf16>, vector<256x64xf32> -> vector<256x64xf32>
    %c0_20 = arith.constant 0 : index
    %c0_21 = arith.constant 0 : index
    %66 = vector.load %arg7[%c0_20, %c0_21] : memref<1x64xf32, #tpu.memory_space<vmem>>, vector<1x64xf32>
    %67 = vector.broadcast %66 : vector<1x64xf32> to vector<256x64xf32>
    %68 = arith.addf %65, %67 : vector<256x64xf32>
    %69 = arith.addf %68, %8 : vector<256x64xf32>
    %cst_22 = arith.constant 0.000000e+00 : f32
    %70 = vector.broadcast %cst_22 : f32 to vector<256x64xf32>
    %71 = arith.maximumf %69, %70 : vector<256x64xf32>
    %72 = vector.shape_cast %71 : vector<256x64xf32> to vector<16x16x64xf32>
    %cst_23 = arith.constant 0.000000e+00 : f32
    %73 = vector.broadcast %cst_23 : f32 to vector<16x1x64xf32>
    %74 = vector.extract_strided_slice %72 {offsets = [0, 0, 0], sizes = [16, 15, 64], strides = [1, 1, 1]} : vector<16x16x64xf32> to vector<16x15x64xf32>
    %75 = tpu.concatenate %73, %74 in 1 : vector<16x1x64xf32>, vector<16x15x64xf32> -> vector<16x16x64xf32>
    %76 = vector.extract_strided_slice %72 {offsets = [0, 1, 0], sizes = [16, 15, 64], strides = [1, 1, 1]} : vector<16x16x64xf32> to vector<16x15x64xf32>
    %77 = tpu.concatenate %76, %73 in 1 : vector<16x15x64xf32>, vector<16x1x64xf32> -> vector<16x16x64xf32>
    %78 = arith.truncf %75 : vector<16x16x64xf32> to vector<16x16x64xbf16>
    %79 = arith.truncf %72 : vector<16x16x64xf32> to vector<16x16x64xbf16>
    %80 = arith.truncf %77 : vector<16x16x64xf32> to vector<16x16x64xbf16>
    %cst_24 = arith.constant 0.000000e+00 : bf16
    %81 = vector.broadcast %cst_24 : bf16 to vector<1x16x64xbf16>
    %82 = tpu.concatenate %81, %78, %81 in 0 : vector<1x16x64xbf16>, vector<16x16x64xbf16>, vector<1x16x64xbf16> -> vector<18x16x64xbf16>
    %83 = tpu.concatenate %81, %79, %81 in 0 : vector<1x16x64xbf16>, vector<16x16x64xbf16>, vector<1x16x64xbf16> -> vector<18x16x64xbf16>
    %84 = tpu.concatenate %81, %80, %81 in 0 : vector<1x16x64xbf16>, vector<16x16x64xbf16>, vector<1x16x64xbf16> -> vector<18x16x64xbf16>
    %85 = vector.extract_strided_slice %82 {offsets = [0, 0, 0], sizes = [16, 16, 64], strides = [1, 1, 1]} : vector<18x16x64xbf16> to vector<16x16x64xbf16>
    %86 = vector.extract_strided_slice %83 {offsets = [0, 0, 0], sizes = [16, 16, 64], strides = [1, 1, 1]} : vector<18x16x64xbf16> to vector<16x16x64xbf16>
    %87 = vector.extract_strided_slice %84 {offsets = [0, 0, 0], sizes = [16, 16, 64], strides = [1, 1, 1]} : vector<18x16x64xbf16> to vector<16x16x64xbf16>
    %88 = vector.extract_strided_slice %82 {offsets = [1, 0, 0], sizes = [16, 16, 64], strides = [1, 1, 1]} : vector<18x16x64xbf16> to vector<16x16x64xbf16>
    %89 = vector.extract_strided_slice %83 {offsets = [1, 0, 0], sizes = [16, 16, 64], strides = [1, 1, 1]} : vector<18x16x64xbf16> to vector<16x16x64xbf16>
    %90 = vector.extract_strided_slice %84 {offsets = [1, 0, 0], sizes = [16, 16, 64], strides = [1, 1, 1]} : vector<18x16x64xbf16> to vector<16x16x64xbf16>
    %91 = vector.extract_strided_slice %82 {offsets = [2, 0, 0], sizes = [16, 16, 64], strides = [1, 1, 1]} : vector<18x16x64xbf16> to vector<16x16x64xbf16>
    %92 = vector.extract_strided_slice %83 {offsets = [2, 0, 0], sizes = [16, 16, 64], strides = [1, 1, 1]} : vector<18x16x64xbf16> to vector<16x16x64xbf16>
    %93 = vector.extract_strided_slice %84 {offsets = [2, 0, 0], sizes = [16, 16, 64], strides = [1, 1, 1]} : vector<18x16x64xbf16> to vector<16x16x64xbf16>
    %94 = tpu.concatenate %85, %86, %87, %88, %89, %90, %91, %92, %93 in 2 : vector<16x16x64xbf16>, vector<16x16x64xbf16>, vector<16x16x64xbf16>, vector<16x16x64xbf16>, vector<16x16x64xbf16>, vector<16x16x64xbf16>, vector<16x16x64xbf16>, vector<16x16x64xbf16>, vector<16x16x64xbf16> -> vector<16x16x576xbf16>
    %95 = vector.shape_cast %94 : vector<16x16x576xbf16> to vector<256x576xbf16>
    %c0_25 = arith.constant 0 : index
    %c0_26 = arith.constant 0 : index
    %96 = vector.load %arg8[%c0_25, %c0_26] : memref<576x64xbf16, #tpu.memory_space<vmem>>, vector<576x64xbf16>
    %cst_27 = arith.constant dense<0.000000e+00> : vector<256x64xf32>
    %97 = tpu.matmul %95, %96, %cst_27 {dimension_numbers = #tpu.dot_dimension_numbers<[1], [0], [0], [1], [0, 0, 1, 1], [], []>} : vector<256x576xbf16>, vector<576x64xbf16>, vector<256x64xf32> -> vector<256x64xf32>
    %c0_28 = arith.constant 0 : index
    %c0_29 = arith.constant 0 : index
    %98 = vector.load %arg9[%c0_28, %c0_29] : memref<1x64xf32, #tpu.memory_space<vmem>>, vector<1x64xf32>
    %99 = vector.broadcast %98 : vector<1x64xf32> to vector<256x64xf32>
    %100 = arith.addf %97, %99 : vector<256x64xf32>
    %cst_30 = arith.constant 0.000000e+00 : f32
    %101 = vector.broadcast %cst_30 : f32 to vector<256x64xf32>
    %102 = arith.maximumf %100, %101 : vector<256x64xf32>
    %103 = vector.shape_cast %102 : vector<256x64xf32> to vector<16x16x64xf32>
    %cst_31 = arith.constant 0.000000e+00 : f32
    %104 = vector.broadcast %cst_31 : f32 to vector<16x1x64xf32>
    %105 = vector.extract_strided_slice %103 {offsets = [0, 0, 0], sizes = [16, 15, 64], strides = [1, 1, 1]} : vector<16x16x64xf32> to vector<16x15x64xf32>
    %106 = tpu.concatenate %104, %105 in 1 : vector<16x1x64xf32>, vector<16x15x64xf32> -> vector<16x16x64xf32>
    %107 = vector.extract_strided_slice %103 {offsets = [0, 1, 0], sizes = [16, 15, 64], strides = [1, 1, 1]} : vector<16x16x64xf32> to vector<16x15x64xf32>
    %108 = tpu.concatenate %107, %104 in 1 : vector<16x15x64xf32>, vector<16x1x64xf32> -> vector<16x16x64xf32>
    %109 = arith.truncf %106 : vector<16x16x64xf32> to vector<16x16x64xbf16>
    %110 = arith.truncf %103 : vector<16x16x64xf32> to vector<16x16x64xbf16>
    %111 = arith.truncf %108 : vector<16x16x64xf32> to vector<16x16x64xbf16>
    %cst_32 = arith.constant 0.000000e+00 : bf16
    %112 = vector.broadcast %cst_32 : bf16 to vector<1x16x64xbf16>
    %113 = tpu.concatenate %112, %109, %112 in 0 : vector<1x16x64xbf16>, vector<16x16x64xbf16>, vector<1x16x64xbf16> -> vector<18x16x64xbf16>
    %114 = tpu.concatenate %112, %110, %112 in 0 : vector<1x16x64xbf16>, vector<16x16x64xbf16>, vector<1x16x64xbf16> -> vector<18x16x64xbf16>
    %115 = tpu.concatenate %112, %111, %112 in 0 : vector<1x16x64xbf16>, vector<16x16x64xbf16>, vector<1x16x64xbf16> -> vector<18x16x64xbf16>
    %116 = vector.extract_strided_slice %113 {offsets = [0, 0, 0], sizes = [16, 16, 64], strides = [1, 1, 1]} : vector<18x16x64xbf16> to vector<16x16x64xbf16>
    %117 = vector.extract_strided_slice %114 {offsets = [0, 0, 0], sizes = [16, 16, 64], strides = [1, 1, 1]} : vector<18x16x64xbf16> to vector<16x16x64xbf16>
    %118 = vector.extract_strided_slice %115 {offsets = [0, 0, 0], sizes = [16, 16, 64], strides = [1, 1, 1]} : vector<18x16x64xbf16> to vector<16x16x64xbf16>
    %119 = vector.extract_strided_slice %113 {offsets = [1, 0, 0], sizes = [16, 16, 64], strides = [1, 1, 1]} : vector<18x16x64xbf16> to vector<16x16x64xbf16>
    %120 = vector.extract_strided_slice %114 {offsets = [1, 0, 0], sizes = [16, 16, 64], strides = [1, 1, 1]} : vector<18x16x64xbf16> to vector<16x16x64xbf16>
    %121 = vector.extract_strided_slice %115 {offsets = [1, 0, 0], sizes = [16, 16, 64], strides = [1, 1, 1]} : vector<18x16x64xbf16> to vector<16x16x64xbf16>
    %122 = vector.extract_strided_slice %113 {offsets = [2, 0, 0], sizes = [16, 16, 64], strides = [1, 1, 1]} : vector<18x16x64xbf16> to vector<16x16x64xbf16>
    %123 = vector.extract_strided_slice %114 {offsets = [2, 0, 0], sizes = [16, 16, 64], strides = [1, 1, 1]} : vector<18x16x64xbf16> to vector<16x16x64xbf16>
    %124 = vector.extract_strided_slice %115 {offsets = [2, 0, 0], sizes = [16, 16, 64], strides = [1, 1, 1]} : vector<18x16x64xbf16> to vector<16x16x64xbf16>
    %125 = tpu.concatenate %116, %117, %118, %119, %120, %121, %122, %123, %124 in 2 : vector<16x16x64xbf16>, vector<16x16x64xbf16>, vector<16x16x64xbf16>, vector<16x16x64xbf16>, vector<16x16x64xbf16>, vector<16x16x64xbf16>, vector<16x16x64xbf16>, vector<16x16x64xbf16>, vector<16x16x64xbf16> -> vector<16x16x576xbf16>
    %126 = vector.shape_cast %125 : vector<16x16x576xbf16> to vector<256x576xbf16>
    %c0_33 = arith.constant 0 : index
    %c0_34 = arith.constant 0 : index
    %127 = vector.load %arg10[%c0_33, %c0_34] : memref<576x64xbf16, #tpu.memory_space<vmem>>, vector<576x64xbf16>
    %cst_35 = arith.constant dense<0.000000e+00> : vector<256x64xf32>
    %128 = tpu.matmul %126, %127, %cst_35 {dimension_numbers = #tpu.dot_dimension_numbers<[1], [0], [0], [1], [0, 0, 1, 1], [], []>} : vector<256x576xbf16>, vector<576x64xbf16>, vector<256x64xf32> -> vector<256x64xf32>
    %c0_36 = arith.constant 0 : index
    %c0_37 = arith.constant 0 : index
    %129 = vector.load %arg11[%c0_36, %c0_37] : memref<1x64xf32, #tpu.memory_space<vmem>>, vector<1x64xf32>
    %130 = vector.broadcast %129 : vector<1x64xf32> to vector<256x64xf32>
    %131 = arith.addf %128, %130 : vector<256x64xf32>
    %132 = arith.addf %131, %71 : vector<256x64xf32>
    %cst_38 = arith.constant 0.000000e+00 : f32
    %133 = vector.broadcast %cst_38 : f32 to vector<256x64xf32>
    %134 = arith.maximumf %132, %133 : vector<256x64xf32>
    %135 = vector.shape_cast %134 : vector<256x64xf32> to vector<16x16x64xf32>
    %c0_39 = arith.constant 0 : index
    %c0_40 = arith.constant 0 : index
    %c0_41 = arith.constant 0 : index
    %136 = vector.load %arg21[%c0_39, %c0_40, %c0_41] : memref<16x16x64xf32, #tpu.memory_space<vmem>>, vector<16x16x64xf32>
    tpu.vector_store %arg21[%c0_39, %c0_40, %c0_41], %135 {strides = array<i32>} : memref<16x16x64xf32, #tpu.memory_space<vmem>>, vector<16x16x64xf32>,
    %c0_42 = arith.constant 0 : index
    %c0_43 = arith.constant 0 : index
    %c0_44 = arith.constant 0 : index
    %137 = tpu.strided_load %arg21[%c0_42, %c0_43, %c0_44] {strides = array<i32: 1, 2, 1>} : memref<16x16x64xf32, #tpu.memory_space<vmem>>, vector<16x8x64xf32>
    %c0_45 = arith.constant 0 : index
    %c1 = arith.constant 1 : index
    %c0_46 = arith.constant 0 : index
    %138 = tpu.strided_load %arg21[%c0_45, %c1, %c0_46] {strides = array<i32: 1, 2, 1>} : memref<16x16x64xf32, #tpu.memory_space<vmem>>, vector<16x8x64xf32>
    %cst_47 = arith.constant 0.000000e+00 : f32
    %139 = vector.broadcast %cst_47 : f32 to vector<16x1x64xf32>
    %140 = vector.extract_strided_slice %138 {offsets = [0, 0, 0], sizes = [16, 7, 64], strides = [1, 1, 1]} : vector<16x8x64xf32> to vector<16x7x64xf32>
    %141 = tpu.concatenate %139, %140 in 1 : vector<16x1x64xf32>, vector<16x7x64xf32> -> vector<16x8x64xf32>
    %142 = arith.truncf %141 : vector<16x8x64xf32> to vector<16x8x64xbf16>
    %143 = arith.truncf %137 : vector<16x8x64xf32> to vector<16x8x64xbf16>
    %144 = arith.truncf %138 : vector<16x8x64xf32> to vector<16x8x64xbf16>
    %cst_48 = arith.constant 0.000000e+00 : bf16
    %145 = vector.broadcast %cst_48 : bf16 to vector<1x8x64xbf16>
    %146 = tpu.concatenate %145, %142, %145 in 0 : vector<1x8x64xbf16>, vector<16x8x64xbf16>, vector<1x8x64xbf16> -> vector<18x8x64xbf16>
    %147 = tpu.concatenate %145, %143, %145 in 0 : vector<1x8x64xbf16>, vector<16x8x64xbf16>, vector<1x8x64xbf16> -> vector<18x8x64xbf16>
    %148 = tpu.concatenate %145, %144, %145 in 0 : vector<1x8x64xbf16>, vector<16x8x64xbf16>, vector<1x8x64xbf16> -> vector<18x8x64xbf16>
    %149 = vector.extract_strided_slice %146 {offsets = [0, 0, 0], sizes = [16, 8, 64], strides = [1, 1, 1]} : vector<18x8x64xbf16> to vector<16x8x64xbf16>
    %150 = vector.shape_cast %149 : vector<16x8x64xbf16> to vector<8x2x8x64xbf16>
    %151 = vector.extract_strided_slice %150 {offsets = [0, 0, 0, 0], sizes = [8, 1, 8, 64], strides = [1, 1, 1, 1]} : vector<8x2x8x64xbf16> to vector<8x1x8x64xbf16>
    %152 = vector.shape_cast %151 : vector<8x1x8x64xbf16> to vector<8x8x64xbf16>
    %153 = vector.extract_strided_slice %147 {offsets = [0, 0, 0], sizes = [16, 8, 64], strides = [1, 1, 1]} : vector<18x8x64xbf16> to vector<16x8x64xbf16>
    %154 = vector.shape_cast %153 : vector<16x8x64xbf16> to vector<8x2x8x64xbf16>
    %155 = vector.extract_strided_slice %154 {offsets = [0, 0, 0, 0], sizes = [8, 1, 8, 64], strides = [1, 1, 1, 1]} : vector<8x2x8x64xbf16> to vector<8x1x8x64xbf16>
    %156 = vector.shape_cast %155 : vector<8x1x8x64xbf16> to vector<8x8x64xbf16>
    %157 = vector.extract_strided_slice %148 {offsets = [0, 0, 0], sizes = [16, 8, 64], strides = [1, 1, 1]} : vector<18x8x64xbf16> to vector<16x8x64xbf16>
    %158 = vector.shape_cast %157 : vector<16x8x64xbf16> to vector<8x2x8x64xbf16>
    %159 = vector.extract_strided_slice %158 {offsets = [0, 0, 0, 0], sizes = [8, 1, 8, 64], strides = [1, 1, 1, 1]} : vector<8x2x8x64xbf16> to vector<8x1x8x64xbf16>
    %160 = vector.shape_cast %159 : vector<8x1x8x64xbf16> to vector<8x8x64xbf16>
    %161 = vector.extract_strided_slice %146 {offsets = [1, 0, 0], sizes = [16, 8, 64], strides = [1, 1, 1]} : vector<18x8x64xbf16> to vector<16x8x64xbf16>
    %162 = vector.shape_cast %161 : vector<16x8x64xbf16> to vector<8x2x8x64xbf16>
    %163 = vector.extract_strided_slice %162 {offsets = [0, 0, 0, 0], sizes = [8, 1, 8, 64], strides = [1, 1, 1, 1]} : vector<8x2x8x64xbf16> to vector<8x1x8x64xbf16>
    %164 = vector.shape_cast %163 : vector<8x1x8x64xbf16> to vector<8x8x64xbf16>
    %165 = vector.extract_strided_slice %147 {offsets = [1, 0, 0], sizes = [16, 8, 64], strides = [1, 1, 1]} : vector<18x8x64xbf16> to vector<16x8x64xbf16>
    %166 = vector.shape_cast %165 : vector<16x8x64xbf16> to vector<8x2x8x64xbf16>
    %167 = vector.extract_strided_slice %166 {offsets = [0, 0, 0, 0], sizes = [8, 1, 8, 64], strides = [1, 1, 1, 1]} : vector<8x2x8x64xbf16> to vector<8x1x8x64xbf16>
    %168 = vector.shape_cast %167 : vector<8x1x8x64xbf16> to vector<8x8x64xbf16>
    %169 = vector.extract_strided_slice %148 {offsets = [1, 0, 0], sizes = [16, 8, 64], strides = [1, 1, 1]} : vector<18x8x64xbf16> to vector<16x8x64xbf16>
    %170 = vector.shape_cast %169 : vector<16x8x64xbf16> to vector<8x2x8x64xbf16>
    %171 = vector.extract_strided_slice %170 {offsets = [0, 0, 0, 0], sizes = [8, 1, 8, 64], strides = [1, 1, 1, 1]} : vector<8x2x8x64xbf16> to vector<8x1x8x64xbf16>
    %172 = vector.shape_cast %171 : vector<8x1x8x64xbf16> to vector<8x8x64xbf16>
    %173 = vector.extract_strided_slice %146 {offsets = [2, 0, 0], sizes = [16, 8, 64], strides = [1, 1, 1]} : vector<18x8x64xbf16> to vector<16x8x64xbf16>
    %174 = vector.shape_cast %173 : vector<16x8x64xbf16> to vector<8x2x8x64xbf16>
    %175 = vector.extract_strided_slice %174 {offsets = [0, 0, 0, 0], sizes = [8, 1, 8, 64], strides = [1, 1, 1, 1]} : vector<8x2x8x64xbf16> to vector<8x1x8x64xbf16>
    %176 = vector.shape_cast %175 : vector<8x1x8x64xbf16> to vector<8x8x64xbf16>
    %177 = vector.extract_strided_slice %147 {offsets = [2, 0, 0], sizes = [16, 8, 64], strides = [1, 1, 1]} : vector<18x8x64xbf16> to vector<16x8x64xbf16>
    %178 = vector.shape_cast %177 : vector<16x8x64xbf16> to vector<8x2x8x64xbf16>
    %179 = vector.extract_strided_slice %178 {offsets = [0, 0, 0, 0], sizes = [8, 1, 8, 64], strides = [1, 1, 1, 1]} : vector<8x2x8x64xbf16> to vector<8x1x8x64xbf16>
    %180 = vector.shape_cast %179 : vector<8x1x8x64xbf16> to vector<8x8x64xbf16>
    %181 = vector.extract_strided_slice %148 {offsets = [2, 0, 0], sizes = [16, 8, 64], strides = [1, 1, 1]} : vector<18x8x64xbf16> to vector<16x8x64xbf16>
    %182 = vector.shape_cast %181 : vector<16x8x64xbf16> to vector<8x2x8x64xbf16>
    %183 = vector.extract_strided_slice %182 {offsets = [0, 0, 0, 0], sizes = [8, 1, 8, 64], strides = [1, 1, 1, 1]} : vector<8x2x8x64xbf16> to vector<8x1x8x64xbf16>
    %184 = vector.shape_cast %183 : vector<8x1x8x64xbf16> to vector<8x8x64xbf16>
    %185 = tpu.concatenate %152, %156, %160, %164, %168, %172, %176, %180, %184 in 2 : vector<8x8x64xbf16>, vector<8x8x64xbf16>, vector<8x8x64xbf16>, vector<8x8x64xbf16>, vector<8x8x64xbf16>, vector<8x8x64xbf16>, vector<8x8x64xbf16>, vector<8x8x64xbf16>, vector<8x8x64xbf16> -> vector<8x8x576xbf16>
    %186 = vector.shape_cast %185 : vector<8x8x576xbf16> to vector<64x576xbf16>
    %187 = vector.shape_cast %143 : vector<16x8x64xbf16> to vector<8x2x8x64xbf16>
    %188 = vector.extract_strided_slice %187 {offsets = [0, 0, 0, 0], sizes = [8, 1, 8, 64], strides = [1, 1, 1, 1]} : vector<8x2x8x64xbf16> to vector<8x1x8x64xbf16>
    %189 = vector.shape_cast %188 : vector<8x1x8x64xbf16> to vector<8x8x64xbf16>
    %190 = vector.shape_cast %189 : vector<8x8x64xbf16> to vector<64x64xbf16>
    %c0_49 = arith.constant 0 : index
    %c0_50 = arith.constant 0 : index
    %191 = vector.load %arg12[%c0_49, %c0_50] : memref<576x128xbf16, #tpu.memory_space<vmem>>, vector<576x128xbf16>
    %cst_51 = arith.constant dense<0.000000e+00> : vector<64x128xf32>
    %192 = tpu.matmul %186, %191, %cst_51 {dimension_numbers = #tpu.dot_dimension_numbers<[1], [0], [0], [1], [0, 0, 1, 1], [], []>} : vector<64x576xbf16>, vector<576x128xbf16>, vector<64x128xf32> -> vector<64x128xf32>
    %c0_52 = arith.constant 0 : index
    %c0_53 = arith.constant 0 : index
    %193 = vector.load %arg13[%c0_52, %c0_53] : memref<1x128xf32, #tpu.memory_space<vmem>>, vector<1x128xf32>
    %194 = vector.broadcast %193 : vector<1x128xf32> to vector<64x128xf32>
    %195 = arith.addf %192, %194 : vector<64x128xf32>
    %cst_54 = arith.constant 0.000000e+00 : f32
    %196 = vector.broadcast %cst_54 : f32 to vector<64x128xf32>
    %197 = arith.maximumf %195, %196 : vector<64x128xf32>
    %198 = vector.shape_cast %197 : vector<64x128xf32> to vector<8x8x128xf32>
    %cst_55 = arith.constant 0.000000e+00 : f32
    %199 = vector.broadcast %cst_55 : f32 to vector<8x1x128xf32>
    %200 = vector.extract_strided_slice %198 {offsets = [0, 0, 0], sizes = [8, 7, 128], strides = [1, 1, 1]} : vector<8x8x128xf32> to vector<8x7x128xf32>
    %201 = tpu.concatenate %199, %200 in 1 : vector<8x1x128xf32>, vector<8x7x128xf32> -> vector<8x8x128xf32>
    %202 = vector.extract_strided_slice %198 {offsets = [0, 1, 0], sizes = [8, 7, 128], strides = [1, 1, 1]} : vector<8x8x128xf32> to vector<8x7x128xf32>
    %203 = tpu.concatenate %202, %199 in 1 : vector<8x7x128xf32>, vector<8x1x128xf32> -> vector<8x8x128xf32>
    %204 = arith.truncf %201 : vector<8x8x128xf32> to vector<8x8x128xbf16>
    %205 = arith.truncf %198 : vector<8x8x128xf32> to vector<8x8x128xbf16>
    %206 = arith.truncf %203 : vector<8x8x128xf32> to vector<8x8x128xbf16>
    %cst_56 = arith.constant 0.000000e+00 : bf16
    %207 = vector.broadcast %cst_56 : bf16 to vector<1x8x128xbf16>
    %208 = tpu.concatenate %207, %204, %207 in 0 : vector<1x8x128xbf16>, vector<8x8x128xbf16>, vector<1x8x128xbf16> -> vector<10x8x128xbf16>
    %209 = tpu.concatenate %207, %205, %207 in 0 : vector<1x8x128xbf16>, vector<8x8x128xbf16>, vector<1x8x128xbf16> -> vector<10x8x128xbf16>
    %210 = tpu.concatenate %207, %206, %207 in 0 : vector<1x8x128xbf16>, vector<8x8x128xbf16>, vector<1x8x128xbf16> -> vector<10x8x128xbf16>
    %211 = vector.extract_strided_slice %208 {offsets = [0, 0, 0], sizes = [8, 8, 128], strides = [1, 1, 1]} : vector<10x8x128xbf16> to vector<8x8x128xbf16>
    %212 = vector.extract_strided_slice %209 {offsets = [0, 0, 0], sizes = [8, 8, 128], strides = [1, 1, 1]} : vector<10x8x128xbf16> to vector<8x8x128xbf16>
    %213 = vector.extract_strided_slice %210 {offsets = [0, 0, 0], sizes = [8, 8, 128], strides = [1, 1, 1]} : vector<10x8x128xbf16> to vector<8x8x128xbf16>
    %214 = vector.extract_strided_slice %208 {offsets = [1, 0, 0], sizes = [8, 8, 128], strides = [1, 1, 1]} : vector<10x8x128xbf16> to vector<8x8x128xbf16>
    %215 = vector.extract_strided_slice %209 {offsets = [1, 0, 0], sizes = [8, 8, 128], strides = [1, 1, 1]} : vector<10x8x128xbf16> to vector<8x8x128xbf16>
    %216 = vector.extract_strided_slice %210 {offsets = [1, 0, 0], sizes = [8, 8, 128], strides = [1, 1, 1]} : vector<10x8x128xbf16> to vector<8x8x128xbf16>
    %217 = vector.extract_strided_slice %208 {offsets = [2, 0, 0], sizes = [8, 8, 128], strides = [1, 1, 1]} : vector<10x8x128xbf16> to vector<8x8x128xbf16>
    %218 = vector.extract_strided_slice %209 {offsets = [2, 0, 0], sizes = [8, 8, 128], strides = [1, 1, 1]} : vector<10x8x128xbf16> to vector<8x8x128xbf16>
    %219 = vector.extract_strided_slice %210 {offsets = [2, 0, 0], sizes = [8, 8, 128], strides = [1, 1, 1]} : vector<10x8x128xbf16> to vector<8x8x128xbf16>
    %220 = tpu.concatenate %211, %212, %213, %214, %215, %216, %217, %218, %219 in 2 : vector<8x8x128xbf16>, vector<8x8x128xbf16>, vector<8x8x128xbf16>, vector<8x8x128xbf16>, vector<8x8x128xbf16>, vector<8x8x128xbf16>, vector<8x8x128xbf16>, vector<8x8x128xbf16>, vector<8x8x128xbf16> -> vector<8x8x1152xbf16>
    %221 = vector.shape_cast %220 : vector<8x8x1152xbf16> to vector<64x1152xbf16>
    %222 = tpu.concatenate %221, %190 in 1 : vector<64x1152xbf16>, vector<64x64xbf16> -> vector<64x1216xbf16>
    %c0_57 = arith.constant 0 : index
    %c0_58 = arith.constant 0 : index
    %223 = vector.load %arg14[%c0_57, %c0_58] : memref<1216x128xbf16, #tpu.memory_space<vmem>>, vector<1216x128xbf16>
    %cst_59 = arith.constant dense<0.000000e+00> : vector<64x128xf32>
    %224 = tpu.matmul %222, %223, %cst_59 {dimension_numbers = #tpu.dot_dimension_numbers<[1], [0], [0], [1], [0, 0, 1, 1], [], []>} : vector<64x1216xbf16>, vector<1216x128xbf16>, vector<64x128xf32> -> vector<64x128xf32>
    %c0_60 = arith.constant 0 : index
    %c0_61 = arith.constant 0 : index
    %225 = vector.load %arg15[%c0_60, %c0_61] : memref<1x128xf32, #tpu.memory_space<vmem>>, vector<1x128xf32>
    %226 = vector.broadcast %225 : vector<1x128xf32> to vector<64x128xf32>
    %227 = arith.addf %224, %226 : vector<64x128xf32>
    %cst_62 = arith.constant 0.000000e+00 : f32
    %228 = vector.broadcast %cst_62 : f32 to vector<64x128xf32>
    %229 = arith.maximumf %227, %228 : vector<64x128xf32>
    %230 = vector.shape_cast %229 : vector<64x128xf32> to vector<8x8x128xf32>
    %cst_63 = arith.constant 0.000000e+00 : f32
    %231 = vector.broadcast %cst_63 : f32 to vector<8x1x128xf32>
    %232 = vector.extract_strided_slice %230 {offsets = [0, 0, 0], sizes = [8, 7, 128], strides = [1, 1, 1]} : vector<8x8x128xf32> to vector<8x7x128xf32>
    %233 = tpu.concatenate %231, %232 in 1 : vector<8x1x128xf32>, vector<8x7x128xf32> -> vector<8x8x128xf32>
    %234 = vector.extract_strided_slice %230 {offsets = [0, 1, 0], sizes = [8, 7, 128], strides = [1, 1, 1]} : vector<8x8x128xf32> to vector<8x7x128xf32>
    %235 = tpu.concatenate %234, %231 in 1 : vector<8x7x128xf32>, vector<8x1x128xf32> -> vector<8x8x128xf32>
    %236 = arith.truncf %233 : vector<8x8x128xf32> to vector<8x8x128xbf16>
    %237 = arith.truncf %230 : vector<8x8x128xf32> to vector<8x8x128xbf16>
    %238 = arith.truncf %235 : vector<8x8x128xf32> to vector<8x8x128xbf16>
    %cst_64 = arith.constant 0.000000e+00 : bf16
    %239 = vector.broadcast %cst_64 : bf16 to vector<1x8x128xbf16>
    %240 = tpu.concatenate %239, %236, %239 in 0 : vector<1x8x128xbf16>, vector<8x8x128xbf16>, vector<1x8x128xbf16> -> vector<10x8x128xbf16>
    %241 = tpu.concatenate %239, %237, %239 in 0 : vector<1x8x128xbf16>, vector<8x8x128xbf16>, vector<1x8x128xbf16> -> vector<10x8x128xbf16>
    %242 = tpu.concatenate %239, %238, %239 in 0 : vector<1x8x128xbf16>, vector<8x8x128xbf16>, vector<1x8x128xbf16> -> vector<10x8x128xbf16>
    %243 = vector.extract_strided_slice %240 {offsets = [0, 0, 0], sizes = [8, 8, 128], strides = [1, 1, 1]} : vector<10x8x128xbf16> to vector<8x8x128xbf16>
    %244 = vector.extract_strided_slice %241 {offsets = [0, 0, 0], sizes = [8, 8, 128], strides = [1, 1, 1]} : vector<10x8x128xbf16> to vector<8x8x128xbf16>
    %245 = vector.extract_strided_slice %242 {offsets = [0, 0, 0], sizes = [8, 8, 128], strides = [1, 1, 1]} : vector<10x8x128xbf16> to vector<8x8x128xbf16>
    %246 = vector.extract_strided_slice %240 {offsets = [1, 0, 0], sizes = [8, 8, 128], strides = [1, 1, 1]} : vector<10x8x128xbf16> to vector<8x8x128xbf16>
    %247 = vector.extract_strided_slice %241 {offsets = [1, 0, 0], sizes = [8, 8, 128], strides = [1, 1, 1]} : vector<10x8x128xbf16> to vector<8x8x128xbf16>
    %248 = vector.extract_strided_slice %242 {offsets = [1, 0, 0], sizes = [8, 8, 128], strides = [1, 1, 1]} : vector<10x8x128xbf16> to vector<8x8x128xbf16>
    %249 = vector.extract_strided_slice %240 {offsets = [2, 0, 0], sizes = [8, 8, 128], strides = [1, 1, 1]} : vector<10x8x128xbf16> to vector<8x8x128xbf16>
    %250 = vector.extract_strided_slice %241 {offsets = [2, 0, 0], sizes = [8, 8, 128], strides = [1, 1, 1]} : vector<10x8x128xbf16> to vector<8x8x128xbf16>
    %251 = vector.extract_strided_slice %242 {offsets = [2, 0, 0], sizes = [8, 8, 128], strides = [1, 1, 1]} : vector<10x8x128xbf16> to vector<8x8x128xbf16>
    %252 = tpu.concatenate %243, %244, %245, %246, %247, %248, %249, %250, %251 in 2 : vector<8x8x128xbf16>, vector<8x8x128xbf16>, vector<8x8x128xbf16>, vector<8x8x128xbf16>, vector<8x8x128xbf16>, vector<8x8x128xbf16>, vector<8x8x128xbf16>, vector<8x8x128xbf16>, vector<8x8x128xbf16> -> vector<8x8x1152xbf16>
    %253 = vector.shape_cast %252 : vector<8x8x1152xbf16> to vector<64x1152xbf16>
    %c0_65 = arith.constant 0 : index
    %c0_66 = arith.constant 0 : index
    %254 = vector.load %arg16[%c0_65, %c0_66] : memref<1152x128xbf16, #tpu.memory_space<vmem>>, vector<1152x128xbf16>
    %cst_67 = arith.constant dense<0.000000e+00> : vector<64x128xf32>
    %255 = tpu.matmul %253, %254, %cst_67 {dimension_numbers = #tpu.dot_dimension_numbers<[1], [0], [0], [1], [0, 0, 1, 1], [], []>} : vector<64x1152xbf16>, vector<1152x128xbf16>, vector<64x128xf32> -> vector<64x128xf32>
    %c0_68 = arith.constant 0 : index
    %c0_69 = arith.constant 0 : index
    %256 = vector.load %arg17[%c0_68, %c0_69] : memref<1x128xf32, #tpu.memory_space<vmem>>, vector<1x128xf32>
    %257 = vector.broadcast %256 : vector<1x128xf32> to vector<64x128xf32>
    %258 = arith.addf %255, %257 : vector<64x128xf32>
    %cst_70 = arith.constant 0.000000e+00 : f32
    %259 = vector.broadcast %cst_70 : f32 to vector<64x128xf32>
    %260 = arith.maximumf %258, %259 : vector<64x128xf32>
    %261 = vector.shape_cast %260 : vector<64x128xf32> to vector<8x8x128xf32>
    %cst_71 = arith.constant 0.000000e+00 : f32
    %262 = vector.broadcast %cst_71 : f32 to vector<8x1x128xf32>
    %263 = vector.extract_strided_slice %261 {offsets = [0, 0, 0], sizes = [8, 7, 128], strides = [1, 1, 1]} : vector<8x8x128xf32> to vector<8x7x128xf32>
    %264 = tpu.concatenate %262, %263 in 1 : vector<8x1x128xf32>, vector<8x7x128xf32> -> vector<8x8x128xf32>
    %265 = vector.extract_strided_slice %261 {offsets = [0, 1, 0], sizes = [8, 7, 128], strides = [1, 1, 1]} : vector<8x8x128xf32> to vector<8x7x128xf32>
    %266 = tpu.concatenate %265, %262 in 1 : vector<8x7x128xf32>, vector<8x1x128xf32> -> vector<8x8x128xf32>
    %267 = arith.truncf %264 : vector<8x8x128xf32> to vector<8x8x128xbf16>
    %268 = arith.truncf %261 : vector<8x8x128xf32> to vector<8x8x128xbf16>
    %269 = arith.truncf %266 : vector<8x8x128xf32> to vector<8x8x128xbf16>
    %cst_72 = arith.constant 0.000000e+00 : bf16
    %270 = vector.broadcast %cst_72 : bf16 to vector<1x8x128xbf16>
    %271 = tpu.concatenate %270, %267, %270 in 0 : vector<1x8x128xbf16>, vector<8x8x128xbf16>, vector<1x8x128xbf16> -> vector<10x8x128xbf16>
    %272 = tpu.concatenate %270, %268, %270 in 0 : vector<1x8x128xbf16>, vector<8x8x128xbf16>, vector<1x8x128xbf16> -> vector<10x8x128xbf16>
    %273 = tpu.concatenate %270, %269, %270 in 0 : vector<1x8x128xbf16>, vector<8x8x128xbf16>, vector<1x8x128xbf16> -> vector<10x8x128xbf16>
    %274 = vector.extract_strided_slice %271 {offsets = [0, 0, 0], sizes = [8, 8, 128], strides = [1, 1, 1]} : vector<10x8x128xbf16> to vector<8x8x128xbf16>
    %275 = vector.extract_strided_slice %272 {offsets = [0, 0, 0], sizes = [8, 8, 128], strides = [1, 1, 1]} : vector<10x8x128xbf16> to vector<8x8x128xbf16>
    %276 = vector.extract_strided_slice %273 {offsets = [0, 0, 0], sizes = [8, 8, 128], strides = [1, 1, 1]} : vector<10x8x128xbf16> to vector<8x8x128xbf16>
    %277 = vector.extract_strided_slice %271 {offsets = [1, 0, 0], sizes = [8, 8, 128], strides = [1, 1, 1]} : vector<10x8x128xbf16> to vector<8x8x128xbf16>
    %278 = vector.extract_strided_slice %272 {offsets = [1, 0, 0], sizes = [8, 8, 128], strides = [1, 1, 1]} : vector<10x8x128xbf16> to vector<8x8x128xbf16>
    %279 = vector.extract_strided_slice %273 {offsets = [1, 0, 0], sizes = [8, 8, 128], strides = [1, 1, 1]} : vector<10x8x128xbf16> to vector<8x8x128xbf16>
    %280 = vector.extract_strided_slice %271 {offsets = [2, 0, 0], sizes = [8, 8, 128], strides = [1, 1, 1]} : vector<10x8x128xbf16> to vector<8x8x128xbf16>
    %281 = vector.extract_strided_slice %272 {offsets = [2, 0, 0], sizes = [8, 8, 128], strides = [1, 1, 1]} : vector<10x8x128xbf16> to vector<8x8x128xbf16>
    %282 = vector.extract_strided_slice %273 {offsets = [2, 0, 0], sizes = [8, 8, 128], strides = [1, 1, 1]} : vector<10x8x128xbf16> to vector<8x8x128xbf16>
    %283 = tpu.concatenate %274, %275, %276, %277, %278, %279, %280, %281, %282 in 2 : vector<8x8x128xbf16>, vector<8x8x128xbf16>, vector<8x8x128xbf16>, vector<8x8x128xbf16>, vector<8x8x128xbf16>, vector<8x8x128xbf16>, vector<8x8x128xbf16>, vector<8x8x128xbf16>, vector<8x8x128xbf16> -> vector<8x8x1152xbf16>
    %284 = vector.shape_cast %283 : vector<8x8x1152xbf16> to vector<64x1152xbf16>
    %c0_73 = arith.constant 0 : index
    %c0_74 = arith.constant 0 : index
    %285 = vector.load %arg18[%c0_73, %c0_74] : memref<1152x128xbf16, #tpu.memory_space<vmem>>, vector<1152x128xbf16>
    %cst_75 = arith.constant dense<0.000000e+00> : vector<64x128xf32>
    %286 = tpu.matmul %284, %285, %cst_75 {dimension_numbers = #tpu.dot_dimension_numbers<[1], [0], [0], [1], [0, 0, 1, 1], [], []>} : vector<64x1152xbf16>, vector<1152x128xbf16>, vector<64x128xf32> -> vector<64x128xf32>
    %c0_76 = arith.constant 0 : index
    %c0_77 = arith.constant 0 : index
    %287 = vector.load %arg19[%c0_76, %c0_77] : memref<1x128xf32, #tpu.memory_space<vmem>>, vector<1x128xf32>
    %288 = vector.broadcast %287 : vector<1x128xf32> to vector<64x128xf32>
    %289 = arith.addf %286, %288 : vector<64x128xf32>
    %290 = arith.addf %289, %229 : vector<64x128xf32>
    %cst_78 = arith.constant 0.000000e+00 : f32
    %291 = vector.broadcast %cst_78 : f32 to vector<64x128xf32>
    %292 = arith.maximumf %290, %291 : vector<64x128xf32>
    %293 = vector.shape_cast %292 : vector<64x128xf32> to vector<1x8x8x128xf32>
    %c0_79 = arith.constant 0 : index
    %c0_80 = arith.constant 0 : index
    %c0_81 = arith.constant 0 : index
    %c0_82 = arith.constant 0 : index
    %294 = vector.load %arg20[%c0_79, %c0_80, %c0_81, %c0_82] : memref<1x8x8x128xf32, #tpu.memory_space<vmem>>, vector<1x8x8x128xf32>
    tpu.vector_store %arg20[%c0_79, %c0_80, %c0_81, %c0_82], %293 {strides = array<i32>} : memref<1x8x8x128xf32, #tpu.memory_space<vmem>>, vector<1x8x8x128xf32>,
    return
  }
  func.func @transform_0(%arg0: i32) -> (i32, i32, i32) {
    %c0_i32 = arith.constant 0 : i32
    %c0_i32_0 = arith.constant 0 : i32
    %c0_i32_1 = arith.constant 0 : i32
    return %arg0, %c0_i32, %c0_i32_0 : i32, i32, i32
  }
  func.func @transform_1(%arg0: i32) -> (i32, i32) {
    %c0_i32 = arith.constant 0 : i32
    %c0_i32_0 = arith.constant 0 : i32
    %c0_i32_1 = arith.constant 0 : i32
    return %c0_i32, %c0_i32_0 : i32, i32
  }
  func.func @transform_2(%arg0: i32) -> (i32, i32) {
    %c0_i32 = arith.constant 0 : i32
    %c0_i32_0 = arith.constant 0 : i32
    %c0_i32_1 = arith.constant 0 : i32
    return %c0_i32, %c0_i32_0 : i32, i32
  }
  func.func @transform_3(%arg0: i32) -> (i32, i32) {
    %c0_i32 = arith.constant 0 : i32
    %c0_i32_0 = arith.constant 0 : i32
    %c0_i32_1 = arith.constant 0 : i32
    return %c0_i32, %c0_i32_0 : i32, i32
  }
  func.func @transform_4(%arg0: i32) -> (i32, i32) {
    %c0_i32 = arith.constant 0 : i32
    %c0_i32_0 = arith.constant 0 : i32
    %c0_i32_1 = arith.constant 0 : i32
    return %c0_i32, %c0_i32_0 : i32, i32
  }
  func.func @transform_5(%arg0: i32) -> (i32, i32) {
    %c0_i32 = arith.constant 0 : i32
    %c0_i32_0 = arith.constant 0 : i32
    %c0_i32_1 = arith.constant 0 : i32
    return %c0_i32, %c0_i32_0 : i32, i32
  }
  func.func @transform_6(%arg0: i32) -> (i32, i32) {
    %c0_i32 = arith.constant 0 : i32
    %c0_i32_0 = arith.constant 0 : i32
    %c0_i32_1 = arith.constant 0 : i32
    return %c0_i32, %c0_i32_0 : i32, i32
  }
  func.func @transform_7(%arg0: i32) -> (i32, i32) {
    %c0_i32 = arith.constant 0 : i32
    %c0_i32_0 = arith.constant 0 : i32
    %c0_i32_1 = arith.constant 0 : i32
    return %c0_i32, %c0_i32_0 : i32, i32
  }
  func.func @transform_8(%arg0: i32) -> (i32, i32) {
    %c0_i32 = arith.constant 0 : i32
    %c0_i32_0 = arith.constant 0 : i32
    %c0_i32_1 = arith.constant 0 : i32
    return %c0_i32, %c0_i32_0 : i32, i32
  }
  func.func @transform_9(%arg0: i32) -> (i32, i32) {
    %c0_i32 = arith.constant 0 : i32
    %c0_i32_0 = arith.constant 0 : i32
    %c0_i32_1 = arith.constant 0 : i32
    return %c0_i32, %c0_i32_0 : i32, i32
  }
  func.func @transform_10(%arg0: i32) -> (i32, i32) {
    %c0_i32 = arith.constant 0 : i32
    %c0_i32_0 = arith.constant 0 : i32
    %c0_i32_1 = arith.constant 0 : i32
    return %c0_i32, %c0_i32_0 : i32, i32
  }
  func.func @transform_11(%arg0: i32) -> (i32, i32) {
    %c0_i32 = arith.constant 0 : i32
    %c0_i32_0 = arith.constant 0 : i32
    %c0_i32_1 = arith.constant 0 : i32
    return %c0_i32, %c0_i32_0 : i32, i32
  }
  func.func @transform_12(%arg0: i32) -> (i32, i32) {
    %c0_i32 = arith.constant 0 : i32
    %c0_i32_0 = arith.constant 0 : i32
    %c0_i32_1 = arith.constant 0 : i32
    return %c0_i32, %c0_i32_0 : i32, i32
  }
  func.func @transform_13(%arg0: i32) -> (i32, i32) {
    %c0_i32 = arith.constant 0 : i32
    %c0_i32_0 = arith.constant 0 : i32
    %c0_i32_1 = arith.constant 0 : i32
    return %c0_i32, %c0_i32_0 : i32, i32
  }
  func.func @transform_14(%arg0: i32) -> (i32, i32) {
    %c0_i32 = arith.constant 0 : i32
    %c0_i32_0 = arith.constant 0 : i32
    %c0_i32_1 = arith.constant 0 : i32
    return %c0_i32, %c0_i32_0 : i32, i32
  }
  func.func @transform_15(%arg0: i32) -> (i32, i32) {
    %c0_i32 = arith.constant 0 : i32
    %c0_i32_0 = arith.constant 0 : i32
    %c0_i32_1 = arith.constant 0 : i32
    return %c0_i32, %c0_i32_0 : i32, i32
  }
  func.func @transform_16(%arg0: i32) -> (i32, i32) {
    %c0_i32 = arith.constant 0 : i32
    %c0_i32_0 = arith.constant 0 : i32
    %c0_i32_1 = arith.constant 0 : i32
    return %c0_i32, %c0_i32_0 : i32, i32
  }
  func.func @transform_17(%arg0: i32) -> (i32, i32) {
    %c0_i32 = arith.constant 0 : i32
    %c0_i32_0 = arith.constant 0 : i32
    %c0_i32_1 = arith.constant 0 : i32
    return %c0_i32, %c0_i32_0 : i32, i32
  }
  func.func @transform_18(%arg0: i32) -> (i32, i32) {
    %c0_i32 = arith.constant 0 : i32
    %c0_i32_0 = arith.constant 0 : i32
    %c0_i32_1 = arith.constant 0 : i32
    return %c0_i32, %c0_i32_0 : i32, i32
  }
  func.func @transform_19(%arg0: i32) -> (i32, i32, i32, i32) {
    %c0_i32 = arith.constant 0 : i32
    %c0_i32_0 = arith.constant 0 : i32
    %c0_i32_1 = arith.constant 0 : i32
    %c0_i32_2 = arith.constant 0 : i32
    return %arg0, %c0_i32, %c0_i32_0, %c0_i32_1 : i32, i32, i32, i32
  }
}

</mosaic_0001>

<llo_original>
// kernel: _lambda_.1
$region0: #{_lambda_.1}
  #allocation0 [shape = 'u32[]', space=smem, size = 0x4, offset = 0x4, fixed_abs, tag = 'smem constant byte address 0x4 - core index']
  #allocation1 [shape = 'u32[72,128]{1,0:T(1,128)}', space=vmem, size = 0x9000, scoped, tag = 'internal scratch']
  #allocation2 [shape = 'f32[16,16,64]{2,1,0:T(8,128)}', space=vmem, size = 0x20000, scoped, tag = 'scratch operand']
  %s0 = inlined_call_operand.vmem [shape: bf16[2,256,27], index: 0, kind: input, shape index: {}]
  %s1 = inlined_call_operand.vmem [shape: bf16[27,64], index: 1, kind: input, shape index: {}]
  %s2 = inlined_call_operand.vmem [shape: f32[1,64], index: 2, kind: input, shape index: {}]
  %s3 = inlined_call_operand.hbm [shape: bf16[576,64], index: 3, kind: input, shape index: {}]
  %s4 = inlined_call_operand.vmem [shape: f32[1,64], index: 4, kind: input, shape index: {}]
  %s5 = inlined_call_operand.hbm [shape: bf16[576,64], index: 5, kind: input, shape index: {}]
  %s6 = inlined_call_operand.vmem [shape: f32[1,64], index: 6, kind: input, shape index: {}]
  %s7 = inlined_call_operand.hbm [shape: bf16[576,64], index: 7, kind: input, shape index: {}]
  %s8 = inlined_call_operand.vmem [shape: f32[1,64], index: 8, kind: input, shape index: {}]
  %s9 = inlined_call_operand.hbm [shape: bf16[576,64], index: 9, kind: input, shape index: {}]
  %s10 = inlined_call_operand.vmem [shape: f32[1,64], index: 10, kind: input, shape index: {}]
  %s11 = inlined_call_operand.vmem [shape: bf16[576,128], index: 11, kind: input, shape index: {}]
  %s12 = inlined_call_operand.vmem [shape: f32[1,128], index: 12, kind: input, shape index: {}]
  %s13 = inlined_call_operand.vmem [shape: bf16[1216,128], index: 13, kind: input, shape index: {}]
  %s14 = inlined_call_operand.vmem [shape: f32[1,128], index: 14, kind: input, shape index: {}]
  %s15 = inlined_call_operand.hbm [shape: bf16[1152,128], index: 15, kind: input, shape index: {}]
  %s16 = inlined_call_operand.vmem [shape: f32[1,128], index: 16, kind: input, shape index: {}]
  %s17 = inlined_call_operand.vmem [shape: bf16[1152,128], index: 17, kind: input, shape index: {}]
  %s18 = inlined_call_operand.vmem [shape: f32[1,128], index: 18, kind: input, shape index: {}]
  %s19 = inlined_call_operand.hbm [shape: f32[2,8,8,128], index: 19, kind: output, shape index: {}]
  %s20 = sld [smem:[#allocation0]]
  $region129: #{_lambda_.1} parent=0
    _
  %s22 = ssub.s32 1, %s20
  %s23 = scalar_select 0, %s22, %s20
  $region1: #{_lambda_.1} parent=0
    #allocation3 [shape = 'u8[147456]{0}', space=vmem, size = 0x24000, scoped, tag = 'input window, operand 3, single buffered']
    #allocation4 [shape = 's32[2]{0}', space=sflag, size = 0x8, scoped, tag = 'scoped memory for _lambda_.1']
    #allocation5 [shape = 's32[2]{0}', space=sflag, size = 0x8, scoped, tag = 'scoped memory for _lambda_.1']
    #allocation6 [shape = 'u8[147456]{0}', space=vmem, size = 0x24000, scoped, tag = 'input window, operand 5, single buffered']
    #allocation7 [shape = 's32[1]{0}', space=sflag, size = 0x4, scoped, tag = 'scoped memory for _lambda_.1']
    #allocation8 [shape = 'u8[147456]{0}', space=vmem, size = 0x24000, scoped, tag = 'input window, operand 7, single buffered']
    #allocation9 [shape = 'u8[147456]{0}', space=vmem, size = 0x24000, scoped, tag = 'input window, operand 9, single buffered']
    #allocation10 [shape = 's32[1]{0}', space=sflag, size = 0x4, scoped, tag = 'scoped memory for _lambda_.1']
    #allocation11 [shape = 'u8[294912]{0}', space=vmem, size = 0x48000, scoped, tag = 'input window, operand 15, single buffered']
    #allocation12 [shape = 'u8[65536]{0}', space=vmem, size = 0x10000, scoped, tag = 'output window, operand 0']
    %24 = vsyncpa [#allocation4], 0
    %25 = vsyncpa [#allocation7], 0
    %26 = vsyncpa [#allocation10], 0
    %27 = vsyncpa [#allocation5], 0
    %s28 = scalar_lea.sflag [#allocation5], 1
    %29 = vsyncpa %s28, 0
    loop: start=0, step=1, limit=4
    $region2: #{_lambda_.1} parent=1 // loop_pre_header
      _
    $region3: #{_lambda_.1} parent=1 // loop_header
      %s31 = sphi 0, %s35
      %p32 = scmp.ge.s32.totalorder %s31, 4
      %s41 = sphi 0, %s43
      %s44 = sphi 0, %s41
      %s45 = sphi 0, %s44
      %s61 = sphi 0, %s45
      %s65 = sphi 0, %s65
      %s67 = sphi 0, %s65
      %s68 = sphi 0, %s67
      %s82 = sphi 0, %s68
      %s86 = sphi 0, %s86
      %s88 = sphi 0, %s86
      %s89 = sphi 0, %s88
      %s103 = sphi 0, %s89
      %s107 = sphi 0, %s107
      %s109 = sphi 0, %s107
      %s110 = sphi 0, %s109
      %s124 = sphi 0, %s110
      %s128 = sphi 0, %s128
      %s130 = sphi 0, %s128
      %s131 = sphi 0, %s130
      %s145 = sphi 0, %s131
      %s149 = sphi 0, %s149
      %s151 = sphi 0, %s149
      %s152 = sphi 0, %s151
      %s166 = sphi 0, %s152
      %s170 = sphi 0, %s170
      %s172 = sphi 0, %s170
      %s173 = sphi 0, %s172
      %s187 = sphi 0, %s173
      %s191 = sphi 0, %s191
      %s193 = sphi 0, %s191
      %s194 = sphi 0, %s193
      %s208 = sphi 0, %s194
      %s212 = sphi 0, %s212
      %s214 = sphi 0, %s212
      %s215 = sphi 0, %s214
      %s229 = sphi 0, %s215
      %s233 = sphi 0, %s233
      %s235 = sphi 0, %s233
      %s236 = sphi 0, %s235
      %s250 = sphi 0, %s236
      %s254 = sphi 0, %s254
      %s256 = sphi 0, %s254
      %s257 = sphi 0, %s256
      %s271 = sphi 0, %s257
      %s275 = sphi 0, %s275
      %s277 = sphi 0, %s275
      %s278 = sphi 0, %s277
      %s292 = sphi 0, %s278
      %s296 = sphi 0, %s296
      %s298 = sphi 0, %s296
      %s299 = sphi 0, %s298
      %s313 = sphi 0, %s299
      %s317 = sphi 0, %s317
      %s319 = sphi 0, %s317
      %s320 = sphi 0, %s319
      %s334 = sphi 0, %s320
      %s338 = sphi 0, %s338
      %s340 = sphi 0, %s338
      %s341 = sphi 0, %s340
      %s355 = sphi 0, %s341
      %s359 = sphi 0, %s359
      %s361 = sphi 0, %s359
      %s362 = sphi 0, %s361
      %s376 = sphi 0, %s362
      %s380 = sphi 0, %s380
      %s382 = sphi 0, %s380
      %s383 = sphi 0, %s382
      %s397 = sphi 0, %s383
      %s401 = sphi 0, %s401
      %s403 = sphi 0, %s401
      %s404 = sphi 0, %s403
      %s418 = sphi 0, %s404
      %s422 = sphi 0, %s422
      %s424 = sphi 0, %s422
      %s425 = sphi 0, %s424
      %s439 = sphi 0, %s425
      %s445 = sphi 0, %s447
      %s448 = sphi 0, %s445
      %s449 = sphi 0, %s448
      %s465 = sphi 0, %s449
    $region4: #{_lambda_.1} parent=1 // loop_header_branch
      %34 = sbr.rel (%p32) target = $region8
    $region5: #{_lambda_.1} parent=1 // loop_body
      %s36 = ssub.s32 %s31, 1
      %s37 = ssub.s32 %s31, 2
      %s38 = sadd.s32 %s31, 1
      %s39 = ssub.s32 %s31, %s38
      %p40 = scmp.eq.s32.totalorder %s39, 0
      %s42 = sadd.s32 %s41, 1
      %s43 = scalar_select %p40, %s41, %s42
      %p46 = pneg %p40
      %p47 = scmp.eq.s32.totalorder %s31, 1
      %p48 = por %p46, %p47
      %p49 = scmp.ne.s32.totalorder %s41, %s44
      %p50 = scmp.eq.s32.totalorder %s31, 0
      %p51 = por %p49, %p50
      %p52 = scmp.ne.s32.totalorder %s41, %s44
      %p53 = scmp.eq.s32.totalorder %s36, 1
      %p54 = por %p52, %p53
      %p55 = scmp.ne.s32.totalorder %s44, %s45
      %p56 = scmp.eq.s32.totalorder %s36, 0
      %p57 = por %p55, %p56
      %p58 = scmp.ne.s32.totalorder %s44, %s45
      %p59 = scmp.eq.s32.totalorder %s37, 1
      %p60 = por %p58, %p59
      %p62 = scmp.ne.s32.totalorder %s45, %s61
      %p63 = scmp.eq.s32.totalorder %s37, 0
      %p64 = por %p62, %p63
      %s66 = sadd.s32 %s65, 1
      %p69 = scmp.eq.s32.totalorder %s31, 1
      %p70 = scmp.ne.s32.totalorder %s65, %s67
      %p71 = scmp.eq.s32.totalorder %s31, 0
      %p72 = por %p70, %p71
      %p73 = scmp.ne.s32.totalorder %s65, %s67
      %p74 = scmp.eq.s32.totalorder %s36, 1
      %p75 = por %p73, %p74
      %p76 = scmp.ne.s32.totalorder %s67, %s68
      %p77 = scmp.eq.s32.totalorder %s36, 0
      %p78 = por %p76, %p77
      %p79 = scmp.ne.s32.totalorder %s67, %s68
      %p80 = scmp.eq.s32.totalorder %s37, 1
      %p81 = por %p79, %p80
      %p83 = scmp.ne.s32.totalorder %s68, %s82
      %p84 = scmp.eq.s32.totalorder %s37, 0
      %p85 = por %p83, %p84
      %s87 = sadd.s32 %s86, 1
      %p90 = scmp.eq.s32.totalorder %s31, 1
      %p91 = scmp.ne.s32.totalorder %s86, %s88
      %p92 = scmp.eq.s32.totalorder %s31, 0
      %p93 = por %p91, %p92
      %p94 = scmp.ne.s32.totalorder %s86, %s88
      %p95 = scmp.eq.s32.totalorder %s36, 1
      %p96 = por %p94, %p95
      %p97 = scmp.ne.s32.totalorder %s88, %s89
      %p98 = scmp.eq.s32.totalorder %s36, 0
      %p99 = por %p97, %p98
      %p100 = scmp.ne.s32.totalorder %s88, %s89
      %p101 = scmp.eq.s32.totalorder %s37, 1
      %p102 = por %p100, %p101
      %p104 = scmp.ne.s32.totalorder %s89, %s103
      %p105 = scmp.eq.s32.totalorder %s37, 0
      %p106 = por %p104, %p105
      %s108 = sadd.s32 %s107, 1
      %p111 = scmp.eq.s32.totalorder %s31, 1
      %p112 = scmp.ne.s32.totalorder %s107, %s109
      %p113 = scmp.eq.s32.totalorder %s31, 0
      %p114 = por %p112, %p113
      %p115 = scmp.ne.s32.totalorder %s107, %s109
      %p116 = scmp.eq.s32.totalorder %s36, 1
      %p117 = por %p115, %p116
      %p118 = scmp.ne.s32.totalorder %s109, %s110
      %p119 = scmp.eq.s32.totalorder %s36, 0
      %p120 = por %p118, %p119
      %p121 = scmp.ne.s32.totalorder %s109, %s110
      %p122 = scmp.eq.s32.totalorder %s37, 1
      %p123 = por %p121, %p122
      %p125 = scmp.ne.s32.totalorder %s110, %s124
      %p126 = scmp.eq.s32.totalorder %s37, 0
      %p127 = por %p125, %p126
      %s129 = sadd.s32 %s128, 1
      %p132 = scmp.eq.s32.totalorder %s31, 1
      %p133 = scmp.ne.s32.totalorder %s128, %s130
      %p134 = scmp.eq.s32.totalorder %s31, 0
      %p135 = por %p133, %p134
      %p136 = scmp.ne.s32.totalorder %s128, %s130
      %p137 = scmp.eq.s32.totalorder %s36, 1
      %p138 = por %p136, %p137
      %p139 = scmp.ne.s32.totalorder %s130, %s131
      %p140 = scmp.eq.s32.totalorder %s36, 0
      %p141 = por %p139, %p140
      %p142 = scmp.ne.s32.totalorder %s130, %s131
      %p143 = scmp.eq.s32.totalorder %s37, 1
      %p144 = por %p142, %p143
      %p146 = scmp.ne.s32.totalorder %s131, %s145
      %p147 = scmp.eq.s32.totalorder %s37, 0
      %p148 = por %p146, %p147
      %s150 = sadd.s32 %s149, 1
      %p153 = scmp.eq.s32.totalorder %s31, 1
      %p154 = scmp.ne.s32.totalorder %s149, %s151
      %p155 = scmp.eq.s32.totalorder %s31, 0
      %p156 = por %p154, %p155
      %p157 = scmp.ne.s32.totalorder %s149, %s151
      %p158 = scmp.eq.s32.totalorder %s36, 1
      %p159 = por %p157, %p158
      %p160 = scmp.ne.s32.totalorder %s151, %s152
      %p161 = scmp.eq.s32.totalorder %s36, 0
      %p162 = por %p160, %p161
      %p163 = scmp.ne.s32.totalorder %s151, %s152
      %p164 = scmp.eq.s32.totalorder %s37, 1
      %p165 = por %p163, %p164
      %p167 = scmp.ne.s32.totalorder %s152, %s166
      %p168 = scmp.eq.s32.totalorder %s37, 0
      %p169 = por %p167, %p168
      %s171 = sadd.s32 %s170, 1
      %p174 = scmp.eq.s32.totalorder %s31, 1
      %p175 = scmp.ne.s32.totalorder %s170, %s172
      %p176 = scmp.eq.s32.totalorder %s31, 0
      %p177 = por %p175, %p176
      %p178 = scmp.ne.s32.totalorder %s170, %s172
      %p179 = scmp.eq.s32.totalorder %s36, 1
      %p180 = por %p178, %p179
      %p181 = scmp.ne.s32.totalorder %s172, %s173
      %p182 = scmp.eq.s32.totalorder %s36, 0
      %p183 = por %p181, %p182
      %p184 = scmp.ne.s32.totalorder %s172, %s173
      %p185 = scmp.eq.s32.totalorder %s37, 1
      %p186 = por %p184, %p185
      %p188 = scmp.ne.s32.totalorder %s173, %s187
      %p189 = scmp.eq.s32.totalorder %s37, 0
      %p190 = por %p188, %p189
      %s192 = sadd.s32 %s191, 1
      %p195 = scmp.eq.s32.totalorder %s31, 1
      %p196 = scmp.ne.s32.totalorder %s191, %s193
      %p197 = scmp.eq.s32.totalorder %s31, 0
      %p198 = por %p196, %p197
      %p199 = scmp.ne.s32.totalorder %s191, %s193
      %p200 = scmp.eq.s32.totalorder %s36, 1
      %p201 = por %p199, %p200
      %p202 = scmp.ne.s32.totalorder %s193, %s194
      %p203 = scmp.eq.s32.totalorder %s36, 0
      %p204 = por %p202, %p203
      %p205 = scmp.ne.s32.totalorder %s193, %s194
      %p206 = scmp.eq.s32.totalorder %s37, 1
      %p207 = por %p205, %p206
      %p209 = scmp.ne.s32.totalorder %s194, %s208
      %p210 = scmp.eq.s32.totalorder %s37, 0
      %p211 = por %p209, %p210
      %s213 = sadd.s32 %s212, 1
      %p216 = scmp.eq.s32.totalorder %s31, 1
      %p217 = scmp.ne.s32.totalorder %s212, %s214
      %p218 = scmp.eq.s32.totalorder %s31, 0
      %p219 = por %p217, %p218
      %p220 = scmp.ne.s32.totalorder %s212, %s214
      %p221 = scmp.eq.s32.totalorder %s36, 1
      %p222 = por %p220, %p221
      %p223 = scmp.ne.s32.totalorder %s214, %s215
      %p224 = scmp.eq.s32.totalorder %s36, 0
      %p225 = por %p223, %p224
      %p226 = scmp.ne.s32.totalorder %s214, %s215
      %p227 = scmp.eq.s32.totalorder %s37, 1
      %p228 = por %p226, %p227
      %p230 = scmp.ne.s32.totalorder %s215, %s229
      %p231 = scmp.eq.s32.totalorder %s37, 0
      %p232 = por %p230, %p231
      %s234 = sadd.s32 %s233, 1
      %p237 = scmp.eq.s32.totalorder %s31, 1
      %p238 = scmp.ne.s32.totalorder %s233, %s235
      %p239 = scmp.eq.s32.totalorder %s31, 0
      %p240 = por %p238, %p239
      %p241 = scmp.ne.s32.totalorder %s233, %s235
      %p242 = scmp.eq.s32.totalorder %s36, 1
      %p243 = por %p241, %p242
      %p244 = scmp.ne.s32.totalorder %s235, %s236
      %p245 = scmp.eq.s32.totalorder %s36, 0
      %p246 = por %p244, %p245
      %p247 = scmp.ne.s32.totalorder %s235, %s236
      %p248 = scmp.eq.s32.totalorder %s37, 1
      %p249 = por %p247, %p248
      %p251 = scmp.ne.s32.totalorder %s236, %s250
      %p252 = scmp.eq.s32.totalorder %s37, 0
      %p253 = por %p251, %p252
      %s255 = sadd.s32 %s254, 1
      %p258 = scmp.eq.s32.totalorder %s31, 1
      %p259 = scmp.ne.s32.totalorder %s254, %s256
      %p260 = scmp.eq.s32.totalorder %s31, 0
      %p261 = por %p259, %p260
      %p262 = scmp.ne.s32.totalorder %s254, %s256
      %p263 = scmp.eq.s32.totalorder %s36, 1
      %p264 = por %p262, %p263
      %p265 = scmp.ne.s32.totalorder %s256, %s257
      %p266 = scmp.eq.s32.totalorder %s36, 0
      %p267 = por %p265, %p266
      %p268 = scmp.ne.s32.totalorder %s256, %s257
      %p269 = scmp.eq.s32.totalorder %s37, 1
      %p270 = por %p268, %p269
      %p272 = scmp.ne.s32.totalorder %s257, %s271
      %p273 = scmp.eq.s32.totalorder %s37, 0
      %p274 = por %p272, %p273
      %s276 = sadd.s32 %s275, 1
      %p279 = scmp.eq.s32.totalorder %s31, 1
      %p280 = scmp.ne.s32.totalorder %s275, %s277
      %p281 = scmp.eq.s32.totalorder %s31, 0
      %p282 = por %p280, %p281
      %p283 = scmp.ne.s32.totalorder %s275, %s277
      %p284 = scmp.eq.s32.totalorder %s36, 1
      %p285 = por %p283, %p284
      %p286 = scmp.ne.s32.totalorder %s277, %s278
      %p287 = scmp.eq.s32.totalorder %s36, 0
      %p288 = por %p286, %p287
      %p289 = scmp.ne.s32.totalorder %s277, %s278
      %p290 = scmp.eq.s32.totalorder %s37, 1
      %p291 = por %p289, %p290
      %p293 = scmp.ne.s32.totalorder %s278, %s292
      %p294 = scmp.eq.s32.totalorder %s37, 0
      %p295 = por %p293, %p294
      %s297 = sadd.s32 %s296, 1
      %p300 = scmp.eq.s32.totalorder %s31, 1
      %p301 = scmp.ne.s32.totalorder %s296, %s298
      %p302 = scmp.eq.s32.totalorder %s31, 0
      %p303 = por %p301, %p302
      %p304 = scmp.ne.s32.totalorder %s296, %s298
      %p305 = scmp.eq.s32.totalorder %s36, 1
      %p306 = por %p304, %p305
      %p307 = scmp.ne.s32.totalorder %s298, %s299
      %p308 = scmp.eq.s32.totalorder %s36, 0
      %p309 = por %p307, %p308
      %p310 = scmp.ne.s32.totalorder %s298, %s299
      %p311 = scmp.eq.s32.totalorder %s37, 1
      %p312 = por %p310, %p311
      %p314 = scmp.ne.s32.totalorder %s299, %s313
      %p315 = scmp.eq.s32.totalorder %s37, 0
      %p316 = por %p314, %p315
      %s318 = sadd.s32 %s317, 1
      %p321 = scmp.eq.s32.totalorder %s31, 1
      %p322 = scmp.ne.s32.totalorder %s317, %s319
      %p323 = scmp.eq.s32.totalorder %s31, 0
      %p324 = por %p322, %p323
      %p325 = scmp.ne.s32.totalorder %s317, %s319
      %p326 = scmp.eq.s32.totalorder %s36, 1
      %p327 = por %p325, %p326
      %p328 = scmp.ne.s32.totalorder %s319, %s320
      %p329 = scmp.eq.s32.totalorder %s36, 0
      %p330 = por %p328, %p329
      %p331 = scmp.ne.s32.totalorder %s319, %s320
      %p332 = scmp.eq.s32.totalorder %s37, 1
      %p333 = por %p331, %p332
      %p335 = scmp.ne.s32.totalorder %s320, %s334
      %p336 = scmp.eq.s32.totalorder %s37, 0
      %p337 = por %p335, %p336
      %s339 = sadd.s32 %s338, 1
      %p342 = scmp.eq.s32.totalorder %s31, 1
      %p343 = scmp.ne.s32.totalorder %s338, %s340
      %p344 = scmp.eq.s32.totalorder %s31, 0
      %p345 = por %p343, %p344
      %p346 = scmp.ne.s32.totalorder %s338, %s340
      %p347 = scmp.eq.s32.totalorder %s36, 1
      %p348 = por %p346, %p347
      %p349 = scmp.ne.s32.totalorder %s340, %s341
      %p350 = scmp.eq.s32.totalorder %s36, 0
      %p351 = por %p349, %p350
      %p352 = scmp.ne.s32.totalorder %s340, %s341
      %p353 = scmp.eq.s32.totalorder %s37, 1
      %p354 = por %p352, %p353
      %p356 = scmp.ne.s32.totalorder %s341, %s355
      %p357 = scmp.eq.s32.totalorder %s37, 0
      %p358 = por %p356, %p357
      %s360 = sadd.s32 %s359, 1
      %p363 = scmp.eq.s32.totalorder %s31, 1
      %p364 = scmp.ne.s32.totalorder %s359, %s361
      %p365 = scmp.eq.s32.totalorder %s31, 0
      %p366 = por %p364, %p365
      %p367 = scmp.ne.s32.totalorder %s359, %s361
      %p368 = scmp.eq.s32.totalorder %s36, 1
      %p369 = por %p367, %p368
      %p370 = scmp.ne.s32.totalorder %s361, %s362
      %p371 = scmp.eq.s32.totalorder %s36, 0
      %p372 = por %p370, %p371
      %p373 = scmp.ne.s32.totalorder %s361, %s362
      %p374 = scmp.eq.s32.totalorder %s37, 1
      %p375 = por %p373, %p374
      %p377 = scmp.ne.s32.totalorder %s362, %s376
      %p378 = scmp.eq.s32.totalorder %s37, 0
      %p379 = por %p377, %p378
      %s381 = sadd.s32 %s380, 1
      %p384 = scmp.eq.s32.totalorder %s31, 1
      %p385 = scmp.ne.s32.totalorder %s380, %s382
      %p386 = scmp.eq.s32.totalorder %s31, 0
      %p387 = por %p385, %p386
      %p388 = scmp.ne.s32.totalorder %s380, %s382
      %p389 = scmp.eq.s32.totalorder %s36, 1
      %p390 = por %p388, %p389
      %p391 = scmp.ne.s32.totalorder %s382, %s383
      %p392 = scmp.eq.s32.totalorder %s36, 0
      %p393 = por %p391, %p392
      %p394 = scmp.ne.s32.totalorder %s382, %s383
      %p395 = scmp.eq.s32.totalorder %s37, 1
      %p396 = por %p394, %p395
      %p398 = scmp.ne.s32.totalorder %s383, %s397
      %p399 = scmp.eq.s32.totalorder %s37, 0
      %p400 = por %p398, %p399
      %s402 = sadd.s32 %s401, 1
      %p405 = scmp.eq.s32.totalorder %s31, 1
      %p406 = scmp.ne.s32.totalorder %s401, %s403
      %p407 = scmp.eq.s32.totalorder %s31, 0
      %p408 = por %p406, %p407
      %p409 = scmp.ne.s32.totalorder %s401, %s403
      %p410 = scmp.eq.s32.totalorder %s36, 1
      %p411 = por %p409, %p410
      %p412 = scmp.ne.s32.totalorder %s403, %s404
      %p413 = scmp.eq.s32.totalorder %s36, 0
      %p414 = por %p412, %p413
      %p415 = scmp.ne.s32.totalorder %s403, %s404
      %p416 = scmp.eq.s32.totalorder %s37, 1
      %p417 = por %p415, %p416
      %p419 = scmp.ne.s32.totalorder %s404, %s418
      %p420 = scmp.eq.s32.totalorder %s37, 0
      %p421 = por %p419, %p420
      %s423 = sadd.s32 %s422, 1
      %p426 = scmp.eq.s32.totalorder %s31, 1
      %p427 = scmp.ne.s32.totalorder %s422, %s424
      %p428 = scmp.eq.s32.totalorder %s31, 0
      %p429 = por %p427, %p428
      %p430 = scmp.ne.s32.totalorder %s422, %s424
      %p431 = scmp.eq.s32.totalorder %s36, 1
      %p432 = por %p430, %p431
      %p433 = scmp.ne.s32.totalorder %s424, %s425
      %p434 = scmp.eq.s32.totalorder %s36, 0
      %p435 = por %p433, %p434
      %p436 = scmp.ne.s32.totalorder %s424, %s425
      %p437 = scmp.eq.s32.totalorder %s37, 1
      %p438 = por %p436, %p437
      %p440 = scmp.ne.s32.totalorder %s425, %s439
      %p441 = scmp.eq.s32.totalorder %s37, 0
      %p442 = por %p440, %p441
      %s443 = ssub.s32 %s31, %s38
      %p444 = scmp.eq.s32.totalorder %s443, 0
      %s446 = sadd.s32 %s445, 1
      %s447 = scalar_select %p444, %s445, %s446
      %p450 = pneg %p444
      %p451 = scmp.eq.s32.totalorder %s31, 1
      %p452 = por %p450, %p451
      %p453 = scmp.ne.s32.totalorder %s445, %s448
      %p454 = scmp.eq.s32.totalorder %s31, 0
      %p455 = por %p453, %p454
      %p456 = scmp.ne.s32.totalorder %s445, %s448
      %p457 = scmp.eq.s32.totalorder %s36, 1
      %p458 = por %p456, %p457
      %p459 = scmp.ne.s32.totalorder %s448, %s449
      %p460 = scmp.eq.s32.totalorder %s36, 0
      %p461 = por %p459, %p460
      %p462 = scmp.ne.s32.totalorder %s448, %s449
      %p463 = scmp.eq.s32.totalorder %s37, 1
      %p464 = por %p462, %p463
      %p466 = scmp.ne.s32.totalorder %s449, %s465
      %p467 = scmp.eq.s32.totalorder %s37, 0
      %p468 = por %p466, %p467
      %p469 = scmp.le.s32.totalorder 1, %s31
      %p470 = scmp.lt.s32.totalorder %s31, 3
      %p471 = pnand %p469, %p470
      %p472 = pneg %p471
      // Predicated region
      $region9: #{_lambda_.1} parent=5 // pred_check
        _
      $region10: #{_lambda_.1} parent=5 // pred_check_branch
        %474 = sbr.rel (%p471) target = $region12
      $region11: #{_lambda_.1} parent=5 // pred_region
        %s475 = ssub.s32 %s31, 1
        // Predicated region
        $region13: #{_lambda_.1} parent=11 // pred_check
          %p476 = pneg %p78
        $region14: #{_lambda_.1} parent=11 // pred_check_branch
          %478 = sbr.rel (%p476) target = $region16
        $region15: #{_lambda_.1} parent=11 // pred_region
          _
        $region16: #{_lambda_.1} parent=11 // pred_fallthru
          _
        // Predicated region
        $region17: #{_lambda_.1} parent=11 // pred_check
          %p479 = pneg %p99
        $region18: #{_lambda_.1} parent=11 // pred_check_branch
          %481 = sbr.rel (%p479) target = $region20
        $region19: #{_lambda_.1} parent=11 // pred_region
          _
        $region20: #{_lambda_.1} parent=11 // pred_fallthru
          _
        // Predicated region
        $region21: #{_lambda_.1} parent=11 // pred_check
          %p482 = pneg %p120
        $region22: #{_lambda_.1} parent=11 // pred_check_branch
          %484 = sbr.rel (%p482) target = $region24
        $region23: #{_lambda_.1} parent=11 // pred_region
          %486 = vsyncadd [#allocation4], 0
          %s487 = sshll.u32 %s3, 4
          %s488 = int_to_ptr.hbm [resolvable:$true] %s487
          %s489 = sshll.u32 [#allocation3], 4
          %s490 = int_to_ptr.vmem [resolvable:$true] %s489
          %495 = dma.hbm_to_vmem [thread:$0]  %s488, 4608, %s490, [#allocation4], 64, 64, 4
        $region24: #{_lambda_.1} parent=11 // pred_fallthru
          _
        // Predicated region
        $region25: #{_lambda_.1} parent=11 // pred_check
          %p496 = pneg %p141
        $region26: #{_lambda_.1} parent=11 // pred_check_branch
          %498 = sbr.rel (%p496) target = $region28
        $region27: #{_lambda_.1} parent=11 // pred_region
          _
        $region28: #{_lambda_.1} parent=11 // pred_fallthru
          _
        // Predicated region
        $region29: #{_lambda_.1} parent=11 // pred_check
          %p499 = pneg %p162
        $region30: #{_lambda_.1} parent=11 // pred_check_branch
          %501 = sbr.rel (%p499) target = $region32
        $region31: #{_lambda_.1} parent=11 // pred_region
          %503 = vsyncadd [#allocation7], 0
          %s504 = sshll.u32 %s5, 4
          %s505 = int_to_ptr.hbm [resolvable:$true] %s504
          %s506 = sshll.u32 [#allocation6], 4
          %s507 = int_to_ptr.vmem [resolvable:$true] %s506
          %512 = dma.hbm_to_vmem [thread:$0]  %s505, 4608, %s507, [#allocation7], 64, 64, 4
        $region32: #{_lambda_.1} parent=11 // pred_fallthru
          _
        // Predicated region
        $region33: #{_lambda_.1} parent=11 // pred_check
          %p513 = pneg %p183
        $region34: #{_lambda_.1} parent=11 // pred_check_branch
          %515 = sbr.rel (%p513) target = $region36
        $region35: #{_lambda_.1} parent=11 // pred_region
          _
        $region36: #{_lambda_.1} parent=11 // pred_fallthru
          _
        // Predicated region
        $region37: #{_lambda_.1} parent=11 // pred_check
          %p516 = pneg %p204
        $region38: #{_lambda_.1} parent=11 // pred_check_branch
          %518 = sbr.rel (%p516) target = $region40
        $region39: #{_lambda_.1} parent=11 // pred_region
          %520 = vsyncadd [#allocation7], 0
          %s521 = sshll.u32 %s7, 4
          %s522 = int_to_ptr.hbm [resolvable:$true] %s521
          %s523 = sshll.u32 [#allocation8], 4
          %s524 = int_to_ptr.vmem [resolvable:$true] %s523
          %529 = dma.hbm_to_vmem [thread:$0]  %s522, 4608, %s524, [#allocation7], 64, 64, 4
        $region40: #{_lambda_.1} parent=11 // pred_fallthru
          _
        // Predicated region
        $region41: #{_lambda_.1} parent=11 // pred_check
          %p530 = pneg %p225
        $region42: #{_lambda_.1} parent=11 // pred_check_branch
          %532 = sbr.rel (%p530) target = $region44
        $region43: #{_lambda_.1} parent=11 // pred_region
          _
        $region44: #{_lambda_.1} parent=11 // pred_fallthru
          _
        // Predicated region
        $region45: #{_lambda_.1} parent=11 // pred_check
          %p533 = pneg %p246
        $region46: #{_lambda_.1} parent=11 // pred_check_branch
          %535 = sbr.rel (%p533) target = $region48
        $region47: #{_lambda_.1} parent=11 // pred_region
          %537 = vsyncadd [#allocation10], 0
          %s538 = sshll.u32 %s9, 4
          %s539 = int_to_ptr.hbm [resolvable:$true] %s538
          %s540 = sshll.u32 [#allocation9], 4
          %s541 = int_to_ptr.vmem [resolvable:$true] %s540
          %546 = dma.hbm_to_vmem [thread:$0]  %s539, 4608, %s541, [#allocation10], 64, 64, 4
        $region48: #{_lambda_.1} parent=11 // pred_fallthru
          _
        // Predicated region
        $region49: #{_lambda_.1} parent=11 // pred_check
          %p547 = pneg %p267
        $region50: #{_lambda_.1} parent=11 // pred_check_branch
          %549 = sbr.rel (%p547) target = $region52
        $region51: #{_lambda_.1} parent=11 // pred_region
          _
        $region52: #{_lambda_.1} parent=11 // pred_fallthru
          _
        // Predicated region
        $region53: #{_lambda_.1} parent=11 // pred_check
          %p550 = pneg %p288
        $region54: #{_lambda_.1} parent=11 // pred_check_branch
          %552 = sbr.rel (%p550) target = $region56
        $region55: #{_lambda_.1} parent=11 // pred_region
          _
        $region56: #{_lambda_.1} parent=11 // pred_fallthru
          _
        // Predicated region
        $region57: #{_lambda_.1} parent=11 // pred_check
          %p553 = pneg %p309
        $region58: #{_lambda_.1} parent=11 // pred_check_branch
          %555 = sbr.rel (%p553) target = $region60
        $region59: #{_lambda_.1} parent=11 // pred_region
          _
        $region60: #{_lambda_.1} parent=11 // pred_fallthru
          _
        // Predicated region
        $region61: #{_lambda_.1} parent=11 // pred_check
          %p556 = pneg %p330
        $region62: #{_lambda_.1} parent=11 // pred_check_branch
          %558 = sbr.rel (%p556) target = $region64
        $region63: #{_lambda_.1} parent=11 // pred_region
          _
        $region64: #{_lambda_.1} parent=11 // pred_fallthru
          _
        // Predicated region
        $region65: #{_lambda_.1} parent=11 // pred_check
          %p559 = pneg %p351
        $region66: #{_lambda_.1} parent=11 // pred_check_branch
          %561 = sbr.rel (%p559) target = $region68
        $region67: #{_lambda_.1} parent=11 // pred_region
          _
        $region68: #{_lambda_.1} parent=11 // pred_fallthru
          _
        // Predicated region
        $region69: #{_lambda_.1} parent=11 // pred_check
          %p562 = pneg %p372
        $region70: #{_lambda_.1} parent=11 // pred_check_branch
          %564 = sbr.rel (%p562) target = $region72
        $region71: #{_lambda_.1} parent=11 // pred_region
          %566 = vsyncadd [#allocation10], 0
          %s567 = sshll.u32 %s15, 4
          %s568 = int_to_ptr.hbm [resolvable:$true] %s567
          %s569 = sshll.u32 [#allocation11], 4
          %s570 = int_to_ptr.vmem [resolvable:$true] %s569
          %575 = dma.hbm_to_vmem [thread:$0]  %s568, 9216, %s570, [#allocation10], 64, 64, 4
        $region72: #{_lambda_.1} parent=11 // pred_fallthru
          _
        // Predicated region
        $region73: #{_lambda_.1} parent=11 // pred_check
          %p576 = pneg %p393
        $region74: #{_lambda_.1} parent=11 // pred_check_branch
          %578 = sbr.rel (%p576) target = $region76
        $region75: #{_lambda_.1} parent=11 // pred_region
          _
        $region76: #{_lambda_.1} parent=11 // pred_fallthru
          _
        // Predicated region
        $region77: #{_lambda_.1} parent=11 // pred_check
          %p579 = pneg %p414
        $region78: #{_lambda_.1} parent=11 // pred_check_branch
          %581 = sbr.rel (%p579) target = $region80
        $region79: #{_lambda_.1} parent=11 // pred_region
          _
        $region80: #{_lambda_.1} parent=11 // pred_fallthru
          _
        // Predicated region
        $region81: #{_lambda_.1} parent=11 // pred_check
          %p582 = pneg %p435
        $region82: #{_lambda_.1} parent=11 // pred_check_branch
          %584 = sbr.rel (%p582) target = $region84
        $region83: #{_lambda_.1} parent=11 // pred_region
          _
        $region84: #{_lambda_.1} parent=11 // pred_fallthru
          _
      $region12: #{_lambda_.1} parent=5 // pred_fallthru
        _
      %p585 = scmp.lt.s32.totalorder %s31, 2
      // Predicated region
      $region85: #{_lambda_.1} parent=5 // pred_check
        %p586 = pneg %p585
      $region86: #{_lambda_.1} parent=5 // pred_check_branch
        %588 = sbr.rel (%p586) target = $region88
      $region87: #{_lambda_.1} parent=5 // pred_region
        // Predicated region
        $region89: #{_lambda_.1} parent=87 // pred_check
          %p589 = pneg %p51
        $region90: #{_lambda_.1} parent=87 // pred_check_branch
          %591 = sbr.rel (%p589) target = $region92
        $region91: #{_lambda_.1} parent=87 // pred_region
          %p592 = scmp.lt.s32.totalorder %s31, 1
          %s593 = scalar_select %p592, %s31, 1
          %s594 = smul.addr %s593, 32
          %s595 = smul.addr %s594, 4
          %s596 = scalar_lea.vmem %s0, %s595
        $region92: #{_lambda_.1} parent=87 // pred_fallthru
          _
      $region88: #{_lambda_.1} parent=5 // pred_fallthru
        _
      %p597 = scmp.le.s32.totalorder 1, %s31
      %p598 = scmp.lt.s32.totalorder %s31, 3
      %p599 = pnand %p597, %p598
      %p600 = pneg %p599
      // Predicated region
      $region93: #{_lambda_.1} parent=5 // pred_check
        _
      $region94: #{_lambda_.1} parent=5 // pred_check_branch
        %602 = sbr.rel (%p599) target = $region96
      $region95: #{_lambda_.1} parent=5 // pred_region
        %s603 = ssub.s32 %s31, 1
        // Predicated region
        $region97: #{_lambda_.1} parent=95 // pred_check
          %p604 = pneg %p120
        $region98: #{_lambda_.1} parent=95 // pred_check_branch
          %606 = sbr.rel (%p604) target = $region100
        $region99: #{_lambda_.1} parent=95 // pred_region
          %608 = dma.done [#allocation4], 4608
        $region100: #{_lambda_.1} parent=95 // pred_fallthru
          _
        // Predicated region
        $region101: #{_lambda_.1} parent=95 // pred_check
          %p609 = pneg %p162
        $region102: #{_lambda_.1} parent=95 // pred_check_branch
          %611 = sbr.rel (%p609) target = $region104
        $region103: #{_lambda_.1} parent=95 // pred_region
          %613 = dma.done [#allocation7], 4608
        $region104: #{_lambda_.1} parent=95 // pred_fallthru
          _
        // Predicated region
        $region105: #{_lambda_.1} parent=95 // pred_check
          %p614 = pneg %p204
        $region106: #{_lambda_.1} parent=95 // pred_check_branch
          %616 = sbr.rel (%p614) target = $region108
        $region107: #{_lambda_.1} parent=95 // pred_region
          %618 = dma.done [#allocation7], 4608
        $region108: #{_lambda_.1} parent=95 // pred_fallthru
          _
        // Predicated region
        $region109: #{_lambda_.1} parent=95 // pred_check
          %p619 = pneg %p246
        $region110: #{_lambda_.1} parent=95 // pred_check_branch
          %621 = sbr.rel (%p619) target = $region112
        $region111: #{_lambda_.1} parent=95 // pred_region
          %623 = dma.done [#allocation10], 4608
        $region112: #{_lambda_.1} parent=95 // pred_fallthru
          _
        // Predicated region
        $region113: #{_lambda_.1} parent=95 // pred_check
          %p624 = pneg %p372
        $region114: #{_lambda_.1} parent=95 // pred_check_branch
          %626 = sbr.rel (%p624) target = $region116
        $region115: #{_lambda_.1} parent=95 // pred_region
          %628 = dma.done [#allocation10], 9216
        $region116: #{_lambda_.1} parent=95 // pred_fallthru
          _
        %p629 = scmp.lt.s32.totalorder %s36, 1
        %s630 = scalar_select %p629, %s36, 1
        %s631 = smul.addr %s630, 32
        %s632 = smul.addr %s631, 4
        %s633 = scalar_lea.vmem %s0, %s632
        %p634 = pneg %p57
        %p635 = pneg %p54
        %p636 = pneg %p78
        %p637 = pneg %p75
        %p638 = pneg %p99
        %p639 = pneg %p96
        %p640 = pneg %p120
        %p641 = pneg %p117
        %p642 = pneg %p141
        %p643 = pneg %p138
        %p644 = pneg %p162
        %p645 = pneg %p159
        %p646 = pneg %p183
        %p647 = pneg %p180
        %p648 = pneg %p204
        %p649 = pneg %p201
        %p650 = pneg %p225
        %p651 = pneg %p222
        %p652 = pneg %p246
        %p653 = pneg %p243
        %p654 = pneg %p267
        %p655 = pneg %p264
        %p656 = pneg %p288
        %p657 = pneg %p285
        %p658 = pneg %p309
        %p659 = pneg %p306
        %p660 = pneg %p330
        %p661 = pneg %p327
        %p662 = pneg %p351
        %p663 = pneg %p348
        %p664 = pneg %p372
        %p665 = pneg %p369
        %p666 = pneg %p393
        %p667 = pneg %p390
        %p668 = pneg %p414
        %p669 = pneg %p411
        %p670 = pneg %p435
        %p671 = pneg %p432
        %p672 = pneg %p461
        %p673 = pneg %p458
        %s674 = sand.u32 %s448, 1
        %s675 = scalar_lea.sflag [#allocation5], %s674
        %s676 = sand.u32 %s448, 1
        %s677 = smul.addr %s676, 64
        %s678 = scalar_lea.vmem [#allocation12], %s677
        %p679 = scmp.lt.s32.totalorder %s36, 1
        %s680 = scalar_select %p679, %s36, 1
        %s681 = smul.addr %s680, 32
        %s682 = smul.addr %s681, 4
        %s683 = scalar_lea.vmem %s0, %s682
        %v685 = vld [vmem:[%s683] sm:$0xf]
        %v686 = vld [vmem:[%s683 + $0x4] sm:$0xf]
        %v687 = vld [vmem:[%s683 + $0x8] sm:$0xf]
        %v688 = vld [vmem:[%s683 + $0xc] sm:$0xf]
        %v689 = vld [vmem:[%s683 + $0x10] sm:$0xf]
        %v690 = vld [vmem:[%s683 + $0x14] sm:$0xf]
        %v691 = vld [vmem:[%s683 + $0x18] sm:$0xf]
        %v692 = vld [vmem:[%s683 + $0x1c] sm:$0xf]
        %v693 = vld [vmem:[%s683 + $0x20] sm:$0xf]
        %v694 = vld [vmem:[%s683 + $0x24] sm:$0xf]
        %v695 = vld [vmem:[%s683 + $0x28] sm:$0xf]
        %v696 = vld [vmem:[%s683 + $0x2c] sm:$0xf]
        %v697 = vld [vmem:[%s683 + $0x30] sm:$0xf]
        %v698 = vld [vmem:[%s683 + $0x34] sm:$0xf]
        %v699 = vld [vmem:[%s683 + $0x38] sm:$0xf]
        %v700 = vld [vmem:[%s683 + $0x3c] sm:$0xf]
        %v701 = vld [vmem:[%s683 + $0x40] sm:$0xf]
        %v702 = vld [vmem:[%s683 + $0x44] sm:$0xf]
        %v703 = vld [vmem:[%s683 + $0x48] sm:$0xf]
        %v704 = vld [vmem:[%s683 + $0x4c] sm:$0xf]
        %v705 = vld [vmem:[%s683 + $0x50] sm:$0xf]
        %v706 = vld [vmem:[%s683 + $0x54] sm:$0xf]
        %v707 = vld [vmem:[%s683 + $0x58] sm:$0xf]
        %v708 = vld [vmem:[%s683 + $0x5c] sm:$0xf]
        %v709 = vld [vmem:[%s683 + $0x60] sm:$0xf]
        %v710 = vld [vmem:[%s683 + $0x64] sm:$0xf]
        %v711 = vld [vmem:[%s683 + $0x68] sm:$0xf]
        %v712 = vld [vmem:[%s683 + $0x6c] sm:$0xf]
        %v713 = vld [vmem:[%s683 + $0x70] sm:$0xf]
        %v714 = vld [vmem:[%s683 + $0x74] sm:$0xf]
        %v715 = vld [vmem:[%s683 + $0x78] sm:$0xf]
        %v716 = vld [vmem:[%s683 + $0x7c] sm:$0xf]
        %v717 = vld [vmem:[%s1] sm:$0xf]
        %v718 = vld [vmem:[%s1 + $0x4] sm:$0xf]
        %v719 = vld [vmem:[%s1 + $0x8] sm:$0xf]
        %v720 = vld [vmem:[%s1 + $0xc] sm:$0x3]
        %v721 = vld [vmem:[%s2] sm:$0x1]
        %v723 = vperm.slane %v721, 0
        %v757 = vunpack.c.l.b16 %v685
        %v758 = vunpack.c.l.b16 %v686
        %v759 = vunpack.c.l.b16 %v687
        %v760 = vunpack.c.l.b16 %v688
        %v761 = vunpack.c.l.b16 %v689
        %v762 = vunpack.c.l.b16 %v690
        %v763 = vunpack.c.l.b16 %v691
        %v764 = vunpack.c.l.b16 %v692
        %v765 = vunpack.c.l.b16 %v693
        %v766 = vunpack.c.l.b16 %v694
        %v767 = vunpack.c.l.b16 %v695
        %v768 = vunpack.c.l.b16 %v696
        %v769 = vunpack.c.l.b16 %v697
        %v770 = vunpack.c.l.b16 %v698
        %v771 = vunpack.c.l.b16 %v699
        %v772 = vunpack.c.l.b16 %v700
        %v773 = vunpack.c.l.b16 %v701
        %v774 = vunpack.c.l.b16 %v702
        %v775 = vunpack.c.l.b16 %v703
        %v776 = vunpack.c.l.b16 %v704
        %v777 = vunpack.c.l.b16 %v705
        %v778 = vunpack.c.l.b16 %v706
        %v779 = vunpack.c.l.b16 %v707
        %v780 = vunpack.c.l.b16 %v708
        %v781 = vunpack.c.l.b16 %v709
        %v782 = vunpack.c.l.b16 %v710
        %v783 = vunpack.c.l.b16 %v711
        %v784 = vunpack.c.l.b16 %v712
        %v785 = vunpack.c.l.b16 %v713
        %v786 = vunpack.c.l.b16 %v714
        %v787 = vunpack.c.l.b16 %v715
        %v788 = vunpack.c.l.b16 %v716
        %v789 = vpack.c.b16 %v758, %v757
        %v790 = vpack.c.b16 %v760, %v759
        %v791 = vpack.c.b16 %v762, %v761
        %v792 = vpack.c.b16 %v764, %v763
        %v793 = vpack.c.b16 %v766, %v765
        %v794 = vpack.c.b16 %v768, %v767
        %v795 = vpack.c.b16 %v770, %v769
        %v796 = vpack.c.b16 %v772, %v771
        %v797 = vpack.c.b16 %v774, %v773
        %v798 = vpack.c.b16 %v776, %v775
        %v799 = vpack.c.b16 %v778, %v777
        %v800 = vpack.c.b16 %v780, %v779
        %v801 = vpack.c.b16 %v782, %v781
        %v802 = vpack.c.b16 %v784, %v783
        %v803 = vpack.c.b16 %v786, %v785
        %v804 = vpack.c.b16 %v788, %v787
        %v809 = vunpack.c.l.b16 %v717
        %v810 = vunpack.c.l.b16 %v718
        %v811 = vunpack.c.l.b16 %v719
        %v812 = vunpack.c.l.b16 %v720
        %v813 = vpack.c.b16 %v810, %v809
        %v814 = vpack.c.b16 %v812, %v811
        %vm816 = vcmask 220160
        %v818 = vsel %vm816, %v789, 0
        %v821 = vsel %vm816, %v790, 0
        %v824 = vsel %vm816, %v791, 0
        %v827 = vsel %vm816, %v792, 0
        %v830 = vsel %vm816, %v793, 0
        %v833 = vsel %vm816, %v794, 0
        %v836 = vsel %vm816, %v795, 0
        %v839 = vsel %vm816, %v796, 0
        %v842 = vsel %vm816, %v797, 0
        %v845 = vsel %vm816, %v798, 0
        %v848 = vsel %vm816, %v799, 0
        %v851 = vsel %vm816, %v800, 0
        %v854 = vsel %vm816, %v801, 0
        %v857 = vsel %vm816, %v802, 0
        %v860 = vsel %vm816, %v803, 0
        %v863 = vsel %vm816, %v804, 0
        %vm865 = vcmask 1044480
        %vm866 = vcmask 1045504
        %v867 = vsel %vm865, 4294967295, 65535
        %v868 = vsel %vm866, %v867, 0
        %v870 = vand.u32 %v814, %v868
        %872 = vmatpush.bf16.msra.mxu0 0
        %873 = vmatpush.bf16.msra.mxu0 0
        %874 = vmatpush.bf16.msra.mxu0 0
        %875 = vmatpush.bf16.msra.mxu0 0
        %876 = vmatpush.bf16.msra.mxu0 0
        %877 = vmatpush.bf16.msra.mxu0 0
        %878 = vmatpush.bf16.msra.mxu0 %v870
        %879 = vmatpush.bf16.msra.mxu0 %v813
        %880 = vmatmul.bf16.gmra.mxu0 %v818
        %v881 = vpop.f32.mrf.mxu0
        %v882 = vadd.f32 %v723, %v881
        %v883 = vpop.f32.mrf.mxu0
        %v884 = vadd.f32 %v723, %v883
        %885 = vmatmul.bf16.gmra.mxu0 %v821
        %v886 = vpop.f32.mrf.mxu0
        %v887 = vadd.f32 %v723, %v886
        %v888 = vpop.f32.mrf.mxu0
        %v889 = vadd.f32 %v723, %v888
        %890 = vmatmul.bf16.gmra.mxu0 %v824
        %v891 = vpop.f32.mrf.mxu0
        %v892 = vadd.f32 %v723, %v891
        %v893 = vpop.f32.mrf.mxu0
        %v894 = vadd.f32 %v723, %v893
        %895 = vmatmul.bf16.gmra.mxu0 %v827
        %v896 = vpop.f32.mrf.mxu0
        %v897 = vadd.f32 %v723, %v896
        %v898 = vpop.f32.mrf.mxu0
        %v899 = vadd.f32 %v723, %v898
        %900 = vmatmul.bf16.gmra.mxu0 %v830
        %v901 = vpop.f32.mrf.mxu0
        %v902 = vadd.f32 %v723, %v901
        %v903 = vpop.f32.mrf.mxu0
        %v904 = vadd.f32 %v723, %v903
        %905 = vmatmul.bf16.gmra.mxu0 %v833
        %v906 = vpop.f32.mrf.mxu0
        %v907 = vadd.f32 %v723, %v906
        %v908 = vpop.f32.mrf.mxu0
        %v909 = vadd.f32 %v723, %v908
        %910 = vmatmul.bf16.gmra.mxu0 %v836
        %v911 = vpop.f32.mrf.mxu0
        %v912 = vadd.f32 %v723, %v911
        %v913 = vpop.f32.mrf.mxu0
        %v914 = vadd.f32 %v723, %v913
        %915 = vmatmul.bf16.gmra.mxu0 %v839
        %v916 = vpop.f32.mrf.mxu0
        %v917 = vadd.f32 %v723, %v916
        %v918 = vpop.f32.mrf.mxu0
        %v919 = vadd.f32 %v723, %v918
        %920 = vmatmul.bf16.gmra.mxu0 %v842
        %v921 = vpop.f32.mrf.mxu0
        %v922 = vadd.f32 %v723, %v921
        %v923 = vpop.f32.mrf.mxu0
        %v924 = vadd.f32 %v723, %v923
        %925 = vmatmul.bf16.gmra.mxu0 %v845
        %v926 = vpop.f32.mrf.mxu0
        %v927 = vadd.f32 %v723, %v926
        %v928 = vpop.f32.mrf.mxu0
        %v929 = vadd.f32 %v723, %v928
        %930 = vmatmul.bf16.gmra.mxu0 %v848
        %v931 = vpop.f32.mrf.mxu0
        %v932 = vadd.f32 %v723, %v931
        %v933 = vpop.f32.mrf.mxu0
        %v934 = vadd.f32 %v723, %v933
        %935 = vmatmul.bf16.gmra.mxu0 %v851
        %v936 = vpop.f32.mrf.mxu0
        %v937 = vadd.f32 %v723, %v936
        %v938 = vpop.f32.mrf.mxu0
        %v939 = vadd.f32 %v723, %v938
        %940 = vmatmul.bf16.gmra.mxu0 %v854
        %v941 = vpop.f32.mrf.mxu0
        %v942 = vadd.f32 %v723, %v941
        %v943 = vpop.f32.mrf.mxu0
        %v944 = vadd.f32 %v723, %v943
        %945 = vmatmul.bf16.gmra.mxu0 %v857
        %v946 = vpop.f32.mrf.mxu0
        %v947 = vadd.f32 %v723, %v946
        %v948 = vpop.f32.mrf.mxu0
        %v949 = vadd.f32 %v723, %v948
        %950 = vmatmul.bf16.gmra.mxu0 %v860
        %v951 = vpop.f32.mrf.mxu0
        %v952 = vadd.f32 %v723, %v951
        %v953 = vpop.f32.mrf.mxu0
        %v954 = vadd.f32 %v723, %v953
        %955 = vmatmul.bf16.gmra.mxu0 %v863
        %v956 = vpop.f32.mrf.mxu0
        %v957 = vadd.f32 %v723, %v956
        %v958 = vpop.f32.mrf.mxu0
        %v959 = vadd.f32 %v723, %v958
        %960 = vdwg.mxu0
        %v961 = vmax.f32 %v882, 0.0
        %v962 = vmax.f32 %v884, 0.0
        %v963 = vmax.f32 %v887, 0.0
        %v964 = vmax.f32 %v889, 0.0
        %v965 = vmax.f32 %v892, 0.0
        %v966 = vmax.f32 %v894, 0.0
        %v967 = vmax.f32 %v897, 0.0
        %v968 = vmax.f32 %v899, 0.0
        %v969 = vmax.f32 %v902, 0.0
        %v970 = vmax.f32 %v904, 0.0
        %v971 = vmax.f32 %v907, 0.0
        %v972 = vmax.f32 %v909, 0.0
        %v973 = vmax.f32 %v912, 0.0
        %v974 = vmax.f32 %v914, 0.0
        %v975 = vmax.f32 %v917, 0.0
        %v976 = vmax.f32 %v919, 0.0
        %v977 = vmax.f32 %v922, 0.0
        %v978 = vmax.f32 %v924, 0.0
        %v979 = vmax.f32 %v927, 0.0
        %v980 = vmax.f32 %v929, 0.0
        %v981 = vmax.f32 %v932, 0.0
        %v982 = vmax.f32 %v934, 0.0
        %v983 = vmax.f32 %v937, 0.0
        %v984 = vmax.f32 %v939, 0.0
        %v985 = vmax.f32 %v942, 0.0
        %v986 = vmax.f32 %v944, 0.0
        %v987 = vmax.f32 %v947, 0.0
        %v988 = vmax.f32 %v949, 0.0
        %v989 = vmax.f32 %v952, 0.0
        %v990 = vmax.f32 %v954, 0.0
        %v991 = vmax.f32 %v957, 0.0
        %v992 = vmax.f32 %v959, 0.0
        %vm1025 = vcmask 1040384
        %v1026 = vrot.slane %v961, 7
        %v1027 = vrot.slane %v962, 7
        %v1028 = vsel %vm1025, %v1026, %v1027
        %v1029 = vrot.slane %v963, 7
        %v1030 = vrot.slane %v964, 7
        %v1031 = vsel %vm1025, %v1029, %v1030
        %v1032 = vrot.slane %v965, 7
        %v1033 = vrot.slane %v966, 7
        %v1034 = vsel %vm1025, %v1032, %v1033
        %v1035 = vrot.slane %v967, 7
        %v1036 = vrot.slane %v968, 7
        %v1037 = vsel %vm1025, %v1035, %v1036
        %v1038 = vrot.slane %v969, 7
        %v1039 = vrot.slane %v970, 7
        %v1040 = vsel %vm1025, %v1038, %v1039
        %v1041 = vrot.slane %v971, 7
        %v1042 = vrot.slane %v972, 7
        %v1043 = vsel %vm1025, %v1041, %v1042
        %v1044 = vrot.slane %v973, 7
        %v1045 = vrot.slane %v974, 7
        %v1046 = vsel %vm1025, %v1044, %v1045
        %v1047 = vrot.slane %v975, 7
        %v1048 = vrot.slane %v976, 7
        %v1049 = vsel %vm1025, %v1047, %v1048
        %v1050 = vrot.slane %v977, 7
        %v1051 = vrot.slane %v978, 7
        %v1052 = vsel %vm1025, %v1050, %v1051
        %v1053 = vrot.slane %v979, 7
        %v1054 = vrot.slane %v980, 7
        %v1055 = vsel %vm1025, %v1053, %v1054
        %v1056 = vrot.slane %v981, 7
        %v1057 = vrot.slane %v982, 7
        %v1058 = vsel %vm1025, %v1056, %v1057
        %v1059 = vrot.slane %v983, 7
        %v1060 = vrot.slane %v984, 7
        %v1061 = vsel %vm1025, %v1059, %v1060
        %v1062 = vrot.slane %v985, 7
        %v1063 = vrot.slane %v986, 7
        %v1064 = vsel %vm1025, %v1062, %v1063
        %v1065 = vrot.slane %v987, 7
        %v1066 = vrot.slane %v988, 7
        %v1067 = vsel %vm1025, %v1065, %v1066
        %v1068 = vrot.slane %v989, 7
        %v1069 = vrot.slane %v990, 7
        %v1070 = vsel %vm1025, %v1068, %v1069
        %v1071 = vrot.slane %v991, 7
        %v1072 = vrot.slane %v992, 7
        %v1073 = vsel %vm1025, %v1071, %v1072
        %v1106 = vsel %vm1025, 0.0, %v1026
        %v1107 = vsel %vm1025, 0.0, %v1029
        %v1108 = vsel %vm1025, 0.0, %v1032
        %v1109 = vsel %vm1025, 0.0, %v1035
        %v1110 = vsel %vm1025, 0.0, %v1038
        %v1111 = vsel %vm1025, 0.0, %v1041
        %v1112 = vsel %vm1025, 0.0, %v1044
        %v1113 = vsel %vm1025, 0.0, %v1047
        %v1114 = vsel %vm1025, 0.0, %v1050
        %v1115 = vsel %vm1025, 0.0, %v1053
        %v1116 = vsel %vm1025, 0.0, %v1056
        %v1117 = vsel %vm1025, 0.0, %v1059
        %v1118 = vsel %vm1025, 0.0, %v1062
        %v1119 = vsel %vm1025, 0.0, %v1065
        %v1120 = vsel %vm1025, 0.0, %v1068
        %v1121 = vsel %vm1025, 0.0, %v1071
        %vm1122 = vcmask 1046528
        %v1123 = vrot.slane %v961, 1
        %v1124 = vrot.slane %v962, 1
        %v1125 = vsel %vm1122, %v1123, %v1124
        %v1126 = vrot.slane %v963, 1
        %v1127 = vrot.slane %v964, 1
        %v1128 = vsel %vm1122, %v1126, %v1127
        %v1129 = vrot.slane %v965, 1
        %v1130 = vrot.slane %v966, 1
        %v1131 = vsel %vm1122, %v1129, %v1130
        %v1132 = vrot.slane %v967, 1
        %v1133 = vrot.slane %v968, 1
        %v1134 = vsel %vm1122, %v1132, %v1133
        %v1135 = vrot.slane %v969, 1
        %v1136 = vrot.slane %v970, 1
        %v1137 = vsel %vm1122, %v1135, %v1136
        %v1138 = vrot.slane %v971, 1
        %v1139 = vrot.slane %v972, 1
        %v1140 = vsel %vm1122, %v1138, %v1139
        %v1141 = vrot.slane %v973, 1
        %v1142 = vrot.slane %v974, 1
        %v1143 = vsel %vm1122, %v1141, %v1142
        %v1144 = vrot.slane %v975, 1
        %v1145 = vrot.slane %v976, 1
        %v1146 = vsel %vm1122, %v1144, %v1145
        %v1147 = vrot.slane %v977, 1
        %v1148 = vrot.slane %v978, 1
        %v1149 = vsel %vm1122, %v1147, %v1148
        %v1150 = vrot.slane %v979, 1
        %v1151 = vrot.slane %v980, 1
        %v1152 = vsel %vm1122, %v1150, %v1151
        %v1153 = vrot.slane %v981, 1
        %v1154 = vrot.slane %v982, 1
        %v1155 = vsel %vm1122, %v1153, %v1154
        %v1156 = vrot.slane %v983, 1
        %v1157 = vrot.slane %v984, 1
        %v1158 = vsel %vm1122, %v1156, %v1157
        %v1159 = vrot.slane %v985, 1
        %v1160 = vrot.slane %v986, 1
        %v1161 = vsel %vm1122, %v1159, %v1160
        %v1162 = vrot.slane %v987, 1
        %v1163 = vrot.slane %v988, 1
        %v1164 = vsel %vm1122, %v1162, %v1163
        %v1165 = vrot.slane %v989, 1
        %v1166 = vrot.slane %v990, 1
        %v1167 = vsel %vm1122, %v1165, %v1166
        %v1168 = vrot.slane %v991, 1
        %v1169 = vrot.slane %v992, 1
        %v1170 = vsel %vm1122, %v1168, %v1169
        %v1203 = vsel %vm1122, %v1124, 0.0
        %v1204 = vsel %vm1122, %v1127, 0.0
        %v1205 = vsel %vm1122, %v1130, 0.0
        %v1206 = vsel %vm1122, %v1133, 0.0
        %v1207 = vsel %vm1122, %v1136, 0.0
        %v1208 = vsel %vm1122, %v1139, 0.0
        %v1209 = vsel %vm1122, %v1142, 0.0
        %v1210 = vsel %vm1122, %v1145, 0.0
        %v1211 = vsel %vm1122, %v1148, 0.0
        %v1212 = vsel %vm1122, %v1151, 0.0
        %v1213 = vsel %vm1122, %v1154, 0.0
        %v1214 = vsel %vm1122, %v1157, 0.0
        %v1215 = vsel %vm1122, %v1160, 0.0
        %v1216 = vsel %vm1122, %v1163, 0.0
        %v1217 = vsel %vm1122, %v1166, 0.0
        %v1218 = vsel %vm1122, %v1169, 0.0
        %v1219 = vpack.c.bf16 %v1106, %v1106
        %v1220 = vpack.c.bf16 %v1028, %v1028
        %v1221 = vpack.c.bf16 %v1107, %v1107
        %v1222 = vpack.c.bf16 %v1031, %v1031
        %v1223 = vpack.c.bf16 %v1108, %v1108
        %v1224 = vpack.c.bf16 %v1034, %v1034
        %v1225 = vpack.c.bf16 %v1109, %v1109
        %v1226 = vpack.c.bf16 %v1037, %v1037
        %v1227 = vpack.c.bf16 %v1110, %v1110
        %v1228 = vpack.c.bf16 %v1040, %v1040
        %v1229 = vpack.c.bf16 %v1111, %v1111
        %v1230 = vpack.c.bf16 %v1043, %v1043
        %v1231 = vpack.c.bf16 %v1112, %v1112
        %v1232 = vpack.c.bf16 %v1046, %v1046
        %v1233 = vpack.c.bf16 %v1113, %v1113
        %v1234 = vpack.c.bf16 %v1049, %v1049
        %v1235 = vpack.c.bf16 %v1114, %v1114
        %v1236 = vpack.c.bf16 %v1052, %v1052
        %v1237 = vpack.c.bf16 %v1115, %v1115
        %v1238 = vpack.c.bf16 %v1055, %v1055
        %v1239 = vpack.c.bf16 %v1116, %v1116
        %v1240 = vpack.c.bf16 %v1058, %v1058
        %v1241 = vpack.c.bf16 %v1117, %v1117
        %v1242 = vpack.c.bf16 %v1061, %v1061
        %v1243 = vpack.c.bf16 %v1118, %v1118
        %v1244 = vpack.c.bf16 %v1064, %v1064
        %v1245 = vpack.c.bf16 %v1119, %v1119
        %v1246 = vpack.c.bf16 %v1067, %v1067
        %v1247 = vpack.c.bf16 %v1120, %v1120
        %v1248 = vpack.c.bf16 %v1070, %v1070
        %v1249 = vpack.c.bf16 %v1121, %v1121
        %v1250 = vpack.c.bf16 %v1073, %v1073
        %v1251 = vpack.c.bf16 %v961, %v961
        %v1252 = vpack.c.bf16 %v962, %v962
        %v1253 = vpack.c.bf16 %v963, %v963
        %v1254 = vpack.c.bf16 %v964, %v964
        %v1255 = vpack.c.bf16 %v965, %v965
        %v1256 = vpack.c.bf16 %v966, %v966
        %v1257 = vpack.c.bf16 %v967, %v967
        %v1258 = vpack.c.bf16 %v968, %v968
        %v1259 = vpack.c.bf16 %v969, %v969
        %v1260 = vpack.c.bf16 %v970, %v970
        %v1261 = vpack.c.bf16 %v971, %v971
        %v1262 = vpack.c.bf16 %v972, %v972
        %v1263 = vpack.c.bf16 %v973, %v973
        %v1264 = vpack.c.bf16 %v974, %v974
        %v1265 = vpack.c.bf16 %v975, %v975
        %v1266 = vpack.c.bf16 %v976, %v976
        %v1267 = vpack.c.bf16 %v977, %v977
        %v1268 = vpack.c.bf16 %v978, %v978
        %v1269 = vpack.c.bf16 %v979, %v979
        %v1270 = vpack.c.bf16 %v980, %v980
        %v1271 = vpack.c.bf16 %v981, %v981
        %v1272 = vpack.c.bf16 %v982, %v982
        %v1273 = vpack.c.bf16 %v983, %v983
        %v1274 = vpack.c.bf16 %v984, %v984
        %v1275 = vpack.c.bf16 %v985, %v985
        %v1276 = vpack.c.bf16 %v986, %v986
        %v1277 = vpack.c.bf16 %v987, %v987
        %v1278 = vpack.c.bf16 %v988, %v988
        %v1279 = vpack.c.bf16 %v989, %v989
        %v1280 = vpack.c.bf16 %v990, %v990
        %v1281 = vpack.c.bf16 %v991, %v991
        %v1282 = vpack.c.bf16 %v992, %v992
        %v1283 = vpack.c.bf16 %v1125, %v1125
        %v1284 = vpack.c.bf16 %v1203, %v1203
        %v1285 = vpack.c.bf16 %v1128, %v1128
        %v1286 = vpack.c.bf16 %v1204, %v1204
        %v1287 = vpack.c.bf16 %v1131, %v1131
        %v1288 = vpack.c.bf16 %v1205, %v1205
        %v1289 = vpack.c.bf16 %v1134, %v1134
        %v1290 = vpack.c.bf16 %v1206, %v1206
        %v1291 = vpack.c.bf16 %v1137, %v1137
        %v1292 = vpack.c.bf16 %v1207, %v1207
        %v1293 = vpack.c.bf16 %v1140, %v1140
        %v1294 = vpack.c.bf16 %v1208, %v1208
        %v1295 = vpack.c.bf16 %v1143, %v1143
        %v1296 = vpack.c.bf16 %v1209, %v1209
        %v1297 = vpack.c.bf16 %v1146, %v1146
        %v1298 = vpack.c.bf16 %v1210, %v1210
        %v1299 = vpack.c.bf16 %v1149, %v1149
        %v1300 = vpack.c.bf16 %v1211, %v1211
        %v1301 = vpack.c.bf16 %v1152, %v1152
        %v1302 = vpack.c.bf16 %v1212, %v1212
        %v1303 = vpack.c.bf16 %v1155, %v1155
        %v1304 = vpack.c.bf16 %v1213, %v1213
        %v1305 = vpack.c.bf16 %v1158, %v1158
        %v1306 = vpack.c.bf16 %v1214, %v1214
        %v1307 = vpack.c.bf16 %v1161, %v1161
        %v1308 = vpack.c.bf16 %v1215, %v1215
        %v1309 = vpack.c.bf16 %v1164, %v1164
        %v1310 = vpack.c.bf16 %v1216, %v1216
        %v1311 = vpack.c.bf16 %v1167, %v1167
        %v1312 = vpack.c.bf16 %v1217, %v1217
        %v1313 = vpack.c.bf16 %v1170, %v1170
        %v1314 = vpack.c.bf16 %v1218, %v1218
        %v1347 = vunpack.c.l.b16 %v1219
        %v1348 = vunpack.c.l.b16 %v1220
        %v1349 = vunpack.c.l.b16 %v1221
        %v1350 = vunpack.c.l.b16 %v1222
        %v1351 = vunpack.c.l.b16 %v1223
        %v1352 = vunpack.c.l.b16 %v1224
        %v1353 = vunpack.c.l.b16 %v1225
        %v1354 = vunpack.c.l.b16 %v1226
        %v1355 = vunpack.c.l.b16 %v1227
        %v1356 = vunpack.c.l.b16 %v1228
        %v1357 = vunpack.c.l.b16 %v1229
        %v1358 = vunpack.c.l.b16 %v1230
        %v1359 = vunpack.c.l.b16 %v1231
        %v1360 = vunpack.c.l.b16 %v1232
        %v1361 = vunpack.c.l.b16 %v1233
        %v1362 = vunpack.c.l.b16 %v1234
        %v1363 = vunpack.c.l.b16 %v1235
        %v1364 = vunpack.c.l.b16 %v1236
        %v1365 = vunpack.c.l.b16 %v1237
        %v1366 = vunpack.c.l.b16 %v1238
        %v1367 = vunpack.c.l.b16 %v1239
        %v1368 = vunpack.c.l.b16 %v1240
        %v1369 = vunpack.c.l.b16 %v1241
        %v1370 = vunpack.c.l.b16 %v1242
        %v1371 = vunpack.c.l.b16 %v1243
        %v1372 = vunpack.c.l.b16 %v1244
        %v1373 = vunpack.c.l.b16 %v1245
        %v1374 = vunpack.c.l.b16 %v1246
        %v1375 = vunpack.c.l.b16 %v1247
        %v1376 = vunpack.c.l.b16 %v1248
        %v1377 = vunpack.c.l.b16 %v1249
        %v1378 = vunpack.c.l.b16 %v1250
        %v1379 = vpack.c.b16 %v1348, %v1347
        %v1380 = vpack.c.b16 %v1350, %v1349
        %v1381 = vpack.c.b16 %v1352, %v1351
        %v1382 = vpack.c.b16 %v1354, %v1353
        %v1383 = vpack.c.b16 %v1356, %v1355
        %v1384 = vpack.c.b16 %v1358, %v1357
        %v1385 = vpack.c.b16 %v1360, %v1359
        %v1386 = vpack.c.b16 %v1362, %v1361
        %v1387 = vpack.c.b16 %v1364, %v1363
        %v1388 = vpack.c.b16 %v1366, %v1365
        %v1389 = vpack.c.b16 %v1368, %v1367
        %v1390 = vpack.c.b16 %v1370, %v1369
        %v1391 = vpack.c.b16 %v1372, %v1371
        %v1392 = vpack.c.b16 %v1374, %v1373
        %v1393 = vpack.c.b16 %v1376, %v1375
        %v1394 = vpack.c.b16 %v1378, %v1377
        %v1427 = vunpack.c.l.b16 %v1251
        %v1428 = vunpack.c.l.b16 %v1252
        %v1429 = vunpack.c.l.b16 %v1253
        %v1430 = vunpack.c.l.b16 %v1254
        %v1431 = vunpack.c.l.b16 %v1255
        %v1432 = vunpack.c.l.b16 %v1256
        %v1433 = vunpack.c.l.b16 %v1257
        %v1434 = vunpack.c.l.b16 %v1258
        %v1435 = vunpack.c.l.b16 %v1259
        %v1436 = vunpack.c.l.b16 %v1260
        %v1437 = vunpack.c.l.b16 %v1261
        %v1438 = vunpack.c.l.b16 %v1262
        %v1439 = vunpack.c.l.b16 %v1263
        %v1440 = vunpack.c.l.b16 %v1264
        %v1441 = vunpack.c.l.b16 %v1265
        %v1442 = vunpack.c.l.b16 %v1266
        %v1443 = vunpack.c.l.b16 %v1267
        %v1444 = vunpack.c.l.b16 %v1268
        %v1445 = vunpack.c.l.b16 %v1269
        %v1446 = vunpack.c.l.b16 %v1270
        %v1447 = vunpack.c.l.b16 %v1271
        %v1448 = vunpack.c.l.b16 %v1272
        %v1449 = vunpack.c.l.b16 %v1273
        %v1450 = vunpack.c.l.b16 %v1274
        %v1451 = vunpack.c.l.b16 %v1275
        %v1452 = vunpack.c.l.b16 %v1276
        %v1453 = vunpack.c.l.b16 %v1277
        %v1454 = vunpack.c.l.b16 %v1278
        %v1455 = vunpack.c.l.b16 %v1279
        %v1456 = vunpack.c.l.b16 %v1280
        %v1457 = vunpack.c.l.b16 %v1281
        %v1458 = vunpack.c.l.b16 %v1282
        %v1459 = vpack.c.b16 %v1428, %v1427
        %v1460 = vpack.c.b16 %v1430, %v1429
        %v1461 = vpack.c.b16 %v1432, %v1431
        %v1462 = vpack.c.b16 %v1434, %v1433
        %v1463 = vpack.c.b16 %v1436, %v1435
        %v1464 = vpack.c.b16 %v1438, %v1437
        %v1465 = vpack.c.b16 %v1440, %v1439
        %v1466 = vpack.c.b16 %v1442, %v1441
        %v1467 = vpack.c.b16 %v1444, %v1443
        %v1468 = vpack.c.b16 %v1446, %v1445
        %v1469 = vpack.c.b16 %v1448, %v1447
        %v1470 = vpack.c.b16 %v1450, %v1449
        %v1471 = vpack.c.b16 %v1452, %v1451
        %v1472 = vpack.c.b16 %v1454, %v1453
        %v1473 = vpack.c.b16 %v1456, %v1455
        %v1474 = vpack.c.b16 %v1458, %v1457
        %v1507 = vunpack.c.l.b16 %v1283
        %v1508 = vunpack.c.l.b16 %v1284
        %v1509 = vunpack.c.l.b16 %v1285
        %v1510 = vunpack.c.l.b16 %v1286
        %v1511 = vunpack.c.l.b16 %v1287
        %v1512 = vunpack.c.l.b16 %v1288
        %v1513 = vunpack.c.l.b16 %v1289
        %v1514 = vunpack.c.l.b16 %v1290
        %v1515 = vunpack.c.l.b16 %v1291
        %v1516 = vunpack.c.l.b16 %v1292
        %v1517 = vunpack.c.l.b16 %v1293
        %v1518 = vunpack.c.l.b16 %v1294
        %v1519 = vunpack.c.l.b16 %v1295
        %v1520 = vunpack.c.l.b16 %v1296
        %v1521 = vunpack.c.l.b16 %v1297
        %v1522 = vunpack.c.l.b16 %v1298
        %v1523 = vunpack.c.l.b16 %v1299
        %v1524 = vunpack.c.l.b16 %v1300
        %v1525 = vunpack.c.l.b16 %v1301
        %v1526 = vunpack.c.l.b16 %v1302
        %v1527 = vunpack.c.l.b16 %v1303
        %v1528 = vunpack.c.l.b16 %v1304
        %v1529 = vunpack.c.l.b16 %v1305
        %v1530 = vunpack.c.l.b16 %v1306
        %v1531 = vunpack.c.l.b16 %v1307
        %v1532 = vunpack.c.l.b16 %v1308
        %v1533 = vunpack.c.l.b16 %v1309
        %v1534 = vunpack.c.l.b16 %v1310
        %v1535 = vunpack.c.l.b16 %v1311
        %v1536 = vunpack.c.l.b16 %v1312
        %v1537 = vunpack.c.l.b16 %v1313
        %v1538 = vunpack.c.l.b16 %v1314
        %v1539 = vpack.c.b16 %v1508, %v1507
        %v1540 = vpack.c.b16 %v1510, %v1509
        %v1541 = vpack.c.b16 %v1512, %v1511
        %v1542 = vpack.c.b16 %v1514, %v1513
        %v1543 = vpack.c.b16 %v1516, %v1515
        %v1544 = vpack.c.b16 %v1518, %v1517
        %v1545 = vpack.c.b16 %v1520, %v1519
        %v1546 = vpack.c.b16 %v1522, %v1521
        %v1547 = vpack.c.b16 %v1524, %v1523
        %v1548 = vpack.c.b16 %v1526, %v1525
        %v1549 = vpack.c.b16 %v1528, %v1527
        %v1550 = vpack.c.b16 %v1530, %v1529
        %v1551 = vpack.c.b16 %v1532, %v1531
        %v1552 = vpack.c.b16 %v1534, %v1533
        %v1553 = vpack.c.b16 %v1536, %v1535
        %v1554 = vpack.c.b16 %v1538, %v1537
        %1556 = vrot.lane.b32.xlu0 0, 64
        %v1557 = vpop.permute.xlu0 %1556
        %1558 = vrot.lane.b32.xlu0 %v1459, 64
        %v1559 = vpop.permute.xlu0 %1558
        %1560 = vrot.lane.b32.xlu0 %v1460, 64
        %v1561 = vpop.permute.xlu0 %1560
        %1562 = vrot.lane.b32.xlu0 %v1461, 64
        %v1563 = vpop.permute.xlu0 %1562
        %1564 = vrot.lane.b32.xlu0 %v1462, 64
        %v1565 = vpop.permute.xlu0 %1564
        %1566 = vrot.lane.b32.xlu0 %v1463, 64
        %v1567 = vpop.permute.xlu0 %1566
        %1568 = vrot.lane.b32.xlu0 %v1464, 64
        %v1569 = vpop.permute.xlu0 %1568
        %1570 = vrot.lane.b32.xlu0 %v1465, 64
        %v1571 = vpop.permute.xlu0 %1570
        %1572 = vrot.lane.b32.xlu0 %v1466, 64
        %v1573 = vpop.permute.xlu0 %1572
        %1574 = vrot.lane.b32.xlu0 %v1467, 64
        %v1575 = vpop.permute.xlu0 %1574
        %1576 = vrot.lane.b32.xlu0 %v1468, 64
        %v1577 = vpop.permute.xlu0 %1576
        %1578 = vrot.lane.b32.xlu0 %v1469, 64
        %v1579 = vpop.permute.xlu0 %1578
        %1580 = vrot.lane.b32.xlu0 %v1470, 64
        %v1581 = vpop.permute.xlu0 %1580
        %1582 = vrot.lane.b32.xlu0 %v1471, 64
        %v1583 = vpop.permute.xlu0 %1582
        %1584 = vrot.lane.b32.xlu0 %v1472, 64
        %v1585 = vpop.permute.xlu0 %1584
        %1586 = vrot.lane.b32.xlu0 %v1473, 64
        %v1587 = vpop.permute.xlu0 %1586
        %1588 = vrot.lane.b32.xlu0 %v1379, 64
        %v1589 = vpop.permute.xlu0 %1588
        %1590 = vrot.lane.b32.xlu0 %v1380, 64
        %v1591 = vpop.permute.xlu0 %1590
        %1592 = vrot.lane.b32.xlu0 %v1381, 64
        %v1593 = vpop.permute.xlu0 %1592
        %1594 = vrot.lane.b32.xlu0 %v1382, 64
        %v1595 = vpop.permute.xlu0 %1594
        %1596 = vrot.lane.b32.xlu0 %v1383, 64
        %v1597 = vpop.permute.xlu0 %1596
        %1598 = vrot.lane.b32.xlu0 %v1384, 64
        %v1599 = vpop.permute.xlu0 %1598
        %1600 = vrot.lane.b32.xlu0 %v1385, 64
        %v1601 = vpop.permute.xlu0 %1600
        %1602 = vrot.lane.b32.xlu0 %v1386, 64
        %v1603 = vpop.permute.xlu0 %1602
        %1604 = vrot.lane.b32.xlu0 %v1387, 64
        %v1605 = vpop.permute.xlu0 %1604
        %1606 = vrot.lane.b32.xlu0 %v1388, 64
        %v1607 = vpop.permute.xlu0 %1606
        %1608 = vrot.lane.b32.xlu0 %v1389, 64
        %v1609 = vpop.permute.xlu0 %1608
        %1610 = vrot.lane.b32.xlu0 %v1390, 64
        %v1611 = vpop.permute.xlu0 %1610
        %1612 = vrot.lane.b32.xlu0 %v1391, 64
        %v1613 = vpop.permute.xlu0 %1612
        %1614 = vrot.lane.b32.xlu0 %v1392, 64
        %v1615 = vpop.permute.xlu0 %1614
        %1616 = vrot.lane.b32.xlu0 %v1393, 64
        %v1617 = vpop.permute.xlu0 %1616
        %1618 = vrot.lane.b32.xlu0 %v1394, 64
        %v1619 = vpop.permute.xlu0 %1618
        %1620 = vrot.lane.b32.xlu0 %v1539, 64
        %v1621 = vpop.permute.xlu0 %1620
        %1622 = vrot.lane.b32.xlu0 %v1540, 64
        %v1623 = vpop.permute.xlu0 %1622
        %1624 = vrot.lane.b32.xlu0 %v1541, 64
        %v1625 = vpop.permute.xlu0 %1624
        %1626 = vrot.lane.b32.xlu0 %v1542, 64
        %v1627 = vpop.permute.xlu0 %1626
        %1628 = vrot.lane.b32.xlu0 %v1543, 64
        %v1629 = vpop.permute.xlu0 %1628
        %1630 = vrot.lane.b32.xlu0 %v1544, 64
        %v1631 = vpop.permute.xlu0 %1630
        %1632 = vrot.lane.b32.xlu0 %v1545, 64
        %v1633 = vpop.permute.xlu0 %1632
        %1634 = vrot.lane.b32.xlu0 %v1546, 64
        %v1635 = vpop.permute.xlu0 %1634
        %1636 = vrot.lane.b32.xlu0 %v1547, 64
        %v1637 = vpop.permute.xlu0 %1636
        %1638 = vrot.lane.b32.xlu0 %v1548, 64
        %v1639 = vpop.permute.xlu0 %1638
        %1640 = vrot.lane.b32.xlu0 %v1549, 64
        %v1641 = vpop.permute.xlu0 %1640
        %1642 = vrot.lane.b32.xlu0 %v1550, 64
        %v1643 = vpop.permute.xlu0 %1642
        %1644 = vrot.lane.b32.xlu0 %v1551, 64
        %v1645 = vpop.permute.xlu0 %1644
        %1646 = vrot.lane.b32.xlu0 %v1552, 64
        %v1647 = vpop.permute.xlu0 %1646
        %1648 = vrot.lane.b32.xlu0 %v1553, 64
        %v1649 = vpop.permute.xlu0 %1648
        %1650 = vrot.lane.b32.xlu0 %v1554, 64
        %v1651 = vpop.permute.xlu0 %1650
        %1652 = vrot.lane.b32.xlu0 %v1474, 64
        %v1653 = vpop.permute.xlu0 %1652
        %vm1654 = vcmask 523264
        %v1657 = vsel %vm1654, 0, %v1557
        %v1661 = vsel %vm1654, %v1379, %v1559
        %v1665 = vsel %vm1654, %v1380, %v1561
        %v1669 = vsel %vm1654, %v1381, %v1563
        %v1673 = vsel %vm1654, %v1382, %v1565
        %v1677 = vsel %vm1654, %v1383, %v1567
        %v1681 = vsel %vm1654, %v1384, %v1569
        %v1685 = vsel %vm1654, %v1385, %v1571
        %v1689 = vsel %vm1654, %v1386, %v1573
        %v1693 = vsel %vm1654, %v1387, %v1575
        %v1697 = vsel %vm1654, %v1388, %v1577
        %v1701 = vsel %vm1654, %v1389, %v1579
        %v1705 = vsel %vm1654, %v1390, %v1581
        %v1709 = vsel %vm1654, %v1391, %v1583
        %v1713 = vsel %vm1654, %v1392, %v1585
        %v1717 = vsel %vm1654, %v1393, %v1587
        %v1720 = vsel %vm1654, 0, %v1589
        %v1724 = vsel %vm1654, %v1539, %v1591
        %v1728 = vsel %vm1654, %v1540, %v1593
        %v1732 = vsel %vm1654, %v1541, %v1595
        %v1736 = vsel %vm1654, %v1542, %v1597
        %v1740 = vsel %vm1654, %v1543, %v1599
        %v1744 = vsel %vm1654, %v1544, %v1601
        %v1748 = vsel %vm1654, %v1545, %v1603
        %v1752 = vsel %vm1654, %v1546, %v1605
        %v1756 = vsel %vm1654, %v1547, %v1607
        %v1760 = vsel %vm1654, %v1548, %v1609
        %v1764 = vsel %vm1654, %v1549, %v1611
        %v1768 = vsel %vm1654, %v1550, %v1613
        %v1772 = vsel %vm1654, %v1551, %v1615
        %v1776 = vsel %vm1654, %v1552, %v1617
        %v1780 = vsel %vm1654, %v1553, %v1619
        %v1784 = vsel %vm1654, %v1459, %v1621
        %v1788 = vsel %vm1654, %v1460, %v1623
        %v1792 = vsel %vm1654, %v1461, %v1625
        %v1796 = vsel %vm1654, %v1462, %v1627
        %v1800 = vsel %vm1654, %v1463, %v1629
        %v1804 = vsel %vm1654, %v1464, %v1631
        %v1808 = vsel %vm1654, %v1465, %v1633
        %v1812 = vsel %vm1654, %v1466, %v1635
        %v1816 = vsel %vm1654, %v1467, %v1637
        %v1820 = vsel %vm1654, %v1468, %v1639
        %v1824 = vsel %vm1654, %v1469, %v1641
        %v1828 = vsel %vm1654, %v1470, %v1643
        %v1832 = vsel %vm1654, %v1471, %v1645
        %v1836 = vsel %vm1654, %v1472, %v1647
        %v1840 = vsel %vm1654, %v1473, %v1649
        %v1844 = vsel %vm1654, %v1474, %v1651
        %v1848 = vsel %vm1654, %v1394, %v1653
        %v1850 = vld [vmem:[#allocation3] sm:$0xf]
        %v1851 = vld [vmem:[#allocation3 + $0x4] sm:$0xf]
        %v1852 = vld [vmem:[#allocation3 + $0x8] sm:$0xf]
        %v1853 = vld [vmem:[#allocation3 + $0xc] sm:$0xf]
        %v1854 = vld [vmem:[#allocation3 + $0x10] sm:$0xf]
        %v1855 = vld [vmem:[#allocation3 + $0x14] sm:$0xf]
        %v1856 = vld [vmem:[#allocation3 + $0x18] sm:$0xf]
        %v1857 = vld [vmem:[#allocation3 + $0x1c] sm:$0xf]
        %v1858 = vld [vmem:[#allocation3 + $0x20] sm:$0xf]
        %v1859 = vld [vmem:[#allocation3 + $0x24] sm:$0xf]
        %v1860 = vld [vmem:[#allocation3 + $0x28] sm:$0xf]
        %v1861 = vld [vmem:[#allocation3 + $0x2c] sm:$0xf]
        %v1862 = vld [vmem:[#allocation3 + $0x30] sm:$0xf]
        %v1863 = vld [vmem:[#allocation3 + $0x34] sm:$0xf]
        %v1864 = vld [vmem:[#allocation3 + $0x38] sm:$0xf]
        %v1865 = vld [vmem:[#allocation3 + $0x3c] sm:$0xf]
        %v1866 = vld [vmem:[#allocation3 + $0x40] sm:$0xf]
        %v1867 = vld [vmem:[#allocation3 + $0x44] sm:$0xf]
        %v1868 = vld [vmem:[#allocation3 + $0x48] sm:$0xf]
        %v1869 = vld [vmem:[#allocation3 + $0x4c] sm:$0xf]
        %v1870 = vld [vmem:[#allocation3 + $0x50] sm:$0xf]
        %v1871 = vld [vmem:[#allocation3 + $0x54] sm:$0xf]
        %v1872 = vld [vmem:[#allocation3 + $0x58] sm:$0xf]
        %v1873 = vld [vmem:[#allocation3 + $0x5c] sm:$0xf]
        %v1874 = vld [vmem:[#allocation3 + $0x60] sm:$0xf]
        %v1875 = vld [vmem:[#allocation3 + $0x64] sm:$0xf]
        %v1876 = vld [vmem:[#allocation3 + $0x68] sm:$0xf]
        %v1877 = vld [vmem:[#allocation3 + $0x6c] sm:$0xf]
        %v1878 = vld [vmem:[#allocation3 + $0x70] sm:$0xf]
        %v1879 = vld [vmem:[#allocation3 + $0x74] sm:$0xf]
        %v1880 = vld [vmem:[#allocation3 + $0x78] sm:$0xf]
        %v1881 = vld [vmem:[#allocation3 + $0x7c] sm:$0xf]
        %v1882 = vld [vmem:[#allocation3 + $0x80] sm:$0xf]
        %v1883 = vld [vmem:[#allocation3 + $0x84] sm:$0xf]
        %v1884 = vld [vmem:[#allocation3 + $0x88] sm:$0xf]
        %v1885 = vld [vmem:[#allocation3 + $0x8c] sm:$0xf]
        %v1886 = vld [vmem:[#allocation3 + $0x90] sm:$0xf]
        %v1887 = vld [vmem:[#allocation3 + $0x94] sm:$0xf]
        %v1888 = vld [vmem:[#allocation3 + $0x98] sm:$0xf]
        %v1889 = vld [vmem:[#allocation3 + $0x9c] sm:$0xf]
        %v1890 = vld [vmem:[#allocation3 + $0xa0] sm:$0xf]
        %v1891 = vld [vmem:[#allocation3 + $0xa4] sm:$0xf]
        %v1892 = vld [vmem:[#allocation3 + $0xa8] sm:$0xf]
        %v1893 = vld [vmem:[#allocation3 + $0xac] sm:$0xf]
        %v1894 = vld [vmem:[#allocation3 + $0xb0] sm:$0xf]
        %v1895 = vld [vmem:[#allocation3 + $0xb4] sm:$0xf]
        %v1896 = vld [vmem:[#allocation3 + $0xb8] sm:$0xf]
        %v1897 = vld [vmem:[#allocation3 + $0xbc] sm:$0xf]
        %v1898 = vld [vmem:[#allocation3 + $0xc0] sm:$0xf]
        %v1899 = vld [vmem:[#allocation3 + $0xc4] sm:$0xf]
        %v1900 = vld [vmem:[#allocation3 + $0xc8] sm:$0xf]
        %v1901 = vld [vmem:[#allocation3 + $0xcc] sm:$0xf]
        %v1902 = vld [vmem:[#allocation3 + $0xd0] sm:$0xf]
        %v1903 = vld [vmem:[#allocation3 + $0xd4] sm:$0xf]
        %v1904 = vld [vmem:[#allocation3 + $0xd8] sm:$0xf]
        %v1905 = vld [vmem:[#allocation3 + $0xdc] sm:$0xf]
        %v1906 = vld [vmem:[#allocation3 + $0xe0] sm:$0xf]
        %v1907 = vld [vmem:[#allocation3 + $0xe4] sm:$0xf]
        %v1908 = vld [vmem:[#allocation3 + $0xe8] sm:$0xf]
        %v1909 = vld [vmem:[#allocation3 + $0xec] sm:$0xf]
        %v1910 = vld [vmem:[#allocation3 + $0xf0] sm:$0xf]
        %v1911 = vld [vmem:[#allocation3 + $0xf4] sm:$0xf]
        %v1912 = vld [vmem:[#allocation3 + $0xf8] sm:$0xf]
        %v1913 = vld [vmem:[#allocation3 + $0xfc] sm:$0xf]
        %v1914 = vld [vmem:[#allocation3 + $0x100] sm:$0xf]
        %v1915 = vld [vmem:[#allocation3 + $0x104] sm:$0xf]
        %v1916 = vld [vmem:[#allocation3 + $0x108] sm:$0xf]
        %v1917 = vld [vmem:[#allocation3 + $0x10c] sm:$0xf]
        %v1918 = vld [vmem:[#allocation3 + $0x110] sm:$0xf]
        %v1919 = vld [vmem:[#allocation3 + $0x114] sm:$0xf]
        %v1920 = vld [vmem:[#allocation3 + $0x118] sm:$0xf]
        %v1921 = vld [vmem:[#allocation3 + $0x11c] sm:$0xf]
        %v1922 = vld [vmem:[%s4] sm:$0x1]
        %v1924 = vperm.slane %v1922, 0
        %v1998 = vunpack.c.l.b16 %v1850
        %v1999 = vunpack.c.l.b16 %v1851
        %v2000 = vunpack.c.l.b16 %v1852
        %v2001 = vunpack.c.l.b16 %v1853
        %v2002 = vunpack.c.l.b16 %v1854
        %v2003 = vunpack.c.l.b16 %v1855
        %v2004 = vunpack.c.l.b16 %v1856
        %v2005 = vunpack.c.l.b16 %v1857
        %v2006 = vunpack.c.l.b16 %v1858
        %v2007 = vunpack.c.l.b16 %v1859
        %v2008 = vunpack.c.l.b16 %v1860
        %v2009 = vunpack.c.l.b16 %v1861
        %v2010 = vunpack.c.l.b16 %v1862
        %v2011 = vunpack.c.l.b16 %v1863
        %v2012 = vunpack.c.l.b16 %v1864
        %v2013 = vunpack.c.l.b16 %v1865
        %v2014 = vunpack.c.l.b16 %v1866
        %v2015 = vunpack.c.l.b16 %v1867
        %v2016 = vunpack.c.l.b16 %v1868
        %v2017 = vunpack.c.l.b16 %v1869
        %v2018 = vunpack.c.l.b16 %v1870
        %v2019 = vunpack.c.l.b16 %v1871
        %v2020 = vunpack.c.l.b16 %v1872
        %v2021 = vunpack.c.l.b16 %v1873
        %v2022 = vunpack.c.l.b16 %v1874
        %v2023 = vunpack.c.l.b16 %v1875
        %v2024 = vunpack.c.l.b16 %v1876
        %v2025 = vunpack.c.l.b16 %v1877
        %v2026 = vunpack.c.l.b16 %v1878
        %v2027 = vunpack.c.l.b16 %v1879
        %v2028 = vunpack.c.l.b16 %v1880
        %v2029 = vunpack.c.l.b16 %v1881
        %v2030 = vunpack.c.l.b16 %v1882
        %v2031 = vunpack.c.l.b16 %v1883
        %v2032 = vunpack.c.l.b16 %v1884
        %v2033 = vunpack.c.l.b16 %v1885
        %v2034 = vunpack.c.l.b16 %v1886
        %v2035 = vunpack.c.l.b16 %v1887
        %v2036 = vunpack.c.l.b16 %v1888
        %v2037 = vunpack.c.l.b16 %v1889
        %v2038 = vunpack.c.l.b16 %v1890
        %v2039 = vunpack.c.l.b16 %v1891
        %v2040 = vunpack.c.l.b16 %v1892
        %v2041 = vunpack.c.l.b16 %v1893
        %v2042 = vunpack.c.l.b16 %v1894
        %v2043 = vunpack.c.l.b16 %v1895
        %v2044 = vunpack.c.l.b16 %v1896
        %v2045 = vunpack.c.l.b16 %v1897
        %v2046 = vunpack.c.l.b16 %v1898
        %v2047 = vunpack.c.l.b16 %v1899
        %v2048 = vunpack.c.l.b16 %v1900
        %v2049 = vunpack.c.l.b16 %v1901
        %v2050 = vunpack.c.l.b16 %v1902
        %v2051 = vunpack.c.l.b16 %v1903
        %v2052 = vunpack.c.l.b16 %v1904
        %v2053 = vunpack.c.l.b16 %v1905
        %v2054 = vunpack.c.l.b16 %v1906
        %v2055 = vunpack.c.l.b16 %v1907
        %v2056 = vunpack.c.l.b16 %v1908
        %v2057 = vunpack.c.l.b16 %v1909
        %v2058 = vunpack.c.l.b16 %v1910
        %v2059 = vunpack.c.l.b16 %v1911
        %v2060 = vunpack.c.l.b16 %v1912
        %v2061 = vunpack.c.l.b16 %v1913
        %v2062 = vunpack.c.l.b16 %v1914
        %v2063 = vunpack.c.l.b16 %v1915
        %v2064 = vunpack.c.l.b16 %v1916
        %v2065 = vunpack.c.l.b16 %v1917
        %v2066 = vunpack.c.l.b16 %v1918
        %v2067 = vunpack.c.l.b16 %v1919
        %v2068 = vunpack.c.l.b16 %v1920
        %v2069 = vunpack.c.l.b16 %v1921
        %v2070 = vpack.c.b16 %v1999, %v1998
        %v2071 = vpack.c.b16 %v2001, %v2000
        %v2072 = vpack.c.b16 %v2003, %v2002
        %v2073 = vpack.c.b16 %v2005, %v2004
        %v2074 = vpack.c.b16 %v2007, %v2006
        %v2075 = vpack.c.b16 %v2009, %v2008
        %v2076 = vpack.c.b16 %v2011, %v2010
        %v2077 = vpack.c.b16 %v2013, %v2012
        %v2078 = vpack.c.b16 %v2015, %v2014
        %v2079 = vpack.c.b16 %v2017, %v2016
        %v2080 = vpack.c.b16 %v2019, %v2018
        %v2081 = vpack.c.b16 %v2021, %v2020
        %v2082 = vpack.c.b16 %v2023, %v2022
        %v2083 = vpack.c.b16 %v2025, %v2024
        %v2084 = vpack.c.b16 %v2027, %v2026
        %v2085 = vpack.c.b16 %v2029, %v2028
        %v2086 = vpack.c.b16 %v2031, %v2030
        %v2087 = vpack.c.b16 %v2033, %v2032
        %v2088 = vpack.c.b16 %v2035, %v2034
        %v2089 = vpack.c.b16 %v2037, %v2036
        %v2090 = vpack.c.b16 %v2039, %v2038
        %v2091 = vpack.c.b16 %v2041, %v2040
        %v2092 = vpack.c.b16 %v2043, %v2042
        %v2093 = vpack.c.b16 %v2045, %v2044
        %v2094 = vpack.c.b16 %v2047, %v2046
        %v2095 = vpack.c.b16 %v2049, %v2048
        %v2096 = vpack.c.b16 %v2051, %v2050
        %v2097 = vpack.c.b16 %v2053, %v2052
        %v2098 = vpack.c.b16 %v2055, %v2054
        %v2099 = vpack.c.b16 %v2057, %v2056
        %v2100 = vpack.c.b16 %v2059, %v2058
        %v2101 = vpack.c.b16 %v2061, %v2060
        %v2102 = vpack.c.b16 %v2063, %v2062
        %v2103 = vpack.c.b16 %v2065, %v2064
        %v2104 = vpack.c.b16 %v2067, %v2066
        %v2105 = vpack.c.b16 %v2069, %v2068
        %v2142 = vsel %vm1654, %v1540, 0
        %v2144 = vsel %vm1654, %v1541, 0
        %v2146 = vsel %vm1654, %v1542, 0
        %v2148 = vsel %vm1654, %v1543, 0
        %v2150 = vsel %vm1654, %v1544, 0
        %v2152 = vsel %vm1654, %v1545, 0
        %v2154 = vsel %vm1654, %v1546, 0
        %v2156 = vsel %vm1654, %v1547, 0
        %v2158 = vsel %vm1654, %v1548, 0
        %v2160 = vsel %vm1654, %v1549, 0
        %v2162 = vsel %vm1654, %v1550, 0
        %v2164 = vsel %vm1654, %v1551, 0
        %v2166 = vsel %vm1654, %v1552, 0
        %v2168 = vsel %vm1654, %v1553, 0
        %v2171 = vsel %vm1654, %v1554, 0
        %v2173 = vsel %vm1654, 0, 0
        %2175 = vmatpush.bf16.msra.mxu0 %v2077
        %2176 = vmatpush.bf16.msra.mxu0 %v2076
        %2177 = vmatpush.bf16.msra.mxu0 %v2075
        %2178 = vmatpush.bf16.msra.mxu0 %v2074
        %2179 = vmatpush.bf16.msra.mxu0 %v2073
        %2180 = vmatpush.bf16.msra.mxu0 %v2072
        %2181 = vmatpush.bf16.msra.mxu0 %v2071
        %2182 = vmatpush.bf16.msra.mxu0 %v2070
        %2183 = vmatmul.bf16.gmra.mxu0 %v1657
        %v2184 = vpop.f32.mrf.mxu0
        %v2185 = vadd.f32 %v1924, %v2184
        %v2186 = vpop.f32.mrf.mxu0
        %v2187 = vadd.f32 %v1924, %v2186
        %2188 = vmatmul.bf16.gmra.mxu0 %v1661
        %v2189 = vpop.f32.mrf.mxu0
        %v2190 = vadd.f32 %v1924, %v2189
        %v2191 = vpop.f32.mrf.mxu0
        %v2192 = vadd.f32 %v1924, %v2191
        %2193 = vmatmul.bf16.gmra.mxu0 %v1665
        %v2194 = vpop.f32.mrf.mxu0
        %v2195 = vadd.f32 %v1924, %v2194
        %v2196 = vpop.f32.mrf.mxu0
        %v2197 = vadd.f32 %v1924, %v2196
        %2198 = vmatmul.bf16.gmra.mxu0 %v1669
        %v2199 = vpop.f32.mrf.mxu0
        %v2200 = vadd.f32 %v1924, %v2199
        %v2201 = vpop.f32.mrf.mxu0
        %v2202 = vadd.f32 %v1924, %v2201
        %2203 = vmatmul.bf16.gmra.mxu0 %v1673
        %v2204 = vpop.f32.mrf.mxu0
        %v2205 = vadd.f32 %v1924, %v2204
        %v2206 = vpop.f32.mrf.mxu0
        %v2207 = vadd.f32 %v1924, %v2206
        %2208 = vmatmul.bf16.gmra.mxu0 %v1677
        %v2209 = vpop.f32.mrf.mxu0
        %v2210 = vadd.f32 %v1924, %v2209
        %v2211 = vpop.f32.mrf.mxu0
        %v2212 = vadd.f32 %v1924, %v2211
        %2213 = vmatmul.bf16.gmra.mxu0 %v1681
        %v2214 = vpop.f32.mrf.mxu0
        %v2215 = vadd.f32 %v1924, %v2214
        %v2216 = vpop.f32.mrf.mxu0
        %v2217 = vadd.f32 %v1924, %v2216
        %2218 = vmatmul.bf16.gmra.mxu0 %v1685
        %v2219 = vpop.f32.mrf.mxu0
        %v2220 = vadd.f32 %v1924, %v2219
        %v2221 = vpop.f32.mrf.mxu0
        %v2222 = vadd.f32 %v1924, %v2221
        %2223 = vmatmul.bf16.gmra.mxu0 %v1689
        %v2224 = vpop.f32.mrf.mxu0
        %v2225 = vadd.f32 %v1924, %v2224
        %v2226 = vpop.f32.mrf.mxu0
        %v2227 = vadd.f32 %v1924, %v2226
        %2228 = vmatmul.bf16.gmra.mxu0 %v1693
        %v2229 = vpop.f32.mrf.mxu0
        %v2230 = vadd.f32 %v1924, %v2229
        %v2231 = vpop.f32.mrf.mxu0
        %v2232 = vadd.f32 %v1924, %v2231
        %2233 = vmatmul.bf16.gmra.mxu0 %v1697
        %v2234 = vpop.f32.mrf.mxu0
        %v2235 = vadd.f32 %v1924, %v2234
        %v2236 = vpop.f32.mrf.mxu0
        %v2237 = vadd.f32 %v1924, %v2236
        %2238 = vmatmul.bf16.gmra.mxu0 %v1701
        %v2239 = vpop.f32.mrf.mxu0
        %v2240 = vadd.f32 %v1924, %v2239
        %v2241 = vpop.f32.mrf.mxu0
        %v2242 = vadd.f32 %v1924, %v2241
        %2243 = vmatmul.bf16.gmra.mxu0 %v1705
        %v2244 = vpop.f32.mrf.mxu0
        %v2245 = vadd.f32 %v1924, %v2244
        %v2246 = vpop.f32.mrf.mxu0
        %v2247 = vadd.f32 %v1924, %v2246
        %2248 = vmatmul.bf16.gmra.mxu0 %v1709
        %v2249 = vpop.f32.mrf.mxu0
        %v2250 = vadd.f32 %v1924, %v2249
        %v2251 = vpop.f32.mrf.mxu0
        %v2252 = vadd.f32 %v1924, %v2251
        %2253 = vmatmul.bf16.gmra.mxu0 %v1713
        %v2254 = vpop.f32.mrf.mxu0
        %v2255 = vadd.f32 %v1924, %v2254
        %v2256 = vpop.f32.mrf.mxu0
        %v2257 = vadd.f32 %v1924, %v2256
        %2258 = vmatmul.bf16.gmra.mxu0 %v1717
        %v2259 = vpop.f32.mrf.mxu0
        %v2260 = vadd.f32 %v1924, %v2259
        %v2261 = vpop.f32.mrf.mxu0
        %v2262 = vadd.f32 %v1924, %v2261
        %2263 = vdwg.mxu0
        %2264 = vmatpush.bf16.msra.mxu0 %v2085
        %2265 = vmatpush.bf16.msra.mxu0 %v2084
        %2266 = vmatpush.bf16.msra.mxu0 %v2083
        %2267 = vmatpush.bf16.msra.mxu0 %v2082
        %2268 = vmatpush.bf16.msra.mxu0 %v2081
        %2269 = vmatpush.bf16.msra.mxu0 %v2080
        %2270 = vmatpush.bf16.msra.mxu0 %v2079
        %2271 = vmatpush.bf16.msra.mxu0 %v2078
        %2272 = vmatmul.bf16.gmra.mxu0 %v1720
        %v2273 = vpop.f32.mrf.mxu0
        %v2274 = vadd.f32 %v2185, %v2273
        %v2275 = vpop.f32.mrf.mxu0
        %v2276 = vadd.f32 %v2187, %v2275
        %2277 = vmatmul.bf16.gmra.mxu0 %v1724
        %v2278 = vpop.f32.mrf.mxu0
        %v2279 = vadd.f32 %v2190, %v2278
        %v2280 = vpop.f32.mrf.mxu0
        %v2281 = vadd.f32 %v2192, %v2280
        %2282 = vmatmul.bf16.gmra.mxu0 %v1728
        %v2283 = vpop.f32.mrf.mxu0
        %v2284 = vadd.f32 %v2195, %v2283
        %v2285 = vpop.f32.mrf.mxu0
        %v2286 = vadd.f32 %v2197, %v2285
        %2287 = vmatmul.bf16.gmra.mxu0 %v1732
        %v2288 = vpop.f32.mrf.mxu0
        %v2289 = vadd.f32 %v2200, %v2288
        %v2290 = vpop.f32.mrf.mxu0
        %v2291 = vadd.f32 %v2202, %v2290
        %2292 = vmatmul.bf16.gmra.mxu0 %v1736
        %v2293 = vpop.f32.mrf.mxu0
        %v2294 = vadd.f32 %v2205, %v2293
        %v2295 = vpop.f32.mrf.mxu0
        %v2296 = vadd.f32 %v2207, %v2295
        %2297 = vmatmul.bf16.gmra.mxu0 %v1740
        %v2298 = vpop.f32.mrf.mxu0
        %v2299 = vadd.f32 %v2210, %v2298
        %v2300 = vpop.f32.mrf.mxu0
        %v2301 = vadd.f32 %v2212, %v2300
        %2302 = vmatmul.bf16.gmra.mxu0 %v1744
        %v2303 = vpop.f32.mrf.mxu0
        %v2304 = vadd.f32 %v2215, %v2303
        %v2305 = vpop.f32.mrf.mxu0
        %v2306 = vadd.f32 %v2217, %v2305
        %2307 = vmatmul.bf16.gmra.mxu0 %v1748
        %v2308 = vpop.f32.mrf.mxu0
        %v2309 = vadd.f32 %v2220, %v2308
        %v2310 = vpop.f32.mrf.mxu0
        %v2311 = vadd.f32 %v2222, %v2310
        %2312 = vmatmul.bf16.gmra.mxu0 %v1752
        %v2313 = vpop.f32.mrf.mxu0
        %v2314 = vadd.f32 %v2225, %v2313
        %v2315 = vpop.f32.mrf.mxu0
        %v2316 = vadd.f32 %v2227, %v2315
        %2317 = vmatmul.bf16.gmra.mxu0 %v1756
        %v2318 = vpop.f32.mrf.mxu0
        %v2319 = vadd.f32 %v2230, %v2318
        %v2320 = vpop.f32.mrf.mxu0
        %v2321 = vadd.f32 %v2232, %v2320
        %2322 = vmatmul.bf16.gmra.mxu0 %v1760
        %v2323 = vpop.f32.mrf.mxu0
        %v2324 = vadd.f32 %v2235, %v2323
        %v2325 = vpop.f32.mrf.mxu0
        %v2326 = vadd.f32 %v2237, %v2325
        %2327 = vmatmul.bf16.gmra.mxu0 %v1764
        %v2328 = vpop.f32.mrf.mxu0
        %v2329 = vadd.f32 %v2240, %v2328
        %v2330 = vpop.f32.mrf.mxu0
        %v2331 = vadd.f32 %v2242, %v2330
        %2332 = vmatmul.bf16.gmra.mxu0 %v1768
        %v2333 = vpop.f32.mrf.mxu0
        %v2334 = vadd.f32 %v2245, %v2333
        %v2335 = vpop.f32.mrf.mxu0
        %v2336 = vadd.f32 %v2247, %v2335
        %2337 = vmatmul.bf16.gmra.mxu0 %v1772
        %v2338 = vpop.f32.mrf.mxu0
        %v2339 = vadd.f32 %v2250, %v2338
        %v2340 = vpop.f32.mrf.mxu0
        %v2341 = vadd.f32 %v2252, %v2340
        %2342 = vmatmul.bf16.gmra.mxu0 %v1776
        %v2343 = vpop.f32.mrf.mxu0
        %v2344 = vadd.f32 %v2255, %v2343
        %v2345 = vpop.f32.mrf.mxu0
        %v2346 = vadd.f32 %v2257, %v2345
        %2347 = vmatmul.bf16.gmra.mxu0 %v1780
        %v2348 = vpop.f32.mrf.mxu0
        %v2349 = vadd.f32 %v2260, %v2348
        %v2350 = vpop.f32.mrf.mxu0
        %v2351 = vadd.f32 %v2262, %v2350
        %2352 = vdwg.mxu0
        %2353 = vmatpush.bf16.msra.mxu0 %v2093
        %2354 = vmatpush.bf16.msra.mxu0 %v2092
        %2355 = vmatpush.bf16.msra.mxu0 %v2091
        %2356 = vmatpush.bf16.msra.mxu0 %v2090
        %2357 = vmatpush.bf16.msra.mxu0 %v2089
        %2358 = vmatpush.bf16.msra.mxu0 %v2088
        %2359 = vmatpush.bf16.msra.mxu0 %v2087
        %2360 = vmatpush.bf16.msra.mxu0 %v2086
        %2361 = vmatmul.bf16.gmra.mxu0 %v1784
        %v2362 = vpop.f32.mrf.mxu0
        %v2363 = vadd.f32 %v2274, %v2362
        %v2364 = vpop.f32.mrf.mxu0
        %v2365 = vadd.f32 %v2276, %v2364
        %2366 = vmatmul.bf16.gmra.mxu0 %v1788
        %v2367 = vpop.f32.mrf.mxu0
        %v2368 = vadd.f32 %v2279, %v2367
        %v2369 = vpop.f32.mrf.mxu0
        %v2370 = vadd.f32 %v2281, %v2369
        %2371 = vmatmul.bf16.gmra.mxu0 %v1792
        %v2372 = vpop.f32.mrf.mxu0
        %v2373 = vadd.f32 %v2284, %v2372
        %v2374 = vpop.f32.mrf.mxu0
        %v2375 = vadd.f32 %v2286, %v2374
        %2376 = vmatmul.bf16.gmra.mxu0 %v1796
        %v2377 = vpop.f32.mrf.mxu0
        %v2378 = vadd.f32 %v2289, %v2377
        %v2379 = vpop.f32.mrf.mxu0
        %v2380 = vadd.f32 %v2291, %v2379
        %2381 = vmatmul.bf16.gmra.mxu0 %v1800
        %v2382 = vpop.f32.mrf.mxu0
        %v2383 = vadd.f32 %v2294, %v2382
        %v2384 = vpop.f32.mrf.mxu0
        %v2385 = vadd.f32 %v2296, %v2384
        %2386 = vmatmul.bf16.gmra.mxu0 %v1804
        %v2387 = vpop.f32.mrf.mxu0
        %v2388 = vadd.f32 %v2299, %v2387
        %v2389 = vpop.f32.mrf.mxu0
        %v2390 = vadd.f32 %v2301, %v2389
        %2391 = vmatmul.bf16.gmra.mxu0 %v1808
        %v2392 = vpop.f32.mrf.mxu0
        %v2393 = vadd.f32 %v2304, %v2392
        %v2394 = vpop.f32.mrf.mxu0
        %v2395 = vadd.f32 %v2306, %v2394
        %2396 = vmatmul.bf16.gmra.mxu0 %v1812
        %v2397 = vpop.f32.mrf.mxu0
        %v2398 = vadd.f32 %v2309, %v2397
        %v2399 = vpop.f32.mrf.mxu0
        %v2400 = vadd.f32 %v2311, %v2399
        %2401 = vmatmul.bf16.gmra.mxu0 %v1816
        %v2402 = vpop.f32.mrf.mxu0
        %v2403 = vadd.f32 %v2314, %v2402
        %v2404 = vpop.f32.mrf.mxu0
        %v2405 = vadd.f32 %v2316, %v2404
        %2406 = vmatmul.bf16.gmra.mxu0 %v1820
        %v2407 = vpop.f32.mrf.mxu0
        %v2408 = vadd.f32 %v2319, %v2407
        %v2409 = vpop.f32.mrf.mxu0
        %v2410 = vadd.f32 %v2321, %v2409
        %2411 = vmatmul.bf16.gmra.mxu0 %v1824
        %v2412 = vpop.f32.mrf.mxu0
        %v2413 = vadd.f32 %v2324, %v2412
        %v2414 = vpop.f32.mrf.mxu0
        %v2415 = vadd.f32 %v2326, %v2414
        %2416 = vmatmul.bf16.gmra.mxu0 %v1828
        %v2417 = vpop.f32.mrf.mxu0
        %v2418 = vadd.f32 %v2329, %v2417
        %v2419 = vpop.f32.mrf.mxu0
        %v2420 = vadd.f32 %v2331, %v2419
        %2421 = vmatmul.bf16.gmra.mxu0 %v1832
        %v2422 = vpop.f32.mrf.mxu0
        %v2423 = vadd.f32 %v2334, %v2422
        %v2424 = vpop.f32.mrf.mxu0
        %v2425 = vadd.f32 %v2336, %v2424
        %2426 = vmatmul.bf16.gmra.mxu0 %v1836
        %v2427 = vpop.f32.mrf.mxu0
        %v2428 = vadd.f32 %v2339, %v2427
        %v2429 = vpop.f32.mrf.mxu0
        %v2430 = vadd.f32 %v2341, %v2429
        %2431 = vmatmul.bf16.gmra.mxu0 %v1840
        %v2432 = vpop.f32.mrf.mxu0
        %v2433 = vadd.f32 %v2344, %v2432
        %v2434 = vpop.f32.mrf.mxu0
        %v2435 = vadd.f32 %v2346, %v2434
        %2436 = vmatmul.bf16.gmra.mxu0 %v1844
        %v2437 = vpop.f32.mrf.mxu0
        %v2438 = vadd.f32 %v2349, %v2437
        %v2439 = vpop.f32.mrf.mxu0
        %v2440 = vadd.f32 %v2351, %v2439
        %2441 = vdwg.mxu0
        %2442 = vmatpush.bf16.msra.mxu0 %v2101
        %2443 = vmatpush.bf16.msra.mxu0 %v2100
        %2444 = vmatpush.bf16.msra.mxu0 %v2099
        %2445 = vmatpush.bf16.msra.mxu0 %v2098
        %2446 = vmatpush.bf16.msra.mxu0 %v2097
        %2447 = vmatpush.bf16.msra.mxu0 %v2096
        %2448 = vmatpush.bf16.msra.mxu0 %v2095
        %2449 = vmatpush.bf16.msra.mxu0 %v2094
        %2450 = vmatmul.bf16.gmra.mxu0 %v1665
        %v2451 = vpop.f32.mrf.mxu0
        %v2452 = vadd.f32 %v2363, %v2451
        %v2453 = vpop.f32.mrf.mxu0
        %v2454 = vadd.f32 %v2365, %v2453
        %2455 = vmatmul.bf16.gmra.mxu0 %v1669
        %v2456 = vpop.f32.mrf.mxu0
        %v2457 = vadd.f32 %v2368, %v2456
        %v2458 = vpop.f32.mrf.mxu0
        %v2459 = vadd.f32 %v2370, %v2458
        %2460 = vmatmul.bf16.gmra.mxu0 %v1673
        %v2461 = vpop.f32.mrf.mxu0
        %v2462 = vadd.f32 %v2373, %v2461
        %v2463 = vpop.f32.mrf.mxu0
        %v2464 = vadd.f32 %v2375, %v2463
        %2465 = vmatmul.bf16.gmra.mxu0 %v1677
        %v2466 = vpop.f32.mrf.mxu0
        %v2467 = vadd.f32 %v2378, %v2466
        %v2468 = vpop.f32.mrf.mxu0
        %v2469 = vadd.f32 %v2380, %v2468
        %2470 = vmatmul.bf16.gmra.mxu0 %v1681
        %v2471 = vpop.f32.mrf.mxu0
        %v2472 = vadd.f32 %v2383, %v2471
        %v2473 = vpop.f32.mrf.mxu0
        %v2474 = vadd.f32 %v2385, %v2473
        %2475 = vmatmul.bf16.gmra.mxu0 %v1685
        %v2476 = vpop.f32.mrf.mxu0
        %v2477 = vadd.f32 %v2388, %v2476
        %v2478 = vpop.f32.mrf.mxu0
        %v2479 = vadd.f32 %v2390, %v2478
        %2480 = vmatmul.bf16.gmra.mxu0 %v1689
        %v2481 = vpop.f32.mrf.mxu0
        %v2482 = vadd.f32 %v2393, %v2481
        %v2483 = vpop.f32.mrf.mxu0
        %v2484 = vadd.f32 %v2395, %v2483
        %2485 = vmatmul.bf16.gmra.mxu0 %v1693
        %v2486 = vpop.f32.mrf.mxu0
        %v2487 = vadd.f32 %v2398, %v2486
        %v2488 = vpop.f32.mrf.mxu0
        %v2489 = vadd.f32 %v2400, %v2488
        %2490 = vmatmul.bf16.gmra.mxu0 %v1697
        %v2491 = vpop.f32.mrf.mxu0
        %v2492 = vadd.f32 %v2403, %v2491
        %v2493 = vpop.f32.mrf.mxu0
        %v2494 = vadd.f32 %v2405, %v2493
        %2495 = vmatmul.bf16.gmra.mxu0 %v1701
        %v2496 = vpop.f32.mrf.mxu0
        %v2497 = vadd.f32 %v2408, %v2496
        %v2498 = vpop.f32.mrf.mxu0
        %v2499 = vadd.f32 %v2410, %v2498
        %2500 = vmatmul.bf16.gmra.mxu0 %v1705
        %v2501 = vpop.f32.mrf.mxu0
        %v2502 = vadd.f32 %v2413, %v2501
        %v2503 = vpop.f32.mrf.mxu0
        %v2504 = vadd.f32 %v2415, %v2503
        %2505 = vmatmul.bf16.gmra.mxu0 %v1709
        %v2506 = vpop.f32.mrf.mxu0
        %v2507 = vadd.f32 %v2418, %v2506
        %v2508 = vpop.f32.mrf.mxu0
        %v2509 = vadd.f32 %v2420, %v2508
        %2510 = vmatmul.bf16.gmra.mxu0 %v1713
        %v2511 = vpop.f32.mrf.mxu0
        %v2512 = vadd.f32 %v2423, %v2511
        %v2513 = vpop.f32.mrf.mxu0
        %v2514 = vadd.f32 %v2425, %v2513
        %2515 = vmatmul.bf16.gmra.mxu0 %v1717
        %v2516 = vpop.f32.mrf.mxu0
        %v2517 = vadd.f32 %v2428, %v2516
        %v2518 = vpop.f32.mrf.mxu0
        %v2519 = vadd.f32 %v2430, %v2518
        %2520 = vmatmul.bf16.gmra.mxu0 %v1848
        %v2521 = vpop.f32.mrf.mxu0
        %v2522 = vadd.f32 %v2433, %v2521
        %v2523 = vpop.f32.mrf.mxu0
        %v2524 = vadd.f32 %v2435, %v2523
        %2525 = vmatmul.bf16.gmra.mxu0 %v1657
        %v2526 = vpop.f32.mrf.mxu0
        %v2527 = vadd.f32 %v2438, %v2526
        %v2528 = vpop.f32.mrf.mxu0
        %v2529 = vadd.f32 %v2440, %v2528
        %2530 = vdwg.mxu0
        %2531 = vmatpush.bf16.msra.mxu0 0
        %2532 = vmatpush.bf16.msra.mxu0 0
        %2533 = vmatpush.bf16.msra.mxu0 0
        %2534 = vmatpush.bf16.msra.mxu0 0
        %2535 = vmatpush.bf16.msra.mxu0 %v2105
        %2536 = vmatpush.bf16.msra.mxu0 %v2104
        %2537 = vmatpush.bf16.msra.mxu0 %v2103
        %2538 = vmatpush.bf16.msra.mxu0 %v2102
        %2539 = vmatmul.bf16.gmra.mxu0 %v2142
        %v2540 = vpop.f32.mrf.mxu0
        %v2541 = vadd.f32 %v2452, %v2540
        %v2542 = vpop.f32.mrf.mxu0
        %v2543 = vadd.f32 %v2454, %v2542
        %2544 = vmatmul.bf16.gmra.mxu0 %v2144
        %v2545 = vpop.f32.mrf.mxu0
        %v2546 = vadd.f32 %v2457, %v2545
        %v2547 = vpop.f32.mrf.mxu0
        %v2548 = vadd.f32 %v2459, %v2547
        %2549 = vmatmul.bf16.gmra.mxu0 %v2146
        %v2550 = vpop.f32.mrf.mxu0
        %v2551 = vadd.f32 %v2462, %v2550
        %v2552 = vpop.f32.mrf.mxu0
        %v2553 = vadd.f32 %v2464, %v2552
        %2554 = vmatmul.bf16.gmra.mxu0 %v2148
        %v2555 = vpop.f32.mrf.mxu0
        %v2556 = vadd.f32 %v2467, %v2555
        %v2557 = vpop.f32.mrf.mxu0
        %v2558 = vadd.f32 %v2469, %v2557
        %2559 = vmatmul.bf16.gmra.mxu0 %v2150
        %v2560 = vpop.f32.mrf.mxu0
        %v2561 = vadd.f32 %v2472, %v2560
        %v2562 = vpop.f32.mrf.mxu0
        %v2563 = vadd.f32 %v2474, %v2562
        %2564 = vmatmul.bf16.gmra.mxu0 %v2152
        %v2565 = vpop.f32.mrf.mxu0
        %v2566 = vadd.f32 %v2477, %v2565
        %v2567 = vpop.f32.mrf.mxu0
        %v2568 = vadd.f32 %v2479, %v2567
        %2569 = vmatmul.bf16.gmra.mxu0 %v2154
        %v2570 = vpop.f32.mrf.mxu0
        %v2571 = vadd.f32 %v2482, %v2570
        %v2572 = vpop.f32.mrf.mxu0
        %v2573 = vadd.f32 %v2484, %v2572
        %2574 = vmatmul.bf16.gmra.mxu0 %v2156
        %v2575 = vpop.f32.mrf.mxu0
        %v2576 = vadd.f32 %v2487, %v2575
        %v2577 = vpop.f32.mrf.mxu0
        %v2578 = vadd.f32 %v2489, %v2577
        %2579 = vmatmul.bf16.gmra.mxu0 %v2158
        %v2580 = vpop.f32.mrf.mxu0
        %v2581 = vadd.f32 %v2492, %v2580
        %v2582 = vpop.f32.mrf.mxu0
        %v2583 = vadd.f32 %v2494, %v2582
        %2584 = vmatmul.bf16.gmra.mxu0 %v2160
        %v2585 = vpop.f32.mrf.mxu0
        %v2586 = vadd.f32 %v2497, %v2585
        %v2587 = vpop.f32.mrf.mxu0
        %v2588 = vadd.f32 %v2499, %v2587
        %2589 = vmatmul.bf16.gmra.mxu0 %v2162
        %v2590 = vpop.f32.mrf.mxu0
        %v2591 = vadd.f32 %v2502, %v2590
        %v2592 = vpop.f32.mrf.mxu0
        %v2593 = vadd.f32 %v2504, %v2592
        %2594 = vmatmul.bf16.gmra.mxu0 %v2164
        %v2595 = vpop.f32.mrf.mxu0
        %v2596 = vadd.f32 %v2507, %v2595
        %v2597 = vpop.f32.mrf.mxu0
        %v2598 = vadd.f32 %v2509, %v2597
        %2599 = vmatmul.bf16.gmra.mxu0 %v2166
        %v2600 = vpop.f32.mrf.mxu0
        %v2601 = vadd.f32 %v2512, %v2600
        %v2602 = vpop.f32.mrf.mxu0
        %v2603 = vadd.f32 %v2514, %v2602
        %2604 = vmatmul.bf16.gmra.mxu0 %v2168
        %v2605 = vpop.f32.mrf.mxu0
        %v2606 = vadd.f32 %v2517, %v2605
        %v2607 = vpop.f32.mrf.mxu0
        %v2608 = vadd.f32 %v2519, %v2607
        %2609 = vmatmul.bf16.gmra.mxu0 %v2171
        %v2610 = vpop.f32.mrf.mxu0
        %v2611 = vadd.f32 %v2522, %v2610
        %v2612 = vpop.f32.mrf.mxu0
        %v2613 = vadd.f32 %v2524, %v2612
        %2614 = vmatmul.bf16.gmra.mxu0 %v2173
        %v2615 = vpop.f32.mrf.mxu0
        %v2616 = vadd.f32 %v2527, %v2615
        %v2617 = vpop.f32.mrf.mxu0
        %v2618 = vadd.f32 %v2529, %v2617
        %2619 = vdwg.mxu0
        %v2620 = vmax.f32 %v2541, 0.0
        %v2621 = vmax.f32 %v2543, 0.0
        %v2622 = vmax.f32 %v2546, 0.0
        %v2623 = vmax.f32 %v2548, 0.0
        %v2624 = vmax.f32 %v2551, 0.0
        %v2625 = vmax.f32 %v2553, 0.0
        %v2626 = vmax.f32 %v2556, 0.0
        %v2627 = vmax.f32 %v2558, 0.0
        %v2628 = vmax.f32 %v2561, 0.0
        %v2629 = vmax.f32 %v2563, 0.0
        %v2630 = vmax.f32 %v2566, 0.0
        %v2631 = vmax.f32 %v2568, 0.0
        %v2632 = vmax.f32 %v2571, 0.0
        %v2633 = vmax.f32 %v2573, 0.0
        %v2634 = vmax.f32 %v2576, 0.0
        %v2635 = vmax.f32 %v2578, 0.0
        %v2636 = vmax.f32 %v2581, 0.0
        %v2637 = vmax.f32 %v2583, 0.0
        %v2638 = vmax.f32 %v2586, 0.0
        %v2639 = vmax.f32 %v2588, 0.0
        %v2640 = vmax.f32 %v2591, 0.0
        %v2641 = vmax.f32 %v2593, 0.0
        %v2642 = vmax.f32 %v2596, 0.0
        %v2643 = vmax.f32 %v2598, 0.0
        %v2644 = vmax.f32 %v2601, 0.0
        %v2645 = vmax.f32 %v2603, 0.0
        %v2646 = vmax.f32 %v2606, 0.0
        %v2647 = vmax.f32 %v2608, 0.0
        %v2648 = vmax.f32 %v2611, 0.0
        %v2649 = vmax.f32 %v2613, 0.0
        %v2650 = vmax.f32 %v2616, 0.0
        %v2651 = vmax.f32 %v2618, 0.0
        %v2684 = vrot.slane %v2620, 7
        %v2685 = vrot.slane %v2621, 7
        %v2686 = vsel %vm1025, %v2684, %v2685
        %v2687 = vrot.slane %v2622, 7
        %v2688 = vrot.slane %v2623, 7
        %v2689 = vsel %vm1025, %v2687, %v2688
        %v2690 = vrot.slane %v2624, 7
        %v2691 = vrot.slane %v2625, 7
        %v2692 = vsel %vm1025, %v2690, %v2691
        %v2693 = vrot.slane %v2626, 7
        %v2694 = vrot.slane %v2627, 7
        %v2695 = vsel %vm1025, %v2693, %v2694
        %v2696 = vrot.slane %v2628, 7
        %v2697 = vrot.slane %v2629, 7
        %v2698 = vsel %vm1025, %v2696, %v2697
        %v2699 = vrot.slane %v2630, 7
        %v2700 = vrot.slane %v2631, 7
        %v2701 = vsel %vm1025, %v2699, %v2700
        %v2702 = vrot.slane %v2632, 7
        %v2703 = vrot.slane %v2633, 7
        %v2704 = vsel %vm1025, %v2702, %v2703
        %v2705 = vrot.slane %v2634, 7
        %v2706 = vrot.slane %v2635, 7
        %v2707 = vsel %vm1025, %v2705, %v2706
        %v2708 = vrot.slane %v2636, 7
        %v2709 = vrot.slane %v2637, 7
        %v2710 = vsel %vm1025, %v2708, %v2709
        %v2711 = vrot.slane %v2638, 7
        %v2712 = vrot.slane %v2639, 7
        %v2713 = vsel %vm1025, %v2711, %v2712
        %v2714 = vrot.slane %v2640, 7
        %v2715 = vrot.slane %v2641, 7
        %v2716 = vsel %vm1025, %v2714, %v2715
        %v2717 = vrot.slane %v2642, 7
        %v2718 = vrot.slane %v2643, 7
        %v2719 = vsel %vm1025, %v2717, %v2718
        %v2720 = vrot.slane %v2644, 7
        %v2721 = vrot.slane %v2645, 7
        %v2722 = vsel %vm1025, %v2720, %v2721
        %v2723 = vrot.slane %v2646, 7
        %v2724 = vrot.slane %v2647, 7
        %v2725 = vsel %vm1025, %v2723, %v2724
        %v2726 = vrot.slane %v2648, 7
        %v2727 = vrot.slane %v2649, 7
        %v2728 = vsel %vm1025, %v2726, %v2727
        %v2729 = vrot.slane %v2650, 7
        %v2730 = vrot.slane %v2651, 7
        %v2731 = vsel %vm1025, %v2729, %v2730
        %v2764 = vsel %vm1025, 0.0, %v2684
        %v2765 = vsel %vm1025, 0.0, %v2687
        %v2766 = vsel %vm1025, 0.0, %v2690
        %v2767 = vsel %vm1025, 0.0, %v2693
        %v2768 = vsel %vm1025, 0.0, %v2696
        %v2769 = vsel %vm1025, 0.0, %v2699
        %v2770 = vsel %vm1025, 0.0, %v2702
        %v2771 = vsel %vm1025, 0.0, %v2705
        %v2772 = vsel %vm1025, 0.0, %v2708
        %v2773 = vsel %vm1025, 0.0, %v2711
        %v2774 = vsel %vm1025, 0.0, %v2714
        %v2775 = vsel %vm1025, 0.0, %v2717
        %v2776 = vsel %vm1025, 0.0, %v2720
        %v2777 = vsel %vm1025, 0.0, %v2723
        %v2778 = vsel %vm1025, 0.0, %v2726
        %v2779 = vsel %vm1025, 0.0, %v2729
        %v2780 = vrot.slane %v2620, 1
        %v2781 = vrot.slane %v2621, 1
        %v2782 = vsel %vm1122, %v2780, %v2781
        %v2783 = vrot.slane %v2622, 1
        %v2784 = vrot.slane %v2623, 1
        %v2785 = vsel %vm1122, %v2783, %v2784
        %v2786 = vrot.slane %v2624, 1
        %v2787 = vrot.slane %v2625, 1
        %v2788 = vsel %vm1122, %v2786, %v2787
        %v2789 = vrot.slane %v2626, 1
        %v2790 = vrot.slane %v2627, 1
        %v2791 = vsel %vm1122, %v2789, %v2790
        %v2792 = vrot.slane %v2628, 1
        %v2793 = vrot.slane %v2629, 1
        %v2794 = vsel %vm1122, %v2792, %v2793
        %v2795 = vrot.slane %v2630, 1
        %v2796 = vrot.slane %v2631, 1
        %v2797 = vsel %vm1122, %v2795, %v2796
        %v2798 = vrot.slane %v2632, 1
        %v2799 = vrot.slane %v2633, 1
        %v2800 = vsel %vm1122, %v2798, %v2799
        %v2801 = vrot.slane %v2634, 1
        %v2802 = vrot.slane %v2635, 1
        %v2803 = vsel %vm1122, %v2801, %v2802
        %v2804 = vrot.slane %v2636, 1
        %v2805 = vrot.slane %v2637, 1
        %v2806 = vsel %vm1122, %v2804, %v2805
        %v2807 = vrot.slane %v2638, 1
        %v2808 = vrot.slane %v2639, 1
        %v2809 = vsel %vm1122, %v2807, %v2808
        %v2810 = vrot.slane %v2640, 1
        %v2811 = vrot.slane %v2641, 1
        %v2812 = vsel %vm1122, %v2810, %v2811
        %v2813 = vrot.slane %v2642, 1
        %v2814 = vrot.slane %v2643, 1
        %v2815 = vsel %vm1122, %v2813, %v2814
        %v2816 = vrot.slane %v2644, 1
        %v2817 = vrot.slane %v2645, 1
        %v2818 = vsel %vm1122, %v2816, %v2817
        %v2819 = vrot.slane %v2646, 1
        %v2820 = vrot.slane %v2647, 1
        %v2821 = vsel %vm1122, %v2819, %v2820
        %v2822 = vrot.slane %v2648, 1
        %v2823 = vrot.slane %v2649, 1
        %v2824 = vsel %vm1122, %v2822, %v2823
        %v2825 = vrot.slane %v2650, 1
        %v2826 = vrot.slane %v2651, 1
        %v2827 = vsel %vm1122, %v2825, %v2826
        %v2860 = vsel %vm1122, %v2781, 0.0
        %v2861 = vsel %vm1122, %v2784, 0.0
        %v2862 = vsel %vm1122, %v2787, 0.0
        %v2863 = vsel %vm1122, %v2790, 0.0
        %v2864 = vsel %vm1122, %v2793, 0.0
        %v2865 = vsel %vm1122, %v2796, 0.0
        %v2866 = vsel %vm1122, %v2799, 0.0
        %v2867 = vsel %vm1122, %v2802, 0.0
        %v2868 = vsel %vm1122, %v2805, 0.0
        %v2869 = vsel %vm1122, %v2808, 0.0
        %v2870 = vsel %vm1122, %v2811, 0.0
        %v2871 = vsel %vm1122, %v2814, 0.0
        %v2872 = vsel %vm1122, %v2817, 0.0
        %v2873 = vsel %vm1122, %v2820, 0.0
        %v2874 = vsel %vm1122, %v2823, 0.0
        %v2875 = vsel %vm1122, %v2826, 0.0
        %v2876 = vpack.c.bf16 %v2764, %v2764
        %v2877 = vpack.c.bf16 %v2686, %v2686
        %v2878 = vpack.c.bf16 %v2765, %v2765
        %v2879 = vpack.c.bf16 %v2689, %v2689
        %v2880 = vpack.c.bf16 %v2766, %v2766
        %v2881 = vpack.c.bf16 %v2692, %v2692
        %v2882 = vpack.c.bf16 %v2767, %v2767
        %v2883 = vpack.c.bf16 %v2695, %v2695
        %v2884 = vpack.c.bf16 %v2768, %v2768
        %v2885 = vpack.c.bf16 %v2698, %v2698
        %v2886 = vpack.c.bf16 %v2769, %v2769
        %v2887 = vpack.c.bf16 %v2701, %v2701
        %v2888 = vpack.c.bf16 %v2770, %v2770
        %v2889 = vpack.c.bf16 %v2704, %v2704
        %v2890 = vpack.c.bf16 %v2771, %v2771
        %v2891 = vpack.c.bf16 %v2707, %v2707
        %v2892 = vpack.c.bf16 %v2772, %v2772
        %v2893 = vpack.c.bf16 %v2710, %v2710
        %v2894 = vpack.c.bf16 %v2773, %v2773
        %v2895 = vpack.c.bf16 %v2713, %v2713
        %v2896 = vpack.c.bf16 %v2774, %v2774
        %v2897 = vpack.c.bf16 %v2716, %v2716
        %v2898 = vpack.c.bf16 %v2775, %v2775
        %v2899 = vpack.c.bf16 %v2719, %v2719
        %v2900 = vpack.c.bf16 %v2776, %v2776
        %v2901 = vpack.c.bf16 %v2722, %v2722
        %v2902 = vpack.c.bf16 %v2777, %v2777
        %v2903 = vpack.c.bf16 %v2725, %v2725
        %v2904 = vpack.c.bf16 %v2778, %v2778
        %v2905 = vpack.c.bf16 %v2728, %v2728
        %v2906 = vpack.c.bf16 %v2779, %v2779
        %v2907 = vpack.c.bf16 %v2731, %v2731
        %v2908 = vpack.c.bf16 %v2620, %v2620
        %v2909 = vpack.c.bf16 %v2621, %v2621
        %v2910 = vpack.c.bf16 %v2622, %v2622
        %v2911 = vpack.c.bf16 %v2623, %v2623
        %v2912 = vpack.c.bf16 %v2624, %v2624
        %v2913 = vpack.c.bf16 %v2625, %v2625
        %v2914 = vpack.c.bf16 %v2626, %v2626
        %v2915 = vpack.c.bf16 %v2627, %v2627
        %v2916 = vpack.c.bf16 %v2628, %v2628
        %v2917 = vpack.c.bf16 %v2629, %v2629
        %v2918 = vpack.c.bf16 %v2630, %v2630
        %v2919 = vpack.c.bf16 %v2631, %v2631
        %v2920 = vpack.c.bf16 %v2632, %v2632
        %v2921 = vpack.c.bf16 %v2633, %v2633
        %v2922 = vpack.c.bf16 %v2634, %v2634
        %v2923 = vpack.c.bf16 %v2635, %v2635
        %v2924 = vpack.c.bf16 %v2636, %v2636
        %v2925 = vpack.c.bf16 %v2637, %v2637
        %v2926 = vpack.c.bf16 %v2638, %v2638
        %v2927 = vpack.c.bf16 %v2639, %v2639
        %v2928 = vpack.c.bf16 %v2640, %v2640
        %v2929 = vpack.c.bf16 %v2641, %v2641
        %v2930 = vpack.c.bf16 %v2642, %v2642
        %v2931 = vpack.c.bf16 %v2643, %v2643
        %v2932 = vpack.c.bf16 %v2644, %v2644
        %v2933 = vpack.c.bf16 %v2645, %v2645
        %v2934 = vpack.c.bf16 %v2646, %v2646
        %v2935 = vpack.c.bf16 %v2647, %v2647
        %v2936 = vpack.c.bf16 %v2648, %v2648
        %v2937 = vpack.c.bf16 %v2649, %v2649
        %v2938 = vpack.c.bf16 %v2650, %v2650
        %v2939 = vpack.c.bf16 %v2651, %v2651
        %v2940 = vpack.c.bf16 %v2782, %v2782
        %v2941 = vpack.c.bf16 %v2860, %v2860
        %v2942 = vpack.c.bf16 %v2785, %v2785
        %v2943 = vpack.c.bf16 %v2861, %v2861
        %v2944 = vpack.c.bf16 %v2788, %v2788
        %v2945 = vpack.c.bf16 %v2862, %v2862
        %v2946 = vpack.c.bf16 %v2791, %v2791
        %v2947 = vpack.c.bf16 %v2863, %v2863
        %v2948 = vpack.c.bf16 %v2794, %v2794
        %v2949 = vpack.c.bf16 %v2864, %v2864
        %v2950 = vpack.c.bf16 %v2797, %v2797
        %v2951 = vpack.c.bf16 %v2865, %v2865
        %v2952 = vpack.c.bf16 %v2800, %v2800
        %v2953 = vpack.c.bf16 %v2866, %v2866
        %v2954 = vpack.c.bf16 %v2803, %v2803
        %v2955 = vpack.c.bf16 %v2867, %v2867
        %v2956 = vpack.c.bf16 %v2806, %v2806
        %v2957 = vpack.c.bf16 %v2868, %v2868
        %v2958 = vpack.c.bf16 %v2809, %v2809
        %v2959 = vpack.c.bf16 %v2869, %v2869
        %v2960 = vpack.c.bf16 %v2812, %v2812
        %v2961 = vpack.c.bf16 %v2870, %v2870
        %v2962 = vpack.c.bf16 %v2815, %v2815
        %v2963 = vpack.c.bf16 %v2871, %v2871
        %v2964 = vpack.c.bf16 %v2818, %v2818
        %v2965 = vpack.c.bf16 %v2872, %v2872
        %v2966 = vpack.c.bf16 %v2821, %v2821
        %v2967 = vpack.c.bf16 %v2873, %v2873
        %v2968 = vpack.c.bf16 %v2824, %v2824
        %v2969 = vpack.c.bf16 %v2874, %v2874
        %v2970 = vpack.c.bf16 %v2827, %v2827
        %v2971 = vpack.c.bf16 %v2875, %v2875
        %v3004 = vunpack.c.l.b16 %v2876
        %v3005 = vunpack.c.l.b16 %v2877
        %v3006 = vunpack.c.l.b16 %v2878
        %v3007 = vunpack.c.l.b16 %v2879
        %v3008 = vunpack.c.l.b16 %v2880
        %v3009 = vunpack.c.l.b16 %v2881
        %v3010 = vunpack.c.l.b16 %v2882
        %v3011 = vunpack.c.l.b16 %v2883
        %v3012 = vunpack.c.l.b16 %v2884
        %v3013 = vunpack.c.l.b16 %v2885
        %v3014 = vunpack.c.l.b16 %v2886
        %v3015 = vunpack.c.l.b16 %v2887
        %v3016 = vunpack.c.l.b16 %v2888
        %v3017 = vunpack.c.l.b16 %v2889
        %v3018 = vunpack.c.l.b16 %v2890
        %v3019 = vunpack.c.l.b16 %v2891
        %v3020 = vunpack.c.l.b16 %v2892
        %v3021 = vunpack.c.l.b16 %v2893
        %v3022 = vunpack.c.l.b16 %v2894
        %v3023 = vunpack.c.l.b16 %v2895
        %v3024 = vunpack.c.l.b16 %v2896
        %v3025 = vunpack.c.l.b16 %v2897
        %v3026 = vunpack.c.l.b16 %v2898
        %v3027 = vunpack.c.l.b16 %v2899
        %v3028 = vunpack.c.l.b16 %v2900
        %v3029 = vunpack.c.l.b16 %v2901
        %v3030 = vunpack.c.l.b16 %v2902
        %v3031 = vunpack.c.l.b16 %v2903
        %v3032 = vunpack.c.l.b16 %v2904
        %v3033 = vunpack.c.l.b16 %v2905
        %v3034 = vunpack.c.l.b16 %v2906
        %v3035 = vunpack.c.l.b16 %v2907
        %v3036 = vpack.c.b16 %v3005, %v3004
        %v3037 = vpack.c.b16 %v3007, %v3006
        %v3038 = vpack.c.b16 %v3009, %v3008
        %v3039 = vpack.c.b16 %v3011, %v3010
        %v3040 = vpack.c.b16 %v3013, %v3012
        %v3041 = vpack.c.b16 %v3015, %v3014
        %v3042 = vpack.c.b16 %v3017, %v3016
        %v3043 = vpack.c.b16 %v3019, %v3018
        %v3044 = vpack.c.b16 %v3021, %v3020
        %v3045 = vpack.c.b16 %v3023, %v3022
        %v3046 = vpack.c.b16 %v3025, %v3024
        %v3047 = vpack.c.b16 %v3027, %v3026
        %v3048 = vpack.c.b16 %v3029, %v3028
        %v3049 = vpack.c.b16 %v3031, %v3030
        %v3050 = vpack.c.b16 %v3033, %v3032
        %v3051 = vpack.c.b16 %v3035, %v3034
        %v3084 = vunpack.c.l.b16 %v2908
        %v3085 = vunpack.c.l.b16 %v2909
        %v3086 = vunpack.c.l.b16 %v2910
        %v3087 = vunpack.c.l.b16 %v2911
        %v3088 = vunpack.c.l.b16 %v2912
        %v3089 = vunpack.c.l.b16 %v2913
        %v3090 = vunpack.c.l.b16 %v2914
        %v3091 = vunpack.c.l.b16 %v2915
        %v3092 = vunpack.c.l.b16 %v2916
        %v3093 = vunpack.c.l.b16 %v2917
        %v3094 = vunpack.c.l.b16 %v2918
        %v3095 = vunpack.c.l.b16 %v2919
        %v3096 = vunpack.c.l.b16 %v2920
        %v3097 = vunpack.c.l.b16 %v2921
        %v3098 = vunpack.c.l.b16 %v2922
        %v3099 = vunpack.c.l.b16 %v2923
        %v3100 = vunpack.c.l.b16 %v2924
        %v3101 = vunpack.c.l.b16 %v2925
        %v3102 = vunpack.c.l.b16 %v2926
        %v3103 = vunpack.c.l.b16 %v2927
        %v3104 = vunpack.c.l.b16 %v2928
        %v3105 = vunpack.c.l.b16 %v2929
        %v3106 = vunpack.c.l.b16 %v2930
        %v3107 = vunpack.c.l.b16 %v2931
        %v3108 = vunpack.c.l.b16 %v2932
        %v3109 = vunpack.c.l.b16 %v2933
        %v3110 = vunpack.c.l.b16 %v2934
        %v3111 = vunpack.c.l.b16 %v2935
        %v3112 = vunpack.c.l.b16 %v2936
        %v3113 = vunpack.c.l.b16 %v2937
        %v3114 = vunpack.c.l.b16 %v2938
        %v3115 = vunpack.c.l.b16 %v2939
        %v3116 = vpack.c.b16 %v3085, %v3084
        %v3117 = vpack.c.b16 %v3087, %v3086
        %v3118 = vpack.c.b16 %v3089, %v3088
        %v3119 = vpack.c.b16 %v3091, %v3090
        %v3120 = vpack.c.b16 %v3093, %v3092
        %v3121 = vpack.c.b16 %v3095, %v3094
        %v3122 = vpack.c.b16 %v3097, %v3096
        %v3123 = vpack.c.b16 %v3099, %v3098
        %v3124 = vpack.c.b16 %v3101, %v3100
        %v3125 = vpack.c.b16 %v3103, %v3102
        %v3126 = vpack.c.b16 %v3105, %v3104
        %v3127 = vpack.c.b16 %v3107, %v3106
        %v3128 = vpack.c.b16 %v3109, %v3108
        %v3129 = vpack.c.b16 %v3111, %v3110
        %v3130 = vpack.c.b16 %v3113, %v3112
        %v3131 = vpack.c.b16 %v3115, %v3114
        %v3164 = vunpack.c.l.b16 %v2940
        %v3165 = vunpack.c.l.b16 %v2941
        %v3166 = vunpack.c.l.b16 %v2942
        %v3167 = vunpack.c.l.b16 %v2943
        %v3168 = vunpack.c.l.b16 %v2944
        %v3169 = vunpack.c.l.b16 %v2945
        %v3170 = vunpack.c.l.b16 %v2946
        %v3171 = vunpack.c.l.b16 %v2947
        %v3172 = vunpack.c.l.b16 %v2948
        %v3173 = vunpack.c.l.b16 %v2949
        %v3174 = vunpack.c.l.b16 %v2950
        %v3175 = vunpack.c.l.b16 %v2951
        %v3176 = vunpack.c.l.b16 %v2952
        %v3177 = vunpack.c.l.b16 %v2953
        %v3178 = vunpack.c.l.b16 %v2954
        %v3179 = vunpack.c.l.b16 %v2955
        %v3180 = vunpack.c.l.b16 %v2956
        %v3181 = vunpack.c.l.b16 %v2957
        %v3182 = vunpack.c.l.b16 %v2958
        %v3183 = vunpack.c.l.b16 %v2959
        %v3184 = vunpack.c.l.b16 %v2960
        %v3185 = vunpack.c.l.b16 %v2961
        %v3186 = vunpack.c.l.b16 %v2962
        %v3187 = vunpack.c.l.b16 %v2963
        %v3188 = vunpack.c.l.b16 %v2964
        %v3189 = vunpack.c.l.b16 %v2965
        %v3190 = vunpack.c.l.b16 %v2966
        %v3191 = vunpack.c.l.b16 %v2967
        %v3192 = vunpack.c.l.b16 %v2968
        %v3193 = vunpack.c.l.b16 %v2969
        %v3194 = vunpack.c.l.b16 %v2970
        %v3195 = vunpack.c.l.b16 %v2971
        %v3196 = vpack.c.b16 %v3165, %v3164
        %v3197 = vpack.c.b16 %v3167, %v3166
        %v3198 = vpack.c.b16 %v3169, %v3168
        %v3199 = vpack.c.b16 %v3171, %v3170
        %v3200 = vpack.c.b16 %v3173, %v3172
        %v3201 = vpack.c.b16 %v3175, %v3174
        %v3202 = vpack.c.b16 %v3177, %v3176
        %v3203 = vpack.c.b16 %v3179, %v3178
        %v3204 = vpack.c.b16 %v3181, %v3180
        %v3205 = vpack.c.b16 %v3183, %v3182
        %v3206 = vpack.c.b16 %v3185, %v3184
        %v3207 = vpack.c.b16 %v3187, %v3186
        %v3208 = vpack.c.b16 %v3189, %v3188
        %v3209 = vpack.c.b16 %v3191, %v3190
        %v3210 = vpack.c.b16 %v3193, %v3192
        %v3211 = vpack.c.b16 %v3195, %v3194
        %3212 = vrot.lane.b32.xlu0 %v3116, 64
        %v3213 = vpop.permute.xlu0 %3212
        %3214 = vrot.lane.b32.xlu0 %v3117, 64
        %v3215 = vpop.permute.xlu0 %3214
        %3216 = vrot.lane.b32.xlu0 %v3118, 64
        %v3217 = vpop.permute.xlu0 %3216
        %3218 = vrot.lane.b32.xlu0 %v3119, 64
        %v3219 = vpop.permute.xlu0 %3218
        %3220 = vrot.lane.b32.xlu0 %v3120, 64
        %v3221 = vpop.permute.xlu0 %3220
        %3222 = vrot.lane.b32.xlu0 %v3121, 64
        %v3223 = vpop.permute.xlu0 %3222
        %3224 = vrot.lane.b32.xlu0 %v3122, 64
        %v3225 = vpop.permute.xlu0 %3224
        %3226 = vrot.lane.b32.xlu0 %v3123, 64
        %v3227 = vpop.permute.xlu0 %3226
        %3228 = vrot.lane.b32.xlu0 %v3124, 64
        %v3229 = vpop.permute.xlu0 %3228
        %3230 = vrot.lane.b32.xlu0 %v3125, 64
        %v3231 = vpop.permute.xlu0 %3230
        %3232 = vrot.lane.b32.xlu0 %v3126, 64
        %v3233 = vpop.permute.xlu0 %3232
        %3234 = vrot.lane.b32.xlu0 %v3127, 64
        %v3235 = vpop.permute.xlu0 %3234
        %3236 = vrot.lane.b32.xlu0 %v3128, 64
        %v3237 = vpop.permute.xlu0 %3236
        %3238 = vrot.lane.b32.xlu0 %v3129, 64
        %v3239 = vpop.permute.xlu0 %3238
        %3240 = vrot.lane.b32.xlu0 %v3130, 64
        %v3241 = vpop.permute.xlu0 %3240
        %3242 = vrot.lane.b32.xlu0 %v3036, 64
        %v3243 = vpop.permute.xlu0 %3242
        %3244 = vrot.lane.b32.xlu0 %v3037, 64
        %v3245 = vpop.permute.xlu0 %3244
        %3246 = vrot.lane.b32.xlu0 %v3038, 64
        %v3247 = vpop.permute.xlu0 %3246
        %3248 = vrot.lane.b32.xlu0 %v3039, 64
        %v3249 = vpop.permute.xlu0 %3248
        %3250 = vrot.lane.b32.xlu0 %v3040, 64
        %v3251 = vpop.permute.xlu0 %3250
        %3252 = vrot.lane.b32.xlu0 %v3041, 64
        %v3253 = vpop.permute.xlu0 %3252
        %3254 = vrot.lane.b32.xlu0 %v3042, 64
        %v3255 = vpop.permute.xlu0 %3254
        %3256 = vrot.lane.b32.xlu0 %v3043, 64
        %v3257 = vpop.permute.xlu0 %3256
        %3258 = vrot.lane.b32.xlu0 %v3044, 64
        %v3259 = vpop.permute.xlu0 %3258
        %3260 = vrot.lane.b32.xlu0 %v3045, 64
        %v3261 = vpop.permute.xlu0 %3260
        %3262 = vrot.lane.b32.xlu0 %v3046, 64
        %v3263 = vpop.permute.xlu0 %3262
        %3264 = vrot.lane.b32.xlu0 %v3047, 64
        %v3265 = vpop.permute.xlu0 %3264
        %3266 = vrot.lane.b32.xlu0 %v3048, 64
        %v3267 = vpop.permute.xlu0 %3266
        %3268 = vrot.lane.b32.xlu0 %v3049, 64
        %v3269 = vpop.permute.xlu0 %3268
        %3270 = vrot.lane.b32.xlu0 %v3050, 64
        %v3271 = vpop.permute.xlu0 %3270
        %3272 = vrot.lane.b32.xlu0 %v3051, 64
        %v3273 = vpop.permute.xlu0 %3272
        %3274 = vrot.lane.b32.xlu0 %v3196, 64
        %v3275 = vpop.permute.xlu0 %3274
        %3276 = vrot.lane.b32.xlu0 %v3197, 64
        %v3277 = vpop.permute.xlu0 %3276
        %3278 = vrot.lane.b32.xlu0 %v3198, 64
        %v3279 = vpop.permute.xlu0 %3278
        %3280 = vrot.lane.b32.xlu0 %v3199, 64
        %v3281 = vpop.permute.xlu0 %3280
        %3282 = vrot.lane.b32.xlu0 %v3200, 64
        %v3283 = vpop.permute.xlu0 %3282
        %3284 = vrot.lane.b32.xlu0 %v3201, 64
        %v3285 = vpop.permute.xlu0 %3284
        %3286 = vrot.lane.b32.xlu0 %v3202, 64
        %v3287 = vpop.permute.xlu0 %3286
        %3288 = vrot.lane.b32.xlu0 %v3203, 64
        %v3289 = vpop.permute.xlu0 %3288
        %3290 = vrot.lane.b32.xlu0 %v3204, 64
        %v3291 = vpop.permute.xlu0 %3290
        %3292 = vrot.lane.b32.xlu0 %v3205, 64
        %v3293 = vpop.permute.xlu0 %3292
        %3294 = vrot.lane.b32.xlu0 %v3206, 64
        %v3295 = vpop.permute.xlu0 %3294
        %3296 = vrot.lane.b32.xlu0 %v3207, 64
        %v3297 = vpop.permute.xlu0 %3296
        %3298 = vrot.lane.b32.xlu0 %v3208, 64
        %v3299 = vpop.permute.xlu0 %3298
        %3300 = vrot.lane.b32.xlu0 %v3209, 64
        %v3301 = vpop.permute.xlu0 %3300
        %3302 = vrot.lane.b32.xlu0 %v3210, 64
        %v3303 = vpop.permute.xlu0 %3302
        %3304 = vrot.lane.b32.xlu0 %v3211, 64
        %v3305 = vpop.permute.xlu0 %3304
        %3306 = vrot.lane.b32.xlu0 %v3131, 64
        %v3307 = vpop.permute.xlu0 %3306
        %v3310 = vsel %vm1654, %v3036, %v3213
        %v3314 = vsel %vm1654, %v3037, %v3215
        %v3318 = vsel %vm1654, %v3038, %v3217
        %v3322 = vsel %vm1654, %v3039, %v3219
        %v3326 = vsel %vm1654, %v3040, %v3221
        %v3330 = vsel %vm1654, %v3041, %v3223
        %v3334 = vsel %vm1654, %v3042, %v3225
        %v3338 = vsel %vm1654, %v3043, %v3227
        %v3342 = vsel %vm1654, %v3044, %v3229
        %v3346 = vsel %vm1654, %v3045, %v3231
        %v3350 = vsel %vm1654, %v3046, %v3233
        %v3354 = vsel %vm1654, %v3047, %v3235
        %v3358 = vsel %vm1654, %v3048, %v3237
        %v3362 = vsel %vm1654, %v3049, %v3239
        %v3366 = vsel %vm1654, %v3050, %v3241
        %v3369 = vsel %vm1654, 0, %v3243
        %v3373 = vsel %vm1654, %v3196, %v3245
        %v3377 = vsel %vm1654, %v3197, %v3247
        %v3381 = vsel %vm1654, %v3198, %v3249
        %v3385 = vsel %vm1654, %v3199, %v3251
        %v3389 = vsel %vm1654, %v3200, %v3253
        %v3393 = vsel %vm1654, %v3201, %v3255
        %v3397 = vsel %vm1654, %v3202, %v3257
        %v3401 = vsel %vm1654, %v3203, %v3259
        %v3405 = vsel %vm1654, %v3204, %v3261
        %v3409 = vsel %vm1654, %v3205, %v3263
        %v3413 = vsel %vm1654, %v3206, %v3265
        %v3417 = vsel %vm1654, %v3207, %v3267
        %v3421 = vsel %vm1654, %v3208, %v3269
        %v3425 = vsel %vm1654, %v3209, %v3271
        %v3429 = vsel %vm1654, %v3210, %v3273
        %v3433 = vsel %vm1654, %v3116, %v3275
        %v3437 = vsel %vm1654, %v3117, %v3277
        %v3441 = vsel %vm1654, %v3118, %v3279
        %v3445 = vsel %vm1654, %v3119, %v3281
        %v3449 = vsel %vm1654, %v3120, %v3283
        %v3453 = vsel %vm1654, %v3121, %v3285
        %v3457 = vsel %vm1654, %v3122, %v3287
        %v3461 = vsel %vm1654, %v3123, %v3289
        %v3465 = vsel %vm1654, %v3124, %v3291
        %v3469 = vsel %vm1654, %v3125, %v3293
        %v3473 = vsel %vm1654, %v3126, %v3295
        %v3477 = vsel %vm1654, %v3127, %v3297
        %v3481 = vsel %vm1654, %v3128, %v3299
        %v3485 = vsel %vm1654, %v3129, %v3301
        %v3489 = vsel %vm1654, %v3130, %v3303
        %v3493 = vsel %vm1654, %v3131, %v3305
        %v3497 = vsel %vm1654, %v3051, %v3307
        %v3499 = vld [vmem:[#allocation6] sm:$0xf]
        %v3500 = vld [vmem:[#allocation6 + $0x4] sm:$0xf]
        %v3501 = vld [vmem:[#allocation6 + $0x8] sm:$0xf]
        %v3502 = vld [vmem:[#allocation6 + $0xc] sm:$0xf]
        %v3503 = vld [vmem:[#allocation6 + $0x10] sm:$0xf]
        %v3504 = vld [vmem:[#allocation6 + $0x14] sm:$0xf]
        %v3505 = vld [vmem:[#allocation6 + $0x18] sm:$0xf]
        %v3506 = vld [vmem:[#allocation6 + $0x1c] sm:$0xf]
        %v3507 = vld [vmem:[#allocation6 + $0x20] sm:$0xf]
        %v3508 = vld [vmem:[#allocation6 + $0x24] sm:$0xf]
        %v3509 = vld [vmem:[#allocation6 + $0x28] sm:$0xf]
        %v3510 = vld [vmem:[#allocation6 + $0x2c] sm:$0xf]
        %v3511 = vld [vmem:[#allocation6 + $0x30] sm:$0xf]
        %v3512 = vld [vmem:[#allocation6 + $0x34] sm:$0xf]
        %v3513 = vld [vmem:[#allocation6 + $0x38] sm:$0xf]
        %v3514 = vld [vmem:[#allocation6 + $0x3c] sm:$0xf]
        %v3515 = vld [vmem:[#allocation6 + $0x40] sm:$0xf]
        %v3516 = vld [vmem:[#allocation6 + $0x44] sm:$0xf]
        %v3517 = vld [vmem:[#allocation6 + $0x48] sm:$0xf]
        %v3518 = vld [vmem:[#allocation6 + $0x4c] sm:$0xf]
        %v3519 = vld [vmem:[#allocation6 + $0x50] sm:$0xf]
        %v3520 = vld [vmem:[#allocation6 + $0x54] sm:$0xf]
        %v3521 = vld [vmem:[#allocation6 + $0x58] sm:$0xf]
        %v3522 = vld [vmem:[#allocation6 + $0x5c] sm:$0xf]
        %v3523 = vld [vmem:[#allocation6 + $0x60] sm:$0xf]
        %v3524 = vld [vmem:[#allocation6 + $0x64] sm:$0xf]
        %v3525 = vld [vmem:[#allocation6 + $0x68] sm:$0xf]
        %v3526 = vld [vmem:[#allocation6 + $0x6c] sm:$0xf]
        %v3527 = vld [vmem:[#allocation6 + $0x70] sm:$0xf]
        %v3528 = vld [vmem:[#allocation6 + $0x74] sm:$0xf]
        %v3529 = vld [vmem:[#allocation6 + $0x78] sm:$0xf]
        %v3530 = vld [vmem:[#allocation6 + $0x7c] sm:$0xf]
        %v3531 = vld [vmem:[#allocation6 + $0x80] sm:$0xf]
        %v3532 = vld [vmem:[#allocation6 + $0x84] sm:$0xf]
        %v3533 = vld [vmem:[#allocation6 + $0x88] sm:$0xf]
        %v3534 = vld [vmem:[#allocation6 + $0x8c] sm:$0xf]
        %v3535 = vld [vmem:[#allocation6 + $0x90] sm:$0xf]
        %v3536 = vld [vmem:[#allocation6 + $0x94] sm:$0xf]
        %v3537 = vld [vmem:[#allocation6 + $0x98] sm:$0xf]
        %v3538 = vld [vmem:[#allocation6 + $0x9c] sm:$0xf]
        %v3539 = vld [vmem:[#allocation6 + $0xa0] sm:$0xf]
        %v3540 = vld [vmem:[#allocation6 + $0xa4] sm:$0xf]
        %v3541 = vld [vmem:[#allocation6 + $0xa8] sm:$0xf]
        %v3542 = vld [vmem:[#allocation6 + $0xac] sm:$0xf]
        %v3543 = vld [vmem:[#allocation6 + $0xb0] sm:$0xf]
        %v3544 = vld [vmem:[#allocation6 + $0xb4] sm:$0xf]
        %v3545 = vld [vmem:[#allocation6 + $0xb8] sm:$0xf]
        %v3546 = vld [vmem:[#allocation6 + $0xbc] sm:$0xf]
        %v3547 = vld [vmem:[#allocation6 + $0xc0] sm:$0xf]
        %v3548 = vld [vmem:[#allocation6 + $0xc4] sm:$0xf]
        %v3549 = vld [vmem:[#allocation6 + $0xc8] sm:$0xf]
        %v3550 = vld [vmem:[#allocation6 + $0xcc] sm:$0xf]
        %v3551 = vld [vmem:[#allocation6 + $0xd0] sm:$0xf]
        %v3552 = vld [vmem:[#allocation6 + $0xd4] sm:$0xf]
        %v3553 = vld [vmem:[#allocation6 + $0xd8] sm:$0xf]
        %v3554 = vld [vmem:[#allocation6 + $0xdc] sm:$0xf]
        %v3555 = vld [vmem:[#allocation6 + $0xe0] sm:$0xf]
        %v3556 = vld [vmem:[#allocation6 + $0xe4] sm:$0xf]
        %v3557 = vld [vmem:[#allocation6 + $0xe8] sm:$0xf]
        %v3558 = vld [vmem:[#allocation6 + $0xec] sm:$0xf]
        %v3559 = vld [vmem:[#allocation6 + $0xf0] sm:$0xf]
        %v3560 = vld [vmem:[#allocation6 + $0xf4] sm:$0xf]
        %v3561 = vld [vmem:[#allocation6 + $0xf8] sm:$0xf]
        %v3562 = vld [vmem:[#allocation6 + $0xfc] sm:$0xf]
        %v3563 = vld [vmem:[#allocation6 + $0x100] sm:$0xf]
        %v3564 = vld [vmem:[#allocation6 + $0x104] sm:$0xf]
        %v3565 = vld [vmem:[#allocation6 + $0x108] sm:$0xf]
        %v3566 = vld [vmem:[#allocation6 + $0x10c] sm:$0xf]
        %v3567 = vld [vmem:[#allocation6 + $0x110] sm:$0xf]
        %v3568 = vld [vmem:[#allocation6 + $0x114] sm:$0xf]
        %v3569 = vld [vmem:[#allocation6 + $0x118] sm:$0xf]
        %v3570 = vld [vmem:[#allocation6 + $0x11c] sm:$0xf]
        %v3571 = vld [vmem:[%s6] sm:$0x1]
        %v3573 = vperm.slane %v3571, 0
        %v3647 = vunpack.c.l.b16 %v3499
        %v3648 = vunpack.c.l.b16 %v3500
        %v3649 = vunpack.c.l.b16 %v3501
        %v3650 = vunpack.c.l.b16 %v3502
        %v3651 = vunpack.c.l.b16 %v3503
        %v3652 = vunpack.c.l.b16 %v3504
        %v3653 = vunpack.c.l.b16 %v3505
        %v3654 = vunpack.c.l.b16 %v3506
        %v3655 = vunpack.c.l.b16 %v3507
        %v3656 = vunpack.c.l.b16 %v3508
        %v3657 = vunpack.c.l.b16 %v3509
        %v3658 = vunpack.c.l.b16 %v3510
        %v3659 = vunpack.c.l.b16 %v3511
        %v3660 = vunpack.c.l.b16 %v3512
        %v3661 = vunpack.c.l.b16 %v3513
        %v3662 = vunpack.c.l.b16 %v3514
        %v3663 = vunpack.c.l.b16 %v3515
        %v3664 = vunpack.c.l.b16 %v3516
        %v3665 = vunpack.c.l.b16 %v3517
        %v3666 = vunpack.c.l.b16 %v3518
        %v3667 = vunpack.c.l.b16 %v3519
        %v3668 = vunpack.c.l.b16 %v3520
        %v3669 = vunpack.c.l.b16 %v3521
        %v3670 = vunpack.c.l.b16 %v3522
        %v3671 = vunpack.c.l.b16 %v3523
        %v3672 = vunpack.c.l.b16 %v3524
        %v3673 = vunpack.c.l.b16 %v3525
        %v3674 = vunpack.c.l.b16 %v3526
        %v3675 = vunpack.c.l.b16 %v3527
        %v3676 = vunpack.c.l.b16 %v3528
        %v3677 = vunpack.c.l.b16 %v3529
        %v3678 = vunpack.c.l.b16 %v3530
        %v3679 = vunpack.c.l.b16 %v3531
        %v3680 = vunpack.c.l.b16 %v3532
        %v3681 = vunpack.c.l.b16 %v3533
        %v3682 = vunpack.c.l.b16 %v3534
        %v3683 = vunpack.c.l.b16 %v3535
        %v3684 = vunpack.c.l.b16 %v3536
        %v3685 = vunpack.c.l.b16 %v3537
        %v3686 = vunpack.c.l.b16 %v3538
        %v3687 = vunpack.c.l.b16 %v3539
        %v3688 = vunpack.c.l.b16 %v3540
        %v3689 = vunpack.c.l.b16 %v3541
        %v3690 = vunpack.c.l.b16 %v3542
        %v3691 = vunpack.c.l.b16 %v3543
        %v3692 = vunpack.c.l.b16 %v3544
        %v3693 = vunpack.c.l.b16 %v3545
        %v3694 = vunpack.c.l.b16 %v3546
        %v3695 = vunpack.c.l.b16 %v3547
        %v3696 = vunpack.c.l.b16 %v3548
        %v3697 = vunpack.c.l.b16 %v3549
        %v3698 = vunpack.c.l.b16 %v3550
        %v3699 = vunpack.c.l.b16 %v3551
        %v3700 = vunpack.c.l.b16 %v3552
        %v3701 = vunpack.c.l.b16 %v3553
        %v3702 = vunpack.c.l.b16 %v3554
        %v3703 = vunpack.c.l.b16 %v3555
        %v3704 = vunpack.c.l.b16 %v3556
        %v3705 = vunpack.c.l.b16 %v3557
        %v3706 = vunpack.c.l.b16 %v3558
        %v3707 = vunpack.c.l.b16 %v3559
        %v3708 = vunpack.c.l.b16 %v3560
        %v3709 = vunpack.c.l.b16 %v3561
        %v3710 = vunpack.c.l.b16 %v3562
        %v3711 = vunpack.c.l.b16 %v3563
        %v3712 = vunpack.c.l.b16 %v3564
        %v3713 = vunpack.c.l.b16 %v3565
        %v3714 = vunpack.c.l.b16 %v3566
        %v3715 = vunpack.c.l.b16 %v3567
        %v3716 = vunpack.c.l.b16 %v3568
        %v3717 = vunpack.c.l.b16 %v3569
        %v3718 = vunpack.c.l.b16 %v3570
        %v3719 = vpack.c.b16 %v3648, %v3647
        %v3720 = vpack.c.b16 %v3650, %v3649
        %v3721 = vpack.c.b16 %v3652, %v3651
        %v3722 = vpack.c.b16 %v3654, %v3653
        %v3723 = vpack.c.b16 %v3656, %v3655
        %v3724 = vpack.c.b16 %v3658, %v3657
        %v3725 = vpack.c.b16 %v3660, %v3659
        %v3726 = vpack.c.b16 %v3662, %v3661
        %v3727 = vpack.c.b16 %v3664, %v3663
        %v3728 = vpack.c.b16 %v3666, %v3665
        %v3729 = vpack.c.b16 %v3668, %v3667
        %v3730 = vpack.c.b16 %v3670, %v3669
        %v3731 = vpack.c.b16 %v3672, %v3671
        %v3732 = vpack.c.b16 %v3674, %v3673
        %v3733 = vpack.c.b16 %v3676, %v3675
        %v3734 = vpack.c.b16 %v3678, %v3677
        %v3735 = vpack.c.b16 %v3680, %v3679
        %v3736 = vpack.c.b16 %v3682, %v3681
        %v3737 = vpack.c.b16 %v3684, %v3683
        %v3738 = vpack.c.b16 %v3686, %v3685
        %v3739 = vpack.c.b16 %v3688, %v3687
        %v3740 = vpack.c.b16 %v3690, %v3689
        %v3741 = vpack.c.b16 %v3692, %v3691
        %v3742 = vpack.c.b16 %v3694, %v3693
        %v3743 = vpack.c.b16 %v3696, %v3695
        %v3744 = vpack.c.b16 %v3698, %v3697
        %v3745 = vpack.c.b16 %v3700, %v3699
        %v3746 = vpack.c.b16 %v3702, %v3701
        %v3747 = vpack.c.b16 %v3704, %v3703
        %v3748 = vpack.c.b16 %v3706, %v3705
        %v3749 = vpack.c.b16 %v3708, %v3707
        %v3750 = vpack.c.b16 %v3710, %v3709
        %v3751 = vpack.c.b16 %v3712, %v3711
        %v3752 = vpack.c.b16 %v3714, %v3713
        %v3753 = vpack.c.b16 %v3716, %v3715
        %v3754 = vpack.c.b16 %v3718, %v3717
        %v3791 = vsel %vm1654, %v3197, 0
        %v3793 = vsel %vm1654, %v3198, 0
        %v3795 = vsel %vm1654, %v3199, 0
        %v3797 = vsel %vm1654, %v3200, 0
        %v3799 = vsel %vm1654, %v3201, 0
        %v3801 = vsel %vm1654, %v3202, 0
        %v3803 = vsel %vm1654, %v3203, 0
        %v3805 = vsel %vm1654, %v3204, 0
        %v3807 = vsel %vm1654, %v3205, 0
        %v3809 = vsel %vm1654, %v3206, 0
        %v3811 = vsel %vm1654, %v3207, 0
        %v3813 = vsel %vm1654, %v3208, 0
        %v3815 = vsel %vm1654, %v3209, 0
        %v3817 = vsel %vm1654, %v3210, 0
        %v3820 = vsel %vm1654, %v3211, 0
        %3822 = vmatpush.bf16.msra.mxu0 %v3726
        %3823 = vmatpush.bf16.msra.mxu0 %v3725
        %3824 = vmatpush.bf16.msra.mxu0 %v3724
        %3825 = vmatpush.bf16.msra.mxu0 %v3723
        %3826 = vmatpush.bf16.msra.mxu0 %v3722
        %3827 = vmatpush.bf16.msra.mxu0 %v3721
        %3828 = vmatpush.bf16.msra.mxu0 %v3720
        %3829 = vmatpush.bf16.msra.mxu0 %v3719
        %3830 = vmatmul.bf16.gmra.mxu0 %v1657
        %v3831 = vpop.f32.mrf.mxu0
        %v3832 = vadd.f32 %v3573, %v3831
        %v3833 = vpop.f32.mrf.mxu0
        %v3834 = vadd.f32 %v3573, %v3833
        %3835 = vmatmul.bf16.gmra.mxu0 %v3310
        %v3836 = vpop.f32.mrf.mxu0
        %v3837 = vadd.f32 %v3573, %v3836
        %v3838 = vpop.f32.mrf.mxu0
        %v3839 = vadd.f32 %v3573, %v3838
        %3840 = vmatmul.bf16.gmra.mxu0 %v3314
        %v3841 = vpop.f32.mrf.mxu0
        %v3842 = vadd.f32 %v3573, %v3841
        %v3843 = vpop.f32.mrf.mxu0
        %v3844 = vadd.f32 %v3573, %v3843
        %3845 = vmatmul.bf16.gmra.mxu0 %v3318
        %v3846 = vpop.f32.mrf.mxu0
        %v3847 = vadd.f32 %v3573, %v3846
        %v3848 = vpop.f32.mrf.mxu0
        %v3849 = vadd.f32 %v3573, %v3848
        %3850 = vmatmul.bf16.gmra.mxu0 %v3322
        %v3851 = vpop.f32.mrf.mxu0
        %v3852 = vadd.f32 %v3573, %v3851
        %v3853 = vpop.f32.mrf.mxu0
        %v3854 = vadd.f32 %v3573, %v3853
        %3855 = vmatmul.bf16.gmra.mxu0 %v3326
        %v3856 = vpop.f32.mrf.mxu0
        %v3857 = vadd.f32 %v3573, %v3856
        %v3858 = vpop.f32.mrf.mxu0
        %v3859 = vadd.f32 %v3573, %v3858
        %3860 = vmatmul.bf16.gmra.mxu0 %v3330
        %v3861 = vpop.f32.mrf.mxu0
        %v3862 = vadd.f32 %v3573, %v3861
        %v3863 = vpop.f32.mrf.mxu0
        %v3864 = vadd.f32 %v3573, %v3863
        %3865 = vmatmul.bf16.gmra.mxu0 %v3334
        %v3866 = vpop.f32.mrf.mxu0
        %v3867 = vadd.f32 %v3573, %v3866
        %v3868 = vpop.f32.mrf.mxu0
        %v3869 = vadd.f32 %v3573, %v3868
        %3870 = vmatmul.bf16.gmra.mxu0 %v3338
        %v3871 = vpop.f32.mrf.mxu0
        %v3872 = vadd.f32 %v3573, %v3871
        %v3873 = vpop.f32.mrf.mxu0
        %v3874 = vadd.f32 %v3573, %v3873
        %3875 = vmatmul.bf16.gmra.mxu0 %v3342
        %v3876 = vpop.f32.mrf.mxu0
        %v3877 = vadd.f32 %v3573, %v3876
        %v3878 = vpop.f32.mrf.mxu0
        %v3879 = vadd.f32 %v3573, %v3878
        %3880 = vmatmul.bf16.gmra.mxu0 %v3346
        %v3881 = vpop.f32.mrf.mxu0
        %v3882 = vadd.f32 %v3573, %v3881
        %v3883 = vpop.f32.mrf.mxu0
        %v3884 = vadd.f32 %v3573, %v3883
        %3885 = vmatmul.bf16.gmra.mxu0 %v3350
        %v3886 = vpop.f32.mrf.mxu0
        %v3887 = vadd.f32 %v3573, %v3886
        %v3888 = vpop.f32.mrf.mxu0
        %v3889 = vadd.f32 %v3573, %v3888
        %3890 = vmatmul.bf16.gmra.mxu0 %v3354
        %v3891 = vpop.f32.mrf.mxu0
        %v3892 = vadd.f32 %v3573, %v3891
        %v3893 = vpop.f32.mrf.mxu0
        %v3894 = vadd.f32 %v3573, %v3893
        %3895 = vmatmul.bf16.gmra.mxu0 %v3358
        %v3896 = vpop.f32.mrf.mxu0
        %v3897 = vadd.f32 %v3573, %v3896
        %v3898 = vpop.f32.mrf.mxu0
        %v3899 = vadd.f32 %v3573, %v3898
        %3900 = vmatmul.bf16.gmra.mxu0 %v3362
        %v3901 = vpop.f32.mrf.mxu0
        %v3902 = vadd.f32 %v3573, %v3901
        %v3903 = vpop.f32.mrf.mxu0
        %v3904 = vadd.f32 %v3573, %v3903
        %3905 = vmatmul.bf16.gmra.mxu0 %v3366
        %v3906 = vpop.f32.mrf.mxu0
        %v3907 = vadd.f32 %v3573, %v3906
        %v3908 = vpop.f32.mrf.mxu0
        %v3909 = vadd.f32 %v3573, %v3908
        %3910 = vdwg.mxu0
        %3911 = vmatpush.bf16.msra.mxu0 %v3734
        %3912 = vmatpush.bf16.msra.mxu0 %v3733
        %3913 = vmatpush.bf16.msra.mxu0 %v3732
        %3914 = vmatpush.bf16.msra.mxu0 %v3731
        %3915 = vmatpush.bf16.msra.mxu0 %v3730
        %3916 = vmatpush.bf16.msra.mxu0 %v3729
        %3917 = vmatpush.bf16.msra.mxu0 %v3728
        %3918 = vmatpush.bf16.msra.mxu0 %v3727
        %3919 = vmatmul.bf16.gmra.mxu0 %v3369
        %v3920 = vpop.f32.mrf.mxu0
        %v3921 = vadd.f32 %v3832, %v3920
        %v3922 = vpop.f32.mrf.mxu0
        %v3923 = vadd.f32 %v3834, %v3922
        %3924 = vmatmul.bf16.gmra.mxu0 %v3373
        %v3925 = vpop.f32.mrf.mxu0
        %v3926 = vadd.f32 %v3837, %v3925
        %v3927 = vpop.f32.mrf.mxu0
        %v3928 = vadd.f32 %v3839, %v3927
        %3929 = vmatmul.bf16.gmra.mxu0 %v3377
        %v3930 = vpop.f32.mrf.mxu0
        %v3931 = vadd.f32 %v3842, %v3930
        %v3932 = vpop.f32.mrf.mxu0
        %v3933 = vadd.f32 %v3844, %v3932
        %3934 = vmatmul.bf16.gmra.mxu0 %v3381
        %v3935 = vpop.f32.mrf.mxu0
        %v3936 = vadd.f32 %v3847, %v3935
        %v3937 = vpop.f32.mrf.mxu0
        %v3938 = vadd.f32 %v3849, %v3937
        %3939 = vmatmul.bf16.gmra.mxu0 %v3385
        %v3940 = vpop.f32.mrf.mxu0
        %v3941 = vadd.f32 %v3852, %v3940
        %v3942 = vpop.f32.mrf.mxu0
        %v3943 = vadd.f32 %v3854, %v3942
        %3944 = vmatmul.bf16.gmra.mxu0 %v3389
        %v3945 = vpop.f32.mrf.mxu0
        %v3946 = vadd.f32 %v3857, %v3945
        %v3947 = vpop.f32.mrf.mxu0
        %v3948 = vadd.f32 %v3859, %v3947
        %3949 = vmatmul.bf16.gmra.mxu0 %v3393
        %v3950 = vpop.f32.mrf.mxu0
        %v3951 = vadd.f32 %v3862, %v3950
        %v3952 = vpop.f32.mrf.mxu0
        %v3953 = vadd.f32 %v3864, %v3952
        %3954 = vmatmul.bf16.gmra.mxu0 %v3397
        %v3955 = vpop.f32.mrf.mxu0
        %v3956 = vadd.f32 %v3867, %v3955
        %v3957 = vpop.f32.mrf.mxu0
        %v3958 = vadd.f32 %v3869, %v3957
        %3959 = vmatmul.bf16.gmra.mxu0 %v3401
        %v3960 = vpop.f32.mrf.mxu0
        %v3961 = vadd.f32 %v3872, %v3960
        %v3962 = vpop.f32.mrf.mxu0
        %v3963 = vadd.f32 %v3874, %v3962
        %3964 = vmatmul.bf16.gmra.mxu0 %v3405
        %v3965 = vpop.f32.mrf.mxu0
        %v3966 = vadd.f32 %v3877, %v3965
        %v3967 = vpop.f32.mrf.mxu0
        %v3968 = vadd.f32 %v3879, %v3967
        %3969 = vmatmul.bf16.gmra.mxu0 %v3409
        %v3970 = vpop.f32.mrf.mxu0
        %v3971 = vadd.f32 %v3882, %v3970
        %v3972 = vpop.f32.mrf.mxu0
        %v3973 = vadd.f32 %v3884, %v3972
        %3974 = vmatmul.bf16.gmra.mxu0 %v3413
        %v3975 = vpop.f32.mrf.mxu0
        %v3976 = vadd.f32 %v3887, %v3975
        %v3977 = vpop.f32.mrf.mxu0
        %v3978 = vadd.f32 %v3889, %v3977
        %3979 = vmatmul.bf16.gmra.mxu0 %v3417
        %v3980 = vpop.f32.mrf.mxu0
        %v3981 = vadd.f32 %v3892, %v3980
        %v3982 = vpop.f32.mrf.mxu0
        %v3983 = vadd.f32 %v3894, %v3982
        %3984 = vmatmul.bf16.gmra.mxu0 %v3421
        %v3985 = vpop.f32.mrf.mxu0
        %v3986 = vadd.f32 %v3897, %v3985
        %v3987 = vpop.f32.mrf.mxu0
        %v3988 = vadd.f32 %v3899, %v3987
        %3989 = vmatmul.bf16.gmra.mxu0 %v3425
        %v3990 = vpop.f32.mrf.mxu0
        %v3991 = vadd.f32 %v3902, %v3990
        %v3992 = vpop.f32.mrf.mxu0
        %v3993 = vadd.f32 %v3904, %v3992
        %3994 = vmatmul.bf16.gmra.mxu0 %v3429
        %v3995 = vpop.f32.mrf.mxu0
        %v3996 = vadd.f32 %v3907, %v3995
        %v3997 = vpop.f32.mrf.mxu0
        %v3998 = vadd.f32 %v3909, %v3997
        %3999 = vdwg.mxu0
        %4000 = vmatpush.bf16.msra.mxu0 %v3742
        %4001 = vmatpush.bf16.msra.mxu0 %v3741
        %4002 = vmatpush.bf16.msra.mxu0 %v3740
        %4003 = vmatpush.bf16.msra.mxu0 %v3739
        %4004 = vmatpush.bf16.msra.mxu0 %v3738
        %4005 = vmatpush.bf16.msra.mxu0 %v3737
        %4006 = vmatpush.bf16.msra.mxu0 %v3736
        %4007 = vmatpush.bf16.msra.mxu0 %v3735
        %4008 = vmatmul.bf16.gmra.mxu0 %v3433
        %v4009 = vpop.f32.mrf.mxu0
        %v4010 = vadd.f32 %v3921, %v4009
        %v4011 = vpop.f32.mrf.mxu0
        %v4012 = vadd.f32 %v3923, %v4011
        %4013 = vmatmul.bf16.gmra.mxu0 %v3437
        %v4014 = vpop.f32.mrf.mxu0
        %v4015 = vadd.f32 %v3926, %v4014
        %v4016 = vpop.f32.mrf.mxu0
        %v4017 = vadd.f32 %v3928, %v4016
        %4018 = vmatmul.bf16.gmra.mxu0 %v3441
        %v4019 = vpop.f32.mrf.mxu0
        %v4020 = vadd.f32 %v3931, %v4019
        %v4021 = vpop.f32.mrf.mxu0
        %v4022 = vadd.f32 %v3933, %v4021
        %4023 = vmatmul.bf16.gmra.mxu0 %v3445
        %v4024 = vpop.f32.mrf.mxu0
        %v4025 = vadd.f32 %v3936, %v4024
        %v4026 = vpop.f32.mrf.mxu0
        %v4027 = vadd.f32 %v3938, %v4026
        %4028 = vmatmul.bf16.gmra.mxu0 %v3449
        %v4029 = vpop.f32.mrf.mxu0
        %v4030 = vadd.f32 %v3941, %v4029
        %v4031 = vpop.f32.mrf.mxu0
        %v4032 = vadd.f32 %v3943, %v4031
        %4033 = vmatmul.bf16.gmra.mxu0 %v3453
        %v4034 = vpop.f32.mrf.mxu0
        %v4035 = vadd.f32 %v3946, %v4034
        %v4036 = vpop.f32.mrf.mxu0
        %v4037 = vadd.f32 %v3948, %v4036
        %4038 = vmatmul.bf16.gmra.mxu0 %v3457
        %v4039 = vpop.f32.mrf.mxu0
        %v4040 = vadd.f32 %v3951, %v4039
        %v4041 = vpop.f32.mrf.mxu0
        %v4042 = vadd.f32 %v3953, %v4041
        %4043 = vmatmul.bf16.gmra.mxu0 %v3461
        %v4044 = vpop.f32.mrf.mxu0
        %v4045 = vadd.f32 %v3956, %v4044
        %v4046 = vpop.f32.mrf.mxu0
        %v4047 = vadd.f32 %v3958, %v4046
        %4048 = vmatmul.bf16.gmra.mxu0 %v3465
        %v4049 = vpop.f32.mrf.mxu0
        %v4050 = vadd.f32 %v3961, %v4049
        %v4051 = vpop.f32.mrf.mxu0
        %v4052 = vadd.f32 %v3963, %v4051
        %4053 = vmatmul.bf16.gmra.mxu0 %v3469
        %v4054 = vpop.f32.mrf.mxu0
        %v4055 = vadd.f32 %v3966, %v4054
        %v4056 = vpop.f32.mrf.mxu0
        %v4057 = vadd.f32 %v3968, %v4056
        %4058 = vmatmul.bf16.gmra.mxu0 %v3473
        %v4059 = vpop.f32.mrf.mxu0
        %v4060 = vadd.f32 %v3971, %v4059
        %v4061 = vpop.f32.mrf.mxu0
        %v4062 = vadd.f32 %v3973, %v4061
        %4063 = vmatmul.bf16.gmra.mxu0 %v3477
        %v4064 = vpop.f32.mrf.mxu0
        %v4065 = vadd.f32 %v3976, %v4064
        %v4066 = vpop.f32.mrf.mxu0
        %v4067 = vadd.f32 %v3978, %v4066
        %4068 = vmatmul.bf16.gmra.mxu0 %v3481
        %v4069 = vpop.f32.mrf.mxu0
        %v4070 = vadd.f32 %v3981, %v4069
        %v4071 = vpop.f32.mrf.mxu0
        %v4072 = vadd.f32 %v3983, %v4071
        %4073 = vmatmul.bf16.gmra.mxu0 %v3485
        %v4074 = vpop.f32.mrf.mxu0
        %v4075 = vadd.f32 %v3986, %v4074
        %v4076 = vpop.f32.mrf.mxu0
        %v4077 = vadd.f32 %v3988, %v4076
        %4078 = vmatmul.bf16.gmra.mxu0 %v3489
        %v4079 = vpop.f32.mrf.mxu0
        %v4080 = vadd.f32 %v3991, %v4079
        %v4081 = vpop.f32.mrf.mxu0
        %v4082 = vadd.f32 %v3993, %v4081
        %4083 = vmatmul.bf16.gmra.mxu0 %v3493
        %v4084 = vpop.f32.mrf.mxu0
        %v4085 = vadd.f32 %v3996, %v4084
        %v4086 = vpop.f32.mrf.mxu0
        %v4087 = vadd.f32 %v3998, %v4086
        %4088 = vdwg.mxu0
        %4089 = vmatpush.bf16.msra.mxu0 %v3750
        %4090 = vmatpush.bf16.msra.mxu0 %v3749
        %4091 = vmatpush.bf16.msra.mxu0 %v3748
        %4092 = vmatpush.bf16.msra.mxu0 %v3747
        %4093 = vmatpush.bf16.msra.mxu0 %v3746
        %4094 = vmatpush.bf16.msra.mxu0 %v3745
        %4095 = vmatpush.bf16.msra.mxu0 %v3744
        %4096 = vmatpush.bf16.msra.mxu0 %v3743
        %4097 = vmatmul.bf16.gmra.mxu0 %v3314
        %v4098 = vpop.f32.mrf.mxu0
        %v4099 = vadd.f32 %v4010, %v4098
        %v4100 = vpop.f32.mrf.mxu0
        %v4101 = vadd.f32 %v4012, %v4100
        %4102 = vmatmul.bf16.gmra.mxu0 %v3318
        %v4103 = vpop.f32.mrf.mxu0
        %v4104 = vadd.f32 %v4015, %v4103
        %v4105 = vpop.f32.mrf.mxu0
        %v4106 = vadd.f32 %v4017, %v4105
        %4107 = vmatmul.bf16.gmra.mxu0 %v3322
        %v4108 = vpop.f32.mrf.mxu0
        %v4109 = vadd.f32 %v4020, %v4108
        %v4110 = vpop.f32.mrf.mxu0
        %v4111 = vadd.f32 %v4022, %v4110
        %4112 = vmatmul.bf16.gmra.mxu0 %v3326
        %v4113 = vpop.f32.mrf.mxu0
        %v4114 = vadd.f32 %v4025, %v4113
        %v4115 = vpop.f32.mrf.mxu0
        %v4116 = vadd.f32 %v4027, %v4115
        %4117 = vmatmul.bf16.gmra.mxu0 %v3330
        %v4118 = vpop.f32.mrf.mxu0
        %v4119 = vadd.f32 %v4030, %v4118
        %v4120 = vpop.f32.mrf.mxu0
        %v4121 = vadd.f32 %v4032, %v4120
        %4122 = vmatmul.bf16.gmra.mxu0 %v3334
        %v4123 = vpop.f32.mrf.mxu0
        %v4124 = vadd.f32 %v4035, %v4123
        %v4125 = vpop.f32.mrf.mxu0
        %v4126 = vadd.f32 %v4037, %v4125
        %4127 = vmatmul.bf16.gmra.mxu0 %v3338
        %v4128 = vpop.f32.mrf.mxu0
        %v4129 = vadd.f32 %v4040, %v4128
        %v4130 = vpop.f32.mrf.mxu0
        %v4131 = vadd.f32 %v4042, %v4130
        %4132 = vmatmul.bf16.gmra.mxu0 %v3342
        %v4133 = vpop.f32.mrf.mxu0
        %v4134 = vadd.f32 %v4045, %v4133
        %v4135 = vpop.f32.mrf.mxu0
        %v4136 = vadd.f32 %v4047, %v4135
        %4137 = vmatmul.bf16.gmra.mxu0 %v3346
        %v4138 = vpop.f32.mrf.mxu0
        %v4139 = vadd.f32 %v4050, %v4138
        %v4140 = vpop.f32.mrf.mxu0
        %v4141 = vadd.f32 %v4052, %v4140
        %4142 = vmatmul.bf16.gmra.mxu0 %v3350
        %v4143 = vpop.f32.mrf.mxu0
        %v4144 = vadd.f32 %v4055, %v4143
        %v4145 = vpop.f32.mrf.mxu0
        %v4146 = vadd.f32 %v4057, %v4145
        %4147 = vmatmul.bf16.gmra.mxu0 %v3354
        %v4148 = vpop.f32.mrf.mxu0
        %v4149 = vadd.f32 %v4060, %v4148
        %v4150 = vpop.f32.mrf.mxu0
        %v4151 = vadd.f32 %v4062, %v4150
        %4152 = vmatmul.bf16.gmra.mxu0 %v3358
        %v4153 = vpop.f32.mrf.mxu0
        %v4154 = vadd.f32 %v4065, %v4153
        %v4155 = vpop.f32.mrf.mxu0
        %v4156 = vadd.f32 %v4067, %v4155
        %4157 = vmatmul.bf16.gmra.mxu0 %v3362
        %v4158 = vpop.f32.mrf.mxu0
        %v4159 = vadd.f32 %v4070, %v4158
        %v4160 = vpop.f32.mrf.mxu0
        %v4161 = vadd.f32 %v4072, %v4160
        %4162 = vmatmul.bf16.gmra.mxu0 %v3366
        %v4163 = vpop.f32.mrf.mxu0
        %v4164 = vadd.f32 %v4075, %v4163
        %v4165 = vpop.f32.mrf.mxu0
        %v4166 = vadd.f32 %v4077, %v4165
        %4167 = vmatmul.bf16.gmra.mxu0 %v3497
        %v4168 = vpop.f32.mrf.mxu0
        %v4169 = vadd.f32 %v4080, %v4168
        %v4170 = vpop.f32.mrf.mxu0
        %v4171 = vadd.f32 %v4082, %v4170
        %4172 = vmatmul.bf16.gmra.mxu0 %v1657
        %v4173 = vpop.f32.mrf.mxu0
        %v4174 = vadd.f32 %v4085, %v4173
        %v4175 = vpop.f32.mrf.mxu0
        %v4176 = vadd.f32 %v4087, %v4175
        %4177 = vdwg.mxu0
        %4178 = vmatpush.bf16.msra.mxu0 0
        %4179 = vmatpush.bf16.msra.mxu0 0
        %4180 = vmatpush.bf16.msra.mxu0 0
        %4181 = vmatpush.bf16.msra.mxu0 0
        %4182 = vmatpush.bf16.msra.mxu0 %v3754
        %4183 = vmatpush.bf16.msra.mxu0 %v3753
        %4184 = vmatpush.bf16.msra.mxu0 %v3752
        %4185 = vmatpush.bf16.msra.mxu0 %v3751
        %4186 = vmatmul.bf16.gmra.mxu0 %v3791
        %v4187 = vpop.f32.mrf.mxu0
        %v4188 = vadd.f32 %v4099, %v4187
        %v4189 = vpop.f32.mrf.mxu0
        %v4190 = vadd.f32 %v4101, %v4189
        %4191 = vmatmul.bf16.gmra.mxu0 %v3793
        %v4192 = vpop.f32.mrf.mxu0
        %v4193 = vadd.f32 %v4104, %v4192
        %v4194 = vpop.f32.mrf.mxu0
        %v4195 = vadd.f32 %v4106, %v4194
        %4196 = vmatmul.bf16.gmra.mxu0 %v3795
        %v4197 = vpop.f32.mrf.mxu0
        %v4198 = vadd.f32 %v4109, %v4197
        %v4199 = vpop.f32.mrf.mxu0
        %v4200 = vadd.f32 %v4111, %v4199
        %4201 = vmatmul.bf16.gmra.mxu0 %v3797
        %v4202 = vpop.f32.mrf.mxu0
        %v4203 = vadd.f32 %v4114, %v4202
        %v4204 = vpop.f32.mrf.mxu0
        %v4205 = vadd.f32 %v4116, %v4204
        %4206 = vmatmul.bf16.gmra.mxu0 %v3799
        %v4207 = vpop.f32.mrf.mxu0
        %v4208 = vadd.f32 %v4119, %v4207
        %v4209 = vpop.f32.mrf.mxu0
        %v4210 = vadd.f32 %v4121, %v4209
        %4211 = vmatmul.bf16.gmra.mxu0 %v3801
        %v4212 = vpop.f32.mrf.mxu0
        %v4213 = vadd.f32 %v4124, %v4212
        %v4214 = vpop.f32.mrf.mxu0
        %v4215 = vadd.f32 %v4126, %v4214
        %4216 = vmatmul.bf16.gmra.mxu0 %v3803
        %v4217 = vpop.f32.mrf.mxu0
        %v4218 = vadd.f32 %v4129, %v4217
        %v4219 = vpop.f32.mrf.mxu0
        %v4220 = vadd.f32 %v4131, %v4219
        %4221 = vmatmul.bf16.gmra.mxu0 %v3805
        %v4222 = vpop.f32.mrf.mxu0
        %v4223 = vadd.f32 %v4134, %v4222
        %v4224 = vpop.f32.mrf.mxu0
        %v4225 = vadd.f32 %v4136, %v4224
        %4226 = vmatmul.bf16.gmra.mxu0 %v3807
        %v4227 = vpop.f32.mrf.mxu0
        %v4228 = vadd.f32 %v4139, %v4227
        %v4229 = vpop.f32.mrf.mxu0
        %v4230 = vadd.f32 %v4141, %v4229
        %4231 = vmatmul.bf16.gmra.mxu0 %v3809
        %v4232 = vpop.f32.mrf.mxu0
        %v4233 = vadd.f32 %v4144, %v4232
        %v4234 = vpop.f32.mrf.mxu0
        %v4235 = vadd.f32 %v4146, %v4234
        %4236 = vmatmul.bf16.gmra.mxu0 %v3811
        %v4237 = vpop.f32.mrf.mxu0
        %v4238 = vadd.f32 %v4149, %v4237
        %v4239 = vpop.f32.mrf.mxu0
        %v4240 = vadd.f32 %v4151, %v4239
        %4241 = vmatmul.bf16.gmra.mxu0 %v3813
        %v4242 = vpop.f32.mrf.mxu0
        %v4243 = vadd.f32 %v4154, %v4242
        %v4244 = vpop.f32.mrf.mxu0
        %v4245 = vadd.f32 %v4156, %v4244
        %4246 = vmatmul.bf16.gmra.mxu0 %v3815
        %v4247 = vpop.f32.mrf.mxu0
        %v4248 = vadd.f32 %v4159, %v4247
        %v4249 = vpop.f32.mrf.mxu0
        %v4250 = vadd.f32 %v4161, %v4249
        %4251 = vmatmul.bf16.gmra.mxu0 %v3817
        %v4252 = vpop.f32.mrf.mxu0
        %v4253 = vadd.f32 %v4164, %v4252
        %v4254 = vpop.f32.mrf.mxu0
        %v4255 = vadd.f32 %v4166, %v4254
        %4256 = vmatmul.bf16.gmra.mxu0 %v3820
        %v4257 = vpop.f32.mrf.mxu0
        %v4258 = vadd.f32 %v4169, %v4257
        %v4259 = vpop.f32.mrf.mxu0
        %v4260 = vadd.f32 %v4171, %v4259
        %4261 = vmatmul.bf16.gmra.mxu0 %v2173
        %v4262 = vpop.f32.mrf.mxu0
        %v4263 = vadd.f32 %v4174, %v4262
        %v4264 = vpop.f32.mrf.mxu0
        %v4265 = vadd.f32 %v4176, %v4264
        %4266 = vdwg.mxu0
        %v4267 = vadd.f32 %v4188, %v961
        %v4268 = vadd.f32 %v4190, %v962
        %v4269 = vadd.f32 %v4193, %v963
        %v4270 = vadd.f32 %v4195, %v964
        %v4271 = vadd.f32 %v4198, %v965
        %v4272 = vadd.f32 %v4200, %v966
        %v4273 = vadd.f32 %v4203, %v967
        %v4274 = vadd.f32 %v4205, %v968
        %v4275 = vadd.f32 %v4208, %v969
        %v4276 = vadd.f32 %v4210, %v970
        %v4277 = vadd.f32 %v4213, %v971
        %v4278 = vadd.f32 %v4215, %v972
        %v4279 = vadd.f32 %v4218, %v973
        %v4280 = vadd.f32 %v4220, %v974
        %v4281 = vadd.f32 %v4223, %v975
        %v4282 = vadd.f32 %v4225, %v976
        %v4283 = vadd.f32 %v4228, %v977
        %v4284 = vadd.f32 %v4230, %v978
        %v4285 = vadd.f32 %v4233, %v979
        %v4286 = vadd.f32 %v4235, %v980
        %v4287 = vadd.f32 %v4238, %v981
        %v4288 = vadd.f32 %v4240, %v982
        %v4289 = vadd.f32 %v4243, %v983
        %v4290 = vadd.f32 %v4245, %v984
        %v4291 = vadd.f32 %v4248, %v985
        %v4292 = vadd.f32 %v4250, %v986
        %v4293 = vadd.f32 %v4253, %v987
        %v4294 = vadd.f32 %v4255, %v988
        %v4295 = vadd.f32 %v4258, %v989
        %v4296 = vadd.f32 %v4260, %v990
        %v4297 = vadd.f32 %v4263, %v991
        %v4298 = vadd.f32 %v4265, %v992
        %v4299 = vmax.f32 %v4267, 0.0
        %v4300 = vmax.f32 %v4268, 0.0
        %v4301 = vmax.f32 %v4269, 0.0
        %v4302 = vmax.f32 %v4270, 0.0
        %v4303 = vmax.f32 %v4271, 0.0
        %v4304 = vmax.f32 %v4272, 0.0
        %v4305 = vmax.f32 %v4273, 0.0
        %v4306 = vmax.f32 %v4274, 0.0
        %v4307 = vmax.f32 %v4275, 0.0
        %v4308 = vmax.f32 %v4276, 0.0
        %v4309 = vmax.f32 %v4277, 0.0
        %v4310 = vmax.f32 %v4278, 0.0
        %v4311 = vmax.f32 %v4279, 0.0
        %v4312 = vmax.f32 %v4280, 0.0
        %v4313 = vmax.f32 %v4281, 0.0
        %v4314 = vmax.f32 %v4282, 0.0
        %v4315 = vmax.f32 %v4283, 0.0
        %v4316 = vmax.f32 %v4284, 0.0
        %v4317 = vmax.f32 %v4285, 0.0
        %v4318 = vmax.f32 %v4286, 0.0
        %v4319 = vmax.f32 %v4287, 0.0
        %v4320 = vmax.f32 %v4288, 0.0
        %v4321 = vmax.f32 %v4289, 0.0
        %v4322 = vmax.f32 %v4290, 0.0
        %v4323 = vmax.f32 %v4291, 0.0
        %v4324 = vmax.f32 %v4292, 0.0
        %v4325 = vmax.f32 %v4293, 0.0
        %v4326 = vmax.f32 %v4294, 0.0
        %v4327 = vmax.f32 %v4295, 0.0
        %v4328 = vmax.f32 %v4296, 0.0
        %v4329 = vmax.f32 %v4297, 0.0
        %v4330 = vmax.f32 %v4298, 0.0
        %v4363 = vrot.slane %v4299, 7
        %v4364 = vrot.slane %v4300, 7
        %v4365 = vsel %vm1025, %v4363, %v4364
        %v4366 = vrot.slane %v4301, 7
        %v4367 = vrot.slane %v4302, 7
        %v4368 = vsel %vm1025, %v4366, %v4367
        %v4369 = vrot.slane %v4303, 7
        %v4370 = vrot.slane %v4304, 7
        %v4371 = vsel %vm1025, %v4369, %v4370
        %v4372 = vrot.slane %v4305, 7
        %v4373 = vrot.slane %v4306, 7
        %v4374 = vsel %vm1025, %v4372, %v4373
        %v4375 = vrot.slane %v4307, 7
        %v4376 = vrot.slane %v4308, 7
        %v4377 = vsel %vm1025, %v4375, %v4376
        %v4378 = vrot.slane %v4309, 7
        %v4379 = vrot.slane %v4310, 7
        %v4380 = vsel %vm1025, %v4378, %v4379
        %v4381 = vrot.slane %v4311, 7
        %v4382 = vrot.slane %v4312, 7
        %v4383 = vsel %vm1025, %v4381, %v4382
        %v4384 = vrot.slane %v4313, 7
        %v4385 = vrot.slane %v4314, 7
        %v4386 = vsel %vm1025, %v4384, %v4385
        %v4387 = vrot.slane %v4315, 7
        %v4388 = vrot.slane %v4316, 7
        %v4389 = vsel %vm1025, %v4387, %v4388
        %v4390 = vrot.slane %v4317, 7
        %v4391 = vrot.slane %v4318, 7
        %v4392 = vsel %vm1025, %v4390, %v4391
        %v4393 = vrot.slane %v4319, 7
        %v4394 = vrot.slane %v4320, 7
        %v4395 = vsel %vm1025, %v4393, %v4394
        %v4396 = vrot.slane %v4321, 7
        %v4397 = vrot.slane %v4322, 7
        %v4398 = vsel %vm1025, %v4396, %v4397
        %v4399 = vrot.slane %v4323, 7
        %v4400 = vrot.slane %v4324, 7
        %v4401 = vsel %vm1025, %v4399, %v4400
        %v4402 = vrot.slane %v4325, 7
        %v4403 = vrot.slane %v4326, 7
        %v4404 = vsel %vm1025, %v4402, %v4403
        %v4405 = vrot.slane %v4327, 7
        %v4406 = vrot.slane %v4328, 7
        %v4407 = vsel %vm1025, %v4405, %v4406
        %v4408 = vrot.slane %v4329, 7
        %v4409 = vrot.slane %v4330, 7
        %v4410 = vsel %vm1025, %v4408, %v4409
        %v4443 = vsel %vm1025, 0.0, %v4363
        %v4444 = vsel %vm1025, 0.0, %v4366
        %v4445 = vsel %vm1025, 0.0, %v4369
        %v4446 = vsel %vm1025, 0.0, %v4372
        %v4447 = vsel %vm1025, 0.0, %v4375
        %v4448 = vsel %vm1025, 0.0, %v4378
        %v4449 = vsel %vm1025, 0.0, %v4381
        %v4450 = vsel %vm1025, 0.0, %v4384
        %v4451 = vsel %vm1025, 0.0, %v4387
        %v4452 = vsel %vm1025, 0.0, %v4390
        %v4453 = vsel %vm1025, 0.0, %v4393
        %v4454 = vsel %vm1025, 0.0, %v4396
        %v4455 = vsel %vm1025, 0.0, %v4399
        %v4456 = vsel %vm1025, 0.0, %v4402
        %v4457 = vsel %vm1025, 0.0, %v4405
        %v4458 = vsel %vm1025, 0.0, %v4408
        %v4459 = vrot.slane %v4299, 1
        %v4460 = vrot.slane %v4300, 1
        %v4461 = vsel %vm1122, %v4459, %v4460
        %v4462 = vrot.slane %v4301, 1
        %v4463 = vrot.slane %v4302, 1
        %v4464 = vsel %vm1122, %v4462, %v4463
        %v4465 = vrot.slane %v4303, 1
        %v4466 = vrot.slane %v4304, 1
        %v4467 = vsel %vm1122, %v4465, %v4466
        %v4468 = vrot.slane %v4305, 1
        %v4469 = vrot.slane %v4306, 1
        %v4470 = vsel %vm1122, %v4468, %v4469
        %v4471 = vrot.slane %v4307, 1
        %v4472 = vrot.slane %v4308, 1
        %v4473 = vsel %vm1122, %v4471, %v4472
        %v4474 = vrot.slane %v4309, 1
        %v4475 = vrot.slane %v4310, 1
        %v4476 = vsel %vm1122, %v4474, %v4475
        %v4477 = vrot.slane %v4311, 1
        %v4478 = vrot.slane %v4312, 1
        %v4479 = vsel %vm1122, %v4477, %v4478
        %v4480 = vrot.slane %v4313, 1
        %v4481 = vrot.slane %v4314, 1
        %v4482 = vsel %vm1122, %v4480, %v4481
        %v4483 = vrot.slane %v4315, 1
        %v4484 = vrot.slane %v4316, 1
        %v4485 = vsel %vm1122, %v4483, %v4484
        %v4486 = vrot.slane %v4317, 1
        %v4487 = vrot.slane %v4318, 1
        %v4488 = vsel %vm1122, %v4486, %v4487
        %v4489 = vrot.slane %v4319, 1
        %v4490 = vrot.slane %v4320, 1
        %v4491 = vsel %vm1122, %v4489, %v4490
        %v4492 = vrot.slane %v4321, 1
        %v4493 = vrot.slane %v4322, 1
        %v4494 = vsel %vm1122, %v4492, %v4493
        %v4495 = vrot.slane %v4323, 1
        %v4496 = vrot.slane %v4324, 1
        %v4497 = vsel %vm1122, %v4495, %v4496
        %v4498 = vrot.slane %v4325, 1
        %v4499 = vrot.slane %v4326, 1
        %v4500 = vsel %vm1122, %v4498, %v4499
        %v4501 = vrot.slane %v4327, 1
        %v4502 = vrot.slane %v4328, 1
        %v4503 = vsel %vm1122, %v4501, %v4502
        %v4504 = vrot.slane %v4329, 1
        %v4505 = vrot.slane %v4330, 1
        %v4506 = vsel %vm1122, %v4504, %v4505
        %v4539 = vsel %vm1122, %v4460, 0.0
        %v4540 = vsel %vm1122, %v4463, 0.0
        %v4541 = vsel %vm1122, %v4466, 0.0
        %v4542 = vsel %vm1122, %v4469, 0.0
        %v4543 = vsel %vm1122, %v4472, 0.0
        %v4544 = vsel %vm1122, %v4475, 0.0
        %v4545 = vsel %vm1122, %v4478, 0.0
        %v4546 = vsel %vm1122, %v4481, 0.0
        %v4547 = vsel %vm1122, %v4484, 0.0
        %v4548 = vsel %vm1122, %v4487, 0.0
        %v4549 = vsel %vm1122, %v4490, 0.0
        %v4550 = vsel %vm1122, %v4493, 0.0
        %v4551 = vsel %vm1122, %v4496, 0.0
        %v4552 = vsel %vm1122, %v4499, 0.0
        %v4553 = vsel %vm1122, %v4502, 0.0
        %v4554 = vsel %vm1122, %v4505, 0.0
        %v4555 = vpack.c.bf16 %v4443, %v4443
        %v4556 = vpack.c.bf16 %v4365, %v4365
        %v4557 = vpack.c.bf16 %v4444, %v4444
        %v4558 = vpack.c.bf16 %v4368, %v4368
        %v4559 = vpack.c.bf16 %v4445, %v4445
        %v4560 = vpack.c.bf16 %v4371, %v4371
        %v4561 = vpack.c.bf16 %v4446, %v4446
        %v4562 = vpack.c.bf16 %v4374, %v4374
        %v4563 = vpack.c.bf16 %v4447, %v4447
        %v4564 = vpack.c.bf16 %v4377, %v4377
        %v4565 = vpack.c.bf16 %v4448, %v4448
        %v4566 = vpack.c.bf16 %v4380, %v4380
        %v4567 = vpack.c.bf16 %v4449, %v4449
        %v4568 = vpack.c.bf16 %v4383, %v4383
        %v4569 = vpack.c.bf16 %v4450, %v4450
        %v4570 = vpack.c.bf16 %v4386, %v4386
        %v4571 = vpack.c.bf16 %v4451, %v4451
        %v4572 = vpack.c.bf16 %v4389, %v4389
        %v4573 = vpack.c.bf16 %v4452, %v4452
        %v4574 = vpack.c.bf16 %v4392, %v4392
        %v4575 = vpack.c.bf16 %v4453, %v4453
        %v4576 = vpack.c.bf16 %v4395, %v4395
        %v4577 = vpack.c.bf16 %v4454, %v4454
        %v4578 = vpack.c.bf16 %v4398, %v4398
        %v4579 = vpack.c.bf16 %v4455, %v4455
        %v4580 = vpack.c.bf16 %v4401, %v4401
        %v4581 = vpack.c.bf16 %v4456, %v4456
        %v4582 = vpack.c.bf16 %v4404, %v4404
        %v4583 = vpack.c.bf16 %v4457, %v4457
        %v4584 = vpack.c.bf16 %v4407, %v4407
        %v4585 = vpack.c.bf16 %v4458, %v4458
        %v4586 = vpack.c.bf16 %v4410, %v4410
        %v4587 = vpack.c.bf16 %v4299, %v4299
        %v4588 = vpack.c.bf16 %v4300, %v4300
        %v4589 = vpack.c.bf16 %v4301, %v4301
        %v4590 = vpack.c.bf16 %v4302, %v4302
        %v4591 = vpack.c.bf16 %v4303, %v4303
        %v4592 = vpack.c.bf16 %v4304, %v4304
        %v4593 = vpack.c.bf16 %v4305, %v4305
        %v4594 = vpack.c.bf16 %v4306, %v4306
        %v4595 = vpack.c.bf16 %v4307, %v4307
        %v4596 = vpack.c.bf16 %v4308, %v4308
        %v4597 = vpack.c.bf16 %v4309, %v4309
        %v4598 = vpack.c.bf16 %v4310, %v4310
        %v4599 = vpack.c.bf16 %v4311, %v4311
        %v4600 = vpack.c.bf16 %v4312, %v4312
        %v4601 = vpack.c.bf16 %v4313, %v4313
        %v4602 = vpack.c.bf16 %v4314, %v4314
        %v4603 = vpack.c.bf16 %v4315, %v4315
        %v4604 = vpack.c.bf16 %v4316, %v4316
        %v4605 = vpack.c.bf16 %v4317, %v4317
        %v4606 = vpack.c.bf16 %v4318, %v4318
        %v4607 = vpack.c.bf16 %v4319, %v4319
        %v4608 = vpack.c.bf16 %v4320, %v4320
        %v4609 = vpack.c.bf16 %v4321, %v4321
        %v4610 = vpack.c.bf16 %v4322, %v4322
        %v4611 = vpack.c.bf16 %v4323, %v4323
        %v4612 = vpack.c.bf16 %v4324, %v4324
        %v4613 = vpack.c.bf16 %v4325, %v4325
        %v4614 = vpack.c.bf16 %v4326, %v4326
        %v4615 = vpack.c.bf16 %v4327, %v4327
        %v4616 = vpack.c.bf16 %v4328, %v4328
        %v4617 = vpack.c.bf16 %v4329, %v4329
        %v4618 = vpack.c.bf16 %v4330, %v4330
        %v4619 = vpack.c.bf16 %v4461, %v4461
        %v4620 = vpack.c.bf16 %v4539, %v4539
        %v4621 = vpack.c.bf16 %v4464, %v4464
        %v4622 = vpack.c.bf16 %v4540, %v4540
        %v4623 = vpack.c.bf16 %v4467, %v4467
        %v4624 = vpack.c.bf16 %v4541, %v4541
        %v4625 = vpack.c.bf16 %v4470, %v4470
        %v4626 = vpack.c.bf16 %v4542, %v4542
        %v4627 = vpack.c.bf16 %v4473, %v4473
        %v4628 = vpack.c.bf16 %v4543, %v4543
        %v4629 = vpack.c.bf16 %v4476, %v4476
        %v4630 = vpack.c.bf16 %v4544, %v4544
        %v4631 = vpack.c.bf16 %v4479, %v4479
        %v4632 = vpack.c.bf16 %v4545, %v4545
        %v4633 = vpack.c.bf16 %v4482, %v4482
        %v4634 = vpack.c.bf16 %v4546, %v4546
        %v4635 = vpack.c.bf16 %v4485, %v4485
        %v4636 = vpack.c.bf16 %v4547, %v4547
        %v4637 = vpack.c.bf16 %v4488, %v4488
        %v4638 = vpack.c.bf16 %v4548, %v4548
        %v4639 = vpack.c.bf16 %v4491, %v4491
        %v4640 = vpack.c.bf16 %v4549, %v4549
        %v4641 = vpack.c.bf16 %v4494, %v4494
        %v4642 = vpack.c.bf16 %v4550, %v4550
        %v4643 = vpack.c.bf16 %v4497, %v4497
        %v4644 = vpack.c.bf16 %v4551, %v4551
        %v4645 = vpack.c.bf16 %v4500, %v4500
        %v4646 = vpack.c.bf16 %v4552, %v4552
        %v4647 = vpack.c.bf16 %v4503, %v4503
        %v4648 = vpack.c.bf16 %v4553, %v4553
        %v4649 = vpack.c.bf16 %v4506, %v4506
        %v4650 = vpack.c.bf16 %v4554, %v4554
        %v4683 = vunpack.c.l.b16 %v4555
        %v4684 = vunpack.c.l.b16 %v4556
        %v4685 = vunpack.c.l.b16 %v4557
        %v4686 = vunpack.c.l.b16 %v4558
        %v4687 = vunpack.c.l.b16 %v4559
        %v4688 = vunpack.c.l.b16 %v4560
        %v4689 = vunpack.c.l.b16 %v4561
        %v4690 = vunpack.c.l.b16 %v4562
        %v4691 = vunpack.c.l.b16 %v4563
        %v4692 = vunpack.c.l.b16 %v4564
        %v4693 = vunpack.c.l.b16 %v4565
        %v4694 = vunpack.c.l.b16 %v4566
        %v4695 = vunpack.c.l.b16 %v4567
        %v4696 = vunpack.c.l.b16 %v4568
        %v4697 = vunpack.c.l.b16 %v4569
        %v4698 = vunpack.c.l.b16 %v4570
        %v4699 = vunpack.c.l.b16 %v4571
        %v4700 = vunpack.c.l.b16 %v4572
        %v4701 = vunpack.c.l.b16 %v4573
        %v4702 = vunpack.c.l.b16 %v4574
        %v4703 = vunpack.c.l.b16 %v4575
        %v4704 = vunpack.c.l.b16 %v4576
        %v4705 = vunpack.c.l.b16 %v4577
        %v4706 = vunpack.c.l.b16 %v4578
        %v4707 = vunpack.c.l.b16 %v4579
        %v4708 = vunpack.c.l.b16 %v4580
        %v4709 = vunpack.c.l.b16 %v4581
        %v4710 = vunpack.c.l.b16 %v4582
        %v4711 = vunpack.c.l.b16 %v4583
        %v4712 = vunpack.c.l.b16 %v4584
        %v4713 = vunpack.c.l.b16 %v4585
        %v4714 = vunpack.c.l.b16 %v4586
        %v4715 = vpack.c.b16 %v4684, %v4683
        %v4716 = vpack.c.b16 %v4686, %v4685
        %v4717 = vpack.c.b16 %v4688, %v4687
        %v4718 = vpack.c.b16 %v4690, %v4689
        %v4719 = vpack.c.b16 %v4692, %v4691
        %v4720 = vpack.c.b16 %v4694, %v4693
        %v4721 = vpack.c.b16 %v4696, %v4695
        %v4722 = vpack.c.b16 %v4698, %v4697
        %v4723 = vpack.c.b16 %v4700, %v4699
        %v4724 = vpack.c.b16 %v4702, %v4701
        %v4725 = vpack.c.b16 %v4704, %v4703
        %v4726 = vpack.c.b16 %v4706, %v4705
        %v4727 = vpack.c.b16 %v4708, %v4707
        %v4728 = vpack.c.b16 %v4710, %v4709
        %v4729 = vpack.c.b16 %v4712, %v4711
        %v4730 = vpack.c.b16 %v4714, %v4713
        %v4763 = vunpack.c.l.b16 %v4587
        %v4764 = vunpack.c.l.b16 %v4588
        %v4765 = vunpack.c.l.b16 %v4589
        %v4766 = vunpack.c.l.b16 %v4590
        %v4767 = vunpack.c.l.b16 %v4591
        %v4768 = vunpack.c.l.b16 %v4592
        %v4769 = vunpack.c.l.b16 %v4593
        %v4770 = vunpack.c.l.b16 %v4594
        %v4771 = vunpack.c.l.b16 %v4595
        %v4772 = vunpack.c.l.b16 %v4596
        %v4773 = vunpack.c.l.b16 %v4597
        %v4774 = vunpack.c.l.b16 %v4598
        %v4775 = vunpack.c.l.b16 %v4599
        %v4776 = vunpack.c.l.b16 %v4600
        %v4777 = vunpack.c.l.b16 %v4601
        %v4778 = vunpack.c.l.b16 %v4602
        %v4779 = vunpack.c.l.b16 %v4603
        %v4780 = vunpack.c.l.b16 %v4604
        %v4781 = vunpack.c.l.b16 %v4605
        %v4782 = vunpack.c.l.b16 %v4606
        %v4783 = vunpack.c.l.b16 %v4607
        %v4784 = vunpack.c.l.b16 %v4608
        %v4785 = vunpack.c.l.b16 %v4609
        %v4786 = vunpack.c.l.b16 %v4610
        %v4787 = vunpack.c.l.b16 %v4611
        %v4788 = vunpack.c.l.b16 %v4612
        %v4789 = vunpack.c.l.b16 %v4613
        %v4790 = vunpack.c.l.b16 %v4614
        %v4791 = vunpack.c.l.b16 %v4615
        %v4792 = vunpack.c.l.b16 %v4616
        %v4793 = vunpack.c.l.b16 %v4617
        %v4794 = vunpack.c.l.b16 %v4618
        %v4795 = vpack.c.b16 %v4764, %v4763
        %v4796 = vpack.c.b16 %v4766, %v4765
        %v4797 = vpack.c.b16 %v4768, %v4767
        %v4798 = vpack.c.b16 %v4770, %v4769
        %v4799 = vpack.c.b16 %v4772, %v4771
        %v4800 = vpack.c.b16 %v4774, %v4773
        %v4801 = vpack.c.b16 %v4776, %v4775
        %v4802 = vpack.c.b16 %v4778, %v4777
        %v4803 = vpack.c.b16 %v4780, %v4779
        %v4804 = vpack.c.b16 %v4782, %v4781
        %v4805 = vpack.c.b16 %v4784, %v4783
        %v4806 = vpack.c.b16 %v4786, %v4785
        %v4807 = vpack.c.b16 %v4788, %v4787
        %v4808 = vpack.c.b16 %v4790, %v4789
        %v4809 = vpack.c.b16 %v4792, %v4791
        %v4810 = vpack.c.b16 %v4794, %v4793
        %v4843 = vunpack.c.l.b16 %v4619
        %v4844 = vunpack.c.l.b16 %v4620
        %v4845 = vunpack.c.l.b16 %v4621
        %v4846 = vunpack.c.l.b16 %v4622
        %v4847 = vunpack.c.l.b16 %v4623
        %v4848 = vunpack.c.l.b16 %v4624
        %v4849 = vunpack.c.l.b16 %v4625
        %v4850 = vunpack.c.l.b16 %v4626
        %v4851 = vunpack.c.l.b16 %v4627
        %v4852 = vunpack.c.l.b16 %v4628
        %v4853 = vunpack.c.l.b16 %v4629
        %v4854 = vunpack.c.l.b16 %v4630
        %v4855 = vunpack.c.l.b16 %v4631
        %v4856 = vunpack.c.l.b16 %v4632
        %v4857 = vunpack.c.l.b16 %v4633
        %v4858 = vunpack.c.l.b16 %v4634
        %v4859 = vunpack.c.l.b16 %v4635
        %v4860 = vunpack.c.l.b16 %v4636
        %v4861 = vunpack.c.l.b16 %v4637
        %v4862 = vunpack.c.l.b16 %v4638
        %v4863 = vunpack.c.l.b16 %v4639
        %v4864 = vunpack.c.l.b16 %v4640
        %v4865 = vunpack.c.l.b16 %v4641
        %v4866 = vunpack.c.l.b16 %v4642
        %v4867 = vunpack.c.l.b16 %v4643
        %v4868 = vunpack.c.l.b16 %v4644
        %v4869 = vunpack.c.l.b16 %v4645
        %v4870 = vunpack.c.l.b16 %v4646
        %v4871 = vunpack.c.l.b16 %v4647
        %v4872 = vunpack.c.l.b16 %v4648
        %v4873 = vunpack.c.l.b16 %v4649
        %v4874 = vunpack.c.l.b16 %v4650
        %v4875 = vpack.c.b16 %v4844, %v4843
        %v4876 = vpack.c.b16 %v4846, %v4845
        %v4877 = vpack.c.b16 %v4848, %v4847
        %v4878 = vpack.c.b16 %v4850, %v4849
        %v4879 = vpack.c.b16 %v4852, %v4851
        %v4880 = vpack.c.b16 %v4854, %v4853
        %v4881 = vpack.c.b16 %v4856, %v4855
        %v4882 = vpack.c.b16 %v4858, %v4857
        %v4883 = vpack.c.b16 %v4860, %v4859
        %v4884 = vpack.c.b16 %v4862, %v4861
        %v4885 = vpack.c.b16 %v4864, %v4863
        %v4886 = vpack.c.b16 %v4866, %v4865
        %v4887 = vpack.c.b16 %v4868, %v4867
        %v4888 = vpack.c.b16 %v4870, %v4869
        %v4889 = vpack.c.b16 %v4872, %v4871
        %v4890 = vpack.c.b16 %v4874, %v4873
        %4891 = vrot.lane.b32.xlu0 %v4795, 64
        %v4892 = vpop.permute.xlu0 %4891
        %4893 = vrot.lane.b32.xlu0 %v4796, 64
        %v4894 = vpop.permute.xlu0 %4893
        %4895 = vrot.lane.b32.xlu0 %v4797, 64
        %v4896 = vpop.permute.xlu0 %4895
        %4897 = vrot.lane.b32.xlu0 %v4798, 64
        %v4898 = vpop.permute.xlu0 %4897
        %4899 = vrot.lane.b32.xlu0 %v4799, 64
        %v4900 = vpop.permute.xlu0 %4899
        %4901 = vrot.lane.b32.xlu0 %v4800, 64
        %v4902 = vpop.permute.xlu0 %4901
        %4903 = vrot.lane.b32.xlu0 %v4801, 64
        %v4904 = vpop.permute.xlu0 %4903
        %4905 = vrot.lane.b32.xlu0 %v4802, 64
        %v4906 = vpop.permute.xlu0 %4905
        %4907 = vrot.lane.b32.xlu0 %v4803, 64
        %v4908 = vpop.permute.xlu0 %4907
        %4909 = vrot.lane.b32.xlu0 %v4804, 64
        %v4910 = vpop.permute.xlu0 %4909
        %4911 = vrot.lane.b32.xlu0 %v4805, 64
        %v4912 = vpop.permute.xlu0 %4911
        %4913 = vrot.lane.b32.xlu0 %v4806, 64
        %v4914 = vpop.permute.xlu0 %4913
        %4915 = vrot.lane.b32.xlu0 %v4807, 64
        %v4916 = vpop.permute.xlu0 %4915
        %4917 = vrot.lane.b32.xlu0 %v4808, 64
        %v4918 = vpop.permute.xlu0 %4917
        %4919 = vrot.lane.b32.xlu0 %v4809, 64
        %v4920 = vpop.permute.xlu0 %4919
        %4921 = vrot.lane.b32.xlu0 %v4715, 64
        %v4922 = vpop.permute.xlu0 %4921
        %4923 = vrot.lane.b32.xlu0 %v4716, 64
        %v4924 = vpop.permute.xlu0 %4923
        %4925 = vrot.lane.b32.xlu0 %v4717, 64
        %v4926 = vpop.permute.xlu0 %4925
        %4927 = vrot.lane.b32.xlu0 %v4718, 64
        %v4928 = vpop.permute.xlu0 %4927
        %4929 = vrot.lane.b32.xlu0 %v4719, 64
        %v4930 = vpop.permute.xlu0 %4929
        %4931 = vrot.lane.b32.xlu0 %v4720, 64
        %v4932 = vpop.permute.xlu0 %4931
        %4933 = vrot.lane.b32.xlu0 %v4721, 64
        %v4934 = vpop.permute.xlu0 %4933
        %4935 = vrot.lane.b32.xlu0 %v4722, 64
        %v4936 = vpop.permute.xlu0 %4935
        %4937 = vrot.lane.b32.xlu0 %v4723, 64
        %v4938 = vpop.permute.xlu0 %4937
        %4939 = vrot.lane.b32.xlu0 %v4724, 64
        %v4940 = vpop.permute.xlu0 %4939
        %4941 = vrot.lane.b32.xlu0 %v4725, 64
        %v4942 = vpop.permute.xlu0 %4941
        %4943 = vrot.lane.b32.xlu0 %v4726, 64
        %v4944 = vpop.permute.xlu0 %4943
        %4945 = vrot.lane.b32.xlu0 %v4727, 64
        %v4946 = vpop.permute.xlu0 %4945
        %4947 = vrot.lane.b32.xlu0 %v4728, 64
        %v4948 = vpop.permute.xlu0 %4947
        %4949 = vrot.lane.b32.xlu0 %v4729, 64
        %v4950 = vpop.permute.xlu0 %4949
        %4951 = vrot.lane.b32.xlu0 %v4730, 64
        %v4952 = vpop.permute.xlu0 %4951
        %4953 = vrot.lane.b32.xlu0 %v4875, 64
        %v4954 = vpop.permute.xlu0 %4953
        %4955 = vrot.lane.b32.xlu0 %v4876, 64
        %v4956 = vpop.permute.xlu0 %4955
        %4957 = vrot.lane.b32.xlu0 %v4877, 64
        %v4958 = vpop.permute.xlu0 %4957
        %4959 = vrot.lane.b32.xlu0 %v4878, 64
        %v4960 = vpop.permute.xlu0 %4959
        %4961 = vrot.lane.b32.xlu0 %v4879, 64
        %v4962 = vpop.permute.xlu0 %4961
        %4963 = vrot.lane.b32.xlu0 %v4880, 64
        %v4964 = vpop.permute.xlu0 %4963
        %4965 = vrot.lane.b32.xlu0 %v4881, 64
        %v4966 = vpop.permute.xlu0 %4965
        %4967 = vrot.lane.b32.xlu0 %v4882, 64
        %v4968 = vpop.permute.xlu0 %4967
        %4969 = vrot.lane.b32.xlu0 %v4883, 64
        %v4970 = vpop.permute.xlu0 %4969
        %4971 = vrot.lane.b32.xlu0 %v4884, 64
        %v4972 = vpop.permute.xlu0 %4971
        %4973 = vrot.lane.b32.xlu0 %v4885, 64
        %v4974 = vpop.permute.xlu0 %4973
        %4975 = vrot.lane.b32.xlu0 %v4886, 64
        %v4976 = vpop.permute.xlu0 %4975
        %4977 = vrot.lane.b32.xlu0 %v4887, 64
        %v4978 = vpop.permute.xlu0 %4977
        %4979 = vrot.lane.b32.xlu0 %v4888, 64
        %v4980 = vpop.permute.xlu0 %4979
        %4981 = vrot.lane.b32.xlu0 %v4889, 64
        %v4982 = vpop.permute.xlu0 %4981
        %4983 = vrot.lane.b32.xlu0 %v4890, 64
        %v4984 = vpop.permute.xlu0 %4983
        %4985 = vrot.lane.b32.xlu0 %v4810, 64
        %v4986 = vpop.permute.xlu0 %4985
        %v4989 = vsel %vm1654, %v4715, %v4892
        %v4993 = vsel %vm1654, %v4716, %v4894
        %v4997 = vsel %vm1654, %v4717, %v4896
        %v5001 = vsel %vm1654, %v4718, %v4898
        %v5005 = vsel %vm1654, %v4719, %v4900
        %v5009 = vsel %vm1654, %v4720, %v4902
        %v5013 = vsel %vm1654, %v4721, %v4904
        %v5017 = vsel %vm1654, %v4722, %v4906
        %v5021 = vsel %vm1654, %v4723, %v4908
        %v5025 = vsel %vm1654, %v4724, %v4910
        %v5029 = vsel %vm1654, %v4725, %v4912
        %v5033 = vsel %vm1654, %v4726, %v4914
        %v5037 = vsel %vm1654, %v4727, %v4916
        %v5041 = vsel %vm1654, %v4728, %v4918
        %v5045 = vsel %vm1654, %v4729, %v4920
        %v5048 = vsel %vm1654, 0, %v4922
        %v5052 = vsel %vm1654, %v4875, %v4924
        %v5056 = vsel %vm1654, %v4876, %v4926
        %v5060 = vsel %vm1654, %v4877, %v4928
        %v5064 = vsel %vm1654, %v4878, %v4930
        %v5068 = vsel %vm1654, %v4879, %v4932
        %v5072 = vsel %vm1654, %v4880, %v4934
        %v5076 = vsel %vm1654, %v4881, %v4936
        %v5080 = vsel %vm1654, %v4882, %v4938
        %v5084 = vsel %vm1654, %v4883, %v4940
        %v5088 = vsel %vm1654, %v4884, %v4942
        %v5092 = vsel %vm1654, %v4885, %v4944
        %v5096 = vsel %vm1654, %v4886, %v4946
        %v5100 = vsel %vm1654, %v4887, %v4948
        %v5104 = vsel %vm1654, %v4888, %v4950
        %v5108 = vsel %vm1654, %v4889, %v4952
        %v5112 = vsel %vm1654, %v4795, %v4954
        %v5116 = vsel %vm1654, %v4796, %v4956
        %v5120 = vsel %vm1654, %v4797, %v4958
        %v5124 = vsel %vm1654, %v4798, %v4960
        %v5128 = vsel %vm1654, %v4799, %v4962
        %v5132 = vsel %vm1654, %v4800, %v4964
        %v5136 = vsel %vm1654, %v4801, %v4966
        %v5140 = vsel %vm1654, %v4802, %v4968
        %v5144 = vsel %vm1654, %v4803, %v4970
        %v5148 = vsel %vm1654, %v4804, %v4972
        %v5152 = vsel %vm1654, %v4805, %v4974
        %v5156 = vsel %vm1654, %v4806, %v4976
        %v5160 = vsel %vm1654, %v4807, %v4978
        %v5164 = vsel %vm1654, %v4808, %v4980
        %v5168 = vsel %vm1654, %v4809, %v4982
        %v5172 = vsel %vm1654, %v4810, %v4984
        %v5176 = vsel %vm1654, %v4730, %v4986
        %v5178 = vld [vmem:[#allocation8] sm:$0xf]
        %v5179 = vld [vmem:[#allocation8 + $0x4] sm:$0xf]
        %v5180 = vld [vmem:[#allocation8 + $0x8] sm:$0xf]
        %v5181 = vld [vmem:[#allocation8 + $0xc] sm:$0xf]
        %v5182 = vld [vmem:[#allocation8 + $0x10] sm:$0xf]
        %v5183 = vld [vmem:[#allocation8 + $0x14] sm:$0xf]
        %v5184 = vld [vmem:[#allocation8 + $0x18] sm:$0xf]
        %v5185 = vld [vmem:[#allocation8 + $0x1c] sm:$0xf]
        %v5186 = vld [vmem:[#allocation8 + $0x20] sm:$0xf]
        %v5187 = vld [vmem:[#allocation8 + $0x24] sm:$0xf]
        %v5188 = vld [vmem:[#allocation8 + $0x28] sm:$0xf]
        %v5189 = vld [vmem:[#allocation8 + $0x2c] sm:$0xf]
        %v5190 = vld [vmem:[#allocation8 + $0x30] sm:$0xf]
        %v5191 = vld [vmem:[#allocation8 + $0x34] sm:$0xf]
        %v5192 = vld [vmem:[#allocation8 + $0x38] sm:$0xf]
        %v5193 = vld [vmem:[#allocation8 + $0x3c] sm:$0xf]
        %v5194 = vld [vmem:[#allocation8 + $0x40] sm:$0xf]
        %v5195 = vld [vmem:[#allocation8 + $0x44] sm:$0xf]
        %v5196 = vld [vmem:[#allocation8 + $0x48] sm:$0xf]
        %v5197 = vld [vmem:[#allocation8 + $0x4c] sm:$0xf]
        %v5198 = vld [vmem:[#allocation8 + $0x50] sm:$0xf]
        %v5199 = vld [vmem:[#allocation8 + $0x54] sm:$0xf]
        %v5200 = vld [vmem:[#allocation8 + $0x58] sm:$0xf]
        %v5201 = vld [vmem:[#allocation8 + $0x5c] sm:$0xf]
        %v5202 = vld [vmem:[#allocation8 + $0x60] sm:$0xf]
        %v5203 = vld [vmem:[#allocation8 + $0x64] sm:$0xf]
        %v5204 = vld [vmem:[#allocation8 + $0x68] sm:$0xf]
        %v5205 = vld [vmem:[#allocation8 + $0x6c] sm:$0xf]
        %v5206 = vld [vmem:[#allocation8 + $0x70] sm:$0xf]
        %v5207 = vld [vmem:[#allocation8 + $0x74] sm:$0xf]
        %v5208 = vld [vmem:[#allocation8 + $0x78] sm:$0xf]
        %v5209 = vld [vmem:[#allocation8 + $0x7c] sm:$0xf]
        %v5210 = vld [vmem:[#allocation8 + $0x80] sm:$0xf]
        %v5211 = vld [vmem:[#allocation8 + $0x84] sm:$0xf]
        %v5212 = vld [vmem:[#allocation8 + $0x88] sm:$0xf]
        %v5213 = vld [vmem:[#allocation8 + $0x8c] sm:$0xf]
        %v5214 = vld [vmem:[#allocation8 + $0x90] sm:$0xf]
        %v5215 = vld [vmem:[#allocation8 + $0x94] sm:$0xf]
        %v5216 = vld [vmem:[#allocation8 + $0x98] sm:$0xf]
        %v5217 = vld [vmem:[#allocation8 + $0x9c] sm:$0xf]
        %v5218 = vld [vmem:[#allocation8 + $0xa0] sm:$0xf]
        %v5219 = vld [vmem:[#allocation8 + $0xa4] sm:$0xf]
        %v5220 = vld [vmem:[#allocation8 + $0xa8] sm:$0xf]
        %v5221 = vld [vmem:[#allocation8 + $0xac] sm:$0xf]
        %v5222 = vld [vmem:[#allocation8 + $0xb0] sm:$0xf]
        %v5223 = vld [vmem:[#allocation8 + $0xb4] sm:$0xf]
        %v5224 = vld [vmem:[#allocation8 + $0xb8] sm:$0xf]
        %v5225 = vld [vmem:[#allocation8 + $0xbc] sm:$0xf]
        %v5226 = vld [vmem:[#allocation8 + $0xc0] sm:$0xf]
        %v5227 = vld [vmem:[#allocation8 + $0xc4] sm:$0xf]
        %v5228 = vld [vmem:[#allocation8 + $0xc8] sm:$0xf]
        %v5229 = vld [vmem:[#allocation8 + $0xcc] sm:$0xf]
        %v5230 = vld [vmem:[#allocation8 + $0xd0] sm:$0xf]
        %v5231 = vld [vmem:[#allocation8 + $0xd4] sm:$0xf]
        %v5232 = vld [vmem:[#allocation8 + $0xd8] sm:$0xf]
        %v5233 = vld [vmem:[#allocation8 + $0xdc] sm:$0xf]
        %v5234 = vld [vmem:[#allocation8 + $0xe0] sm:$0xf]
        %v5235 = vld [vmem:[#allocation8 + $0xe4] sm:$0xf]
        %v5236 = vld [vmem:[#allocation8 + $0xe8] sm:$0xf]
        %v5237 = vld [vmem:[#allocation8 + $0xec] sm:$0xf]
        %v5238 = vld [vmem:[#allocation8 + $0xf0] sm:$0xf]
        %v5239 = vld [vmem:[#allocation8 + $0xf4] sm:$0xf]
        %v5240 = vld [vmem:[#allocation8 + $0xf8] sm:$0xf]
        %v5241 = vld [vmem:[#allocation8 + $0xfc] sm:$0xf]
        %v5242 = vld [vmem:[#allocation8 + $0x100] sm:$0xf]
        %v5243 = vld [vmem:[#allocation8 + $0x104] sm:$0xf]
        %v5244 = vld [vmem:[#allocation8 + $0x108] sm:$0xf]
        %v5245 = vld [vmem:[#allocation8 + $0x10c] sm:$0xf]
        %v5246 = vld [vmem:[#allocation8 + $0x110] sm:$0xf]
        %v5247 = vld [vmem:[#allocation8 + $0x114] sm:$0xf]
        %v5248 = vld [vmem:[#allocation8 + $0x118] sm:$0xf]
        %v5249 = vld [vmem:[#allocation8 + $0x11c] sm:$0xf]
        %v5250 = vld [vmem:[%s8] sm:$0x1]
        %v5252 = vperm.slane %v5250, 0
        %v5326 = vunpack.c.l.b16 %v5178
        %v5327 = vunpack.c.l.b16 %v5179
        %v5328 = vunpack.c.l.b16 %v5180
        %v5329 = vunpack.c.l.b16 %v5181
        %v5330 = vunpack.c.l.b16 %v5182
        %v5331 = vunpack.c.l.b16 %v5183
        %v5332 = vunpack.c.l.b16 %v5184
        %v5333 = vunpack.c.l.b16 %v5185
        %v5334 = vunpack.c.l.b16 %v5186
        %v5335 = vunpack.c.l.b16 %v5187
        %v5336 = vunpack.c.l.b16 %v5188
        %v5337 = vunpack.c.l.b16 %v5189
        %v5338 = vunpack.c.l.b16 %v5190
        %v5339 = vunpack.c.l.b16 %v5191
        %v5340 = vunpack.c.l.b16 %v5192
        %v5341 = vunpack.c.l.b16 %v5193
        %v5342 = vunpack.c.l.b16 %v5194
        %v5343 = vunpack.c.l.b16 %v5195
        %v5344 = vunpack.c.l.b16 %v5196
        %v5345 = vunpack.c.l.b16 %v5197
        %v5346 = vunpack.c.l.b16 %v5198
        %v5347 = vunpack.c.l.b16 %v5199
        %v5348 = vunpack.c.l.b16 %v5200
        %v5349 = vunpack.c.l.b16 %v5201
        %v5350 = vunpack.c.l.b16 %v5202
        %v5351 = vunpack.c.l.b16 %v5203
        %v5352 = vunpack.c.l.b16 %v5204
        %v5353 = vunpack.c.l.b16 %v5205
        %v5354 = vunpack.c.l.b16 %v5206
        %v5355 = vunpack.c.l.b16 %v5207
        %v5356 = vunpack.c.l.b16 %v5208
        %v5357 = vunpack.c.l.b16 %v5209
        %v5358 = vunpack.c.l.b16 %v5210
        %v5359 = vunpack.c.l.b16 %v5211
        %v5360 = vunpack.c.l.b16 %v5212
        %v5361 = vunpack.c.l.b16 %v5213
        %v5362 = vunpack.c.l.b16 %v5214
        %v5363 = vunpack.c.l.b16 %v5215
        %v5364 = vunpack.c.l.b16 %v5216
        %v5365 = vunpack.c.l.b16 %v5217
        %v5366 = vunpack.c.l.b16 %v5218
        %v5367 = vunpack.c.l.b16 %v5219
        %v5368 = vunpack.c.l.b16 %v5220
        %v5369 = vunpack.c.l.b16 %v5221
        %v5370 = vunpack.c.l.b16 %v5222
        %v5371 = vunpack.c.l.b16 %v5223
        %v5372 = vunpack.c.l.b16 %v5224
        %v5373 = vunpack.c.l.b16 %v5225
        %v5374 = vunpack.c.l.b16 %v5226
        %v5375 = vunpack.c.l.b16 %v5227
        %v5376 = vunpack.c.l.b16 %v5228
        %v5377 = vunpack.c.l.b16 %v5229
        %v5378 = vunpack.c.l.b16 %v5230
        %v5379 = vunpack.c.l.b16 %v5231
        %v5380 = vunpack.c.l.b16 %v5232
        %v5381 = vunpack.c.l.b16 %v5233
        %v5382 = vunpack.c.l.b16 %v5234
        %v5383 = vunpack.c.l.b16 %v5235
        %v5384 = vunpack.c.l.b16 %v5236
        %v5385 = vunpack.c.l.b16 %v5237
        %v5386 = vunpack.c.l.b16 %v5238
        %v5387 = vunpack.c.l.b16 %v5239
        %v5388 = vunpack.c.l.b16 %v5240
        %v5389 = vunpack.c.l.b16 %v5241
        %v5390 = vunpack.c.l.b16 %v5242
        %v5391 = vunpack.c.l.b16 %v5243
        %v5392 = vunpack.c.l.b16 %v5244
        %v5393 = vunpack.c.l.b16 %v5245
        %v5394 = vunpack.c.l.b16 %v5246
        %v5395 = vunpack.c.l.b16 %v5247
        %v5396 = vunpack.c.l.b16 %v5248
        %v5397 = vunpack.c.l.b16 %v5249
        %v5398 = vpack.c.b16 %v5327, %v5326
        %v5399 = vpack.c.b16 %v5329, %v5328
        %v5400 = vpack.c.b16 %v5331, %v5330
        %v5401 = vpack.c.b16 %v5333, %v5332
        %v5402 = vpack.c.b16 %v5335, %v5334
        %v5403 = vpack.c.b16 %v5337, %v5336
        %v5404 = vpack.c.b16 %v5339, %v5338
        %v5405 = vpack.c.b16 %v5341, %v5340
        %v5406 = vpack.c.b16 %v5343, %v5342
        %v5407 = vpack.c.b16 %v5345, %v5344
        %v5408 = vpack.c.b16 %v5347, %v5346
        %v5409 = vpack.c.b16 %v5349, %v5348
        %v5410 = vpack.c.b16 %v5351, %v5350
        %v5411 = vpack.c.b16 %v5353, %v5352
        %v5412 = vpack.c.b16 %v5355, %v5354
        %v5413 = vpack.c.b16 %v5357, %v5356
        %v5414 = vpack.c.b16 %v5359, %v5358
        %v5415 = vpack.c.b16 %v5361, %v5360
        %v5416 = vpack.c.b16 %v5363, %v5362
        %v5417 = vpack.c.b16 %v5365, %v5364
        %v5418 = vpack.c.b16 %v5367, %v5366
        %v5419 = vpack.c.b16 %v5369, %v5368
        %v5420 = vpack.c.b16 %v5371, %v5370
        %v5421 = vpack.c.b16 %v5373, %v5372
        %v5422 = vpack.c.b16 %v5375, %v5374
        %v5423 = vpack.c.b16 %v5377, %v5376
        %v5424 = vpack.c.b16 %v5379, %v5378
        %v5425 = vpack.c.b16 %v5381, %v5380
        %v5426 = vpack.c.b16 %v5383, %v5382
        %v5427 = vpack.c.b16 %v5385, %v5384
        %v5428 = vpack.c.b16 %v5387, %v5386
        %v5429 = vpack.c.b16 %v5389, %v5388
        %v5430 = vpack.c.b16 %v5391, %v5390
        %v5431 = vpack.c.b16 %v5393, %v5392
        %v5432 = vpack.c.b16 %v5395, %v5394
        %v5433 = vpack.c.b16 %v5397, %v5396
        %v5470 = vsel %vm1654, %v4876, 0
        %v5472 = vsel %vm1654, %v4877, 0
        %v5474 = vsel %vm1654, %v4878, 0
        %v5476 = vsel %vm1654, %v4879, 0
        %v5478 = vsel %vm1654, %v4880, 0
        %v5480 = vsel %vm1654, %v4881, 0
        %v5482 = vsel %vm1654, %v4882, 0
        %v5484 = vsel %vm1654, %v4883, 0
        %v5486 = vsel %vm1654, %v4884, 0
        %v5488 = vsel %vm1654, %v4885, 0
        %v5490 = vsel %vm1654, %v4886, 0
        %v5492 = vsel %vm1654, %v4887, 0
        %v5494 = vsel %vm1654, %v4888, 0
        %v5496 = vsel %vm1654, %v4889, 0
        %v5499 = vsel %vm1654, %v4890, 0
        %5501 = vmatpush.bf16.msra.mxu0 %v5405
        %5502 = vmatpush.bf16.msra.mxu0 %v5404
        %5503 = vmatpush.bf16.msra.mxu0 %v5403
        %5504 = vmatpush.bf16.msra.mxu0 %v5402
        %5505 = vmatpush.bf16.msra.mxu0 %v5401
        %5506 = vmatpush.bf16.msra.mxu0 %v5400
        %5507 = vmatpush.bf16.msra.mxu0 %v5399
        %5508 = vmatpush.bf16.msra.mxu0 %v5398
        %5509 = vmatmul.bf16.gmra.mxu0 %v1657
        %v5510 = vpop.f32.mrf.mxu0
        %v5511 = vadd.f32 %v5252, %v5510
        %v5512 = vpop.f32.mrf.mxu0
        %v5513 = vadd.f32 %v5252, %v5512
        %5514 = vmatmul.bf16.gmra.mxu0 %v4989
        %v5515 = vpop.f32.mrf.mxu0
        %v5516 = vadd.f32 %v5252, %v5515
        %v5517 = vpop.f32.mrf.mxu0
        %v5518 = vadd.f32 %v5252, %v5517
        %5519 = vmatmul.bf16.gmra.mxu0 %v4993
        %v5520 = vpop.f32.mrf.mxu0
        %v5521 = vadd.f32 %v5252, %v5520
        %v5522 = vpop.f32.mrf.mxu0
        %v5523 = vadd.f32 %v5252, %v5522
        %5524 = vmatmul.bf16.gmra.mxu0 %v4997
        %v5525 = vpop.f32.mrf.mxu0
        %v5526 = vadd.f32 %v5252, %v5525
        %v5527 = vpop.f32.mrf.mxu0
        %v5528 = vadd.f32 %v5252, %v5527
        %5529 = vmatmul.bf16.gmra.mxu0 %v5001
        %v5530 = vpop.f32.mrf.mxu0
        %v5531 = vadd.f32 %v5252, %v5530
        %v5532 = vpop.f32.mrf.mxu0
        %v5533 = vadd.f32 %v5252, %v5532
        %5534 = vmatmul.bf16.gmra.mxu0 %v5005
        %v5535 = vpop.f32.mrf.mxu0
        %v5536 = vadd.f32 %v5252, %v5535
        %v5537 = vpop.f32.mrf.mxu0
        %v5538 = vadd.f32 %v5252, %v5537
        %5539 = vmatmul.bf16.gmra.mxu0 %v5009
        %v5540 = vpop.f32.mrf.mxu0
        %v5541 = vadd.f32 %v5252, %v5540
        %v5542 = vpop.f32.mrf.mxu0
        %v5543 = vadd.f32 %v5252, %v5542
        %5544 = vmatmul.bf16.gmra.mxu0 %v5013
        %v5545 = vpop.f32.mrf.mxu0
        %v5546 = vadd.f32 %v5252, %v5545
        %v5547 = vpop.f32.mrf.mxu0
        %v5548 = vadd.f32 %v5252, %v5547
        %5549 = vmatmul.bf16.gmra.mxu0 %v5017
        %v5550 = vpop.f32.mrf.mxu0
        %v5551 = vadd.f32 %v5252, %v5550
        %v5552 = vpop.f32.mrf.mxu0
        %v5553 = vadd.f32 %v5252, %v5552
        %5554 = vmatmul.bf16.gmra.mxu0 %v5021
        %v5555 = vpop.f32.mrf.mxu0
        %v5556 = vadd.f32 %v5252, %v5555
        %v5557 = vpop.f32.mrf.mxu0
        %v5558 = vadd.f32 %v5252, %v5557
        %5559 = vmatmul.bf16.gmra.mxu0 %v5025
        %v5560 = vpop.f32.mrf.mxu0
        %v5561 = vadd.f32 %v5252, %v5560
        %v5562 = vpop.f32.mrf.mxu0
        %v5563 = vadd.f32 %v5252, %v5562
        %5564 = vmatmul.bf16.gmra.mxu0 %v5029
        %v5565 = vpop.f32.mrf.mxu0
        %v5566 = vadd.f32 %v5252, %v5565
        %v5567 = vpop.f32.mrf.mxu0
        %v5568 = vadd.f32 %v5252, %v5567
        %5569 = vmatmul.bf16.gmra.mxu0 %v5033
        %v5570 = vpop.f32.mrf.mxu0
        %v5571 = vadd.f32 %v5252, %v5570
        %v5572 = vpop.f32.mrf.mxu0
        %v5573 = vadd.f32 %v5252, %v5572
        %5574 = vmatmul.bf16.gmra.mxu0 %v5037
        %v5575 = vpop.f32.mrf.mxu0
        %v5576 = vadd.f32 %v5252, %v5575
        %v5577 = vpop.f32.mrf.mxu0
        %v5578 = vadd.f32 %v5252, %v5577
        %5579 = vmatmul.bf16.gmra.mxu0 %v5041
        %v5580 = vpop.f32.mrf.mxu0
        %v5581 = vadd.f32 %v5252, %v5580
        %v5582 = vpop.f32.mrf.mxu0
        %v5583 = vadd.f32 %v5252, %v5582
        %5584 = vmatmul.bf16.gmra.mxu0 %v5045
        %v5585 = vpop.f32.mrf.mxu0
        %v5586 = vadd.f32 %v5252, %v5585
        %v5587 = vpop.f32.mrf.mxu0
        %v5588 = vadd.f32 %v5252, %v5587
        %5589 = vdwg.mxu0
        %5590 = vmatpush.bf16.msra.mxu0 %v5413
        %5591 = vmatpush.bf16.msra.mxu0 %v5412
        %5592 = vmatpush.bf16.msra.mxu0 %v5411
        %5593 = vmatpush.bf16.msra.mxu0 %v5410
        %5594 = vmatpush.bf16.msra.mxu0 %v5409
        %5595 = vmatpush.bf16.msra.mxu0 %v5408
        %5596 = vmatpush.bf16.msra.mxu0 %v5407
        %5597 = vmatpush.bf16.msra.mxu0 %v5406
        %5598 = vmatmul.bf16.gmra.mxu0 %v5048
        %v5599 = vpop.f32.mrf.mxu0
        %v5600 = vadd.f32 %v5511, %v5599
        %v5601 = vpop.f32.mrf.mxu0
        %v5602 = vadd.f32 %v5513, %v5601
        %5603 = vmatmul.bf16.gmra.mxu0 %v5052
        %v5604 = vpop.f32.mrf.mxu0
        %v5605 = vadd.f32 %v5516, %v5604
        %v5606 = vpop.f32.mrf.mxu0
        %v5607 = vadd.f32 %v5518, %v5606
        %5608 = vmatmul.bf16.gmra.mxu0 %v5056
        %v5609 = vpop.f32.mrf.mxu0
        %v5610 = vadd.f32 %v5521, %v5609
        %v5611 = vpop.f32.mrf.mxu0
        %v5612 = vadd.f32 %v5523, %v5611
        %5613 = vmatmul.bf16.gmra.mxu0 %v5060
        %v5614 = vpop.f32.mrf.mxu0
        %v5615 = vadd.f32 %v5526, %v5614
        %v5616 = vpop.f32.mrf.mxu0
        %v5617 = vadd.f32 %v5528, %v5616
        %5618 = vmatmul.bf16.gmra.mxu0 %v5064
        %v5619 = vpop.f32.mrf.mxu0
        %v5620 = vadd.f32 %v5531, %v5619
        %v5621 = vpop.f32.mrf.mxu0
        %v5622 = vadd.f32 %v5533, %v5621
        %5623 = vmatmul.bf16.gmra.mxu0 %v5068
        %v5624 = vpop.f32.mrf.mxu0
        %v5625 = vadd.f32 %v5536, %v5624
        %v5626 = vpop.f32.mrf.mxu0
        %v5627 = vadd.f32 %v5538, %v5626
        %5628 = vmatmul.bf16.gmra.mxu0 %v5072
        %v5629 = vpop.f32.mrf.mxu0
        %v5630 = vadd.f32 %v5541, %v5629
        %v5631 = vpop.f32.mrf.mxu0
        %v5632 = vadd.f32 %v5543, %v5631
        %5633 = vmatmul.bf16.gmra.mxu0 %v5076
        %v5634 = vpop.f32.mrf.mxu0
        %v5635 = vadd.f32 %v5546, %v5634
        %v5636 = vpop.f32.mrf.mxu0
        %v5637 = vadd.f32 %v5548, %v5636
        %5638 = vmatmul.bf16.gmra.mxu0 %v5080
        %v5639 = vpop.f32.mrf.mxu0
        %v5640 = vadd.f32 %v5551, %v5639
        %v5641 = vpop.f32.mrf.mxu0
        %v5642 = vadd.f32 %v5553, %v5641
        %5643 = vmatmul.bf16.gmra.mxu0 %v5084
        %v5644 = vpop.f32.mrf.mxu0
        %v5645 = vadd.f32 %v5556, %v5644
        %v5646 = vpop.f32.mrf.mxu0
        %v5647 = vadd.f32 %v5558, %v5646
        %5648 = vmatmul.bf16.gmra.mxu0 %v5088
        %v5649 = vpop.f32.mrf.mxu0
        %v5650 = vadd.f32 %v5561, %v5649
        %v5651 = vpop.f32.mrf.mxu0
        %v5652 = vadd.f32 %v5563, %v5651
        %5653 = vmatmul.bf16.gmra.mxu0 %v5092
        %v5654 = vpop.f32.mrf.mxu0
        %v5655 = vadd.f32 %v5566, %v5654
        %v5656 = vpop.f32.mrf.mxu0
        %v5657 = vadd.f32 %v5568, %v5656
        %5658 = vmatmul.bf16.gmra.mxu0 %v5096
        %v5659 = vpop.f32.mrf.mxu0
        %v5660 = vadd.f32 %v5571, %v5659
        %v5661 = vpop.f32.mrf.mxu0
        %v5662 = vadd.f32 %v5573, %v5661
        %5663 = vmatmul.bf16.gmra.mxu0 %v5100
        %v5664 = vpop.f32.mrf.mxu0
        %v5665 = vadd.f32 %v5576, %v5664
        %v5666 = vpop.f32.mrf.mxu0
        %v5667 = vadd.f32 %v5578, %v5666
        %5668 = vmatmul.bf16.gmra.mxu0 %v5104
        %v5669 = vpop.f32.mrf.mxu0
        %v5670 = vadd.f32 %v5581, %v5669
        %v5671 = vpop.f32.mrf.mxu0
        %v5672 = vadd.f32 %v5583, %v5671
        %5673 = vmatmul.bf16.gmra.mxu0 %v5108
        %v5674 = vpop.f32.mrf.mxu0
        %v5675 = vadd.f32 %v5586, %v5674
        %v5676 = vpop.f32.mrf.mxu0
        %v5677 = vadd.f32 %v5588, %v5676
        %5678 = vdwg.mxu0
        %5679 = vmatpush.bf16.msra.mxu0 %v5421
        %5680 = vmatpush.bf16.msra.mxu0 %v5420
        %5681 = vmatpush.bf16.msra.mxu0 %v5419
        %5682 = vmatpush.bf16.msra.mxu0 %v5418
        %5683 = vmatpush.bf16.msra.mxu0 %v5417
        %5684 = vmatpush.bf16.msra.mxu0 %v5416
        %5685 = vmatpush.bf16.msra.mxu0 %v5415
        %5686 = vmatpush.bf16.msra.mxu0 %v5414
        %5687 = vmatmul.bf16.gmra.mxu0 %v5112
        %v5688 = vpop.f32.mrf.mxu0
        %v5689 = vadd.f32 %v5600, %v5688
        %v5690 = vpop.f32.mrf.mxu0
        %v5691 = vadd.f32 %v5602, %v5690
        %5692 = vmatmul.bf16.gmra.mxu0 %v5116
        %v5693 = vpop.f32.mrf.mxu0
        %v5694 = vadd.f32 %v5605, %v5693
        %v5695 = vpop.f32.mrf.mxu0
        %v5696 = vadd.f32 %v5607, %v5695
        %5697 = vmatmul.bf16.gmra.mxu0 %v5120
        %v5698 = vpop.f32.mrf.mxu0
        %v5699 = vadd.f32 %v5610, %v5698
        %v5700 = vpop.f32.mrf.mxu0
        %v5701 = vadd.f32 %v5612, %v5700
        %5702 = vmatmul.bf16.gmra.mxu0 %v5124
        %v5703 = vpop.f32.mrf.mxu0
        %v5704 = vadd.f32 %v5615, %v5703
        %v5705 = vpop.f32.mrf.mxu0
        %v5706 = vadd.f32 %v5617, %v5705
        %5707 = vmatmul.bf16.gmra.mxu0 %v5128
        %v5708 = vpop.f32.mrf.mxu0
        %v5709 = vadd.f32 %v5620, %v5708
        %v5710 = vpop.f32.mrf.mxu0
        %v5711 = vadd.f32 %v5622, %v5710
        %5712 = vmatmul.bf16.gmra.mxu0 %v5132
        %v5713 = vpop.f32.mrf.mxu0
        %v5714 = vadd.f32 %v5625, %v5713
        %v5715 = vpop.f32.mrf.mxu0
        %v5716 = vadd.f32 %v5627, %v5715
        %5717 = vmatmul.bf16.gmra.mxu0 %v5136
        %v5718 = vpop.f32.mrf.mxu0
        %v5719 = vadd.f32 %v5630, %v5718
        %v5720 = vpop.f32.mrf.mxu0
        %v5721 = vadd.f32 %v5632, %v5720
        %5722 = vmatmul.bf16.gmra.mxu0 %v5140
        %v5723 = vpop.f32.mrf.mxu0
        %v5724 = vadd.f32 %v5635, %v5723
        %v5725 = vpop.f32.mrf.mxu0
        %v5726 = vadd.f32 %v5637, %v5725
        %5727 = vmatmul.bf16.gmra.mxu0 %v5144
        %v5728 = vpop.f32.mrf.mxu0
        %v5729 = vadd.f32 %v5640, %v5728
        %v5730 = vpop.f32.mrf.mxu0
        %v5731 = vadd.f32 %v5642, %v5730
        %5732 = vmatmul.bf16.gmra.mxu0 %v5148
        %v5733 = vpop.f32.mrf.mxu0
        %v5734 = vadd.f32 %v5645, %v5733
        %v5735 = vpop.f32.mrf.mxu0
        %v5736 = vadd.f32 %v5647, %v5735
        %5737 = vmatmul.bf16.gmra.mxu0 %v5152
        %v5738 = vpop.f32.mrf.mxu0
        %v5739 = vadd.f32 %v5650, %v5738
        %v5740 = vpop.f32.mrf.mxu0
        %v5741 = vadd.f32 %v5652, %v5740
        %5742 = vmatmul.bf16.gmra.mxu0 %v5156
        %v5743 = vpop.f32.mrf.mxu0
        %v5744 = vadd.f32 %v5655, %v5743
        %v5745 = vpop.f32.mrf.mxu0
        %v5746 = vadd.f32 %v5657, %v5745
        %5747 = vmatmul.bf16.gmra.mxu0 %v5160
        %v5748 = vpop.f32.mrf.mxu0
        %v5749 = vadd.f32 %v5660, %v5748
        %v5750 = vpop.f32.mrf.mxu0
        %v5751 = vadd.f32 %v5662, %v5750
        %5752 = vmatmul.bf16.gmra.mxu0 %v5164
        %v5753 = vpop.f32.mrf.mxu0
        %v5754 = vadd.f32 %v5665, %v5753
        %v5755 = vpop.f32.mrf.mxu0
        %v5756 = vadd.f32 %v5667, %v5755
        %5757 = vmatmul.bf16.gmra.mxu0 %v5168
        %v5758 = vpop.f32.mrf.mxu0
        %v5759 = vadd.f32 %v5670, %v5758
        %v5760 = vpop.f32.mrf.mxu0
        %v5761 = vadd.f32 %v5672, %v5760
        %5762 = vmatmul.bf16.gmra.mxu0 %v5172
        %v5763 = vpop.f32.mrf.mxu0
        %v5764 = vadd.f32 %v5675, %v5763
        %v5765 = vpop.f32.mrf.mxu0
        %v5766 = vadd.f32 %v5677, %v5765
        %5767 = vdwg.mxu0
        %5768 = vmatpush.bf16.msra.mxu0 %v5429
        %5769 = vmatpush.bf16.msra.mxu0 %v5428
        %5770 = vmatpush.bf16.msra.mxu0 %v5427
        %5771 = vmatpush.bf16.msra.mxu0 %v5426
        %5772 = vmatpush.bf16.msra.mxu0 %v5425
        %5773 = vmatpush.bf16.msra.mxu0 %v5424
        %5774 = vmatpush.bf16.msra.mxu0 %v5423
        %5775 = vmatpush.bf16.msra.mxu0 %v5422
        %5776 = vmatmul.bf16.gmra.mxu0 %v4993
        %v5777 = vpop.f32.mrf.mxu0
        %v5778 = vadd.f32 %v5689, %v5777
        %v5779 = vpop.f32.mrf.mxu0
        %v5780 = vadd.f32 %v5691, %v5779
        %5781 = vmatmul.bf16.gmra.mxu0 %v4997
        %v5782 = vpop.f32.mrf.mxu0
        %v5783 = vadd.f32 %v5694, %v5782
        %v5784 = vpop.f32.mrf.mxu0
        %v5785 = vadd.f32 %v5696, %v5784
        %5786 = vmatmul.bf16.gmra.mxu0 %v5001
        %v5787 = vpop.f32.mrf.mxu0
        %v5788 = vadd.f32 %v5699, %v5787
        %v5789 = vpop.f32.mrf.mxu0
        %v5790 = vadd.f32 %v5701, %v5789
        %5791 = vmatmul.bf16.gmra.mxu0 %v5005
        %v5792 = vpop.f32.mrf.mxu0
        %v5793 = vadd.f32 %v5704, %v5792
        %v5794 = vpop.f32.mrf.mxu0
        %v5795 = vadd.f32 %v5706, %v5794
        %5796 = vmatmul.bf16.gmra.mxu0 %v5009
        %v5797 = vpop.f32.mrf.mxu0
        %v5798 = vadd.f32 %v5709, %v5797
        %v5799 = vpop.f32.mrf.mxu0
        %v5800 = vadd.f32 %v5711, %v5799
        %5801 = vmatmul.bf16.gmra.mxu0 %v5013
        %v5802 = vpop.f32.mrf.mxu0
        %v5803 = vadd.f32 %v5714, %v5802
        %v5804 = vpop.f32.mrf.mxu0
        %v5805 = vadd.f32 %v5716, %v5804
        %5806 = vmatmul.bf16.gmra.mxu0 %v5017
        %v5807 = vpop.f32.mrf.mxu0
        %v5808 = vadd.f32 %v5719, %v5807
        %v5809 = vpop.f32.mrf.mxu0
        %v5810 = vadd.f32 %v5721, %v5809
        %5811 = vmatmul.bf16.gmra.mxu0 %v5021
        %v5812 = vpop.f32.mrf.mxu0
        %v5813 = vadd.f32 %v5724, %v5812
        %v5814 = vpop.f32.mrf.mxu0
        %v5815 = vadd.f32 %v5726, %v5814
        %5816 = vmatmul.bf16.gmra.mxu0 %v5025
        %v5817 = vpop.f32.mrf.mxu0
        %v5818 = vadd.f32 %v5729, %v5817
        %v5819 = vpop.f32.mrf.mxu0
        %v5820 = vadd.f32 %v5731, %v5819
        %5821 = vmatmul.bf16.gmra.mxu0 %v5029
        %v5822 = vpop.f32.mrf.mxu0
        %v5823 = vadd.f32 %v5734, %v5822
        %v5824 = vpop.f32.mrf.mxu0
        %v5825 = vadd.f32 %v5736, %v5824
        %5826 = vmatmul.bf16.gmra.mxu0 %v5033
        %v5827 = vpop.f32.mrf.mxu0
        %v5828 = vadd.f32 %v5739, %v5827
        %v5829 = vpop.f32.mrf.mxu0
        %v5830 = vadd.f32 %v5741, %v5829
        %5831 = vmatmul.bf16.gmra.mxu0 %v5037
        %v5832 = vpop.f32.mrf.mxu0
        %v5833 = vadd.f32 %v5744, %v5832
        %v5834 = vpop.f32.mrf.mxu0
        %v5835 = vadd.f32 %v5746, %v5834
        %5836 = vmatmul.bf16.gmra.mxu0 %v5041
        %v5837 = vpop.f32.mrf.mxu0
        %v5838 = vadd.f32 %v5749, %v5837
        %v5839 = vpop.f32.mrf.mxu0
        %v5840 = vadd.f32 %v5751, %v5839
        %5841 = vmatmul.bf16.gmra.mxu0 %v5045
        %v5842 = vpop.f32.mrf.mxu0
        %v5843 = vadd.f32 %v5754, %v5842
        %v5844 = vpop.f32.mrf.mxu0
        %v5845 = vadd.f32 %v5756, %v5844
        %5846 = vmatmul.bf16.gmra.mxu0 %v5176
        %v5847 = vpop.f32.mrf.mxu0
        %v5848 = vadd.f32 %v5759, %v5847
        %v5849 = vpop.f32.mrf.mxu0
        %v5850 = vadd.f32 %v5761, %v5849
        %5851 = vmatmul.bf16.gmra.mxu0 %v1657
        %v5852 = vpop.f32.mrf.mxu0
        %v5853 = vadd.f32 %v5764, %v5852
        %v5854 = vpop.f32.mrf.mxu0
        %v5855 = vadd.f32 %v5766, %v5854
        %5856 = vdwg.mxu0
        %5857 = vmatpush.bf16.msra.mxu0 0
        %5858 = vmatpush.bf16.msra.mxu0 0
        %5859 = vmatpush.bf16.msra.mxu0 0
        %5860 = vmatpush.bf16.msra.mxu0 0
        %5861 = vmatpush.bf16.msra.mxu0 %v5433
        %5862 = vmatpush.bf16.msra.mxu0 %v5432
        %5863 = vmatpush.bf16.msra.mxu0 %v5431
        %5864 = vmatpush.bf16.msra.mxu0 %v5430
        %5865 = vmatmul.bf16.gmra.mxu0 %v5470
        %v5866 = vpop.f32.mrf.mxu0
        %v5867 = vadd.f32 %v5778, %v5866
        %v5868 = vpop.f32.mrf.mxu0
        %v5869 = vadd.f32 %v5780, %v5868
        %5870 = vmatmul.bf16.gmra.mxu0 %v5472
        %v5871 = vpop.f32.mrf.mxu0
        %v5872 = vadd.f32 %v5783, %v5871
        %v5873 = vpop.f32.mrf.mxu0
        %v5874 = vadd.f32 %v5785, %v5873
        %5875 = vmatmul.bf16.gmra.mxu0 %v5474
        %v5876 = vpop.f32.mrf.mxu0
        %v5877 = vadd.f32 %v5788, %v5876
        %v5878 = vpop.f32.mrf.mxu0
        %v5879 = vadd.f32 %v5790, %v5878
        %5880 = vmatmul.bf16.gmra.mxu0 %v5476
        %v5881 = vpop.f32.mrf.mxu0
        %v5882 = vadd.f32 %v5793, %v5881
        %v5883 = vpop.f32.mrf.mxu0
        %v5884 = vadd.f32 %v5795, %v5883
        %5885 = vmatmul.bf16.gmra.mxu0 %v5478
        %v5886 = vpop.f32.mrf.mxu0
        %v5887 = vadd.f32 %v5798, %v5886
        %v5888 = vpop.f32.mrf.mxu0
        %v5889 = vadd.f32 %v5800, %v5888
        %5890 = vmatmul.bf16.gmra.mxu0 %v5480
        %v5891 = vpop.f32.mrf.mxu0
        %v5892 = vadd.f32 %v5803, %v5891
        %v5893 = vpop.f32.mrf.mxu0
        %v5894 = vadd.f32 %v5805, %v5893
        %5895 = vmatmul.bf16.gmra.mxu0 %v5482
        %v5896 = vpop.f32.mrf.mxu0
        %v5897 = vadd.f32 %v5808, %v5896
        %v5898 = vpop.f32.mrf.mxu0
        %v5899 = vadd.f32 %v5810, %v5898
        %5900 = vmatmul.bf16.gmra.mxu0 %v5484
        %v5901 = vpop.f32.mrf.mxu0
        %v5902 = vadd.f32 %v5813, %v5901
        %v5903 = vpop.f32.mrf.mxu0
        %v5904 = vadd.f32 %v5815, %v5903
        %5905 = vmatmul.bf16.gmra.mxu0 %v5486
        %v5906 = vpop.f32.mrf.mxu0
        %v5907 = vadd.f32 %v5818, %v5906
        %v5908 = vpop.f32.mrf.mxu0
        %v5909 = vadd.f32 %v5820, %v5908
        %5910 = vmatmul.bf16.gmra.mxu0 %v5488
        %v5911 = vpop.f32.mrf.mxu0
        %v5912 = vadd.f32 %v5823, %v5911
        %v5913 = vpop.f32.mrf.mxu0
        %v5914 = vadd.f32 %v5825, %v5913
        %5915 = vmatmul.bf16.gmra.mxu0 %v5490
        %v5916 = vpop.f32.mrf.mxu0
        %v5917 = vadd.f32 %v5828, %v5916
        %v5918 = vpop.f32.mrf.mxu0
        %v5919 = vadd.f32 %v5830, %v5918
        %5920 = vmatmul.bf16.gmra.mxu0 %v5492
        %v5921 = vpop.f32.mrf.mxu0
        %v5922 = vadd.f32 %v5833, %v5921
        %v5923 = vpop.f32.mrf.mxu0
        %v5924 = vadd.f32 %v5835, %v5923
        %5925 = vmatmul.bf16.gmra.mxu0 %v5494
        %v5926 = vpop.f32.mrf.mxu0
        %v5927 = vadd.f32 %v5838, %v5926
        %v5928 = vpop.f32.mrf.mxu0
        %v5929 = vadd.f32 %v5840, %v5928
        %5930 = vmatmul.bf16.gmra.mxu0 %v5496
        %v5931 = vpop.f32.mrf.mxu0
        %v5932 = vadd.f32 %v5843, %v5931
        %v5933 = vpop.f32.mrf.mxu0
        %v5934 = vadd.f32 %v5845, %v5933
        %5935 = vmatmul.bf16.gmra.mxu0 %v5499
        %v5936 = vpop.f32.mrf.mxu0
        %v5937 = vadd.f32 %v5848, %v5936
        %v5938 = vpop.f32.mrf.mxu0
        %v5939 = vadd.f32 %v5850, %v5938
        %5940 = vmatmul.bf16.gmra.mxu0 %v2173
        %v5941 = vpop.f32.mrf.mxu0
        %v5942 = vadd.f32 %v5853, %v5941
        %v5943 = vpop.f32.mrf.mxu0
        %v5944 = vadd.f32 %v5855, %v5943
        %5945 = vdwg.mxu0
        %v5946 = vmax.f32 %v5867, 0.0
        %v5947 = vmax.f32 %v5869, 0.0
        %v5948 = vmax.f32 %v5872, 0.0
        %v5949 = vmax.f32 %v5874, 0.0
        %v5950 = vmax.f32 %v5877, 0.0
        %v5951 = vmax.f32 %v5879, 0.0
        %v5952 = vmax.f32 %v5882, 0.0
        %v5953 = vmax.f32 %v5884, 0.0
        %v5954 = vmax.f32 %v5887, 0.0
        %v5955 = vmax.f32 %v5889, 0.0
        %v5956 = vmax.f32 %v5892, 0.0
        %v5957 = vmax.f32 %v5894, 0.0
        %v5958 = vmax.f32 %v5897, 0.0
        %v5959 = vmax.f32 %v5899, 0.0
        %v5960 = vmax.f32 %v5902, 0.0
        %v5961 = vmax.f32 %v5904, 0.0
        %v5962 = vmax.f32 %v5907, 0.0
        %v5963 = vmax.f32 %v5909, 0.0
        %v5964 = vmax.f32 %v5912, 0.0
        %v5965 = vmax.f32 %v5914, 0.0
        %v5966 = vmax.f32 %v5917, 0.0
        %v5967 = vmax.f32 %v5919, 0.0
        %v5968 = vmax.f32 %v5922, 0.0
        %v5969 = vmax.f32 %v5924, 0.0
        %v5970 = vmax.f32 %v5927, 0.0
        %v5971 = vmax.f32 %v5929, 0.0
        %v5972 = vmax.f32 %v5932, 0.0
        %v5973 = vmax.f32 %v5934, 0.0
        %v5974 = vmax.f32 %v5937, 0.0
        %v5975 = vmax.f32 %v5939, 0.0
        %v5976 = vmax.f32 %v5942, 0.0
        %v5977 = vmax.f32 %v5944, 0.0
        %v6010 = vrot.slane %v5946, 7
        %v6011 = vrot.slane %v5947, 7
        %v6012 = vsel %vm1025, %v6010, %v6011
        %v6013 = vrot.slane %v5948, 7
        %v6014 = vrot.slane %v5949, 7
        %v6015 = vsel %vm1025, %v6013, %v6014
        %v6016 = vrot.slane %v5950, 7
        %v6017 = vrot.slane %v5951, 7
        %v6018 = vsel %vm1025, %v6016, %v6017
        %v6019 = vrot.slane %v5952, 7
        %v6020 = vrot.slane %v5953, 7
        %v6021 = vsel %vm1025, %v6019, %v6020
        %v6022 = vrot.slane %v5954, 7
        %v6023 = vrot.slane %v5955, 7
        %v6024 = vsel %vm1025, %v6022, %v6023
        %v6025 = vrot.slane %v5956, 7
        %v6026 = vrot.slane %v5957, 7
        %v6027 = vsel %vm1025, %v6025, %v6026
        %v6028 = vrot.slane %v5958, 7
        %v6029 = vrot.slane %v5959, 7
        %v6030 = vsel %vm1025, %v6028, %v6029
        %v6031 = vrot.slane %v5960, 7
        %v6032 = vrot.slane %v5961, 7
        %v6033 = vsel %vm1025, %v6031, %v6032
        %v6034 = vrot.slane %v5962, 7
        %v6035 = vrot.slane %v5963, 7
        %v6036 = vsel %vm1025, %v6034, %v6035
        %v6037 = vrot.slane %v5964, 7
        %v6038 = vrot.slane %v5965, 7
        %v6039 = vsel %vm1025, %v6037, %v6038
        %v6040 = vrot.slane %v5966, 7
        %v6041 = vrot.slane %v5967, 7
        %v6042 = vsel %vm1025, %v6040, %v6041
        %v6043 = vrot.slane %v5968, 7
        %v6044 = vrot.slane %v5969, 7
        %v6045 = vsel %vm1025, %v6043, %v6044
        %v6046 = vrot.slane %v5970, 7
        %v6047 = vrot.slane %v5971, 7
        %v6048 = vsel %vm1025, %v6046, %v6047
        %v6049 = vrot.slane %v5972, 7
        %v6050 = vrot.slane %v5973, 7
        %v6051 = vsel %vm1025, %v6049, %v6050
        %v6052 = vrot.slane %v5974, 7
        %v6053 = vrot.slane %v5975, 7
        %v6054 = vsel %vm1025, %v6052, %v6053
        %v6055 = vrot.slane %v5976, 7
        %v6056 = vrot.slane %v5977, 7
        %v6057 = vsel %vm1025, %v6055, %v6056
        %v6090 = vsel %vm1025, 0.0, %v6010
        %v6091 = vsel %vm1025, 0.0, %v6013
        %v6092 = vsel %vm1025, 0.0, %v6016
        %v6093 = vsel %vm1025, 0.0, %v6019
        %v6094 = vsel %vm1025, 0.0, %v6022
        %v6095 = vsel %vm1025, 0.0, %v6025
        %v6096 = vsel %vm1025, 0.0, %v6028
        %v6097 = vsel %vm1025, 0.0, %v6031
        %v6098 = vsel %vm1025, 0.0, %v6034
        %v6099 = vsel %vm1025, 0.0, %v6037
        %v6100 = vsel %vm1025, 0.0, %v6040
        %v6101 = vsel %vm1025, 0.0, %v6043
        %v6102 = vsel %vm1025, 0.0, %v6046
        %v6103 = vsel %vm1025, 0.0, %v6049
        %v6104 = vsel %vm1025, 0.0, %v6052
        %v6105 = vsel %vm1025, 0.0, %v6055
        %v6106 = vrot.slane %v5946, 1
        %v6107 = vrot.slane %v5947, 1
        %v6108 = vsel %vm1122, %v6106, %v6107
        %v6109 = vrot.slane %v5948, 1
        %v6110 = vrot.slane %v5949, 1
        %v6111 = vsel %vm1122, %v6109, %v6110
        %v6112 = vrot.slane %v5950, 1
        %v6113 = vrot.slane %v5951, 1
        %v6114 = vsel %vm1122, %v6112, %v6113
        %v6115 = vrot.slane %v5952, 1
        %v6116 = vrot.slane %v5953, 1
        %v6117 = vsel %vm1122, %v6115, %v6116
        %v6118 = vrot.slane %v5954, 1
        %v6119 = vrot.slane %v5955, 1
        %v6120 = vsel %vm1122, %v6118, %v6119
        %v6121 = vrot.slane %v5956, 1
        %v6122 = vrot.slane %v5957, 1
        %v6123 = vsel %vm1122, %v6121, %v6122
        %v6124 = vrot.slane %v5958, 1
        %v6125 = vrot.slane %v5959, 1
        %v6126 = vsel %vm1122, %v6124, %v6125
        %v6127 = vrot.slane %v5960, 1
        %v6128 = vrot.slane %v5961, 1
        %v6129 = vsel %vm1122, %v6127, %v6128
        %v6130 = vrot.slane %v5962, 1
        %v6131 = vrot.slane %v5963, 1
        %v6132 = vsel %vm1122, %v6130, %v6131
        %v6133 = vrot.slane %v5964, 1
        %v6134 = vrot.slane %v5965, 1
        %v6135 = vsel %vm1122, %v6133, %v6134
        %v6136 = vrot.slane %v5966, 1
        %v6137 = vrot.slane %v5967, 1
        %v6138 = vsel %vm1122, %v6136, %v6137
        %v6139 = vrot.slane %v5968, 1
        %v6140 = vrot.slane %v5969, 1
        %v6141 = vsel %vm1122, %v6139, %v6140
        %v6142 = vrot.slane %v5970, 1
        %v6143 = vrot.slane %v5971, 1
        %v6144 = vsel %vm1122, %v6142, %v6143
        %v6145 = vrot.slane %v5972, 1
        %v6146 = vrot.slane %v5973, 1
        %v6147 = vsel %vm1122, %v6145, %v6146
        %v6148 = vrot.slane %v5974, 1
        %v6149 = vrot.slane %v5975, 1
        %v6150 = vsel %vm1122, %v6148, %v6149
        %v6151 = vrot.slane %v5976, 1
        %v6152 = vrot.slane %v5977, 1
        %v6153 = vsel %vm1122, %v6151, %v6152
        %v6186 = vsel %vm1122, %v6107, 0.0
        %v6187 = vsel %vm1122, %v6110, 0.0
        %v6188 = vsel %vm1122, %v6113, 0.0
        %v6189 = vsel %vm1122, %v6116, 0.0
        %v6190 = vsel %vm1122, %v6119, 0.0
        %v6191 = vsel %vm1122, %v6122, 0.0
        %v6192 = vsel %vm1122, %v6125, 0.0
        %v6193 = vsel %vm1122, %v6128, 0.0
        %v6194 = vsel %vm1122, %v6131, 0.0
        %v6195 = vsel %vm1122, %v6134, 0.0
        %v6196 = vsel %vm1122, %v6137, 0.0
        %v6197 = vsel %vm1122, %v6140, 0.0
        %v6198 = vsel %vm1122, %v6143, 0.0
        %v6199 = vsel %vm1122, %v6146, 0.0
        %v6200 = vsel %vm1122, %v6149, 0.0
        %v6201 = vsel %vm1122, %v6152, 0.0
        %v6202 = vpack.c.bf16 %v6090, %v6090
        %v6203 = vpack.c.bf16 %v6012, %v6012
        %v6204 = vpack.c.bf16 %v6091, %v6091
        %v6205 = vpack.c.bf16 %v6015, %v6015
        %v6206 = vpack.c.bf16 %v6092, %v6092
        %v6207 = vpack.c.bf16 %v6018, %v6018
        %v6208 = vpack.c.bf16 %v6093, %v6093
        %v6209 = vpack.c.bf16 %v6021, %v6021
        %v6210 = vpack.c.bf16 %v6094, %v6094
        %v6211 = vpack.c.bf16 %v6024, %v6024
        %v6212 = vpack.c.bf16 %v6095, %v6095
        %v6213 = vpack.c.bf16 %v6027, %v6027
        %v6214 = vpack.c.bf16 %v6096, %v6096
        %v6215 = vpack.c.bf16 %v6030, %v6030
        %v6216 = vpack.c.bf16 %v6097, %v6097
        %v6217 = vpack.c.bf16 %v6033, %v6033
        %v6218 = vpack.c.bf16 %v6098, %v6098
        %v6219 = vpack.c.bf16 %v6036, %v6036
        %v6220 = vpack.c.bf16 %v6099, %v6099
        %v6221 = vpack.c.bf16 %v6039, %v6039
        %v6222 = vpack.c.bf16 %v6100, %v6100
        %v6223 = vpack.c.bf16 %v6042, %v6042
        %v6224 = vpack.c.bf16 %v6101, %v6101
        %v6225 = vpack.c.bf16 %v6045, %v6045
        %v6226 = vpack.c.bf16 %v6102, %v6102
        %v6227 = vpack.c.bf16 %v6048, %v6048
        %v6228 = vpack.c.bf16 %v6103, %v6103
        %v6229 = vpack.c.bf16 %v6051, %v6051
        %v6230 = vpack.c.bf16 %v6104, %v6104
        %v6231 = vpack.c.bf16 %v6054, %v6054
        %v6232 = vpack.c.bf16 %v6105, %v6105
        %v6233 = vpack.c.bf16 %v6057, %v6057
        %v6234 = vpack.c.bf16 %v5946, %v5946
        %v6235 = vpack.c.bf16 %v5947, %v5947
        %v6236 = vpack.c.bf16 %v5948, %v5948
        %v6237 = vpack.c.bf16 %v5949, %v5949
        %v6238 = vpack.c.bf16 %v5950, %v5950
        %v6239 = vpack.c.bf16 %v5951, %v5951
        %v6240 = vpack.c.bf16 %v5952, %v5952
        %v6241 = vpack.c.bf16 %v5953, %v5953
        %v6242 = vpack.c.bf16 %v5954, %v5954
        %v6243 = vpack.c.bf16 %v5955, %v5955
        %v6244 = vpack.c.bf16 %v5956, %v5956
        %v6245 = vpack.c.bf16 %v5957, %v5957
        %v6246 = vpack.c.bf16 %v5958, %v5958
        %v6247 = vpack.c.bf16 %v5959, %v5959
        %v6248 = vpack.c.bf16 %v5960, %v5960
        %v6249 = vpack.c.bf16 %v5961, %v5961
        %v6250 = vpack.c.bf16 %v5962, %v5962
        %v6251 = vpack.c.bf16 %v5963, %v5963
        %v6252 = vpack.c.bf16 %v5964, %v5964
        %v6253 = vpack.c.bf16 %v5965, %v5965
        %v6254 = vpack.c.bf16 %v5966, %v5966
        %v6255 = vpack.c.bf16 %v5967, %v5967
        %v6256 = vpack.c.bf16 %v5968, %v5968
        %v6257 = vpack.c.bf16 %v5969, %v5969
        %v6258 = vpack.c.bf16 %v5970, %v5970
        %v6259 = vpack.c.bf16 %v5971, %v5971
        %v6260 = vpack.c.bf16 %v5972, %v5972
        %v6261 = vpack.c.bf16 %v5973, %v5973
        %v6262 = vpack.c.bf16 %v5974, %v5974
        %v6263 = vpack.c.bf16 %v5975, %v5975
        %v6264 = vpack.c.bf16 %v5976, %v5976
        %v6265 = vpack.c.bf16 %v5977, %v5977
        %v6266 = vpack.c.bf16 %v6108, %v6108
        %v6267 = vpack.c.bf16 %v6186, %v6186
        %v6268 = vpack.c.bf16 %v6111, %v6111
        %v6269 = vpack.c.bf16 %v6187, %v6187
        %v6270 = vpack.c.bf16 %v6114, %v6114
        %v6271 = vpack.c.bf16 %v6188, %v6188
        %v6272 = vpack.c.bf16 %v6117, %v6117
        %v6273 = vpack.c.bf16 %v6189, %v6189
        %v6274 = vpack.c.bf16 %v6120, %v6120
        %v6275 = vpack.c.bf16 %v6190, %v6190
        %v6276 = vpack.c.bf16 %v6123, %v6123
        %v6277 = vpack.c.bf16 %v6191, %v6191
        %v6278 = vpack.c.bf16 %v6126, %v6126
        %v6279 = vpack.c.bf16 %v6192, %v6192
        %v6280 = vpack.c.bf16 %v6129, %v6129
        %v6281 = vpack.c.bf16 %v6193, %v6193
        %v6282 = vpack.c.bf16 %v6132, %v6132
        %v6283 = vpack.c.bf16 %v6194, %v6194
        %v6284 = vpack.c.bf16 %v6135, %v6135
        %v6285 = vpack.c.bf16 %v6195, %v6195
        %v6286 = vpack.c.bf16 %v6138, %v6138
        %v6287 = vpack.c.bf16 %v6196, %v6196
        %v6288 = vpack.c.bf16 %v6141, %v6141
        %v6289 = vpack.c.bf16 %v6197, %v6197
        %v6290 = vpack.c.bf16 %v6144, %v6144
        %v6291 = vpack.c.bf16 %v6198, %v6198
        %v6292 = vpack.c.bf16 %v6147, %v6147
        %v6293 = vpack.c.bf16 %v6199, %v6199
        %v6294 = vpack.c.bf16 %v6150, %v6150
        %v6295 = vpack.c.bf16 %v6200, %v6200
        %v6296 = vpack.c.bf16 %v6153, %v6153
        %v6297 = vpack.c.bf16 %v6201, %v6201
        %v6330 = vunpack.c.l.b16 %v6202
        %v6331 = vunpack.c.l.b16 %v6203
        %v6332 = vunpack.c.l.b16 %v6204
        %v6333 = vunpack.c.l.b16 %v6205
        %v6334 = vunpack.c.l.b16 %v6206
        %v6335 = vunpack.c.l.b16 %v6207
        %v6336 = vunpack.c.l.b16 %v6208
        %v6337 = vunpack.c.l.b16 %v6209
        %v6338 = vunpack.c.l.b16 %v6210
        %v6339 = vunpack.c.l.b16 %v6211
        %v6340 = vunpack.c.l.b16 %v6212
        %v6341 = vunpack.c.l.b16 %v6213
        %v6342 = vunpack.c.l.b16 %v6214
        %v6343 = vunpack.c.l.b16 %v6215
        %v6344 = vunpack.c.l.b16 %v6216
        %v6345 = vunpack.c.l.b16 %v6217
        %v6346 = vunpack.c.l.b16 %v6218
        %v6347 = vunpack.c.l.b16 %v6219
        %v6348 = vunpack.c.l.b16 %v6220
        %v6349 = vunpack.c.l.b16 %v6221
        %v6350 = vunpack.c.l.b16 %v6222
        %v6351 = vunpack.c.l.b16 %v6223
        %v6352 = vunpack.c.l.b16 %v6224
        %v6353 = vunpack.c.l.b16 %v6225
        %v6354 = vunpack.c.l.b16 %v6226
        %v6355 = vunpack.c.l.b16 %v6227
        %v6356 = vunpack.c.l.b16 %v6228
        %v6357 = vunpack.c.l.b16 %v6229
        %v6358 = vunpack.c.l.b16 %v6230
        %v6359 = vunpack.c.l.b16 %v6231
        %v6360 = vunpack.c.l.b16 %v6232
        %v6361 = vunpack.c.l.b16 %v6233
        %v6362 = vpack.c.b16 %v6331, %v6330
        %v6363 = vpack.c.b16 %v6333, %v6332
        %v6364 = vpack.c.b16 %v6335, %v6334
        %v6365 = vpack.c.b16 %v6337, %v6336
        %v6366 = vpack.c.b16 %v6339, %v6338
        %v6367 = vpack.c.b16 %v6341, %v6340
        %v6368 = vpack.c.b16 %v6343, %v6342
        %v6369 = vpack.c.b16 %v6345, %v6344
        %v6370 = vpack.c.b16 %v6347, %v6346
        %v6371 = vpack.c.b16 %v6349, %v6348
        %v6372 = vpack.c.b16 %v6351, %v6350
        %v6373 = vpack.c.b16 %v6353, %v6352
        %v6374 = vpack.c.b16 %v6355, %v6354
        %v6375 = vpack.c.b16 %v6357, %v6356
        %v6376 = vpack.c.b16 %v6359, %v6358
        %v6377 = vpack.c.b16 %v6361, %v6360
        %v6410 = vunpack.c.l.b16 %v6234
        %v6411 = vunpack.c.l.b16 %v6235
        %v6412 = vunpack.c.l.b16 %v6236
        %v6413 = vunpack.c.l.b16 %v6237
        %v6414 = vunpack.c.l.b16 %v6238
        %v6415 = vunpack.c.l.b16 %v6239
        %v6416 = vunpack.c.l.b16 %v6240
        %v6417 = vunpack.c.l.b16 %v6241
        %v6418 = vunpack.c.l.b16 %v6242
        %v6419 = vunpack.c.l.b16 %v6243
        %v6420 = vunpack.c.l.b16 %v6244
        %v6421 = vunpack.c.l.b16 %v6245
        %v6422 = vunpack.c.l.b16 %v6246
        %v6423 = vunpack.c.l.b16 %v6247
        %v6424 = vunpack.c.l.b16 %v6248
        %v6425 = vunpack.c.l.b16 %v6249
        %v6426 = vunpack.c.l.b16 %v6250
        %v6427 = vunpack.c.l.b16 %v6251
        %v6428 = vunpack.c.l.b16 %v6252
        %v6429 = vunpack.c.l.b16 %v6253
        %v6430 = vunpack.c.l.b16 %v6254
        %v6431 = vunpack.c.l.b16 %v6255
        %v6432 = vunpack.c.l.b16 %v6256
        %v6433 = vunpack.c.l.b16 %v6257
        %v6434 = vunpack.c.l.b16 %v6258
        %v6435 = vunpack.c.l.b16 %v6259
        %v6436 = vunpack.c.l.b16 %v6260
        %v6437 = vunpack.c.l.b16 %v6261
        %v6438 = vunpack.c.l.b16 %v6262
        %v6439 = vunpack.c.l.b16 %v6263
        %v6440 = vunpack.c.l.b16 %v6264
        %v6441 = vunpack.c.l.b16 %v6265
        %v6442 = vpack.c.b16 %v6411, %v6410
        %v6443 = vpack.c.b16 %v6413, %v6412
        %v6444 = vpack.c.b16 %v6415, %v6414
        %v6445 = vpack.c.b16 %v6417, %v6416
        %v6446 = vpack.c.b16 %v6419, %v6418
        %v6447 = vpack.c.b16 %v6421, %v6420
        %v6448 = vpack.c.b16 %v6423, %v6422
        %v6449 = vpack.c.b16 %v6425, %v6424
        %v6450 = vpack.c.b16 %v6427, %v6426
        %v6451 = vpack.c.b16 %v6429, %v6428
        %v6452 = vpack.c.b16 %v6431, %v6430
        %v6453 = vpack.c.b16 %v6433, %v6432
        %v6454 = vpack.c.b16 %v6435, %v6434
        %v6455 = vpack.c.b16 %v6437, %v6436
        %v6456 = vpack.c.b16 %v6439, %v6438
        %v6457 = vpack.c.b16 %v6441, %v6440
        %v6490 = vunpack.c.l.b16 %v6266
        %v6491 = vunpack.c.l.b16 %v6267
        %v6492 = vunpack.c.l.b16 %v6268
        %v6493 = vunpack.c.l.b16 %v6269
        %v6494 = vunpack.c.l.b16 %v6270
        %v6495 = vunpack.c.l.b16 %v6271
        %v6496 = vunpack.c.l.b16 %v6272
        %v6497 = vunpack.c.l.b16 %v6273
        %v6498 = vunpack.c.l.b16 %v6274
        %v6499 = vunpack.c.l.b16 %v6275
        %v6500 = vunpack.c.l.b16 %v6276
        %v6501 = vunpack.c.l.b16 %v6277
        %v6502 = vunpack.c.l.b16 %v6278
        %v6503 = vunpack.c.l.b16 %v6279
        %v6504 = vunpack.c.l.b16 %v6280
        %v6505 = vunpack.c.l.b16 %v6281
        %v6506 = vunpack.c.l.b16 %v6282
        %v6507 = vunpack.c.l.b16 %v6283
        %v6508 = vunpack.c.l.b16 %v6284
        %v6509 = vunpack.c.l.b16 %v6285
        %v6510 = vunpack.c.l.b16 %v6286
        %v6511 = vunpack.c.l.b16 %v6287
        %v6512 = vunpack.c.l.b16 %v6288
        %v6513 = vunpack.c.l.b16 %v6289
        %v6514 = vunpack.c.l.b16 %v6290
        %v6515 = vunpack.c.l.b16 %v6291
        %v6516 = vunpack.c.l.b16 %v6292
        %v6517 = vunpack.c.l.b16 %v6293
        %v6518 = vunpack.c.l.b16 %v6294
        %v6519 = vunpack.c.l.b16 %v6295
        %v6520 = vunpack.c.l.b16 %v6296
        %v6521 = vunpack.c.l.b16 %v6297
        %v6522 = vpack.c.b16 %v6491, %v6490
        %v6523 = vpack.c.b16 %v6493, %v6492
        %v6524 = vpack.c.b16 %v6495, %v6494
        %v6525 = vpack.c.b16 %v6497, %v6496
        %v6526 = vpack.c.b16 %v6499, %v6498
        %v6527 = vpack.c.b16 %v6501, %v6500
        %v6528 = vpack.c.b16 %v6503, %v6502
        %v6529 = vpack.c.b16 %v6505, %v6504
        %v6530 = vpack.c.b16 %v6507, %v6506
        %v6531 = vpack.c.b16 %v6509, %v6508
        %v6532 = vpack.c.b16 %v6511, %v6510
        %v6533 = vpack.c.b16 %v6513, %v6512
        %v6534 = vpack.c.b16 %v6515, %v6514
        %v6535 = vpack.c.b16 %v6517, %v6516
        %v6536 = vpack.c.b16 %v6519, %v6518
        %v6537 = vpack.c.b16 %v6521, %v6520
        %6538 = vrot.lane.b32.xlu0 %v6442, 64
        %v6539 = vpop.permute.xlu0 %6538
        %6540 = vrot.lane.b32.xlu0 %v6443, 64
        %v6541 = vpop.permute.xlu0 %6540
        %6542 = vrot.lane.b32.xlu0 %v6444, 64
        %v6543 = vpop.permute.xlu0 %6542
        %6544 = vrot.lane.b32.xlu0 %v6445, 64
        %v6545 = vpop.permute.xlu0 %6544
        %6546 = vrot.lane.b32.xlu0 %v6446, 64
        %v6547 = vpop.permute.xlu0 %6546
        %6548 = vrot.lane.b32.xlu0 %v6447, 64
        %v6549 = vpop.permute.xlu0 %6548
        %6550 = vrot.lane.b32.xlu0 %v6448, 64
        %v6551 = vpop.permute.xlu0 %6550
        %6552 = vrot.lane.b32.xlu0 %v6449, 64
        %v6553 = vpop.permute.xlu0 %6552
        %6554 = vrot.lane.b32.xlu0 %v6450, 64
        %v6555 = vpop.permute.xlu0 %6554
        %6556 = vrot.lane.b32.xlu0 %v6451, 64
        %v6557 = vpop.permute.xlu0 %6556
        %6558 = vrot.lane.b32.xlu0 %v6452, 64
        %v6559 = vpop.permute.xlu0 %6558
        %6560 = vrot.lane.b32.xlu0 %v6453, 64
        %v6561 = vpop.permute.xlu0 %6560
        %6562 = vrot.lane.b32.xlu0 %v6454, 64
        %v6563 = vpop.permute.xlu0 %6562
        %6564 = vrot.lane.b32.xlu0 %v6455, 64
        %v6565 = vpop.permute.xlu0 %6564
        %6566 = vrot.lane.b32.xlu0 %v6456, 64
        %v6567 = vpop.permute.xlu0 %6566
        %6568 = vrot.lane.b32.xlu0 %v6362, 64
        %v6569 = vpop.permute.xlu0 %6568
        %6570 = vrot.lane.b32.xlu0 %v6363, 64
        %v6571 = vpop.permute.xlu0 %6570
        %6572 = vrot.lane.b32.xlu0 %v6364, 64
        %v6573 = vpop.permute.xlu0 %6572
        %6574 = vrot.lane.b32.xlu0 %v6365, 64
        %v6575 = vpop.permute.xlu0 %6574
        %6576 = vrot.lane.b32.xlu0 %v6366, 64
        %v6577 = vpop.permute.xlu0 %6576
        %6578 = vrot.lane.b32.xlu0 %v6367, 64
        %v6579 = vpop.permute.xlu0 %6578
        %6580 = vrot.lane.b32.xlu0 %v6368, 64
        %v6581 = vpop.permute.xlu0 %6580
        %6582 = vrot.lane.b32.xlu0 %v6369, 64
        %v6583 = vpop.permute.xlu0 %6582
        %6584 = vrot.lane.b32.xlu0 %v6370, 64
        %v6585 = vpop.permute.xlu0 %6584
        %6586 = vrot.lane.b32.xlu0 %v6371, 64
        %v6587 = vpop.permute.xlu0 %6586
        %6588 = vrot.lane.b32.xlu0 %v6372, 64
        %v6589 = vpop.permute.xlu0 %6588
        %6590 = vrot.lane.b32.xlu0 %v6373, 64
        %v6591 = vpop.permute.xlu0 %6590
        %6592 = vrot.lane.b32.xlu0 %v6374, 64
        %v6593 = vpop.permute.xlu0 %6592
        %6594 = vrot.lane.b32.xlu0 %v6375, 64
        %v6595 = vpop.permute.xlu0 %6594
        %6596 = vrot.lane.b32.xlu0 %v6376, 64
        %v6597 = vpop.permute.xlu0 %6596
        %6598 = vrot.lane.b32.xlu0 %v6377, 64
        %v6599 = vpop.permute.xlu0 %6598
        %6600 = vrot.lane.b32.xlu0 %v6522, 64
        %v6601 = vpop.permute.xlu0 %6600
        %6602 = vrot.lane.b32.xlu0 %v6523, 64
        %v6603 = vpop.permute.xlu0 %6602
        %6604 = vrot.lane.b32.xlu0 %v6524, 64
        %v6605 = vpop.permute.xlu0 %6604
        %6606 = vrot.lane.b32.xlu0 %v6525, 64
        %v6607 = vpop.permute.xlu0 %6606
        %6608 = vrot.lane.b32.xlu0 %v6526, 64
        %v6609 = vpop.permute.xlu0 %6608
        %6610 = vrot.lane.b32.xlu0 %v6527, 64
        %v6611 = vpop.permute.xlu0 %6610
        %6612 = vrot.lane.b32.xlu0 %v6528, 64
        %v6613 = vpop.permute.xlu0 %6612
        %6614 = vrot.lane.b32.xlu0 %v6529, 64
        %v6615 = vpop.permute.xlu0 %6614
        %6616 = vrot.lane.b32.xlu0 %v6530, 64
        %v6617 = vpop.permute.xlu0 %6616
        %6618 = vrot.lane.b32.xlu0 %v6531, 64
        %v6619 = vpop.permute.xlu0 %6618
        %6620 = vrot.lane.b32.xlu0 %v6532, 64
        %v6621 = vpop.permute.xlu0 %6620
        %6622 = vrot.lane.b32.xlu0 %v6533, 64
        %v6623 = vpop.permute.xlu0 %6622
        %6624 = vrot.lane.b32.xlu0 %v6534, 64
        %v6625 = vpop.permute.xlu0 %6624
        %6626 = vrot.lane.b32.xlu0 %v6535, 64
        %v6627 = vpop.permute.xlu0 %6626
        %6628 = vrot.lane.b32.xlu0 %v6536, 64
        %v6629 = vpop.permute.xlu0 %6628
        %6630 = vrot.lane.b32.xlu0 %v6537, 64
        %v6631 = vpop.permute.xlu0 %6630
        %6632 = vrot.lane.b32.xlu0 %v6457, 64
        %v6633 = vpop.permute.xlu0 %6632
        %v6636 = vsel %vm1654, %v6362, %v6539
        %v6640 = vsel %vm1654, %v6363, %v6541
        %v6644 = vsel %vm1654, %v6364, %v6543
        %v6648 = vsel %vm1654, %v6365, %v6545
        %v6652 = vsel %vm1654, %v6366, %v6547
        %v6656 = vsel %vm1654, %v6367, %v6549
        %v6660 = vsel %vm1654, %v6368, %v6551
        %v6664 = vsel %vm1654, %v6369, %v6553
        %v6668 = vsel %vm1654, %v6370, %v6555
        %v6672 = vsel %vm1654, %v6371, %v6557
        %v6676 = vsel %vm1654, %v6372, %v6559
        %v6680 = vsel %vm1654, %v6373, %v6561
        %v6684 = vsel %vm1654, %v6374, %v6563
        %v6688 = vsel %vm1654, %v6375, %v6565
        %v6692 = vsel %vm1654, %v6376, %v6567
        %v6695 = vsel %vm1654, 0, %v6569
        %v6699 = vsel %vm1654, %v6522, %v6571
        %v6703 = vsel %vm1654, %v6523, %v6573
        %v6707 = vsel %vm1654, %v6524, %v6575
        %v6711 = vsel %vm1654, %v6525, %v6577
        %v6715 = vsel %vm1654, %v6526, %v6579
        %v6719 = vsel %vm1654, %v6527, %v6581
        %v6723 = vsel %vm1654, %v6528, %v6583
        %v6727 = vsel %vm1654, %v6529, %v6585
        %v6731 = vsel %vm1654, %v6530, %v6587
        %v6735 = vsel %vm1654, %v6531, %v6589
        %v6739 = vsel %vm1654, %v6532, %v6591
        %v6743 = vsel %vm1654, %v6533, %v6593
        %v6747 = vsel %vm1654, %v6534, %v6595
        %v6751 = vsel %vm1654, %v6535, %v6597
        %v6755 = vsel %vm1654, %v6536, %v6599
        %v6759 = vsel %vm1654, %v6442, %v6601
        %v6763 = vsel %vm1654, %v6443, %v6603
        %v6767 = vsel %vm1654, %v6444, %v6605
        %v6771 = vsel %vm1654, %v6445, %v6607
        %v6775 = vsel %vm1654, %v6446, %v6609
        %v6779 = vsel %vm1654, %v6447, %v6611
        %v6783 = vsel %vm1654, %v6448, %v6613
        %v6787 = vsel %vm1654, %v6449, %v6615
        %v6791 = vsel %vm1654, %v6450, %v6617
        %v6795 = vsel %vm1654, %v6451, %v6619
        %v6799 = vsel %vm1654, %v6452, %v6621
        %v6803 = vsel %vm1654, %v6453, %v6623
        %v6807 = vsel %vm1654, %v6454, %v6625
        %v6811 = vsel %vm1654, %v6455, %v6627
        %v6815 = vsel %vm1654, %v6456, %v6629
        %v6819 = vsel %vm1654, %v6457, %v6631
        %v6823 = vsel %vm1654, %v6377, %v6633
        %v6825 = vld [vmem:[#allocation9] sm:$0xf]
        %v6826 = vld [vmem:[#allocation9 + $0x4] sm:$0xf]
        %v6827 = vld [vmem:[#allocation9 + $0x8] sm:$0xf]
        %v6828 = vld [vmem:[#allocation9 + $0xc] sm:$0xf]
        %v6829 = vld [vmem:[#allocation9 + $0x10] sm:$0xf]
        %v6830 = vld [vmem:[#allocation9 + $0x14] sm:$0xf]
        %v6831 = vld [vmem:[#allocation9 + $0x18] sm:$0xf]
        %v6832 = vld [vmem:[#allocation9 + $0x1c] sm:$0xf]
        %v6833 = vld [vmem:[#allocation9 + $0x20] sm:$0xf]
        %v6834 = vld [vmem:[#allocation9 + $0x24] sm:$0xf]
        %v6835 = vld [vmem:[#allocation9 + $0x28] sm:$0xf]
        %v6836 = vld [vmem:[#allocation9 + $0x2c] sm:$0xf]
        %v6837 = vld [vmem:[#allocation9 + $0x30] sm:$0xf]
        %v6838 = vld [vmem:[#allocation9 + $0x34] sm:$0xf]
        %v6839 = vld [vmem:[#allocation9 + $0x38] sm:$0xf]
        %v6840 = vld [vmem:[#allocation9 + $0x3c] sm:$0xf]
        %v6841 = vld [vmem:[#allocation9 + $0x40] sm:$0xf]
        %v6842 = vld [vmem:[#allocation9 + $0x44] sm:$0xf]
        %v6843 = vld [vmem:[#allocation9 + $0x48] sm:$0xf]
        %v6844 = vld [vmem:[#allocation9 + $0x4c] sm:$0xf]
        %v6845 = vld [vmem:[#allocation9 + $0x50] sm:$0xf]
        %v6846 = vld [vmem:[#allocation9 + $0x54] sm:$0xf]
        %v6847 = vld [vmem:[#allocation9 + $0x58] sm:$0xf]
        %v6848 = vld [vmem:[#allocation9 + $0x5c] sm:$0xf]
        %v6849 = vld [vmem:[#allocation9 + $0x60] sm:$0xf]
        %v6850 = vld [vmem:[#allocation9 + $0x64] sm:$0xf]
        %v6851 = vld [vmem:[#allocation9 + $0x68] sm:$0xf]
        %v6852 = vld [vmem:[#allocation9 + $0x6c] sm:$0xf]
        %v6853 = vld [vmem:[#allocation9 + $0x70] sm:$0xf]
        %v6854 = vld [vmem:[#allocation9 + $0x74] sm:$0xf]
        %v6855 = vld [vmem:[#allocation9 + $0x78] sm:$0xf]
        %v6856 = vld [vmem:[#allocation9 + $0x7c] sm:$0xf]
        %v6857 = vld [vmem:[#allocation9 + $0x80] sm:$0xf]
        %v6858 = vld [vmem:[#allocation9 + $0x84] sm:$0xf]
        %v6859 = vld [vmem:[#allocation9 + $0x88] sm:$0xf]
        %v6860 = vld [vmem:[#allocation9 + $0x8c] sm:$0xf]
        %v6861 = vld [vmem:[#allocation9 + $0x90] sm:$0xf]
        %v6862 = vld [vmem:[#allocation9 + $0x94] sm:$0xf]
        %v6863 = vld [vmem:[#allocation9 + $0x98] sm:$0xf]
        %v6864 = vld [vmem:[#allocation9 + $0x9c] sm:$0xf]
        %v6865 = vld [vmem:[#allocation9 + $0xa0] sm:$0xf]
        %v6866 = vld [vmem:[#allocation9 + $0xa4] sm:$0xf]
        %v6867 = vld [vmem:[#allocation9 + $0xa8] sm:$0xf]
        %v6868 = vld [vmem:[#allocation9 + $0xac] sm:$0xf]
        %v6869 = vld [vmem:[#allocation9 + $0xb0] sm:$0xf]
        %v6870 = vld [vmem:[#allocation9 + $0xb4] sm:$0xf]
        %v6871 = vld [vmem:[#allocation9 + $0xb8] sm:$0xf]
        %v6872 = vld [vmem:[#allocation9 + $0xbc] sm:$0xf]
        %v6873 = vld [vmem:[#allocation9 + $0xc0] sm:$0xf]
        %v6874 = vld [vmem:[#allocation9 + $0xc4] sm:$0xf]
        %v6875 = vld [vmem:[#allocation9 + $0xc8] sm:$0xf]
        %v6876 = vld [vmem:[#allocation9 + $0xcc] sm:$0xf]
        %v6877 = vld [vmem:[#allocation9 + $0xd0] sm:$0xf]
        %v6878 = vld [vmem:[#allocation9 + $0xd4] sm:$0xf]
        %v6879 = vld [vmem:[#allocation9 + $0xd8] sm:$0xf]
        %v6880 = vld [vmem:[#allocation9 + $0xdc] sm:$0xf]
        %v6881 = vld [vmem:[#allocation9 + $0xe0] sm:$0xf]
        %v6882 = vld [vmem:[#allocation9 + $0xe4] sm:$0xf]
        %v6883 = vld [vmem:[#allocation9 + $0xe8] sm:$0xf]
        %v6884 = vld [vmem:[#allocation9 + $0xec] sm:$0xf]
        %v6885 = vld [vmem:[#allocation9 + $0xf0] sm:$0xf]
        %v6886 = vld [vmem:[#allocation9 + $0xf4] sm:$0xf]
        %v6887 = vld [vmem:[#allocation9 + $0xf8] sm:$0xf]
        %v6888 = vld [vmem:[#allocation9 + $0xfc] sm:$0xf]
        %v6889 = vld [vmem:[#allocation9 + $0x100] sm:$0xf]
        %v6890 = vld [vmem:[#allocation9 + $0x104] sm:$0xf]
        %v6891 = vld [vmem:[#allocation9 + $0x108] sm:$0xf]
        %v6892 = vld [vmem:[#allocation9 + $0x10c] sm:$0xf]
        %v6893 = vld [vmem:[#allocation9 + $0x110] sm:$0xf]
        %v6894 = vld [vmem:[#allocation9 + $0x114] sm:$0xf]
        %v6895 = vld [vmem:[#allocation9 + $0x118] sm:$0xf]
        %v6896 = vld [vmem:[#allocation9 + $0x11c] sm:$0xf]
        %v6897 = vld [vmem:[%s10] sm:$0x1]
        %v6899 = vperm.slane %v6897, 0
        %v6973 = vunpack.c.l.b16 %v6825
        %v6974 = vunpack.c.l.b16 %v6826
        %v6975 = vunpack.c.l.b16 %v6827
        %v6976 = vunpack.c.l.b16 %v6828
        %v6977 = vunpack.c.l.b16 %v6829
        %v6978 = vunpack.c.l.b16 %v6830
        %v6979 = vunpack.c.l.b16 %v6831
        %v6980 = vunpack.c.l.b16 %v6832
        %v6981 = vunpack.c.l.b16 %v6833
        %v6982 = vunpack.c.l.b16 %v6834
        %v6983 = vunpack.c.l.b16 %v6835
        %v6984 = vunpack.c.l.b16 %v6836
        %v6985 = vunpack.c.l.b16 %v6837
        %v6986 = vunpack.c.l.b16 %v6838
        %v6987 = vunpack.c.l.b16 %v6839
        %v6988 = vunpack.c.l.b16 %v6840
        %v6989 = vunpack.c.l.b16 %v6841
        %v6990 = vunpack.c.l.b16 %v6842
        %v6991 = vunpack.c.l.b16 %v6843
        %v6992 = vunpack.c.l.b16 %v6844
        %v6993 = vunpack.c.l.b16 %v6845
        %v6994 = vunpack.c.l.b16 %v6846
        %v6995 = vunpack.c.l.b16 %v6847
        %v6996 = vunpack.c.l.b16 %v6848
        %v6997 = vunpack.c.l.b16 %v6849
        %v6998 = vunpack.c.l.b16 %v6850
        %v6999 = vunpack.c.l.b16 %v6851
        %v7000 = vunpack.c.l.b16 %v6852
        %v7001 = vunpack.c.l.b16 %v6853
        %v7002 = vunpack.c.l.b16 %v6854
        %v7003 = vunpack.c.l.b16 %v6855
        %v7004 = vunpack.c.l.b16 %v6856
        %v7005 = vunpack.c.l.b16 %v6857
        %v7006 = vunpack.c.l.b16 %v6858
        %v7007 = vunpack.c.l.b16 %v6859
        %v7008 = vunpack.c.l.b16 %v6860
        %v7009 = vunpack.c.l.b16 %v6861
        %v7010 = vunpack.c.l.b16 %v6862
        %v7011 = vunpack.c.l.b16 %v6863
        %v7012 = vunpack.c.l.b16 %v6864
        %v7013 = vunpack.c.l.b16 %v6865
        %v7014 = vunpack.c.l.b16 %v6866
        %v7015 = vunpack.c.l.b16 %v6867
        %v7016 = vunpack.c.l.b16 %v6868
        %v7017 = vunpack.c.l.b16 %v6869
        %v7018 = vunpack.c.l.b16 %v6870
        %v7019 = vunpack.c.l.b16 %v6871
        %v7020 = vunpack.c.l.b16 %v6872
        %v7021 = vunpack.c.l.b16 %v6873
        %v7022 = vunpack.c.l.b16 %v6874
        %v7023 = vunpack.c.l.b16 %v6875
        %v7024 = vunpack.c.l.b16 %v6876
        %v7025 = vunpack.c.l.b16 %v6877
        %v7026 = vunpack.c.l.b16 %v6878
        %v7027 = vunpack.c.l.b16 %v6879
        %v7028 = vunpack.c.l.b16 %v6880
        %v7029 = vunpack.c.l.b16 %v6881
        %v7030 = vunpack.c.l.b16 %v6882
        %v7031 = vunpack.c.l.b16 %v6883
        %v7032 = vunpack.c.l.b16 %v6884
        %v7033 = vunpack.c.l.b16 %v6885
        %v7034 = vunpack.c.l.b16 %v6886
        %v7035 = vunpack.c.l.b16 %v6887
        %v7036 = vunpack.c.l.b16 %v6888
        %v7037 = vunpack.c.l.b16 %v6889
        %v7038 = vunpack.c.l.b16 %v6890
        %v7039 = vunpack.c.l.b16 %v6891
        %v7040 = vunpack.c.l.b16 %v6892
        %v7041 = vunpack.c.l.b16 %v6893
        %v7042 = vunpack.c.l.b16 %v6894
        %v7043 = vunpack.c.l.b16 %v6895
        %v7044 = vunpack.c.l.b16 %v6896
        %v7045 = vpack.c.b16 %v6974, %v6973
        %v7046 = vpack.c.b16 %v6976, %v6975
        %v7047 = vpack.c.b16 %v6978, %v6977
        %v7048 = vpack.c.b16 %v6980, %v6979
        %v7049 = vpack.c.b16 %v6982, %v6981
        %v7050 = vpack.c.b16 %v6984, %v6983
        %v7051 = vpack.c.b16 %v6986, %v6985
        %v7052 = vpack.c.b16 %v6988, %v6987
        %v7053 = vpack.c.b16 %v6990, %v6989
        %v7054 = vpack.c.b16 %v6992, %v6991
        %v7055 = vpack.c.b16 %v6994, %v6993
        %v7056 = vpack.c.b16 %v6996, %v6995
        %v7057 = vpack.c.b16 %v6998, %v6997
        %v7058 = vpack.c.b16 %v7000, %v6999
        %v7059 = vpack.c.b16 %v7002, %v7001
        %v7060 = vpack.c.b16 %v7004, %v7003
        %v7061 = vpack.c.b16 %v7006, %v7005
        %v7062 = vpack.c.b16 %v7008, %v7007
        %v7063 = vpack.c.b16 %v7010, %v7009
        %v7064 = vpack.c.b16 %v7012, %v7011
        %v7065 = vpack.c.b16 %v7014, %v7013
        %v7066 = vpack.c.b16 %v7016, %v7015
        %v7067 = vpack.c.b16 %v7018, %v7017
        %v7068 = vpack.c.b16 %v7020, %v7019
        %v7069 = vpack.c.b16 %v7022, %v7021
        %v7070 = vpack.c.b16 %v7024, %v7023
        %v7071 = vpack.c.b16 %v7026, %v7025
        %v7072 = vpack.c.b16 %v7028, %v7027
        %v7073 = vpack.c.b16 %v7030, %v7029
        %v7074 = vpack.c.b16 %v7032, %v7031
        %v7075 = vpack.c.b16 %v7034, %v7033
        %v7076 = vpack.c.b16 %v7036, %v7035
        %v7077 = vpack.c.b16 %v7038, %v7037
        %v7078 = vpack.c.b16 %v7040, %v7039
        %v7079 = vpack.c.b16 %v7042, %v7041
        %v7080 = vpack.c.b16 %v7044, %v7043
        %v7117 = vsel %vm1654, %v6523, 0
        %v7119 = vsel %vm1654, %v6524, 0
        %v7121 = vsel %vm1654, %v6525, 0
        %v7123 = vsel %vm1654, %v6526, 0
        %v7125 = vsel %vm1654, %v6527, 0
        %v7127 = vsel %vm1654, %v6528, 0
        %v7129 = vsel %vm1654, %v6529, 0
        %v7131 = vsel %vm1654, %v6530, 0
        %v7133 = vsel %vm1654, %v6531, 0
        %v7135 = vsel %vm1654, %v6532, 0
        %v7137 = vsel %vm1654, %v6533, 0
        %v7139 = vsel %vm1654, %v6534, 0
        %v7141 = vsel %vm1654, %v6535, 0
        %v7143 = vsel %vm1654, %v6536, 0
        %v7146 = vsel %vm1654, %v6537, 0
        %7148 = vmatpush.bf16.msra.mxu0 %v7052
        %7149 = vmatpush.bf16.msra.mxu0 %v7051
        %7150 = vmatpush.bf16.msra.mxu0 %v7050
        %7151 = vmatpush.bf16.msra.mxu0 %v7049
        %7152 = vmatpush.bf16.msra.mxu0 %v7048
        %7153 = vmatpush.bf16.msra.mxu0 %v7047
        %7154 = vmatpush.bf16.msra.mxu0 %v7046
        %7155 = vmatpush.bf16.msra.mxu0 %v7045
        %7156 = vmatmul.bf16.gmra.mxu0 %v1657
        %v7157 = vpop.f32.mrf.mxu0
        %v7158 = vadd.f32 %v6899, %v7157
        %v7159 = vpop.f32.mrf.mxu0
        %v7160 = vadd.f32 %v6899, %v7159
        %7161 = vmatmul.bf16.gmra.mxu0 %v6636
        %v7162 = vpop.f32.mrf.mxu0
        %v7163 = vadd.f32 %v6899, %v7162
        %v7164 = vpop.f32.mrf.mxu0
        %v7165 = vadd.f32 %v6899, %v7164
        %7166 = vmatmul.bf16.gmra.mxu0 %v6640
        %v7167 = vpop.f32.mrf.mxu0
        %v7168 = vadd.f32 %v6899, %v7167
        %v7169 = vpop.f32.mrf.mxu0
        %v7170 = vadd.f32 %v6899, %v7169
        %7171 = vmatmul.bf16.gmra.mxu0 %v6644
        %v7172 = vpop.f32.mrf.mxu0
        %v7173 = vadd.f32 %v6899, %v7172
        %v7174 = vpop.f32.mrf.mxu0
        %v7175 = vadd.f32 %v6899, %v7174
        %7176 = vmatmul.bf16.gmra.mxu0 %v6648
        %v7177 = vpop.f32.mrf.mxu0
        %v7178 = vadd.f32 %v6899, %v7177
        %v7179 = vpop.f32.mrf.mxu0
        %v7180 = vadd.f32 %v6899, %v7179
        %7181 = vmatmul.bf16.gmra.mxu0 %v6652
        %v7182 = vpop.f32.mrf.mxu0
        %v7183 = vadd.f32 %v6899, %v7182
        %v7184 = vpop.f32.mrf.mxu0
        %v7185 = vadd.f32 %v6899, %v7184
        %7186 = vmatmul.bf16.gmra.mxu0 %v6656
        %v7187 = vpop.f32.mrf.mxu0
        %v7188 = vadd.f32 %v6899, %v7187
        %v7189 = vpop.f32.mrf.mxu0
        %v7190 = vadd.f32 %v6899, %v7189
        %7191 = vmatmul.bf16.gmra.mxu0 %v6660
        %v7192 = vpop.f32.mrf.mxu0
        %v7193 = vadd.f32 %v6899, %v7192
        %v7194 = vpop.f32.mrf.mxu0
        %v7195 = vadd.f32 %v6899, %v7194
        %7196 = vmatmul.bf16.gmra.mxu0 %v6664
        %v7197 = vpop.f32.mrf.mxu0
        %v7198 = vadd.f32 %v6899, %v7197
        %v7199 = vpop.f32.mrf.mxu0
        %v7200 = vadd.f32 %v6899, %v7199
        %7201 = vmatmul.bf16.gmra.mxu0 %v6668
        %v7202 = vpop.f32.mrf.mxu0
        %v7203 = vadd.f32 %v6899, %v7202
        %v7204 = vpop.f32.mrf.mxu0
        %v7205 = vadd.f32 %v6899, %v7204
        %7206 = vmatmul.bf16.gmra.mxu0 %v6672
        %v7207 = vpop.f32.mrf.mxu0
        %v7208 = vadd.f32 %v6899, %v7207
        %v7209 = vpop.f32.mrf.mxu0
        %v7210 = vadd.f32 %v6899, %v7209
        %7211 = vmatmul.bf16.gmra.mxu0 %v6676
        %v7212 = vpop.f32.mrf.mxu0
        %v7213 = vadd.f32 %v6899, %v7212
        %v7214 = vpop.f32.mrf.mxu0
        %v7215 = vadd.f32 %v6899, %v7214
        %7216 = vmatmul.bf16.gmra.mxu0 %v6680
        %v7217 = vpop.f32.mrf.mxu0
        %v7218 = vadd.f32 %v6899, %v7217
        %v7219 = vpop.f32.mrf.mxu0
        %v7220 = vadd.f32 %v6899, %v7219
        %7221 = vmatmul.bf16.gmra.mxu0 %v6684
        %v7222 = vpop.f32.mrf.mxu0
        %v7223 = vadd.f32 %v6899, %v7222
        %v7224 = vpop.f32.mrf.mxu0
        %v7225 = vadd.f32 %v6899, %v7224
        %7226 = vmatmul.bf16.gmra.mxu0 %v6688
        %v7227 = vpop.f32.mrf.mxu0
        %v7228 = vadd.f32 %v6899, %v7227
        %v7229 = vpop.f32.mrf.mxu0
        %v7230 = vadd.f32 %v6899, %v7229
        %7231 = vmatmul.bf16.gmra.mxu0 %v6692
        %v7232 = vpop.f32.mrf.mxu0
        %v7233 = vadd.f32 %v6899, %v7232
        %v7234 = vpop.f32.mrf.mxu0
        %v7235 = vadd.f32 %v6899, %v7234
        %7236 = vdwg.mxu0
        %7237 = vmatpush.bf16.msra.mxu0 %v7060
        %7238 = vmatpush.bf16.msra.mxu0 %v7059
        %7239 = vmatpush.bf16.msra.mxu0 %v7058
        %7240 = vmatpush.bf16.msra.mxu0 %v7057
        %7241 = vmatpush.bf16.msra.mxu0 %v7056
        %7242 = vmatpush.bf16.msra.mxu0 %v7055
        %7243 = vmatpush.bf16.msra.mxu0 %v7054
        %7244 = vmatpush.bf16.msra.mxu0 %v7053
        %7245 = vmatmul.bf16.gmra.mxu0 %v6695
        %v7246 = vpop.f32.mrf.mxu0
        %v7247 = vadd.f32 %v7158, %v7246
        %v7248 = vpop.f32.mrf.mxu0
        %v7249 = vadd.f32 %v7160, %v7248
        %7250 = vmatmul.bf16.gmra.mxu0 %v6699
        %v7251 = vpop.f32.mrf.mxu0
        %v7252 = vadd.f32 %v7163, %v7251
        %v7253 = vpop.f32.mrf.mxu0
        %v7254 = vadd.f32 %v7165, %v7253
        %7255 = vmatmul.bf16.gmra.mxu0 %v6703
        %v7256 = vpop.f32.mrf.mxu0
        %v7257 = vadd.f32 %v7168, %v7256
        %v7258 = vpop.f32.mrf.mxu0
        %v7259 = vadd.f32 %v7170, %v7258
        %7260 = vmatmul.bf16.gmra.mxu0 %v6707
        %v7261 = vpop.f32.mrf.mxu0
        %v7262 = vadd.f32 %v7173, %v7261
        %v7263 = vpop.f32.mrf.mxu0
        %v7264 = vadd.f32 %v7175, %v7263
        %7265 = vmatmul.bf16.gmra.mxu0 %v6711
        %v7266 = vpop.f32.mrf.mxu0
        %v7267 = vadd.f32 %v7178, %v7266
        %v7268 = vpop.f32.mrf.mxu0
        %v7269 = vadd.f32 %v7180, %v7268
        %7270 = vmatmul.bf16.gmra.mxu0 %v6715
        %v7271 = vpop.f32.mrf.mxu0
        %v7272 = vadd.f32 %v7183, %v7271
        %v7273 = vpop.f32.mrf.mxu0
        %v7274 = vadd.f32 %v7185, %v7273
        %7275 = vmatmul.bf16.gmra.mxu0 %v6719
        %v7276 = vpop.f32.mrf.mxu0
        %v7277 = vadd.f32 %v7188, %v7276
        %v7278 = vpop.f32.mrf.mxu0
        %v7279 = vadd.f32 %v7190, %v7278
        %7280 = vmatmul.bf16.gmra.mxu0 %v6723
        %v7281 = vpop.f32.mrf.mxu0
        %v7282 = vadd.f32 %v7193, %v7281
        %v7283 = vpop.f32.mrf.mxu0
        %v7284 = vadd.f32 %v7195, %v7283
        %7285 = vmatmul.bf16.gmra.mxu0 %v6727
        %v7286 = vpop.f32.mrf.mxu0
        %v7287 = vadd.f32 %v7198, %v7286
        %v7288 = vpop.f32.mrf.mxu0
        %v7289 = vadd.f32 %v7200, %v7288
        %7290 = vmatmul.bf16.gmra.mxu0 %v6731
        %v7291 = vpop.f32.mrf.mxu0
        %v7292 = vadd.f32 %v7203, %v7291
        %v7293 = vpop.f32.mrf.mxu0
        %v7294 = vadd.f32 %v7205, %v7293
        %7295 = vmatmul.bf16.gmra.mxu0 %v6735
        %v7296 = vpop.f32.mrf.mxu0
        %v7297 = vadd.f32 %v7208, %v7296
        %v7298 = vpop.f32.mrf.mxu0
        %v7299 = vadd.f32 %v7210, %v7298
        %7300 = vmatmul.bf16.gmra.mxu0 %v6739
        %v7301 = vpop.f32.mrf.mxu0
        %v7302 = vadd.f32 %v7213, %v7301
        %v7303 = vpop.f32.mrf.mxu0
        %v7304 = vadd.f32 %v7215, %v7303
        %7305 = vmatmul.bf16.gmra.mxu0 %v6743
        %v7306 = vpop.f32.mrf.mxu0
        %v7307 = vadd.f32 %v7218, %v7306
        %v7308 = vpop.f32.mrf.mxu0
        %v7309 = vadd.f32 %v7220, %v7308
        %7310 = vmatmul.bf16.gmra.mxu0 %v6747
        %v7311 = vpop.f32.mrf.mxu0
        %v7312 = vadd.f32 %v7223, %v7311
        %v7313 = vpop.f32.mrf.mxu0
        %v7314 = vadd.f32 %v7225, %v7313
        %7315 = vmatmul.bf16.gmra.mxu0 %v6751
        %v7316 = vpop.f32.mrf.mxu0
        %v7317 = vadd.f32 %v7228, %v7316
        %v7318 = vpop.f32.mrf.mxu0
        %v7319 = vadd.f32 %v7230, %v7318
        %7320 = vmatmul.bf16.gmra.mxu0 %v6755
        %v7321 = vpop.f32.mrf.mxu0
        %v7322 = vadd.f32 %v7233, %v7321
        %v7323 = vpop.f32.mrf.mxu0
        %v7324 = vadd.f32 %v7235, %v7323
        %7325 = vdwg.mxu0
        %7326 = vmatpush.bf16.msra.mxu0 %v7068
        %7327 = vmatpush.bf16.msra.mxu0 %v7067
        %7328 = vmatpush.bf16.msra.mxu0 %v7066
        %7329 = vmatpush.bf16.msra.mxu0 %v7065
        %7330 = vmatpush.bf16.msra.mxu0 %v7064
        %7331 = vmatpush.bf16.msra.mxu0 %v7063
        %7332 = vmatpush.bf16.msra.mxu0 %v7062
        %7333 = vmatpush.bf16.msra.mxu0 %v7061
        %7334 = vmatmul.bf16.gmra.mxu0 %v6759
        %v7335 = vpop.f32.mrf.mxu0
        %v7336 = vadd.f32 %v7247, %v7335
        %v7337 = vpop.f32.mrf.mxu0
        %v7338 = vadd.f32 %v7249, %v7337
        %7339 = vmatmul.bf16.gmra.mxu0 %v6763
        %v7340 = vpop.f32.mrf.mxu0
        %v7341 = vadd.f32 %v7252, %v7340
        %v7342 = vpop.f32.mrf.mxu0
        %v7343 = vadd.f32 %v7254, %v7342
        %7344 = vmatmul.bf16.gmra.mxu0 %v6767
        %v7345 = vpop.f32.mrf.mxu0
        %v7346 = vadd.f32 %v7257, %v7345
        %v7347 = vpop.f32.mrf.mxu0
        %v7348 = vadd.f32 %v7259, %v7347
        %7349 = vmatmul.bf16.gmra.mxu0 %v6771
        %v7350 = vpop.f32.mrf.mxu0
        %v7351 = vadd.f32 %v7262, %v7350
        %v7352 = vpop.f32.mrf.mxu0
        %v7353 = vadd.f32 %v7264, %v7352
        %7354 = vmatmul.bf16.gmra.mxu0 %v6775
        %v7355 = vpop.f32.mrf.mxu0
        %v7356 = vadd.f32 %v7267, %v7355
        %v7357 = vpop.f32.mrf.mxu0
        %v7358 = vadd.f32 %v7269, %v7357
        %7359 = vmatmul.bf16.gmra.mxu0 %v6779
        %v7360 = vpop.f32.mrf.mxu0
        %v7361 = vadd.f32 %v7272, %v7360
        %v7362 = vpop.f32.mrf.mxu0
        %v7363 = vadd.f32 %v7274, %v7362
        %7364 = vmatmul.bf16.gmra.mxu0 %v6783
        %v7365 = vpop.f32.mrf.mxu0
        %v7366 = vadd.f32 %v7277, %v7365
        %v7367 = vpop.f32.mrf.mxu0
        %v7368 = vadd.f32 %v7279, %v7367
        %7369 = vmatmul.bf16.gmra.mxu0 %v6787
        %v7370 = vpop.f32.mrf.mxu0
        %v7371 = vadd.f32 %v7282, %v7370
        %v7372 = vpop.f32.mrf.mxu0
        %v7373 = vadd.f32 %v7284, %v7372
        %7374 = vmatmul.bf16.gmra.mxu0 %v6791
        %v7375 = vpop.f32.mrf.mxu0
        %v7376 = vadd.f32 %v7287, %v7375
        %v7377 = vpop.f32.mrf.mxu0
        %v7378 = vadd.f32 %v7289, %v7377
        %7379 = vmatmul.bf16.gmra.mxu0 %v6795
        %v7380 = vpop.f32.mrf.mxu0
        %v7381 = vadd.f32 %v7292, %v7380
        %v7382 = vpop.f32.mrf.mxu0
        %v7383 = vadd.f32 %v7294, %v7382
        %7384 = vmatmul.bf16.gmra.mxu0 %v6799
        %v7385 = vpop.f32.mrf.mxu0
        %v7386 = vadd.f32 %v7297, %v7385
        %v7387 = vpop.f32.mrf.mxu0
        %v7388 = vadd.f32 %v7299, %v7387
        %7389 = vmatmul.bf16.gmra.mxu0 %v6803
        %v7390 = vpop.f32.mrf.mxu0
        %v7391 = vadd.f32 %v7302, %v7390
        %v7392 = vpop.f32.mrf.mxu0
        %v7393 = vadd.f32 %v7304, %v7392
        %7394 = vmatmul.bf16.gmra.mxu0 %v6807
        %v7395 = vpop.f32.mrf.mxu0
        %v7396 = vadd.f32 %v7307, %v7395
        %v7397 = vpop.f32.mrf.mxu0
        %v7398 = vadd.f32 %v7309, %v7397
        %7399 = vmatmul.bf16.gmra.mxu0 %v6811
        %v7400 = vpop.f32.mrf.mxu0
        %v7401 = vadd.f32 %v7312, %v7400
        %v7402 = vpop.f32.mrf.mxu0
        %v7403 = vadd.f32 %v7314, %v7402
        %7404 = vmatmul.bf16.gmra.mxu0 %v6815
        %v7405 = vpop.f32.mrf.mxu0
        %v7406 = vadd.f32 %v7317, %v7405
        %v7407 = vpop.f32.mrf.mxu0
        %v7408 = vadd.f32 %v7319, %v7407
        %7409 = vmatmul.bf16.gmra.mxu0 %v6819
        %v7410 = vpop.f32.mrf.mxu0
        %v7411 = vadd.f32 %v7322, %v7410
        %v7412 = vpop.f32.mrf.mxu0
        %v7413 = vadd.f32 %v7324, %v7412
        %7414 = vdwg.mxu0
        %7415 = vmatpush.bf16.msra.mxu0 %v7076
        %7416 = vmatpush.bf16.msra.mxu0 %v7075
        %7417 = vmatpush.bf16.msra.mxu0 %v7074
        %7418 = vmatpush.bf16.msra.mxu0 %v7073
        %7419 = vmatpush.bf16.msra.mxu0 %v7072
        %7420 = vmatpush.bf16.msra.mxu0 %v7071
        %7421 = vmatpush.bf16.msra.mxu0 %v7070
        %7422 = vmatpush.bf16.msra.mxu0 %v7069
        %7423 = vmatmul.bf16.gmra.mxu0 %v6640
        %v7424 = vpop.f32.mrf.mxu0
        %v7425 = vadd.f32 %v7336, %v7424
        %v7426 = vpop.f32.mrf.mxu0
        %v7427 = vadd.f32 %v7338, %v7426
        %7428 = vmatmul.bf16.gmra.mxu0 %v6644
        %v7429 = vpop.f32.mrf.mxu0
        %v7430 = vadd.f32 %v7341, %v7429
        %v7431 = vpop.f32.mrf.mxu0
        %v7432 = vadd.f32 %v7343, %v7431
        %7433 = vmatmul.bf16.gmra.mxu0 %v6648
        %v7434 = vpop.f32.mrf.mxu0
        %v7435 = vadd.f32 %v7346, %v7434
        %v7436 = vpop.f32.mrf.mxu0
        %v7437 = vadd.f32 %v7348, %v7436
        %7438 = vmatmul.bf16.gmra.mxu0 %v6652
        %v7439 = vpop.f32.mrf.mxu0
        %v7440 = vadd.f32 %v7351, %v7439
        %v7441 = vpop.f32.mrf.mxu0
        %v7442 = vadd.f32 %v7353, %v7441
        %7443 = vmatmul.bf16.gmra.mxu0 %v6656
        %v7444 = vpop.f32.mrf.mxu0
        %v7445 = vadd.f32 %v7356, %v7444
        %v7446 = vpop.f32.mrf.mxu0
        %v7447 = vadd.f32 %v7358, %v7446
        %7448 = vmatmul.bf16.gmra.mxu0 %v6660
        %v7449 = vpop.f32.mrf.mxu0
        %v7450 = vadd.f32 %v7361, %v7449
        %v7451 = vpop.f32.mrf.mxu0
        %v7452 = vadd.f32 %v7363, %v7451
        %7453 = vmatmul.bf16.gmra.mxu0 %v6664
        %v7454 = vpop.f32.mrf.mxu0
        %v7455 = vadd.f32 %v7366, %v7454
        %v7456 = vpop.f32.mrf.mxu0
        %v7457 = vadd.f32 %v7368, %v7456
        %7458 = vmatmul.bf16.gmra.mxu0 %v6668
        %v7459 = vpop.f32.mrf.mxu0
        %v7460 = vadd.f32 %v7371, %v7459
        %v7461 = vpop.f32.mrf.mxu0
        %v7462 = vadd.f32 %v7373, %v7461
        %7463 = vmatmul.bf16.gmra.mxu0 %v6672
        %v7464 = vpop.f32.mrf.mxu0
        %v7465 = vadd.f32 %v7376, %v7464
        %v7466 = vpop.f32.mrf.mxu0
        %v7467 = vadd.f32 %v7378, %v7466
        %7468 = vmatmul.bf16.gmra.mxu0 %v6676
        %v7469 = vpop.f32.mrf.mxu0
        %v7470 = vadd.f32 %v7381, %v7469
        %v7471 = vpop.f32.mrf.mxu0
        %v7472 = vadd.f32 %v7383, %v7471
        %7473 = vmatmul.bf16.gmra.mxu0 %v6680
        %v7474 = vpop.f32.mrf.mxu0
        %v7475 = vadd.f32 %v7386, %v7474
        %v7476 = vpop.f32.mrf.mxu0
        %v7477 = vadd.f32 %v7388, %v7476
        %7478 = vmatmul.bf16.gmra.mxu0 %v6684
        %v7479 = vpop.f32.mrf.mxu0
        %v7480 = vadd.f32 %v7391, %v7479
        %v7481 = vpop.f32.mrf.mxu0
        %v7482 = vadd.f32 %v7393, %v7481
        %7483 = vmatmul.bf16.gmra.mxu0 %v6688
        %v7484 = vpop.f32.mrf.mxu0
        %v7485 = vadd.f32 %v7396, %v7484
        %v7486 = vpop.f32.mrf.mxu0
        %v7487 = vadd.f32 %v7398, %v7486
        %7488 = vmatmul.bf16.gmra.mxu0 %v6692
        %v7489 = vpop.f32.mrf.mxu0
        %v7490 = vadd.f32 %v7401, %v7489
        %v7491 = vpop.f32.mrf.mxu0
        %v7492 = vadd.f32 %v7403, %v7491
        %7493 = vmatmul.bf16.gmra.mxu0 %v6823
        %v7494 = vpop.f32.mrf.mxu0
        %v7495 = vadd.f32 %v7406, %v7494
        %v7496 = vpop.f32.mrf.mxu0
        %v7497 = vadd.f32 %v7408, %v7496
        %7498 = vmatmul.bf16.gmra.mxu0 %v1657
        %v7499 = vpop.f32.mrf.mxu0
        %v7500 = vadd.f32 %v7411, %v7499
        %v7501 = vpop.f32.mrf.mxu0
        %v7502 = vadd.f32 %v7413, %v7501
        %7503 = vdwg.mxu0
        %7504 = vmatpush.bf16.msra.mxu0 0
        %7505 = vmatpush.bf16.msra.mxu0 0
        %7506 = vmatpush.bf16.msra.mxu0 0
        %7507 = vmatpush.bf16.msra.mxu0 0
        %7508 = vmatpush.bf16.msra.mxu0 %v7080
        %7509 = vmatpush.bf16.msra.mxu0 %v7079
        %7510 = vmatpush.bf16.msra.mxu0 %v7078
        %7511 = vmatpush.bf16.msra.mxu0 %v7077
        %7512 = vmatmul.bf16.gmra.mxu0 %v7117
        %v7513 = vpop.f32.mrf.mxu0
        %v7514 = vadd.f32 %v7425, %v7513
        %v7515 = vpop.f32.mrf.mxu0
        %v7516 = vadd.f32 %v7427, %v7515
        %7517 = vmatmul.bf16.gmra.mxu0 %v7119
        %v7518 = vpop.f32.mrf.mxu0
        %v7519 = vadd.f32 %v7430, %v7518
        %v7520 = vpop.f32.mrf.mxu0
        %v7521 = vadd.f32 %v7432, %v7520
        %7522 = vmatmul.bf16.gmra.mxu0 %v7121
        %v7523 = vpop.f32.mrf.mxu0
        %v7524 = vadd.f32 %v7435, %v7523
        %v7525 = vpop.f32.mrf.mxu0
        %v7526 = vadd.f32 %v7437, %v7525
        %7527 = vmatmul.bf16.gmra.mxu0 %v7123
        %v7528 = vpop.f32.mrf.mxu0
        %v7529 = vadd.f32 %v7440, %v7528
        %v7530 = vpop.f32.mrf.mxu0
        %v7531 = vadd.f32 %v7442, %v7530
        %7532 = vmatmul.bf16.gmra.mxu0 %v7125
        %v7533 = vpop.f32.mrf.mxu0
        %v7534 = vadd.f32 %v7445, %v7533
        %v7535 = vpop.f32.mrf.mxu0
        %v7536 = vadd.f32 %v7447, %v7535
        %7537 = vmatmul.bf16.gmra.mxu0 %v7127
        %v7538 = vpop.f32.mrf.mxu0
        %v7539 = vadd.f32 %v7450, %v7538
        %v7540 = vpop.f32.mrf.mxu0
        %v7541 = vadd.f32 %v7452, %v7540
        %7542 = vmatmul.bf16.gmra.mxu0 %v7129
        %v7543 = vpop.f32.mrf.mxu0
        %v7544 = vadd.f32 %v7455, %v7543
        %v7545 = vpop.f32.mrf.mxu0
        %v7546 = vadd.f32 %v7457, %v7545
        %7547 = vmatmul.bf16.gmra.mxu0 %v7131
        %v7548 = vpop.f32.mrf.mxu0
        %v7549 = vadd.f32 %v7460, %v7548
        %v7550 = vpop.f32.mrf.mxu0
        %v7551 = vadd.f32 %v7462, %v7550
        %7552 = vmatmul.bf16.gmra.mxu0 %v7133
        %v7553 = vpop.f32.mrf.mxu0
        %v7554 = vadd.f32 %v7465, %v7553
        %v7555 = vpop.f32.mrf.mxu0
        %v7556 = vadd.f32 %v7467, %v7555
        %7557 = vmatmul.bf16.gmra.mxu0 %v7135
        %v7558 = vpop.f32.mrf.mxu0
        %v7559 = vadd.f32 %v7470, %v7558
        %v7560 = vpop.f32.mrf.mxu0
        %v7561 = vadd.f32 %v7472, %v7560
        %7562 = vmatmul.bf16.gmra.mxu0 %v7137
        %v7563 = vpop.f32.mrf.mxu0
        %v7564 = vadd.f32 %v7475, %v7563
        %v7565 = vpop.f32.mrf.mxu0
        %v7566 = vadd.f32 %v7477, %v7565
        %7567 = vmatmul.bf16.gmra.mxu0 %v7139
        %v7568 = vpop.f32.mrf.mxu0
        %v7569 = vadd.f32 %v7480, %v7568
        %v7570 = vpop.f32.mrf.mxu0
        %v7571 = vadd.f32 %v7482, %v7570
        %7572 = vmatmul.bf16.gmra.mxu0 %v7141
        %v7573 = vpop.f32.mrf.mxu0
        %v7574 = vadd.f32 %v7485, %v7573
        %v7575 = vpop.f32.mrf.mxu0
        %v7576 = vadd.f32 %v7487, %v7575
        %7577 = vmatmul.bf16.gmra.mxu0 %v7143
        %v7578 = vpop.f32.mrf.mxu0
        %v7579 = vadd.f32 %v7490, %v7578
        %v7580 = vpop.f32.mrf.mxu0
        %v7581 = vadd.f32 %v7492, %v7580
        %7582 = vmatmul.bf16.gmra.mxu0 %v7146
        %v7583 = vpop.f32.mrf.mxu0
        %v7584 = vadd.f32 %v7495, %v7583
        %v7585 = vpop.f32.mrf.mxu0
        %v7586 = vadd.f32 %v7497, %v7585
        %7587 = vmatmul.bf16.gmra.mxu0 %v2173
        %v7588 = vpop.f32.mrf.mxu0
        %v7589 = vadd.f32 %v7500, %v7588
        %v7590 = vpop.f32.mrf.mxu0
        %v7591 = vadd.f32 %v7502, %v7590
        %7592 = vdwg.mxu0
        %v7593 = vadd.f32 %v7514, %v4299
        %v7594 = vadd.f32 %v7516, %v4300
        %v7595 = vadd.f32 %v7519, %v4301
        %v7596 = vadd.f32 %v7521, %v4302
        %v7597 = vadd.f32 %v7524, %v4303
        %v7598 = vadd.f32 %v7526, %v4304
        %v7599 = vadd.f32 %v7529, %v4305
        %v7600 = vadd.f32 %v7531, %v4306
        %v7601 = vadd.f32 %v7534, %v4307
        %v7602 = vadd.f32 %v7536, %v4308
        %v7603 = vadd.f32 %v7539, %v4309
        %v7604 = vadd.f32 %v7541, %v4310
        %v7605 = vadd.f32 %v7544, %v4311
        %v7606 = vadd.f32 %v7546, %v4312
        %v7607 = vadd.f32 %v7549, %v4313
        %v7608 = vadd.f32 %v7551, %v4314
        %v7609 = vadd.f32 %v7554, %v4315
        %v7610 = vadd.f32 %v7556, %v4316
        %v7611 = vadd.f32 %v7559, %v4317
        %v7612 = vadd.f32 %v7561, %v4318
        %v7613 = vadd.f32 %v7564, %v4319
        %v7614 = vadd.f32 %v7566, %v4320
        %v7615 = vadd.f32 %v7569, %v4321
        %v7616 = vadd.f32 %v7571, %v4322
        %v7617 = vadd.f32 %v7574, %v4323
        %v7618 = vadd.f32 %v7576, %v4324
        %v7619 = vadd.f32 %v7579, %v4325
        %v7620 = vadd.f32 %v7581, %v4326
        %v7621 = vadd.f32 %v7584, %v4327
        %v7622 = vadd.f32 %v7586, %v4328
        %v7623 = vadd.f32 %v7589, %v4329
        %v7624 = vadd.f32 %v7591, %v4330
        %v7625 = vmax.f32 %v7593, 0.0
        %v7626 = vmax.f32 %v7594, 0.0
        %v7627 = vmax.f32 %v7595, 0.0
        %v7628 = vmax.f32 %v7596, 0.0
        %v7629 = vmax.f32 %v7597, 0.0
        %v7630 = vmax.f32 %v7598, 0.0
        %v7631 = vmax.f32 %v7599, 0.0
        %v7632 = vmax.f32 %v7600, 0.0
        %v7633 = vmax.f32 %v7601, 0.0
        %v7634 = vmax.f32 %v7602, 0.0
        %v7635 = vmax.f32 %v7603, 0.0
        %v7636 = vmax.f32 %v7604, 0.0
        %v7637 = vmax.f32 %v7605, 0.0
        %v7638 = vmax.f32 %v7606, 0.0
        %v7639 = vmax.f32 %v7607, 0.0
        %v7640 = vmax.f32 %v7608, 0.0
        %v7641 = vmax.f32 %v7609, 0.0
        %v7642 = vmax.f32 %v7610, 0.0
        %v7643 = vmax.f32 %v7611, 0.0
        %v7644 = vmax.f32 %v7612, 0.0
        %v7645 = vmax.f32 %v7613, 0.0
        %v7646 = vmax.f32 %v7614, 0.0
        %v7647 = vmax.f32 %v7615, 0.0
        %v7648 = vmax.f32 %v7616, 0.0
        %v7649 = vmax.f32 %v7617, 0.0
        %v7650 = vmax.f32 %v7618, 0.0
        %v7651 = vmax.f32 %v7619, 0.0
        %v7652 = vmax.f32 %v7620, 0.0
        %v7653 = vmax.f32 %v7621, 0.0
        %v7654 = vmax.f32 %v7622, 0.0
        %v7655 = vmax.f32 %v7623, 0.0
        %v7656 = vmax.f32 %v7624, 0.0
        %7657 = vst.msk [vmem:[#allocation2] sm:$0xff] %vm1654, %v7625
        %7658 = vst.msk [vmem:[#allocation2 + $0x8] sm:$0xff] %vm1654, %v7626
        %7659 = vst.msk [vmem:[#allocation2 + $0x10] sm:$0xff] %vm1654, %v7627
        %7660 = vst.msk [vmem:[#allocation2 + $0x18] sm:$0xff] %vm1654, %v7628
        %7661 = vst.msk [vmem:[#allocation2 + $0x20] sm:$0xff] %vm1654, %v7629
        %7662 = vst.msk [vmem:[#allocation2 + $0x28] sm:$0xff] %vm1654, %v7630
        %7663 = vst.msk [vmem:[#allocation2 + $0x30] sm:$0xff] %vm1654, %v7631
        %7664 = vst.msk [vmem:[#allocation2 + $0x38] sm:$0xff] %vm1654, %v7632
        %7665 = vst.msk [vmem:[#allocation2 + $0x40] sm:$0xff] %vm1654, %v7633
        %7666 = vst.msk [vmem:[#allocation2 + $0x48] sm:$0xff] %vm1654, %v7634
        %7667 = vst.msk [vmem:[#allocation2 + $0x50] sm:$0xff] %vm1654, %v7635
        %7668 = vst.msk [vmem:[#allocation2 + $0x58] sm:$0xff] %vm1654, %v7636
        %7669 = vst.msk [vmem:[#allocation2 + $0x60] sm:$0xff] %vm1654, %v7637
        %7670 = vst.msk [vmem:[#allocation2 + $0x68] sm:$0xff] %vm1654, %v7638
        %7671 = vst.msk [vmem:[#allocation2 + $0x70] sm:$0xff] %vm1654, %v7639
        %7672 = vst.msk [vmem:[#allocation2 + $0x78] sm:$0xff] %vm1654, %v7640
        %7673 = vst.msk [vmem:[#allocation2 + $0x80] sm:$0xff] %vm1654, %v7641
        %7674 = vst.msk [vmem:[#allocation2 + $0x88] sm:$0xff] %vm1654, %v7642
        %7675 = vst.msk [vmem:[#allocation2 + $0x90] sm:$0xff] %vm1654, %v7643
        %7676 = vst.msk [vmem:[#allocation2 + $0x98] sm:$0xff] %vm1654, %v7644
        %7677 = vst.msk [vmem:[#allocation2 + $0xa0] sm:$0xff] %vm1654, %v7645
        %7678 = vst.msk [vmem:[#allocation2 + $0xa8] sm:$0xff] %vm1654, %v7646
        %7679 = vst.msk [vmem:[#allocation2 + $0xb0] sm:$0xff] %vm1654, %v7647
        %7680 = vst.msk [vmem:[#allocation2 + $0xb8] sm:$0xff] %vm1654, %v7648
        %7681 = vst.msk [vmem:[#allocation2 + $0xc0] sm:$0xff] %vm1654, %v7649
        %7682 = vst.msk [vmem:[#allocation2 + $0xc8] sm:$0xff] %vm1654, %v7650
        %7683 = vst.msk [vmem:[#allocation2 + $0xd0] sm:$0xff] %vm1654, %v7651
        %7684 = vst.msk [vmem:[#allocation2 + $0xd8] sm:$0xff] %vm1654, %v7652
        %7685 = vst.msk [vmem:[#allocation2 + $0xe0] sm:$0xff] %vm1654, %v7653
        %7686 = vst.msk [vmem:[#allocation2 + $0xe8] sm:$0xff] %vm1654, %v7654
        %7687 = vst.msk [vmem:[#allocation2 + $0xf0] sm:$0xff] %vm1654, %v7655
        %7688 = vst.msk [vmem:[#allocation2 + $0xf8] sm:$0xff] %vm1654, %v7656
        %v7689 = vld [vmem:[#allocation2] ss:$2 sm:$0xff]
        %s7690 = scalar_lea.vmem [#allocation2], 16
        %v7691 = vld [vmem:[%s7690] ss:$2 sm:$0xff]
        %s7692 = scalar_lea.vmem [#allocation2], 32
        %v7693 = vld [vmem:[%s7692] ss:$2 sm:$0xff]
        %s7694 = scalar_lea.vmem [#allocation2], 48
        %v7695 = vld [vmem:[%s7694] ss:$2 sm:$0xff]
        %s7696 = scalar_lea.vmem [#allocation2], 64
        %v7697 = vld [vmem:[%s7696] ss:$2 sm:$0xff]
        %s7698 = scalar_lea.vmem [#allocation2], 80
        %v7699 = vld [vmem:[%s7698] ss:$2 sm:$0xff]
        %s7700 = scalar_lea.vmem [#allocation2], 96
        %v7701 = vld [vmem:[%s7700] ss:$2 sm:$0xff]
        %s7702 = scalar_lea.vmem [#allocation2], 112
        %v7703 = vld [vmem:[%s7702] ss:$2 sm:$0xff]
        %s7704 = scalar_lea.vmem [#allocation2], 128
        %v7705 = vld [vmem:[%s7704] ss:$2 sm:$0xff]
        %s7706 = scalar_lea.vmem [#allocation2], 144
        %v7707 = vld [vmem:[%s7706] ss:$2 sm:$0xff]
        %s7708 = scalar_lea.vmem [#allocation2], 160
        %v7709 = vld [vmem:[%s7708] ss:$2 sm:$0xff]
        %s7710 = scalar_lea.vmem [#allocation2], 176
        %v7711 = vld [vmem:[%s7710] ss:$2 sm:$0xff]
        %s7712 = scalar_lea.vmem [#allocation2], 192
        %v7713 = vld [vmem:[%s7712] ss:$2 sm:$0xff]
        %s7714 = scalar_lea.vmem [#allocation2], 208
        %v7715 = vld [vmem:[%s7714] ss:$2 sm:$0xff]
        %s7716 = scalar_lea.vmem [#allocation2], 224
        %v7717 = vld [vmem:[%s7716] ss:$2 sm:$0xff]
        %s7718 = scalar_lea.vmem [#allocation2], 240
        %v7719 = vld [vmem:[%s7718] ss:$2 sm:$0xff]
        %s7720 = scalar_lea.vmem [#allocation2], 1
        %v7721 = vld [vmem:[%s7720] ss:$2 sm:$0xff]
        %s7722 = scalar_lea.vmem [#allocation2], 17
        %v7723 = vld [vmem:[%s7722] ss:$2 sm:$0xff]
        %s7724 = scalar_lea.vmem [#allocation2], 33
        %v7725 = vld [vmem:[%s7724] ss:$2 sm:$0xff]
        %s7726 = scalar_lea.vmem [#allocation2], 49
        %v7727 = vld [vmem:[%s7726] ss:$2 sm:$0xff]
        %s7728 = scalar_lea.vmem [#allocation2], 65
        %v7729 = vld [vmem:[%s7728] ss:$2 sm:$0xff]
        %s7730 = scalar_lea.vmem [#allocation2], 81
        %v7731 = vld [vmem:[%s7730] ss:$2 sm:$0xff]
        %s7732 = scalar_lea.vmem [#allocation2], 97
        %v7733 = vld [vmem:[%s7732] ss:$2 sm:$0xff]
        %s7734 = scalar_lea.vmem [#allocation2], 113
        %v7735 = vld [vmem:[%s7734] ss:$2 sm:$0xff]
        %s7736 = scalar_lea.vmem [#allocation2], 129
        %v7737 = vld [vmem:[%s7736] ss:$2 sm:$0xff]
        %s7738 = scalar_lea.vmem [#allocation2], 145
        %v7739 = vld [vmem:[%s7738] ss:$2 sm:$0xff]
        %s7740 = scalar_lea.vmem [#allocation2], 161
        %v7741 = vld [vmem:[%s7740] ss:$2 sm:$0xff]
        %s7742 = scalar_lea.vmem [#allocation2], 177
        %v7743 = vld [vmem:[%s7742] ss:$2 sm:$0xff]
        %s7744 = scalar_lea.vmem [#allocation2], 193
        %v7745 = vld [vmem:[%s7744] ss:$2 sm:$0xff]
        %s7746 = scalar_lea.vmem [#allocation2], 209
        %v7747 = vld [vmem:[%s7746] ss:$2 sm:$0xff]
        %s7748 = scalar_lea.vmem [#allocation2], 225
        %v7749 = vld [vmem:[%s7748] ss:$2 sm:$0xff]
        %s7750 = scalar_lea.vmem [#allocation2], 241
        %v7751 = vld [vmem:[%s7750] ss:$2 sm:$0xff]
        %v7768 = vrot.slane %v7721, 7
        %v7769 = vrot.slane %v7723, 7
        %v7770 = vrot.slane %v7725, 7
        %v7771 = vrot.slane %v7727, 7
        %v7772 = vrot.slane %v7729, 7
        %v7773 = vrot.slane %v7731, 7
        %v7774 = vrot.slane %v7733, 7
        %v7775 = vrot.slane %v7735, 7
        %v7776 = vrot.slane %v7737, 7
        %v7777 = vrot.slane %v7739, 7
        %v7778 = vrot.slane %v7741, 7
        %v7779 = vrot.slane %v7743, 7
        %v7780 = vrot.slane %v7745, 7
        %v7781 = vrot.slane %v7747, 7
        %v7782 = vrot.slane %v7749, 7
        %v7783 = vrot.slane %v7751, 7
        %v7800 = vsel %vm1025, 0.0, %v7768
        %v7801 = vsel %vm1025, 0.0, %v7769
        %v7802 = vsel %vm1025, 0.0, %v7770
        %v7803 = vsel %vm1025, 0.0, %v7771
        %v7804 = vsel %vm1025, 0.0, %v7772
        %v7805 = vsel %vm1025, 0.0, %v7773
        %v7806 = vsel %vm1025, 0.0, %v7774
        %v7807 = vsel %vm1025, 0.0, %v7775
        %v7808 = vsel %vm1025, 0.0, %v7776
        %v7809 = vsel %vm1025, 0.0, %v7777
        %v7810 = vsel %vm1025, 0.0, %v7778
        %v7811 = vsel %vm1025, 0.0, %v7779
        %v7812 = vsel %vm1025, 0.0, %v7780
        %v7813 = vsel %vm1025, 0.0, %v7781
        %v7814 = vsel %vm1025, 0.0, %v7782
        %v7815 = vsel %vm1025, 0.0, %v7783
        %v7816 = vpack.c.bf16 %v7800, %v7800
        %v7817 = vpack.c.bf16 %v7801, %v7801
        %v7818 = vpack.c.bf16 %v7802, %v7802
        %v7819 = vpack.c.bf16 %v7803, %v7803
        %v7820 = vpack.c.bf16 %v7804, %v7804
        %v7821 = vpack.c.bf16 %v7805, %v7805
        %v7822 = vpack.c.bf16 %v7806, %v7806
        %v7823 = vpack.c.bf16 %v7807, %v7807
        %v7824 = vpack.c.bf16 %v7808, %v7808
        %v7825 = vpack.c.bf16 %v7809, %v7809
        %v7826 = vpack.c.bf16 %v7810, %v7810
        %v7827 = vpack.c.bf16 %v7811, %v7811
        %v7828 = vpack.c.bf16 %v7812, %v7812
        %v7829 = vpack.c.bf16 %v7813, %v7813
        %v7830 = vpack.c.bf16 %v7814, %v7814
        %v7831 = vpack.c.bf16 %v7815, %v7815
        %v7832 = vpack.c.bf16 %v7689, %v7689
        %v7833 = vpack.c.bf16 %v7691, %v7691
        %v7834 = vpack.c.bf16 %v7693, %v7693
        %v7835 = vpack.c.bf16 %v7695, %v7695
        %v7836 = vpack.c.bf16 %v7697, %v7697
        %v7837 = vpack.c.bf16 %v7699, %v7699
        %v7838 = vpack.c.bf16 %v7701, %v7701
        %v7839 = vpack.c.bf16 %v7703, %v7703
        %v7840 = vpack.c.bf16 %v7705, %v7705
        %v7841 = vpack.c.bf16 %v7707, %v7707
        %v7842 = vpack.c.bf16 %v7709, %v7709
        %v7843 = vpack.c.bf16 %v7711, %v7711
        %v7844 = vpack.c.bf16 %v7713, %v7713
        %v7845 = vpack.c.bf16 %v7715, %v7715
        %v7846 = vpack.c.bf16 %v7717, %v7717
        %v7847 = vpack.c.bf16 %v7719, %v7719
        %v7848 = vpack.c.bf16 %v7721, %v7721
        %v7849 = vpack.c.bf16 %v7723, %v7723
        %v7850 = vpack.c.bf16 %v7725, %v7725
        %v7851 = vpack.c.bf16 %v7727, %v7727
        %v7852 = vpack.c.bf16 %v7729, %v7729
        %v7853 = vpack.c.bf16 %v7731, %v7731
        %v7854 = vpack.c.bf16 %v7733, %v7733
        %v7855 = vpack.c.bf16 %v7735, %v7735
        %v7856 = vpack.c.bf16 %v7737, %v7737
        %v7857 = vpack.c.bf16 %v7739, %v7739
        %v7858 = vpack.c.bf16 %v7741, %v7741
        %v7859 = vpack.c.bf16 %v7743, %v7743
        %v7860 = vpack.c.bf16 %v7745, %v7745
        %v7861 = vpack.c.bf16 %v7747, %v7747
        %v7862 = vpack.c.bf16 %v7749, %v7749
        %v7863 = vpack.c.bf16 %v7751, %v7751
        %7871 = vrot.lane.b32.xlu0 %v7833, 64
        %v7872 = vpop.permute.xlu0 %7871
        %7873 = vrot.lane.b32.xlu0 %v7835, 64
        %v7874 = vpop.permute.xlu0 %7873
        %7875 = vrot.lane.b32.xlu0 %v7837, 64
        %v7876 = vpop.permute.xlu0 %7875
        %7877 = vrot.lane.b32.xlu0 %v7839, 64
        %v7878 = vpop.permute.xlu0 %7877
        %7879 = vrot.lane.b32.xlu0 %v7841, 64
        %v7880 = vpop.permute.xlu0 %7879
        %7881 = vrot.lane.b32.xlu0 %v7843, 64
        %v7882 = vpop.permute.xlu0 %7881
        %7883 = vrot.lane.b32.xlu0 %v7845, 64
        %v7884 = vpop.permute.xlu0 %7883
        %7893 = vrot.lane.b32.xlu0 %v7816, 64
        %v7894 = vpop.permute.xlu0 %7893
        %7895 = vrot.lane.b32.xlu0 %v7818, 64
        %v7896 = vpop.permute.xlu0 %7895
        %7897 = vrot.lane.b32.xlu0 %v7820, 64
        %v7898 = vpop.permute.xlu0 %7897
        %7899 = vrot.lane.b32.xlu0 %v7822, 64
        %v7900 = vpop.permute.xlu0 %7899
        %7901 = vrot.lane.b32.xlu0 %v7824, 64
        %v7902 = vpop.permute.xlu0 %7901
        %7903 = vrot.lane.b32.xlu0 %v7826, 64
        %v7904 = vpop.permute.xlu0 %7903
        %7905 = vrot.lane.b32.xlu0 %v7828, 64
        %v7906 = vpop.permute.xlu0 %7905
        %7907 = vrot.lane.b32.xlu0 %v7830, 64
        %v7908 = vpop.permute.xlu0 %7907
        %7917 = vrot.lane.b32.xlu0 %v7848, 64
        %v7918 = vpop.permute.xlu0 %7917
        %7919 = vrot.lane.b32.xlu0 %v7850, 64
        %v7920 = vpop.permute.xlu0 %7919
        %7921 = vrot.lane.b32.xlu0 %v7852, 64
        %v7922 = vpop.permute.xlu0 %7921
        %7923 = vrot.lane.b32.xlu0 %v7854, 64
        %v7924 = vpop.permute.xlu0 %7923
        %7925 = vrot.lane.b32.xlu0 %v7856, 64
        %v7926 = vpop.permute.xlu0 %7925
        %7927 = vrot.lane.b32.xlu0 %v7858, 64
        %v7928 = vpop.permute.xlu0 %7927
        %7929 = vrot.lane.b32.xlu0 %v7860, 64
        %v7930 = vpop.permute.xlu0 %7929
        %7931 = vrot.lane.b32.xlu0 %v7862, 64
        %v7932 = vpop.permute.xlu0 %7931
        %7934 = vrot.lane.b32.xlu0 %v7847, 64
        %v7935 = vpop.permute.xlu0 %7934
        %v7938 = vsel %vm1654, %v7817, %v7872
        %v7941 = vsel %vm1654, %v7819, %v7874
        %v7944 = vsel %vm1654, %v7821, %v7876
        %v7947 = vsel %vm1654, %v7823, %v7878
        %v7950 = vsel %vm1654, %v7825, %v7880
        %v7953 = vsel %vm1654, %v7827, %v7882
        %v7956 = vsel %vm1654, %v7829, %v7884
        %v7958 = vsel %vm1654, 0, %v7894
        %v7961 = vsel %vm1654, %v7849, %v7896
        %v7964 = vsel %vm1654, %v7851, %v7898
        %v7967 = vsel %vm1654, %v7853, %v7900
        %v7970 = vsel %vm1654, %v7855, %v7902
        %v7973 = vsel %vm1654, %v7857, %v7904
        %v7976 = vsel %vm1654, %v7859, %v7906
        %v7979 = vsel %vm1654, %v7861, %v7908
        %v7982 = vsel %vm1654, %v7832, %v7918
        %v7985 = vsel %vm1654, %v7834, %v7920
        %v7988 = vsel %vm1654, %v7836, %v7922
        %v7991 = vsel %vm1654, %v7838, %v7924
        %v7994 = vsel %vm1654, %v7840, %v7926
        %v7997 = vsel %vm1654, %v7842, %v7928
        %v8000 = vsel %vm1654, %v7844, %v7930
        %v8003 = vsel %vm1654, %v7846, %v7932
        %v8006 = vsel %vm1654, %v7831, %v7935
        %v8040 = vunpack.c.l.b16 %v1657
        %v8041 = vunpack.c.l.b16 %v7958
        %v8042 = vunpack.c.l.b16 %v7982
        %v8043 = vunpack.c.l.b16 %v7938
        %v8044 = vunpack.c.l.b16 %v7849
        %v8045 = vunpack.c.l.b16 %v7961
        %v8046 = vunpack.c.l.b16 %v7985
        %v8047 = vunpack.c.l.b16 %v7941
        %v8048 = vunpack.c.l.b16 %v7851
        %v8049 = vunpack.c.l.b16 %v7964
        %v8050 = vunpack.c.l.b16 %v7988
        %v8051 = vunpack.c.l.b16 %v7944
        %v8052 = vunpack.c.l.b16 %v7853
        %v8053 = vunpack.c.l.b16 %v7967
        %v8054 = vunpack.c.l.b16 %v7991
        %v8055 = vunpack.c.l.b16 %v7947
        %v8056 = vunpack.c.l.b16 %v7855
        %v8057 = vunpack.c.l.b16 %v7970
        %v8058 = vunpack.c.l.b16 %v7994
        %v8059 = vunpack.c.l.b16 %v7950
        %v8060 = vunpack.c.l.b16 %v7857
        %v8061 = vunpack.c.l.b16 %v7973
        %v8062 = vunpack.c.l.b16 %v7997
        %v8063 = vunpack.c.l.b16 %v7953
        %v8064 = vunpack.c.l.b16 %v7859
        %v8065 = vunpack.c.l.b16 %v7976
        %v8066 = vunpack.c.l.b16 %v8000
        %v8067 = vunpack.c.l.b16 %v7956
        %v8068 = vunpack.c.l.b16 %v7861
        %v8069 = vunpack.c.l.b16 %v7979
        %v8070 = vunpack.c.l.b16 %v8003
        %v8071 = vunpack.c.l.b16 %v8006
        %v8072 = vunpack.c.l.b16 %v7863
        %v8073 = vld [vmem:[%s11] sm:$0xf]
        %v8074 = vld [vmem:[%s11 + $0x4] sm:$0xf]
        %v8075 = vld [vmem:[%s11 + $0x8] sm:$0xf]
        %v8076 = vld [vmem:[%s11 + $0xc] sm:$0xf]
        %v8077 = vld [vmem:[%s11 + $0x10] sm:$0xf]
        %v8078 = vld [vmem:[%s11 + $0x14] sm:$0xf]
        %v8079 = vld [vmem:[%s11 + $0x18] sm:$0xf]
        %v8080 = vld [vmem:[%s11 + $0x1c] sm:$0xf]
        %v8081 = vld [vmem:[%s11 + $0x20] sm:$0xf]
        %v8082 = vld [vmem:[%s11 + $0x24] sm:$0xf]
        %v8083 = vld [vmem:[%s11 + $0x28] sm:$0xf]
        %v8084 = vld [vmem:[%s11 + $0x2c] sm:$0xf]
        %v8085 = vld [vmem:[%s11 + $0x30] sm:$0xf]
        %v8086 = vld [vmem:[%s11 + $0x34] sm:$0xf]
        %v8087 = vld [vmem:[%s11 + $0x38] sm:$0xf]
        %v8088 = vld [vmem:[%s11 + $0x3c] sm:$0xf]
        %v8089 = vld [vmem:[%s11 + $0x40] sm:$0xf]
        %v8090 = vld [vmem:[%s11 + $0x44] sm:$0xf]
        %v8091 = vld [vmem:[%s11 + $0x48] sm:$0xf]
        %v8092 = vld [vmem:[%s11 + $0x4c] sm:$0xf]
        %v8093 = vld [vmem:[%s11 + $0x50] sm:$0xf]
        %v8094 = vld [vmem:[%s11 + $0x54] sm:$0xf]
        %v8095 = vld [vmem:[%s11 + $0x58] sm:$0xf]
        %v8096 = vld [vmem:[%s11 + $0x5c] sm:$0xf]
        %v8097 = vld [vmem:[%s11 + $0x60] sm:$0xf]
        %v8098 = vld [vmem:[%s11 + $0x64] sm:$0xf]
        %v8099 = vld [vmem:[%s11 + $0x68] sm:$0xf]
        %v8100 = vld [vmem:[%s11 + $0x6c] sm:$0xf]
        %v8101 = vld [vmem:[%s11 + $0x70] sm:$0xf]
        %v8102 = vld [vmem:[%s11 + $0x74] sm:$0xf]
        %v8103 = vld [vmem:[%s11 + $0x78] sm:$0xf]
        %v8104 = vld [vmem:[%s11 + $0x7c] sm:$0xf]
        %v8105 = vld [vmem:[%s11 + $0x80] sm:$0xf]
        %v8106 = vld [vmem:[%s11 + $0x84] sm:$0xf]
        %v8107 = vld [vmem:[%s11 + $0x88] sm:$0xf]
        %v8108 = vld [vmem:[%s11 + $0x8c] sm:$0xf]
        %v8109 = vld [vmem:[%s11 + $0x90] sm:$0xf]
        %v8110 = vld [vmem:[%s11 + $0x94] sm:$0xf]
        %v8111 = vld [vmem:[%s11 + $0x98] sm:$0xf]
        %v8112 = vld [vmem:[%s11 + $0x9c] sm:$0xf]
        %v8113 = vld [vmem:[%s11 + $0xa0] sm:$0xf]
        %v8114 = vld [vmem:[%s11 + $0xa4] sm:$0xf]
        %v8115 = vld [vmem:[%s11 + $0xa8] sm:$0xf]
        %v8116 = vld [vmem:[%s11 + $0xac] sm:$0xf]
        %v8117 = vld [vmem:[%s11 + $0xb0] sm:$0xf]
        %v8118 = vld [vmem:[%s11 + $0xb4] sm:$0xf]
        %v8119 = vld [vmem:[%s11 + $0xb8] sm:$0xf]
        %v8120 = vld [vmem:[%s11 + $0xbc] sm:$0xf]
        %v8121 = vld [vmem:[%s11 + $0xc0] sm:$0xf]
        %v8122 = vld [vmem:[%s11 + $0xc4] sm:$0xf]
        %v8123 = vld [vmem:[%s11 + $0xc8] sm:$0xf]
        %v8124 = vld [vmem:[%s11 + $0xcc] sm:$0xf]
        %v8125 = vld [vmem:[%s11 + $0xd0] sm:$0xf]
        %v8126 = vld [vmem:[%s11 + $0xd4] sm:$0xf]
        %v8127 = vld [vmem:[%s11 + $0xd8] sm:$0xf]
        %v8128 = vld [vmem:[%s11 + $0xdc] sm:$0xf]
        %v8129 = vld [vmem:[%s11 + $0xe0] sm:$0xf]
        %v8130 = vld [vmem:[%s11 + $0xe4] sm:$0xf]
        %v8131 = vld [vmem:[%s11 + $0xe8] sm:$0xf]
        %v8132 = vld [vmem:[%s11 + $0xec] sm:$0xf]
        %v8133 = vld [vmem:[%s11 + $0xf0] sm:$0xf]
        %v8134 = vld [vmem:[%s11 + $0xf4] sm:$0xf]
        %v8135 = vld [vmem:[%s11 + $0xf8] sm:$0xf]
        %v8136 = vld [vmem:[%s11 + $0xfc] sm:$0xf]
        %v8137 = vld [vmem:[%s11 + $0x100] sm:$0xf]
        %v8138 = vld [vmem:[%s11 + $0x104] sm:$0xf]
        %v8139 = vld [vmem:[%s11 + $0x108] sm:$0xf]
        %v8140 = vld [vmem:[%s11 + $0x10c] sm:$0xf]
        %v8141 = vld [vmem:[%s11 + $0x110] sm:$0xf]
        %v8142 = vld [vmem:[%s11 + $0x114] sm:$0xf]
        %v8143 = vld [vmem:[%s11 + $0x118] sm:$0xf]
        %v8144 = vld [vmem:[%s11 + $0x11c] sm:$0xf]
        %v8145 = vld [vmem:[%s12] sm:$0x1]
        %v8147 = vperm.slane %v8145, 0
        %v8149 = vpack.c.b16 %v8043, %v8040
        %v8150 = vpack.c.b16 %v8045, %v8041
        %v8151 = vpack.c.b16 %v8046, %v8042
        %v8152 = vpack.c.b16 %v8047, %v8043
        %v8153 = vpack.c.b16 %v8048, %v8044
        %v8154 = vpack.c.b16 %v8051, %v8047
        %v8155 = vpack.c.b16 %v8053, %v8049
        %v8156 = vpack.c.b16 %v8054, %v8050
        %v8157 = vpack.c.b16 %v8055, %v8051
        %v8158 = vpack.c.b16 %v8056, %v8052
        %v8159 = vpack.c.b16 %v8059, %v8055
        %v8160 = vpack.c.b16 %v8061, %v8057
        %v8161 = vpack.c.b16 %v8062, %v8058
        %v8162 = vpack.c.b16 %v8063, %v8059
        %v8163 = vpack.c.b16 %v8064, %v8060
        %v8164 = vpack.c.b16 %v8067, %v8063
        %v8165 = vpack.c.b16 %v8069, %v8065
        %v8166 = vpack.c.b16 %v8070, %v8066
        %v8167 = vpack.c.b16 %v8071, %v8067
        %v8168 = vpack.c.b16 %v8072, %v8068
        %v8257 = vunpack.c.l.b16 %v8073
        %v8258 = vunpack.c.l.b16 %v8074
        %v8259 = vunpack.c.l.b16 %v8075
        %v8260 = vunpack.c.l.b16 %v8076
        %v8261 = vunpack.c.l.b16 %v8077
        %v8262 = vunpack.c.l.b16 %v8078
        %v8263 = vunpack.c.l.b16 %v8079
        %v8264 = vunpack.c.l.b16 %v8080
        %v8265 = vunpack.c.l.b16 %v8081
        %v8266 = vunpack.c.l.b16 %v8082
        %v8267 = vunpack.c.l.b16 %v8083
        %v8268 = vunpack.c.l.b16 %v8084
        %v8269 = vunpack.c.l.b16 %v8085
        %v8270 = vunpack.c.l.b16 %v8086
        %v8271 = vunpack.c.l.b16 %v8087
        %v8272 = vunpack.c.l.b16 %v8088
        %v8273 = vunpack.c.l.b16 %v8089
        %v8274 = vunpack.c.l.b16 %v8090
        %v8275 = vunpack.c.l.b16 %v8091
        %v8276 = vunpack.c.l.b16 %v8092
        %v8277 = vunpack.c.l.b16 %v8093
        %v8278 = vunpack.c.l.b16 %v8094
        %v8279 = vunpack.c.l.b16 %v8095
        %v8280 = vunpack.c.l.b16 %v8096
        %v8281 = vunpack.c.l.b16 %v8097
        %v8282 = vunpack.c.l.b16 %v8098
        %v8283 = vunpack.c.l.b16 %v8099
        %v8284 = vunpack.c.l.b16 %v8100
        %v8285 = vunpack.c.l.b16 %v8101
        %v8286 = vunpack.c.l.b16 %v8102
        %v8287 = vunpack.c.l.b16 %v8103
        %v8288 = vunpack.c.l.b16 %v8104
        %v8289 = vunpack.c.l.b16 %v8105
        %v8290 = vunpack.c.l.b16 %v8106
        %v8291 = vunpack.c.l.b16 %v8107
        %v8292 = vunpack.c.l.b16 %v8108
        %v8293 = vunpack.c.l.b16 %v8109
        %v8294 = vunpack.c.l.b16 %v8110
        %v8295 = vunpack.c.l.b16 %v8111
        %v8296 = vunpack.c.l.b16 %v8112
        %v8297 = vunpack.c.l.b16 %v8113
        %v8298 = vunpack.c.l.b16 %v8114
        %v8299 = vunpack.c.l.b16 %v8115
        %v8300 = vunpack.c.l.b16 %v8116
        %v8301 = vunpack.c.l.b16 %v8117
        %v8302 = vunpack.c.l.b16 %v8118
        %v8303 = vunpack.c.l.b16 %v8119
        %v8304 = vunpack.c.l.b16 %v8120
        %v8305 = vunpack.c.l.b16 %v8121
        %v8306 = vunpack.c.l.b16 %v8122
        %v8307 = vunpack.c.l.b16 %v8123
        %v8308 = vunpack.c.l.b16 %v8124
        %v8309 = vunpack.c.l.b16 %v8125
        %v8310 = vunpack.c.l.b16 %v8126
        %v8311 = vunpack.c.l.b16 %v8127
        %v8312 = vunpack.c.l.b16 %v8128
        %v8313 = vunpack.c.l.b16 %v8129
        %v8314 = vunpack.c.l.b16 %v8130
        %v8315 = vunpack.c.l.b16 %v8131
        %v8316 = vunpack.c.l.b16 %v8132
        %v8317 = vunpack.c.l.b16 %v8133
        %v8318 = vunpack.c.l.b16 %v8134
        %v8319 = vunpack.c.l.b16 %v8135
        %v8320 = vunpack.c.l.b16 %v8136
        %v8321 = vunpack.c.l.b16 %v8137
        %v8322 = vunpack.c.l.b16 %v8138
        %v8323 = vunpack.c.l.b16 %v8139
        %v8324 = vunpack.c.l.b16 %v8140
        %v8325 = vunpack.c.l.b16 %v8141
        %v8326 = vunpack.c.l.b16 %v8142
        %v8327 = vunpack.c.l.b16 %v8143
        %v8328 = vunpack.c.l.b16 %v8144
        %v8329 = vpack.c.b16 %v8258, %v8257
        %v8330 = vpack.c.b16 %v8260, %v8259
        %v8331 = vpack.c.b16 %v8262, %v8261
        %v8332 = vpack.c.b16 %v8264, %v8263
        %v8333 = vpack.c.b16 %v8266, %v8265
        %v8334 = vpack.c.b16 %v8268, %v8267
        %v8335 = vpack.c.b16 %v8270, %v8269
        %v8336 = vpack.c.b16 %v8272, %v8271
        %v8337 = vpack.c.b16 %v8274, %v8273
        %v8338 = vpack.c.b16 %v8276, %v8275
        %v8339 = vpack.c.b16 %v8278, %v8277
        %v8340 = vpack.c.b16 %v8280, %v8279
        %v8341 = vpack.c.b16 %v8282, %v8281
        %v8342 = vpack.c.b16 %v8284, %v8283
        %v8343 = vpack.c.b16 %v8286, %v8285
        %v8344 = vpack.c.b16 %v8288, %v8287
        %v8345 = vpack.c.b16 %v8290, %v8289
        %v8346 = vpack.c.b16 %v8292, %v8291
        %v8347 = vpack.c.b16 %v8294, %v8293
        %v8348 = vpack.c.b16 %v8296, %v8295
        %v8349 = vpack.c.b16 %v8298, %v8297
        %v8350 = vpack.c.b16 %v8300, %v8299
        %v8351 = vpack.c.b16 %v8302, %v8301
        %v8352 = vpack.c.b16 %v8304, %v8303
        %v8353 = vpack.c.b16 %v8306, %v8305
        %v8354 = vpack.c.b16 %v8308, %v8307
        %v8355 = vpack.c.b16 %v8310, %v8309
        %v8356 = vpack.c.b16 %v8312, %v8311
        %v8357 = vpack.c.b16 %v8314, %v8313
        %v8358 = vpack.c.b16 %v8316, %v8315
        %v8359 = vpack.c.b16 %v8318, %v8317
        %v8360 = vpack.c.b16 %v8320, %v8319
        %v8361 = vpack.c.b16 %v8322, %v8321
        %v8362 = vpack.c.b16 %v8324, %v8323
        %v8363 = vpack.c.b16 %v8326, %v8325
        %v8364 = vpack.c.b16 %v8328, %v8327
        %v8402 = vsel %vm1654, %v8153, 0
        %v8405 = vsel %vm1654, %v8158, 0
        %v8408 = vsel %vm1654, %v8163, 0
        %v8411 = vsel %vm1654, %v8168, 0
        %8413 = vmatpush.bf16.msra.mxu0 %v8336
        %8414 = vmatpush.bf16.msra.mxu0 %v8335
        %8415 = vmatpush.bf16.msra.mxu0 %v8334
        %8416 = vmatpush.bf16.msra.mxu0 %v8333
        %8417 = vmatpush.bf16.msra.mxu0 %v8332
        %8418 = vmatpush.bf16.msra.mxu0 %v8331
        %8419 = vmatpush.bf16.msra.mxu0 %v8330
        %8420 = vmatpush.bf16.msra.mxu0 %v8329
        %8421 = vmatmul.bf16.gmra.mxu0 %v8149
        %v8422 = vpop.f32.mrf.mxu0
        %v8423 = vadd.f32 %v8147, %v8422
        %v8424 = vpop.f32.mrf.mxu0
        %v8425 = vadd.f32 %v8147, %v8424
        %8426 = vmatmul.bf16.gmra.mxu0 %v8154
        %v8427 = vpop.f32.mrf.mxu0
        %v8428 = vadd.f32 %v8147, %v8427
        %v8429 = vpop.f32.mrf.mxu0
        %v8430 = vadd.f32 %v8147, %v8429
        %8431 = vmatmul.bf16.gmra.mxu0 %v8159
        %v8432 = vpop.f32.mrf.mxu0
        %v8433 = vadd.f32 %v8147, %v8432
        %v8434 = vpop.f32.mrf.mxu0
        %v8435 = vadd.f32 %v8147, %v8434
        %8436 = vmatmul.bf16.gmra.mxu0 %v8164
        %v8437 = vpop.f32.mrf.mxu0
        %v8438 = vadd.f32 %v8147, %v8437
        %v8439 = vpop.f32.mrf.mxu0
        %v8440 = vadd.f32 %v8147, %v8439
        %8441 = vdwg.mxu0
        %8442 = vmatpush.bf16.msra.mxu0 %v8344
        %8443 = vmatpush.bf16.msra.mxu0 %v8343
        %8444 = vmatpush.bf16.msra.mxu0 %v8342
        %8445 = vmatpush.bf16.msra.mxu0 %v8341
        %8446 = vmatpush.bf16.msra.mxu0 %v8340
        %8447 = vmatpush.bf16.msra.mxu0 %v8339
        %8448 = vmatpush.bf16.msra.mxu0 %v8338
        %8449 = vmatpush.bf16.msra.mxu0 %v8337
        %8450 = vmatmul.bf16.gmra.mxu0 %v8150
        %v8451 = vpop.f32.mrf.mxu0
        %v8452 = vadd.f32 %v8423, %v8451
        %v8453 = vpop.f32.mrf.mxu0
        %v8454 = vadd.f32 %v8425, %v8453
        %8455 = vmatmul.bf16.gmra.mxu0 %v8155
        %v8456 = vpop.f32.mrf.mxu0
        %v8457 = vadd.f32 %v8428, %v8456
        %v8458 = vpop.f32.mrf.mxu0
        %v8459 = vadd.f32 %v8430, %v8458
        %8460 = vmatmul.bf16.gmra.mxu0 %v8160
        %v8461 = vpop.f32.mrf.mxu0
        %v8462 = vadd.f32 %v8433, %v8461
        %v8463 = vpop.f32.mrf.mxu0
        %v8464 = vadd.f32 %v8435, %v8463
        %8465 = vmatmul.bf16.gmra.mxu0 %v8165
        %v8466 = vpop.f32.mrf.mxu0
        %v8467 = vadd.f32 %v8438, %v8466
        %v8468 = vpop.f32.mrf.mxu0
        %v8469 = vadd.f32 %v8440, %v8468
        %8470 = vdwg.mxu0
        %8471 = vmatpush.bf16.msra.mxu0 %v8352
        %8472 = vmatpush.bf16.msra.mxu0 %v8351
        %8473 = vmatpush.bf16.msra.mxu0 %v8350
        %8474 = vmatpush.bf16.msra.mxu0 %v8349
        %8475 = vmatpush.bf16.msra.mxu0 %v8348
        %8476 = vmatpush.bf16.msra.mxu0 %v8347
        %8477 = vmatpush.bf16.msra.mxu0 %v8346
        %8478 = vmatpush.bf16.msra.mxu0 %v8345
        %8479 = vmatmul.bf16.gmra.mxu0 %v8151
        %v8480 = vpop.f32.mrf.mxu0
        %v8481 = vadd.f32 %v8452, %v8480
        %v8482 = vpop.f32.mrf.mxu0
        %v8483 = vadd.f32 %v8454, %v8482
        %8484 = vmatmul.bf16.gmra.mxu0 %v8156
        %v8485 = vpop.f32.mrf.mxu0
        %v8486 = vadd.f32 %v8457, %v8485
        %v8487 = vpop.f32.mrf.mxu0
        %v8488 = vadd.f32 %v8459, %v8487
        %8489 = vmatmul.bf16.gmra.mxu0 %v8161
        %v8490 = vpop.f32.mrf.mxu0
        %v8491 = vadd.f32 %v8462, %v8490
        %v8492 = vpop.f32.mrf.mxu0
        %v8493 = vadd.f32 %v8464, %v8492
        %8494 = vmatmul.bf16.gmra.mxu0 %v8166
        %v8495 = vpop.f32.mrf.mxu0
        %v8496 = vadd.f32 %v8467, %v8495
        %v8497 = vpop.f32.mrf.mxu0
        %v8498 = vadd.f32 %v8469, %v8497
        %8499 = vdwg.mxu0
        %8500 = vmatpush.bf16.msra.mxu0 %v8360
        %8501 = vmatpush.bf16.msra.mxu0 %v8359
        %8502 = vmatpush.bf16.msra.mxu0 %v8358
        %8503 = vmatpush.bf16.msra.mxu0 %v8357
        %8504 = vmatpush.bf16.msra.mxu0 %v8356
        %8505 = vmatpush.bf16.msra.mxu0 %v8355
        %8506 = vmatpush.bf16.msra.mxu0 %v8354
        %8507 = vmatpush.bf16.msra.mxu0 %v8353
        %8508 = vmatmul.bf16.gmra.mxu0 %v8152
        %v8509 = vpop.f32.mrf.mxu0
        %v8510 = vadd.f32 %v8481, %v8509
        %v8511 = vpop.f32.mrf.mxu0
        %v8512 = vadd.f32 %v8483, %v8511
        %8513 = vmatmul.bf16.gmra.mxu0 %v8157
        %v8514 = vpop.f32.mrf.mxu0
        %v8515 = vadd.f32 %v8486, %v8514
        %v8516 = vpop.f32.mrf.mxu0
        %v8517 = vadd.f32 %v8488, %v8516
        %8518 = vmatmul.bf16.gmra.mxu0 %v8162
        %v8519 = vpop.f32.mrf.mxu0
        %v8520 = vadd.f32 %v8491, %v8519
        %v8521 = vpop.f32.mrf.mxu0
        %v8522 = vadd.f32 %v8493, %v8521
        %8523 = vmatmul.bf16.gmra.mxu0 %v8167
        %v8524 = vpop.f32.mrf.mxu0
        %v8525 = vadd.f32 %v8496, %v8524
        %v8526 = vpop.f32.mrf.mxu0
        %v8527 = vadd.f32 %v8498, %v8526
        %8528 = vdwg.mxu0
        %8529 = vmatpush.bf16.msra.mxu0 0
        %8530 = vmatpush.bf16.msra.mxu0 0
        %8531 = vmatpush.bf16.msra.mxu0 0
        %8532 = vmatpush.bf16.msra.mxu0 0
        %8533 = vmatpush.bf16.msra.mxu0 %v8364
        %8534 = vmatpush.bf16.msra.mxu0 %v8363
        %8535 = vmatpush.bf16.msra.mxu0 %v8362
        %8536 = vmatpush.bf16.msra.mxu0 %v8361
        %8537 = vmatmul.bf16.gmra.mxu0 %v8402
        %v8538 = vpop.f32.mrf.mxu0
        %v8539 = vadd.f32 %v8510, %v8538
        %v8540 = vpop.f32.mrf.mxu0
        %v8541 = vadd.f32 %v8512, %v8540
        %8542 = vmatmul.bf16.gmra.mxu0 %v8405
        %v8543 = vpop.f32.mrf.mxu0
        %v8544 = vadd.f32 %v8515, %v8543
        %v8545 = vpop.f32.mrf.mxu0
        %v8546 = vadd.f32 %v8517, %v8545
        %8547 = vmatmul.bf16.gmra.mxu0 %v8408
        %v8548 = vpop.f32.mrf.mxu0
        %v8549 = vadd.f32 %v8520, %v8548
        %v8550 = vpop.f32.mrf.mxu0
        %v8551 = vadd.f32 %v8522, %v8550
        %8552 = vmatmul.bf16.gmra.mxu0 %v8411
        %v8553 = vpop.f32.mrf.mxu0
        %v8554 = vadd.f32 %v8525, %v8553
        %v8555 = vpop.f32.mrf.mxu0
        %v8556 = vadd.f32 %v8527, %v8555
        %8557 = vdwg.mxu0
        %v8558 = vmax.f32 %v8539, 0.0
        %v8559 = vmax.f32 %v8541, 0.0
        %v8560 = vmax.f32 %v8544, 0.0
        %v8561 = vmax.f32 %v8546, 0.0
        %v8562 = vmax.f32 %v8549, 0.0
        %v8563 = vmax.f32 %v8551, 0.0
        %v8564 = vmax.f32 %v8554, 0.0
        %v8565 = vmax.f32 %v8556, 0.0
        %v8574 = vrot.slane %v8558, 7
        %v8575 = vrot.slane %v8559, 7
        %v8576 = vrot.slane %v8560, 7
        %v8577 = vrot.slane %v8561, 7
        %v8578 = vrot.slane %v8562, 7
        %v8579 = vrot.slane %v8563, 7
        %v8580 = vrot.slane %v8564, 7
        %v8581 = vrot.slane %v8565, 7
        %v8590 = vsel %vm1025, 0.0, %v8574
        %v8591 = vsel %vm1025, 0.0, %v8575
        %v8592 = vsel %vm1025, 0.0, %v8576
        %v8593 = vsel %vm1025, 0.0, %v8577
        %v8594 = vsel %vm1025, 0.0, %v8578
        %v8595 = vsel %vm1025, 0.0, %v8579
        %v8596 = vsel %vm1025, 0.0, %v8580
        %v8597 = vsel %vm1025, 0.0, %v8581
        %v8598 = vrot.slane %v8558, 1
        %v8599 = vrot.slane %v8559, 1
        %v8600 = vrot.slane %v8560, 1
        %v8601 = vrot.slane %v8561, 1
        %v8602 = vrot.slane %v8562, 1
        %v8603 = vrot.slane %v8563, 1
        %v8604 = vrot.slane %v8564, 1
        %v8605 = vrot.slane %v8565, 1
        %v8614 = vsel %vm1122, %v8598, 0.0
        %v8615 = vsel %vm1122, %v8599, 0.0
        %v8616 = vsel %vm1122, %v8600, 0.0
        %v8617 = vsel %vm1122, %v8601, 0.0
        %v8618 = vsel %vm1122, %v8602, 0.0
        %v8619 = vsel %vm1122, %v8603, 0.0
        %v8620 = vsel %vm1122, %v8604, 0.0
        %v8621 = vsel %vm1122, %v8605, 0.0
        %v8622 = vpack.c.bf16 %v8590, %v8590
        %v8623 = vpack.c.bf16 %v8591, %v8591
        %v8624 = vpack.c.bf16 %v8592, %v8592
        %v8625 = vpack.c.bf16 %v8593, %v8593
        %v8626 = vpack.c.bf16 %v8594, %v8594
        %v8627 = vpack.c.bf16 %v8595, %v8595
        %v8628 = vpack.c.bf16 %v8596, %v8596
        %v8629 = vpack.c.bf16 %v8597, %v8597
        %v8630 = vpack.c.bf16 %v8558, %v8558
        %v8631 = vpack.c.bf16 %v8559, %v8559
        %v8632 = vpack.c.bf16 %v8560, %v8560
        %v8633 = vpack.c.bf16 %v8561, %v8561
        %v8634 = vpack.c.bf16 %v8562, %v8562
        %v8635 = vpack.c.bf16 %v8563, %v8563
        %v8636 = vpack.c.bf16 %v8564, %v8564
        %v8637 = vpack.c.bf16 %v8565, %v8565
        %v8638 = vpack.c.bf16 %v8614, %v8614
        %v8639 = vpack.c.bf16 %v8615, %v8615
        %v8640 = vpack.c.bf16 %v8616, %v8616
        %v8641 = vpack.c.bf16 %v8617, %v8617
        %v8642 = vpack.c.bf16 %v8618, %v8618
        %v8643 = vpack.c.bf16 %v8619, %v8619
        %v8644 = vpack.c.bf16 %v8620, %v8620
        %v8645 = vpack.c.bf16 %v8621, %v8621
        %v8670 = vunpack.c.l.b16 0
        %v8671 = vunpack.c.l.b16 %v8622
        %v8672 = vunpack.c.l.b16 %v8630
        %v8673 = vunpack.c.l.b16 %v8638
        %v8674 = vunpack.c.l.b16 %v8623
        %v8675 = vunpack.c.l.b16 %v8631
        %v8676 = vunpack.c.l.b16 %v8639
        %v8677 = vunpack.c.l.b16 %v8624
        %v8678 = vunpack.c.l.b16 %v8632
        %v8679 = vunpack.c.l.b16 %v8640
        %v8680 = vunpack.c.l.b16 %v8625
        %v8681 = vunpack.c.l.b16 %v8633
        %v8682 = vunpack.c.l.b16 %v8641
        %v8683 = vunpack.c.l.b16 %v8626
        %v8684 = vunpack.c.l.b16 %v8634
        %v8685 = vunpack.c.l.b16 %v8642
        %v8686 = vunpack.c.l.b16 %v8627
        %v8687 = vunpack.c.l.b16 %v8635
        %v8688 = vunpack.c.l.b16 %v8643
        %v8689 = vunpack.c.l.b16 %v8628
        %v8690 = vunpack.c.l.b16 %v8636
        %v8691 = vunpack.c.l.b16 %v8644
        %v8692 = vunpack.c.l.b16 %v8629
        %v8693 = vunpack.c.l.b16 %v8637
        %v8694 = vunpack.c.l.b16 %v8645
        %v8695 = vpack.c.b16 %v8671, %v8670
        %v8696 = vpack.c.b16 %v8672, %v8670
        %v8697 = vpack.c.b16 %v8673, %v8670
        %v8698 = vpack.c.b16 %v8674, %v8671
        %v8699 = vpack.c.b16 %v8675, %v8672
        %v8700 = vpack.c.b16 %v8676, %v8673
        %v8701 = vpack.c.b16 %v8677, %v8674
        %v8702 = vpack.c.b16 %v8678, %v8675
        %v8703 = vpack.c.b16 %v8679, %v8676
        %v8704 = vpack.c.b16 %v8680, %v8677
        %v8705 = vpack.c.b16 %v8681, %v8678
        %v8706 = vpack.c.b16 %v8682, %v8679
        %v8707 = vpack.c.b16 %v8683, %v8680
        %v8708 = vpack.c.b16 %v8684, %v8681
        %v8709 = vpack.c.b16 %v8685, %v8682
        %v8710 = vpack.c.b16 %v8686, %v8683
        %v8711 = vpack.c.b16 %v8687, %v8684
        %v8712 = vpack.c.b16 %v8688, %v8685
        %v8713 = vpack.c.b16 %v8689, %v8686
        %v8714 = vpack.c.b16 %v8690, %v8687
        %v8715 = vpack.c.b16 %v8691, %v8688
        %v8716 = vpack.c.b16 %v8692, %v8689
        %v8717 = vpack.c.b16 %v8693, %v8690
        %v8718 = vpack.c.b16 %v8694, %v8691
        %v8719 = vpack.c.b16 %v8670, %v8692
        %v8720 = vpack.c.b16 %v8670, %v8693
        %v8721 = vpack.c.b16 %v8670, %v8694
        %v8757 = vunpack.c.l.b16 %v7832
        %v8758 = vunpack.c.l.b16 %v7834
        %v8759 = vunpack.c.l.b16 %v7836
        %v8760 = vunpack.c.l.b16 %v7838
        %v8761 = vunpack.c.l.b16 %v7840
        %v8762 = vunpack.c.l.b16 %v7842
        %v8763 = vunpack.c.l.b16 %v7844
        %v8764 = vunpack.c.l.b16 %v7846
        %v8765 = vpack.c.b16 %v8758, %v8757
        %v8766 = vpack.c.b16 %v8760, %v8759
        %v8767 = vpack.c.b16 %v8762, %v8761
        %v8768 = vpack.c.b16 %v8764, %v8763
        %v8769 = vld [vmem:[%s13] sm:$0xf]
        %v8770 = vld [vmem:[%s13 + $0x4] sm:$0xf]
        %v8771 = vld [vmem:[%s13 + $0x8] sm:$0xf]
        %v8772 = vld [vmem:[%s13 + $0xc] sm:$0xf]
        %v8773 = vld [vmem:[%s13 + $0x10] sm:$0xf]
        %v8774 = vld [vmem:[%s13 + $0x14] sm:$0xf]
        %v8775 = vld [vmem:[%s13 + $0x18] sm:$0xf]
        %v8776 = vld [vmem:[%s13 + $0x1c] sm:$0xf]
        %v8777 = vld [vmem:[%s13 + $0x20] sm:$0xf]
        %v8778 = vld [vmem:[%s13 + $0x24] sm:$0xf]
        %v8779 = vld [vmem:[%s13 + $0x28] sm:$0xf]
        %v8780 = vld [vmem:[%s13 + $0x2c] sm:$0xf]
        %v8781 = vld [vmem:[%s13 + $0x30] sm:$0xf]
        %v8782 = vld [vmem:[%s13 + $0x34] sm:$0xf]
        %v8783 = vld [vmem:[%s13 + $0x38] sm:$0xf]
        %v8784 = vld [vmem:[%s13 + $0x3c] sm:$0xf]
        %v8785 = vld [vmem:[%s13 + $0x40] sm:$0xf]
        %v8786 = vld [vmem:[%s13 + $0x44] sm:$0xf]
        %v8787 = vld [vmem:[%s13 + $0x48] sm:$0xf]
        %v8788 = vld [vmem:[%s13 + $0x4c] sm:$0xf]
        %v8789 = vld [vmem:[%s13 + $0x50] sm:$0xf]
        %v8790 = vld [vmem:[%s13 + $0x54] sm:$0xf]
        %v8791 = vld [vmem:[%s13 + $0x58] sm:$0xf]
        %v8792 = vld [vmem:[%s13 + $0x5c] sm:$0xf]
        %v8793 = vld [vmem:[%s13 + $0x60] sm:$0xf]
        %v8794 = vld [vmem:[%s13 + $0x64] sm:$0xf]
        %v8795 = vld [vmem:[%s13 + $0x68] sm:$0xf]
        %v8796 = vld [vmem:[%s13 + $0x6c] sm:$0xf]
        %v8797 = vld [vmem:[%s13 + $0x70] sm:$0xf]
        %v8798 = vld [vmem:[%s13 + $0x74] sm:$0xf]
        %v8799 = vld [vmem:[%s13 + $0x78] sm:$0xf]
        %v8800 = vld [vmem:[%s13 + $0x7c] sm:$0xf]
        %v8801 = vld [vmem:[%s13 + $0x80] sm:$0xf]
        %v8802 = vld [vmem:[%s13 + $0x84] sm:$0xf]
        %v8803 = vld [vmem:[%s13 + $0x88] sm:$0xf]
        %v8804 = vld [vmem:[%s13 + $0x8c] sm:$0xf]
        %v8805 = vld [vmem:[%s13 + $0x90] sm:$0xf]
        %v8806 = vld [vmem:[%s13 + $0x94] sm:$0xf]
        %v8807 = vld [vmem:[%s13 + $0x98] sm:$0xf]
        %v8808 = vld [vmem:[%s13 + $0x9c] sm:$0xf]
        %v8809 = vld [vmem:[%s13 + $0xa0] sm:$0xf]
        %v8810 = vld [vmem:[%s13 + $0xa4] sm:$0xf]
        %v8811 = vld [vmem:[%s13 + $0xa8] sm:$0xf]
        %v8812 = vld [vmem:[%s13 + $0xac] sm:$0xf]
        %v8813 = vld [vmem:[%s13 + $0xb0] sm:$0xf]
        %v8814 = vld [vmem:[%s13 + $0xb4] sm:$0xf]
        %v8815 = vld [vmem:[%s13 + $0xb8] sm:$0xf]
        %v8816 = vld [vmem:[%s13 + $0xbc] sm:$0xf]
        %v8817 = vld [vmem:[%s13 + $0xc0] sm:$0xf]
        %v8818 = vld [vmem:[%s13 + $0xc4] sm:$0xf]
        %v8819 = vld [vmem:[%s13 + $0xc8] sm:$0xf]
        %v8820 = vld [vmem:[%s13 + $0xcc] sm:$0xf]
        %v8821 = vld [vmem:[%s13 + $0xd0] sm:$0xf]
        %v8822 = vld [vmem:[%s13 + $0xd4] sm:$0xf]
        %v8823 = vld [vmem:[%s13 + $0xd8] sm:$0xf]
        %v8824 = vld [vmem:[%s13 + $0xdc] sm:$0xf]
        %v8825 = vld [vmem:[%s13 + $0xe0] sm:$0xf]
        %v8826 = vld [vmem:[%s13 + $0xe4] sm:$0xf]
        %v8827 = vld [vmem:[%s13 + $0xe8] sm:$0xf]
        %v8828 = vld [vmem:[%s13 + $0xec] sm:$0xf]
        %v8829 = vld [vmem:[%s13 + $0xf0] sm:$0xf]
        %v8830 = vld [vmem:[%s13 + $0xf4] sm:$0xf]
        %v8831 = vld [vmem:[%s13 + $0xf8] sm:$0xf]
        %v8832 = vld [vmem:[%s13 + $0xfc] sm:$0xf]
        %v8833 = vld [vmem:[%s13 + $0x100] sm:$0xf]
        %v8834 = vld [vmem:[%s13 + $0x104] sm:$0xf]
        %v8835 = vld [vmem:[%s13 + $0x108] sm:$0xf]
        %v8836 = vld [vmem:[%s13 + $0x10c] sm:$0xf]
        %v8837 = vld [vmem:[%s13 + $0x110] sm:$0xf]
        %v8838 = vld [vmem:[%s13 + $0x114] sm:$0xf]
        %v8839 = vld [vmem:[%s13 + $0x118] sm:$0xf]
        %v8840 = vld [vmem:[%s13 + $0x11c] sm:$0xf]
        %v8841 = vld [vmem:[%s13 + $0x120] sm:$0xf]
        %v8842 = vld [vmem:[%s13 + $0x124] sm:$0xf]
        %v8843 = vld [vmem:[%s13 + $0x128] sm:$0xf]
        %v8844 = vld [vmem:[%s13 + $0x12c] sm:$0xf]
        %v8845 = vld [vmem:[%s13 + $0x130] sm:$0xf]
        %v8846 = vld [vmem:[%s13 + $0x134] sm:$0xf]
        %v8847 = vld [vmem:[%s13 + $0x138] sm:$0xf]
        %v8848 = vld [vmem:[%s13 + $0x13c] sm:$0xf]
        %v8849 = vld [vmem:[%s13 + $0x140] sm:$0xf]
        %v8850 = vld [vmem:[%s13 + $0x144] sm:$0xf]
        %v8851 = vld [vmem:[%s13 + $0x148] sm:$0xf]
        %v8852 = vld [vmem:[%s13 + $0x14c] sm:$0xf]
        %v8853 = vld [vmem:[%s13 + $0x150] sm:$0xf]
        %v8854 = vld [vmem:[%s13 + $0x154] sm:$0xf]
        %v8855 = vld [vmem:[%s13 + $0x158] sm:$0xf]
        %v8856 = vld [vmem:[%s13 + $0x15c] sm:$0xf]
        %v8857 = vld [vmem:[%s13 + $0x160] sm:$0xf]
        %v8858 = vld [vmem:[%s13 + $0x164] sm:$0xf]
        %v8859 = vld [vmem:[%s13 + $0x168] sm:$0xf]
        %v8860 = vld [vmem:[%s13 + $0x16c] sm:$0xf]
        %v8861 = vld [vmem:[%s13 + $0x170] sm:$0xf]
        %v8862 = vld [vmem:[%s13 + $0x174] sm:$0xf]
        %v8863 = vld [vmem:[%s13 + $0x178] sm:$0xf]
        %v8864 = vld [vmem:[%s13 + $0x17c] sm:$0xf]
        %v8865 = vld [vmem:[%s13 + $0x180] sm:$0xf]
        %v8866 = vld [vmem:[%s13 + $0x184] sm:$0xf]
        %v8867 = vld [vmem:[%s13 + $0x188] sm:$0xf]
        %v8868 = vld [vmem:[%s13 + $0x18c] sm:$0xf]
        %v8869 = vld [vmem:[%s13 + $0x190] sm:$0xf]
        %v8870 = vld [vmem:[%s13 + $0x194] sm:$0xf]
        %v8871 = vld [vmem:[%s13 + $0x198] sm:$0xf]
        %v8872 = vld [vmem:[%s13 + $0x19c] sm:$0xf]
        %v8873 = vld [vmem:[%s13 + $0x1a0] sm:$0xf]
        %v8874 = vld [vmem:[%s13 + $0x1a4] sm:$0xf]
        %v8875 = vld [vmem:[%s13 + $0x1a8] sm:$0xf]
        %v8876 = vld [vmem:[%s13 + $0x1ac] sm:$0xf]
        %v8877 = vld [vmem:[%s13 + $0x1b0] sm:$0xf]
        %v8878 = vld [vmem:[%s13 + $0x1b4] sm:$0xf]
        %v8879 = vld [vmem:[%s13 + $0x1b8] sm:$0xf]
        %v8880 = vld [vmem:[%s13 + $0x1bc] sm:$0xf]
        %v8881 = vld [vmem:[%s13 + $0x1c0] sm:$0xf]
        %v8882 = vld [vmem:[%s13 + $0x1c4] sm:$0xf]
        %v8883 = vld [vmem:[%s13 + $0x1c8] sm:$0xf]
        %v8884 = vld [vmem:[%s13 + $0x1cc] sm:$0xf]
        %v8885 = vld [vmem:[%s13 + $0x1d0] sm:$0xf]
        %v8886 = vld [vmem:[%s13 + $0x1d4] sm:$0xf]
        %v8887 = vld [vmem:[%s13 + $0x1d8] sm:$0xf]
        %v8888 = vld [vmem:[%s13 + $0x1dc] sm:$0xf]
        %v8889 = vld [vmem:[%s13 + $0x1e0] sm:$0xf]
        %v8890 = vld [vmem:[%s13 + $0x1e4] sm:$0xf]
        %v8891 = vld [vmem:[%s13 + $0x1e8] sm:$0xf]
        %v8892 = vld [vmem:[%s13 + $0x1ec] sm:$0xf]
        %v8893 = vld [vmem:[%s13 + $0x1f0] sm:$0xf]
        %v8894 = vld [vmem:[%s13 + $0x1f4] sm:$0xf]
        %v8895 = vld [vmem:[%s13 + $0x1f8] sm:$0xf]
        %v8896 = vld [vmem:[%s13 + $0x1fc] sm:$0xf]
        %v8897 = vld [vmem:[%s13 + $0x200] sm:$0xf]
        %v8898 = vld [vmem:[%s13 + $0x204] sm:$0xf]
        %v8899 = vld [vmem:[%s13 + $0x208] sm:$0xf]
        %v8900 = vld [vmem:[%s13 + $0x20c] sm:$0xf]
        %v8901 = vld [vmem:[%s13 + $0x210] sm:$0xf]
        %v8902 = vld [vmem:[%s13 + $0x214] sm:$0xf]
        %v8903 = vld [vmem:[%s13 + $0x218] sm:$0xf]
        %v8904 = vld [vmem:[%s13 + $0x21c] sm:$0xf]
        %v8905 = vld [vmem:[%s13 + $0x220] sm:$0xf]
        %v8906 = vld [vmem:[%s13 + $0x224] sm:$0xf]
        %v8907 = vld [vmem:[%s13 + $0x228] sm:$0xf]
        %v8908 = vld [vmem:[%s13 + $0x22c] sm:$0xf]
        %v8909 = vld [vmem:[%s13 + $0x230] sm:$0xf]
        %v8910 = vld [vmem:[%s13 + $0x234] sm:$0xf]
        %v8911 = vld [vmem:[%s13 + $0x238] sm:$0xf]
        %v8912 = vld [vmem:[%s13 + $0x23c] sm:$0xf]
        %v8913 = vld [vmem:[%s13 + $0x240] sm:$0xf]
        %v8914 = vld [vmem:[%s13 + $0x244] sm:$0xf]
        %v8915 = vld [vmem:[%s13 + $0x248] sm:$0xf]
        %v8916 = vld [vmem:[%s13 + $0x24c] sm:$0xf]
        %v8917 = vld [vmem:[%s13 + $0x250] sm:$0xf]
        %v8918 = vld [vmem:[%s13 + $0x254] sm:$0xf]
        %v8919 = vld [vmem:[%s13 + $0x258] sm:$0xf]
        %v8920 = vld [vmem:[%s13 + $0x25c] sm:$0xf]
        %v8921 = vld [vmem:[%s14] sm:$0x1]
        %v8923 = vperm.slane %v8921, 0
        %v9077 = vunpack.c.l.b16 %v8769
        %v9078 = vunpack.c.l.b16 %v8770
        %v9079 = vunpack.c.l.b16 %v8771
        %v9080 = vunpack.c.l.b16 %v8772
        %v9081 = vunpack.c.l.b16 %v8773
        %v9082 = vunpack.c.l.b16 %v8774
        %v9083 = vunpack.c.l.b16 %v8775
        %v9084 = vunpack.c.l.b16 %v8776
        %v9085 = vunpack.c.l.b16 %v8777
        %v9086 = vunpack.c.l.b16 %v8778
        %v9087 = vunpack.c.l.b16 %v8779
        %v9088 = vunpack.c.l.b16 %v8780
        %v9089 = vunpack.c.l.b16 %v8781
        %v9090 = vunpack.c.l.b16 %v8782
        %v9091 = vunpack.c.l.b16 %v8783
        %v9092 = vunpack.c.l.b16 %v8784
        %v9093 = vunpack.c.l.b16 %v8785
        %v9094 = vunpack.c.l.b16 %v8786
        %v9095 = vunpack.c.l.b16 %v8787
        %v9096 = vunpack.c.l.b16 %v8788
        %v9097 = vunpack.c.l.b16 %v8789
        %v9098 = vunpack.c.l.b16 %v8790
        %v9099 = vunpack.c.l.b16 %v8791
        %v9100 = vunpack.c.l.b16 %v8792
        %v9101 = vunpack.c.l.b16 %v8793
        %v9102 = vunpack.c.l.b16 %v8794
        %v9103 = vunpack.c.l.b16 %v8795
        %v9104 = vunpack.c.l.b16 %v8796
        %v9105 = vunpack.c.l.b16 %v8797
        %v9106 = vunpack.c.l.b16 %v8798
        %v9107 = vunpack.c.l.b16 %v8799
        %v9108 = vunpack.c.l.b16 %v8800
        %v9109 = vunpack.c.l.b16 %v8801
        %v9110 = vunpack.c.l.b16 %v8802
        %v9111 = vunpack.c.l.b16 %v8803
        %v9112 = vunpack.c.l.b16 %v8804
        %v9113 = vunpack.c.l.b16 %v8805
        %v9114 = vunpack.c.l.b16 %v8806
        %v9115 = vunpack.c.l.b16 %v8807
        %v9116 = vunpack.c.l.b16 %v8808
        %v9117 = vunpack.c.l.b16 %v8809
        %v9118 = vunpack.c.l.b16 %v8810
        %v9119 = vunpack.c.l.b16 %v8811
        %v9120 = vunpack.c.l.b16 %v8812
        %v9121 = vunpack.c.l.b16 %v8813
        %v9122 = vunpack.c.l.b16 %v8814
        %v9123 = vunpack.c.l.b16 %v8815
        %v9124 = vunpack.c.l.b16 %v8816
        %v9125 = vunpack.c.l.b16 %v8817
        %v9126 = vunpack.c.l.b16 %v8818
        %v9127 = vunpack.c.l.b16 %v8819
        %v9128 = vunpack.c.l.b16 %v8820
        %v9129 = vunpack.c.l.b16 %v8821
        %v9130 = vunpack.c.l.b16 %v8822
        %v9131 = vunpack.c.l.b16 %v8823
        %v9132 = vunpack.c.l.b16 %v8824
        %v9133 = vunpack.c.l.b16 %v8825
        %v9134 = vunpack.c.l.b16 %v8826
        %v9135 = vunpack.c.l.b16 %v8827
        %v9136 = vunpack.c.l.b16 %v8828
        %v9137 = vunpack.c.l.b16 %v8829
        %v9138 = vunpack.c.l.b16 %v8830
        %v9139 = vunpack.c.l.b16 %v8831
        %v9140 = vunpack.c.l.b16 %v8832
        %v9141 = vunpack.c.l.b16 %v8833
        %v9142 = vunpack.c.l.b16 %v8834
        %v9143 = vunpack.c.l.b16 %v8835
        %v9144 = vunpack.c.l.b16 %v8836
        %v9145 = vunpack.c.l.b16 %v8837
        %v9146 = vunpack.c.l.b16 %v8838
        %v9147 = vunpack.c.l.b16 %v8839
        %v9148 = vunpack.c.l.b16 %v8840
        %v9149 = vunpack.c.l.b16 %v8841
        %v9150 = vunpack.c.l.b16 %v8842
        %v9151 = vunpack.c.l.b16 %v8843
        %v9152 = vunpack.c.l.b16 %v8844
        %v9153 = vunpack.c.l.b16 %v8845
        %v9154 = vunpack.c.l.b16 %v8846
        %v9155 = vunpack.c.l.b16 %v8847
        %v9156 = vunpack.c.l.b16 %v8848
        %v9157 = vunpack.c.l.b16 %v8849
        %v9158 = vunpack.c.l.b16 %v8850
        %v9159 = vunpack.c.l.b16 %v8851
        %v9160 = vunpack.c.l.b16 %v8852
        %v9161 = vunpack.c.l.b16 %v8853
        %v9162 = vunpack.c.l.b16 %v8854
        %v9163 = vunpack.c.l.b16 %v8855
        %v9164 = vunpack.c.l.b16 %v8856
        %v9165 = vunpack.c.l.b16 %v8857
        %v9166 = vunpack.c.l.b16 %v8858
        %v9167 = vunpack.c.l.b16 %v8859
        %v9168 = vunpack.c.l.b16 %v8860
        %v9169 = vunpack.c.l.b16 %v8861
        %v9170 = vunpack.c.l.b16 %v8862
        %v9171 = vunpack.c.l.b16 %v8863
        %v9172 = vunpack.c.l.b16 %v8864
        %v9173 = vunpack.c.l.b16 %v8865
        %v9174 = vunpack.c.l.b16 %v8866
        %v9175 = vunpack.c.l.b16 %v8867
        %v9176 = vunpack.c.l.b16 %v8868
        %v9177 = vunpack.c.l.b16 %v8869
        %v9178 = vunpack.c.l.b16 %v8870
        %v9179 = vunpack.c.l.b16 %v8871
        %v9180 = vunpack.c.l.b16 %v8872
        %v9181 = vunpack.c.l.b16 %v8873
        %v9182 = vunpack.c.l.b16 %v8874
        %v9183 = vunpack.c.l.b16 %v8875
        %v9184 = vunpack.c.l.b16 %v8876
        %v9185 = vunpack.c.l.b16 %v8877
        %v9186 = vunpack.c.l.b16 %v8878
        %v9187 = vunpack.c.l.b16 %v8879
        %v9188 = vunpack.c.l.b16 %v8880
        %v9189 = vunpack.c.l.b16 %v8881
        %v9190 = vunpack.c.l.b16 %v8882
        %v9191 = vunpack.c.l.b16 %v8883
        %v9192 = vunpack.c.l.b16 %v8884
        %v9193 = vunpack.c.l.b16 %v8885
        %v9194 = vunpack.c.l.b16 %v8886
        %v9195 = vunpack.c.l.b16 %v8887
        %v9196 = vunpack.c.l.b16 %v8888
        %v9197 = vunpack.c.l.b16 %v8889
        %v9198 = vunpack.c.l.b16 %v8890
        %v9199 = vunpack.c.l.b16 %v8891
        %v9200 = vunpack.c.l.b16 %v8892
        %v9201 = vunpack.c.l.b16 %v8893
        %v9202 = vunpack.c.l.b16 %v8894
        %v9203 = vunpack.c.l.b16 %v8895
        %v9204 = vunpack.c.l.b16 %v8896
        %v9205 = vunpack.c.l.b16 %v8897
        %v9206 = vunpack.c.l.b16 %v8898
        %v9207 = vunpack.c.l.b16 %v8899
        %v9208 = vunpack.c.l.b16 %v8900
        %v9209 = vunpack.c.l.b16 %v8901
        %v9210 = vunpack.c.l.b16 %v8902
        %v9211 = vunpack.c.l.b16 %v8903
        %v9212 = vunpack.c.l.b16 %v8904
        %v9213 = vunpack.c.l.b16 %v8905
        %v9214 = vunpack.c.l.b16 %v8906
        %v9215 = vunpack.c.l.b16 %v8907
        %v9216 = vunpack.c.l.b16 %v8908
        %v9217 = vunpack.c.l.b16 %v8909
        %v9218 = vunpack.c.l.b16 %v8910
        %v9219 = vunpack.c.l.b16 %v8911
        %v9220 = vunpack.c.l.b16 %v8912
        %v9221 = vunpack.c.l.b16 %v8913
        %v9222 = vunpack.c.l.b16 %v8914
        %v9223 = vunpack.c.l.b16 %v8915
        %v9224 = vunpack.c.l.b16 %v8916
        %v9225 = vunpack.c.l.b16 %v8917
        %v9226 = vunpack.c.l.b16 %v8918
        %v9227 = vunpack.c.l.b16 %v8919
        %v9228 = vunpack.c.l.b16 %v8920
        %v9229 = vpack.c.b16 %v9078, %v9077
        %v9230 = vpack.c.b16 %v9080, %v9079
        %v9231 = vpack.c.b16 %v9082, %v9081
        %v9232 = vpack.c.b16 %v9084, %v9083
        %v9233 = vpack.c.b16 %v9086, %v9085
        %v9234 = vpack.c.b16 %v9088, %v9087
        %v9235 = vpack.c.b16 %v9090, %v9089
        %v9236 = vpack.c.b16 %v9092, %v9091
        %v9237 = vpack.c.b16 %v9094, %v9093
        %v9238 = vpack.c.b16 %v9096, %v9095
        %v9239 = vpack.c.b16 %v9098, %v9097
        %v9240 = vpack.c.b16 %v9100, %v9099
        %v9241 = vpack.c.b16 %v9102, %v9101
        %v9242 = vpack.c.b16 %v9104, %v9103
        %v9243 = vpack.c.b16 %v9106, %v9105
        %v9244 = vpack.c.b16 %v9108, %v9107
        %v9245 = vpack.c.b16 %v9110, %v9109
        %v9246 = vpack.c.b16 %v9112, %v9111
        %v9247 = vpack.c.b16 %v9114, %v9113
        %v9248 = vpack.c.b16 %v9116, %v9115
        %v9249 = vpack.c.b16 %v9118, %v9117
        %v9250 = vpack.c.b16 %v9120, %v9119
        %v9251 = vpack.c.b16 %v9122, %v9121
        %v9252 = vpack.c.b16 %v9124, %v9123
        %v9253 = vpack.c.b16 %v9126, %v9125
        %v9254 = vpack.c.b16 %v9128, %v9127
        %v9255 = vpack.c.b16 %v9130, %v9129
        %v9256 = vpack.c.b16 %v9132, %v9131
        %v9257 = vpack.c.b16 %v9134, %v9133
        %v9258 = vpack.c.b16 %v9136, %v9135
        %v9259 = vpack.c.b16 %v9138, %v9137
        %v9260 = vpack.c.b16 %v9140, %v9139
        %v9261 = vpack.c.b16 %v9142, %v9141
        %v9262 = vpack.c.b16 %v9144, %v9143
        %v9263 = vpack.c.b16 %v9146, %v9145
        %v9264 = vpack.c.b16 %v9148, %v9147
        %v9265 = vpack.c.b16 %v9150, %v9149
        %v9266 = vpack.c.b16 %v9152, %v9151
        %v9267 = vpack.c.b16 %v9154, %v9153
        %v9268 = vpack.c.b16 %v9156, %v9155
        %v9269 = vpack.c.b16 %v9158, %v9157
        %v9270 = vpack.c.b16 %v9160, %v9159
        %v9271 = vpack.c.b16 %v9162, %v9161
        %v9272 = vpack.c.b16 %v9164, %v9163
        %v9273 = vpack.c.b16 %v9166, %v9165
        %v9274 = vpack.c.b16 %v9168, %v9167
        %v9275 = vpack.c.b16 %v9170, %v9169
        %v9276 = vpack.c.b16 %v9172, %v9171
        %v9277 = vpack.c.b16 %v9174, %v9173
        %v9278 = vpack.c.b16 %v9176, %v9175
        %v9279 = vpack.c.b16 %v9178, %v9177
        %v9280 = vpack.c.b16 %v9180, %v9179
        %v9281 = vpack.c.b16 %v9182, %v9181
        %v9282 = vpack.c.b16 %v9184, %v9183
        %v9283 = vpack.c.b16 %v9186, %v9185
        %v9284 = vpack.c.b16 %v9188, %v9187
        %v9285 = vpack.c.b16 %v9190, %v9189
        %v9286 = vpack.c.b16 %v9192, %v9191
        %v9287 = vpack.c.b16 %v9194, %v9193
        %v9288 = vpack.c.b16 %v9196, %v9195
        %v9289 = vpack.c.b16 %v9198, %v9197
        %v9290 = vpack.c.b16 %v9200, %v9199
        %v9291 = vpack.c.b16 %v9202, %v9201
        %v9292 = vpack.c.b16 %v9204, %v9203
        %v9293 = vpack.c.b16 %v9206, %v9205
        %v9294 = vpack.c.b16 %v9208, %v9207
        %v9295 = vpack.c.b16 %v9210, %v9209
        %v9296 = vpack.c.b16 %v9212, %v9211
        %v9297 = vpack.c.b16 %v9214, %v9213
        %v9298 = vpack.c.b16 %v9216, %v9215
        %v9299 = vpack.c.b16 %v9218, %v9217
        %v9300 = vpack.c.b16 %v9220, %v9219
        %v9301 = vpack.c.b16 %v9222, %v9221
        %v9302 = vpack.c.b16 %v9224, %v9223
        %v9303 = vpack.c.b16 %v9226, %v9225
        %v9304 = vpack.c.b16 %v9228, %v9227
        %v9382 = vsel %vm1654, %v8765, 0
        %v9385 = vsel %vm1654, %v8766, 0
        %v9388 = vsel %vm1654, %v8767, 0
        %v9391 = vsel %vm1654, %v8768, 0
        %9393 = vmatpush.bf16.msra.mxu0 %v9236
        %9394 = vmatpush.bf16.msra.mxu0 %v9235
        %9395 = vmatpush.bf16.msra.mxu0 %v9234
        %9396 = vmatpush.bf16.msra.mxu0 %v9233
        %9397 = vmatpush.bf16.msra.mxu0 %v9232
        %9398 = vmatpush.bf16.msra.mxu0 %v9231
        %9399 = vmatpush.bf16.msra.mxu0 %v9230
        %9400 = vmatpush.bf16.msra.mxu0 %v9229
        %9401 = vmatmul.bf16.gmra.mxu0 %v8695
        %v9402 = vpop.f32.mrf.mxu0
        %v9403 = vadd.f32 %v8923, %v9402
        %v9404 = vpop.f32.mrf.mxu0
        %v9405 = vadd.f32 %v8923, %v9404
        %9406 = vmatmul.bf16.gmra.mxu0 %v8701
        %v9407 = vpop.f32.mrf.mxu0
        %v9408 = vadd.f32 %v8923, %v9407
        %v9409 = vpop.f32.mrf.mxu0
        %v9410 = vadd.f32 %v8923, %v9409
        %9411 = vmatmul.bf16.gmra.mxu0 %v8707
        %v9412 = vpop.f32.mrf.mxu0
        %v9413 = vadd.f32 %v8923, %v9412
        %v9414 = vpop.f32.mrf.mxu0
        %v9415 = vadd.f32 %v8923, %v9414
        %9416 = vmatmul.bf16.gmra.mxu0 %v8713
        %v9417 = vpop.f32.mrf.mxu0
        %v9418 = vadd.f32 %v8923, %v9417
        %v9419 = vpop.f32.mrf.mxu0
        %v9420 = vadd.f32 %v8923, %v9419
        %9421 = vdwg.mxu0
        %9422 = vmatpush.bf16.msra.mxu0 %v9244
        %9423 = vmatpush.bf16.msra.mxu0 %v9243
        %9424 = vmatpush.bf16.msra.mxu0 %v9242
        %9425 = vmatpush.bf16.msra.mxu0 %v9241
        %9426 = vmatpush.bf16.msra.mxu0 %v9240
        %9427 = vmatpush.bf16.msra.mxu0 %v9239
        %9428 = vmatpush.bf16.msra.mxu0 %v9238
        %9429 = vmatpush.bf16.msra.mxu0 %v9237
        %9430 = vmatmul.bf16.gmra.mxu0 %v8696
        %v9431 = vpop.f32.mrf.mxu0
        %v9432 = vadd.f32 %v9403, %v9431
        %v9433 = vpop.f32.mrf.mxu0
        %v9434 = vadd.f32 %v9405, %v9433
        %9435 = vmatmul.bf16.gmra.mxu0 %v8702
        %v9436 = vpop.f32.mrf.mxu0
        %v9437 = vadd.f32 %v9408, %v9436
        %v9438 = vpop.f32.mrf.mxu0
        %v9439 = vadd.f32 %v9410, %v9438
        %9440 = vmatmul.bf16.gmra.mxu0 %v8708
        %v9441 = vpop.f32.mrf.mxu0
        %v9442 = vadd.f32 %v9413, %v9441
        %v9443 = vpop.f32.mrf.mxu0
        %v9444 = vadd.f32 %v9415, %v9443
        %9445 = vmatmul.bf16.gmra.mxu0 %v8714
        %v9446 = vpop.f32.mrf.mxu0
        %v9447 = vadd.f32 %v9418, %v9446
        %v9448 = vpop.f32.mrf.mxu0
        %v9449 = vadd.f32 %v9420, %v9448
        %9450 = vdwg.mxu0
        %9451 = vmatpush.bf16.msra.mxu0 %v9252
        %9452 = vmatpush.bf16.msra.mxu0 %v9251
        %9453 = vmatpush.bf16.msra.mxu0 %v9250
        %9454 = vmatpush.bf16.msra.mxu0 %v9249
        %9455 = vmatpush.bf16.msra.mxu0 %v9248
        %9456 = vmatpush.bf16.msra.mxu0 %v9247
        %9457 = vmatpush.bf16.msra.mxu0 %v9246
        %9458 = vmatpush.bf16.msra.mxu0 %v9245
        %9459 = vmatmul.bf16.gmra.mxu0 %v8697
        %v9460 = vpop.f32.mrf.mxu0
        %v9461 = vadd.f32 %v9432, %v9460
        %v9462 = vpop.f32.mrf.mxu0
        %v9463 = vadd.f32 %v9434, %v9462
        %9464 = vmatmul.bf16.gmra.mxu0 %v8703
        %v9465 = vpop.f32.mrf.mxu0
        %v9466 = vadd.f32 %v9437, %v9465
        %v9467 = vpop.f32.mrf.mxu0
        %v9468 = vadd.f32 %v9439, %v9467
        %9469 = vmatmul.bf16.gmra.mxu0 %v8709
        %v9470 = vpop.f32.mrf.mxu0
        %v9471 = vadd.f32 %v9442, %v9470
        %v9472 = vpop.f32.mrf.mxu0
        %v9473 = vadd.f32 %v9444, %v9472
        %9474 = vmatmul.bf16.gmra.mxu0 %v8715
        %v9475 = vpop.f32.mrf.mxu0
        %v9476 = vadd.f32 %v9447, %v9475
        %v9477 = vpop.f32.mrf.mxu0
        %v9478 = vadd.f32 %v9449, %v9477
        %9479 = vdwg.mxu0
        %9480 = vmatpush.bf16.msra.mxu0 %v9260
        %9481 = vmatpush.bf16.msra.mxu0 %v9259
        %9482 = vmatpush.bf16.msra.mxu0 %v9258
        %9483 = vmatpush.bf16.msra.mxu0 %v9257
        %9484 = vmatpush.bf16.msra.mxu0 %v9256
        %9485 = vmatpush.bf16.msra.mxu0 %v9255
        %9486 = vmatpush.bf16.msra.mxu0 %v9254
        %9487 = vmatpush.bf16.msra.mxu0 %v9253
        %9488 = vmatmul.bf16.gmra.mxu0 %v8698
        %v9489 = vpop.f32.mrf.mxu0
        %v9490 = vadd.f32 %v9461, %v9489
        %v9491 = vpop.f32.mrf.mxu0
        %v9492 = vadd.f32 %v9463, %v9491
        %9493 = vmatmul.bf16.gmra.mxu0 %v8704
        %v9494 = vpop.f32.mrf.mxu0
        %v9495 = vadd.f32 %v9466, %v9494
        %v9496 = vpop.f32.mrf.mxu0
        %v9497 = vadd.f32 %v9468, %v9496
        %9498 = vmatmul.bf16.gmra.mxu0 %v8710
        %v9499 = vpop.f32.mrf.mxu0
        %v9500 = vadd.f32 %v9471, %v9499
        %v9501 = vpop.f32.mrf.mxu0
        %v9502 = vadd.f32 %v9473, %v9501
        %9503 = vmatmul.bf16.gmra.mxu0 %v8716
        %v9504 = vpop.f32.mrf.mxu0
        %v9505 = vadd.f32 %v9476, %v9504
        %v9506 = vpop.f32.mrf.mxu0
        %v9507 = vadd.f32 %v9478, %v9506
        %9508 = vdwg.mxu0
        %9509 = vmatpush.bf16.msra.mxu0 %v9268
        %9510 = vmatpush.bf16.msra.mxu0 %v9267
        %9511 = vmatpush.bf16.msra.mxu0 %v9266
        %9512 = vmatpush.bf16.msra.mxu0 %v9265
        %9513 = vmatpush.bf16.msra.mxu0 %v9264
        %9514 = vmatpush.bf16.msra.mxu0 %v9263
        %9515 = vmatpush.bf16.msra.mxu0 %v9262
        %9516 = vmatpush.bf16.msra.mxu0 %v9261
        %9517 = vmatmul.bf16.gmra.mxu0 %v8699
        %v9518 = vpop.f32.mrf.mxu0
        %v9519 = vadd.f32 %v9490, %v9518
        %v9520 = vpop.f32.mrf.mxu0
        %v9521 = vadd.f32 %v9492, %v9520
        %9522 = vmatmul.bf16.gmra.mxu0 %v8705
        %v9523 = vpop.f32.mrf.mxu0
        %v9524 = vadd.f32 %v9495, %v9523
        %v9525 = vpop.f32.mrf.mxu0
        %v9526 = vadd.f32 %v9497, %v9525
        %9527 = vmatmul.bf16.gmra.mxu0 %v8711
        %v9528 = vpop.f32.mrf.mxu0
        %v9529 = vadd.f32 %v9500, %v9528
        %v9530 = vpop.f32.mrf.mxu0
        %v9531 = vadd.f32 %v9502, %v9530
        %9532 = vmatmul.bf16.gmra.mxu0 %v8717
        %v9533 = vpop.f32.mrf.mxu0
        %v9534 = vadd.f32 %v9505, %v9533
        %v9535 = vpop.f32.mrf.mxu0
        %v9536 = vadd.f32 %v9507, %v9535
        %9537 = vdwg.mxu0
        %9538 = vmatpush.bf16.msra.mxu0 %v9276
        %9539 = vmatpush.bf16.msra.mxu0 %v9275
        %9540 = vmatpush.bf16.msra.mxu0 %v9274
        %9541 = vmatpush.bf16.msra.mxu0 %v9273
        %9542 = vmatpush.bf16.msra.mxu0 %v9272
        %9543 = vmatpush.bf16.msra.mxu0 %v9271
        %9544 = vmatpush.bf16.msra.mxu0 %v9270
        %9545 = vmatpush.bf16.msra.mxu0 %v9269
        %9546 = vmatmul.bf16.gmra.mxu0 %v8700
        %v9547 = vpop.f32.mrf.mxu0
        %v9548 = vadd.f32 %v9519, %v9547
        %v9549 = vpop.f32.mrf.mxu0
        %v9550 = vadd.f32 %v9521, %v9549
        %9551 = vmatmul.bf16.gmra.mxu0 %v8706
        %v9552 = vpop.f32.mrf.mxu0
        %v9553 = vadd.f32 %v9524, %v9552
        %v9554 = vpop.f32.mrf.mxu0
        %v9555 = vadd.f32 %v9526, %v9554
        %9556 = vmatmul.bf16.gmra.mxu0 %v8712
        %v9557 = vpop.f32.mrf.mxu0
        %v9558 = vadd.f32 %v9529, %v9557
        %v9559 = vpop.f32.mrf.mxu0
        %v9560 = vadd.f32 %v9531, %v9559
        %9561 = vmatmul.bf16.gmra.mxu0 %v8718
        %v9562 = vpop.f32.mrf.mxu0
        %v9563 = vadd.f32 %v9534, %v9562
        %v9564 = vpop.f32.mrf.mxu0
        %v9565 = vadd.f32 %v9536, %v9564
        %9566 = vdwg.mxu0
        %9567 = vmatpush.bf16.msra.mxu0 %v9284
        %9568 = vmatpush.bf16.msra.mxu0 %v9283
        %9569 = vmatpush.bf16.msra.mxu0 %v9282
        %9570 = vmatpush.bf16.msra.mxu0 %v9281
        %9571 = vmatpush.bf16.msra.mxu0 %v9280
        %9572 = vmatpush.bf16.msra.mxu0 %v9279
        %9573 = vmatpush.bf16.msra.mxu0 %v9278
        %9574 = vmatpush.bf16.msra.mxu0 %v9277
        %9575 = vmatmul.bf16.gmra.mxu0 %v8701
        %v9576 = vpop.f32.mrf.mxu0
        %v9577 = vadd.f32 %v9548, %v9576
        %v9578 = vpop.f32.mrf.mxu0
        %v9579 = vadd.f32 %v9550, %v9578
        %9580 = vmatmul.bf16.gmra.mxu0 %v8707
        %v9581 = vpop.f32.mrf.mxu0
        %v9582 = vadd.f32 %v9553, %v9581
        %v9583 = vpop.f32.mrf.mxu0
        %v9584 = vadd.f32 %v9555, %v9583
        %9585 = vmatmul.bf16.gmra.mxu0 %v8713
        %v9586 = vpop.f32.mrf.mxu0
        %v9587 = vadd.f32 %v9558, %v9586
        %v9588 = vpop.f32.mrf.mxu0
        %v9589 = vadd.f32 %v9560, %v9588
        %9590 = vmatmul.bf16.gmra.mxu0 %v8719
        %v9591 = vpop.f32.mrf.mxu0
        %v9592 = vadd.f32 %v9563, %v9591
        %v9593 = vpop.f32.mrf.mxu0
        %v9594 = vadd.f32 %v9565, %v9593
        %9595 = vdwg.mxu0
        %9596 = vmatpush.bf16.msra.mxu0 %v9292
        %9597 = vmatpush.bf16.msra.mxu0 %v9291
        %9598 = vmatpush.bf16.msra.mxu0 %v9290
        %9599 = vmatpush.bf16.msra.mxu0 %v9289
        %9600 = vmatpush.bf16.msra.mxu0 %v9288
        %9601 = vmatpush.bf16.msra.mxu0 %v9287
        %9602 = vmatpush.bf16.msra.mxu0 %v9286
        %9603 = vmatpush.bf16.msra.mxu0 %v9285
        %9604 = vmatmul.bf16.gmra.mxu0 %v8702
        %v9605 = vpop.f32.mrf.mxu0
        %v9606 = vadd.f32 %v9577, %v9605
        %v9607 = vpop.f32.mrf.mxu0
        %v9608 = vadd.f32 %v9579, %v9607
        %9609 = vmatmul.bf16.gmra.mxu0 %v8708
        %v9610 = vpop.f32.mrf.mxu0
        %v9611 = vadd.f32 %v9582, %v9610
        %v9612 = vpop.f32.mrf.mxu0
        %v9613 = vadd.f32 %v9584, %v9612
        %9614 = vmatmul.bf16.gmra.mxu0 %v8714
        %v9615 = vpop.f32.mrf.mxu0
        %v9616 = vadd.f32 %v9587, %v9615
        %v9617 = vpop.f32.mrf.mxu0
        %v9618 = vadd.f32 %v9589, %v9617
        %9619 = vmatmul.bf16.gmra.mxu0 %v8720
        %v9620 = vpop.f32.mrf.mxu0
        %v9621 = vadd.f32 %v9592, %v9620
        %v9622 = vpop.f32.mrf.mxu0
        %v9623 = vadd.f32 %v9594, %v9622
        %9624 = vdwg.mxu0
        %9625 = vmatpush.bf16.msra.mxu0 %v9300
        %9626 = vmatpush.bf16.msra.mxu0 %v9299
        %9627 = vmatpush.bf16.msra.mxu0 %v9298
        %9628 = vmatpush.bf16.msra.mxu0 %v9297
        %9629 = vmatpush.bf16.msra.mxu0 %v9296
        %9630 = vmatpush.bf16.msra.mxu0 %v9295
        %9631 = vmatpush.bf16.msra.mxu0 %v9294
        %9632 = vmatpush.bf16.msra.mxu0 %v9293
        %9633 = vmatmul.bf16.gmra.mxu0 %v8703
        %v9634 = vpop.f32.mrf.mxu0
        %v9635 = vadd.f32 %v9606, %v9634
        %v9636 = vpop.f32.mrf.mxu0
        %v9637 = vadd.f32 %v9608, %v9636
        %9638 = vmatmul.bf16.gmra.mxu0 %v8709
        %v9639 = vpop.f32.mrf.mxu0
        %v9640 = vadd.f32 %v9611, %v9639
        %v9641 = vpop.f32.mrf.mxu0
        %v9642 = vadd.f32 %v9613, %v9641
        %9643 = vmatmul.bf16.gmra.mxu0 %v8715
        %v9644 = vpop.f32.mrf.mxu0
        %v9645 = vadd.f32 %v9616, %v9644
        %v9646 = vpop.f32.mrf.mxu0
        %v9647 = vadd.f32 %v9618, %v9646
        %9648 = vmatmul.bf16.gmra.mxu0 %v8721
        %v9649 = vpop.f32.mrf.mxu0
        %v9650 = vadd.f32 %v9621, %v9649
        %v9651 = vpop.f32.mrf.mxu0
        %v9652 = vadd.f32 %v9623, %v9651
        %9653 = vdwg.mxu0
        %9654 = vmatpush.bf16.msra.mxu0 0
        %9655 = vmatpush.bf16.msra.mxu0 0
        %9656 = vmatpush.bf16.msra.mxu0 0
        %9657 = vmatpush.bf16.msra.mxu0 0
        %9658 = vmatpush.bf16.msra.mxu0 %v9304
        %9659 = vmatpush.bf16.msra.mxu0 %v9303
        %9660 = vmatpush.bf16.msra.mxu0 %v9302
        %9661 = vmatpush.bf16.msra.mxu0 %v9301
        %9662 = vmatmul.bf16.gmra.mxu0 %v9382
        %v9663 = vpop.f32.mrf.mxu0
        %v9664 = vadd.f32 %v9635, %v9663
        %v9665 = vpop.f32.mrf.mxu0
        %v9666 = vadd.f32 %v9637, %v9665
        %9667 = vmatmul.bf16.gmra.mxu0 %v9385
        %v9668 = vpop.f32.mrf.mxu0
        %v9669 = vadd.f32 %v9640, %v9668
        %v9670 = vpop.f32.mrf.mxu0
        %v9671 = vadd.f32 %v9642, %v9670
        %9672 = vmatmul.bf16.gmra.mxu0 %v9388
        %v9673 = vpop.f32.mrf.mxu0
        %v9674 = vadd.f32 %v9645, %v9673
        %v9675 = vpop.f32.mrf.mxu0
        %v9676 = vadd.f32 %v9647, %v9675
        %9677 = vmatmul.bf16.gmra.mxu0 %v9391
        %v9678 = vpop.f32.mrf.mxu0
        %v9679 = vadd.f32 %v9650, %v9678
        %v9680 = vpop.f32.mrf.mxu0
        %v9681 = vadd.f32 %v9652, %v9680
        %9682 = vdwg.mxu0
        %v9683 = vmax.f32 %v9664, 0.0
        %v9684 = vmax.f32 %v9666, 0.0
        %v9685 = vmax.f32 %v9669, 0.0
        %v9686 = vmax.f32 %v9671, 0.0
        %v9687 = vmax.f32 %v9674, 0.0
        %v9688 = vmax.f32 %v9676, 0.0
        %v9689 = vmax.f32 %v9679, 0.0
        %v9690 = vmax.f32 %v9681, 0.0
        %v9699 = vrot.slane %v9683, 7
        %v9700 = vrot.slane %v9684, 7
        %v9701 = vrot.slane %v9685, 7
        %v9702 = vrot.slane %v9686, 7
        %v9703 = vrot.slane %v9687, 7
        %v9704 = vrot.slane %v9688, 7
        %v9705 = vrot.slane %v9689, 7
        %v9706 = vrot.slane %v9690, 7
        %v9715 = vsel %vm1025, 0.0, %v9699
        %v9716 = vsel %vm1025, 0.0, %v9700
        %v9717 = vsel %vm1025, 0.0, %v9701
        %v9718 = vsel %vm1025, 0.0, %v9702
        %v9719 = vsel %vm1025, 0.0, %v9703
        %v9720 = vsel %vm1025, 0.0, %v9704
        %v9721 = vsel %vm1025, 0.0, %v9705
        %v9722 = vsel %vm1025, 0.0, %v9706
        %v9723 = vrot.slane %v9683, 1
        %v9724 = vrot.slane %v9684, 1
        %v9725 = vrot.slane %v9685, 1
        %v9726 = vrot.slane %v9686, 1
        %v9727 = vrot.slane %v9687, 1
        %v9728 = vrot.slane %v9688, 1
        %v9729 = vrot.slane %v9689, 1
        %v9730 = vrot.slane %v9690, 1
        %v9739 = vsel %vm1122, %v9723, 0.0
        %v9740 = vsel %vm1122, %v9724, 0.0
        %v9741 = vsel %vm1122, %v9725, 0.0
        %v9742 = vsel %vm1122, %v9726, 0.0
        %v9743 = vsel %vm1122, %v9727, 0.0
        %v9744 = vsel %vm1122, %v9728, 0.0
        %v9745 = vsel %vm1122, %v9729, 0.0
        %v9746 = vsel %vm1122, %v9730, 0.0
        %v9747 = vpack.c.bf16 %v9715, %v9715
        %v9748 = vpack.c.bf16 %v9716, %v9716
        %v9749 = vpack.c.bf16 %v9717, %v9717
        %v9750 = vpack.c.bf16 %v9718, %v9718
        %v9751 = vpack.c.bf16 %v9719, %v9719
        %v9752 = vpack.c.bf16 %v9720, %v9720
        %v9753 = vpack.c.bf16 %v9721, %v9721
        %v9754 = vpack.c.bf16 %v9722, %v9722
        %v9755 = vpack.c.bf16 %v9683, %v9683
        %v9756 = vpack.c.bf16 %v9684, %v9684
        %v9757 = vpack.c.bf16 %v9685, %v9685
        %v9758 = vpack.c.bf16 %v9686, %v9686
        %v9759 = vpack.c.bf16 %v9687, %v9687
        %v9760 = vpack.c.bf16 %v9688, %v9688
        %v9761 = vpack.c.bf16 %v9689, %v9689
        %v9762 = vpack.c.bf16 %v9690, %v9690
        %v9763 = vpack.c.bf16 %v9739, %v9739
        %v9764 = vpack.c.bf16 %v9740, %v9740
        %v9765 = vpack.c.bf16 %v9741, %v9741
        %v9766 = vpack.c.bf16 %v9742, %v9742
        %v9767 = vpack.c.bf16 %v9743, %v9743
        %v9768 = vpack.c.bf16 %v9744, %v9744
        %v9769 = vpack.c.bf16 %v9745, %v9745
        %v9770 = vpack.c.bf16 %v9746, %v9746
        %v9795 = vunpack.c.l.b16 %v9747
        %v9796 = vunpack.c.l.b16 %v9755
        %v9797 = vunpack.c.l.b16 %v9763
        %v9798 = vunpack.c.l.b16 %v9748
        %v9799 = vunpack.c.l.b16 %v9756
        %v9800 = vunpack.c.l.b16 %v9764
        %v9801 = vunpack.c.l.b16 %v9749
        %v9802 = vunpack.c.l.b16 %v9757
        %v9803 = vunpack.c.l.b16 %v9765
        %v9804 = vunpack.c.l.b16 %v9750
        %v9805 = vunpack.c.l.b16 %v9758
        %v9806 = vunpack.c.l.b16 %v9766
        %v9807 = vunpack.c.l.b16 %v9751
        %v9808 = vunpack.c.l.b16 %v9759
        %v9809 = vunpack.c.l.b16 %v9767
        %v9810 = vunpack.c.l.b16 %v9752
        %v9811 = vunpack.c.l.b16 %v9760
        %v9812 = vunpack.c.l.b16 %v9768
        %v9813 = vunpack.c.l.b16 %v9753
        %v9814 = vunpack.c.l.b16 %v9761
        %v9815 = vunpack.c.l.b16 %v9769
        %v9816 = vunpack.c.l.b16 %v9754
        %v9817 = vunpack.c.l.b16 %v9762
        %v9818 = vunpack.c.l.b16 %v9770
        %v9819 = vld [vmem:[#allocation11] sm:$0xf]
        %v9820 = vld [vmem:[#allocation11 + $0x4] sm:$0xf]
        %v9821 = vld [vmem:[#allocation11 + $0x8] sm:$0xf]
        %v9822 = vld [vmem:[#allocation11 + $0xc] sm:$0xf]
        %v9823 = vld [vmem:[#allocation11 + $0x10] sm:$0xf]
        %v9824 = vld [vmem:[#allocation11 + $0x14] sm:$0xf]
        %v9825 = vld [vmem:[#allocation11 + $0x18] sm:$0xf]
        %v9826 = vld [vmem:[#allocation11 + $0x1c] sm:$0xf]
        %v9827 = vld [vmem:[#allocation11 + $0x20] sm:$0xf]
        %v9828 = vld [vmem:[#allocation11 + $0x24] sm:$0xf]
        %v9829 = vld [vmem:[#allocation11 + $0x28] sm:$0xf]
        %v9830 = vld [vmem:[#allocation11 + $0x2c] sm:$0xf]
        %v9831 = vld [vmem:[#allocation11 + $0x30] sm:$0xf]
        %v9832 = vld [vmem:[#allocation11 + $0x34] sm:$0xf]
        %v9833 = vld [vmem:[#allocation11 + $0x38] sm:$0xf]
        %v9834 = vld [vmem:[#allocation11 + $0x3c] sm:$0xf]
        %v9835 = vld [vmem:[#allocation11 + $0x40] sm:$0xf]
        %v9836 = vld [vmem:[#allocation11 + $0x44] sm:$0xf]
        %v9837 = vld [vmem:[#allocation11 + $0x48] sm:$0xf]
        %v9838 = vld [vmem:[#allocation11 + $0x4c] sm:$0xf]
        %v9839 = vld [vmem:[#allocation11 + $0x50] sm:$0xf]
        %v9840 = vld [vmem:[#allocation11 + $0x54] sm:$0xf]
        %v9841 = vld [vmem:[#allocation11 + $0x58] sm:$0xf]
        %v9842 = vld [vmem:[#allocation11 + $0x5c] sm:$0xf]
        %v9843 = vld [vmem:[#allocation11 + $0x60] sm:$0xf]
        %v9844 = vld [vmem:[#allocation11 + $0x64] sm:$0xf]
        %v9845 = vld [vmem:[#allocation11 + $0x68] sm:$0xf]
        %v9846 = vld [vmem:[#allocation11 + $0x6c] sm:$0xf]
        %v9847 = vld [vmem:[#allocation11 + $0x70] sm:$0xf]
        %v9848 = vld [vmem:[#allocation11 + $0x74] sm:$0xf]
        %v9849 = vld [vmem:[#allocation11 + $0x78] sm:$0xf]
        %v9850 = vld [vmem:[#allocation11 + $0x7c] sm:$0xf]
        %v9851 = vld [vmem:[#allocation11 + $0x80] sm:$0xf]
        %v9852 = vld [vmem:[#allocation11 + $0x84] sm:$0xf]
        %v9853 = vld [vmem:[#allocation11 + $0x88] sm:$0xf]
        %v9854 = vld [vmem:[#allocation11 + $0x8c] sm:$0xf]
        %v9855 = vld [vmem:[#allocation11 + $0x90] sm:$0xf]
        %v9856 = vld [vmem:[#allocation11 + $0x94] sm:$0xf]
        %v9857 = vld [vmem:[#allocation11 + $0x98] sm:$0xf]
        %v9858 = vld [vmem:[#allocation11 + $0x9c] sm:$0xf]
        %v9859 = vld [vmem:[#allocation11 + $0xa0] sm:$0xf]
        %v9860 = vld [vmem:[#allocation11 + $0xa4] sm:$0xf]
        %v9861 = vld [vmem:[#allocation11 + $0xa8] sm:$0xf]
        %v9862 = vld [vmem:[#allocation11 + $0xac] sm:$0xf]
        %v9863 = vld [vmem:[#allocation11 + $0xb0] sm:$0xf]
        %v9864 = vld [vmem:[#allocation11 + $0xb4] sm:$0xf]
        %v9865 = vld [vmem:[#allocation11 + $0xb8] sm:$0xf]
        %v9866 = vld [vmem:[#allocation11 + $0xbc] sm:$0xf]
        %v9867 = vld [vmem:[#allocation11 + $0xc0] sm:$0xf]
        %v9868 = vld [vmem:[#allocation11 + $0xc4] sm:$0xf]
        %v9869 = vld [vmem:[#allocation11 + $0xc8] sm:$0xf]
        %v9870 = vld [vmem:[#allocation11 + $0xcc] sm:$0xf]
        %v9871 = vld [vmem:[#allocation11 + $0xd0] sm:$0xf]
        %v9872 = vld [vmem:[#allocation11 + $0xd4] sm:$0xf]
        %v9873 = vld [vmem:[#allocation11 + $0xd8] sm:$0xf]
        %v9874 = vld [vmem:[#allocation11 + $0xdc] sm:$0xf]
        %v9875 = vld [vmem:[#allocation11 + $0xe0] sm:$0xf]
        %v9876 = vld [vmem:[#allocation11 + $0xe4] sm:$0xf]
        %v9877 = vld [vmem:[#allocation11 + $0xe8] sm:$0xf]
        %v9878 = vld [vmem:[#allocation11 + $0xec] sm:$0xf]
        %v9879 = vld [vmem:[#allocation11 + $0xf0] sm:$0xf]
        %v9880 = vld [vmem:[#allocation11 + $0xf4] sm:$0xf]
        %v9881 = vld [vmem:[#allocation11 + $0xf8] sm:$0xf]
        %v9882 = vld [vmem:[#allocation11 + $0xfc] sm:$0xf]
        %v9883 = vld [vmem:[#allocation11 + $0x100] sm:$0xf]
        %v9884 = vld [vmem:[#allocation11 + $0x104] sm:$0xf]
        %v9885 = vld [vmem:[#allocation11 + $0x108] sm:$0xf]
        %v9886 = vld [vmem:[#allocation11 + $0x10c] sm:$0xf]
        %v9887 = vld [vmem:[#allocation11 + $0x110] sm:$0xf]
        %v9888 = vld [vmem:[#allocation11 + $0x114] sm:$0xf]
        %v9889 = vld [vmem:[#allocation11 + $0x118] sm:$0xf]
        %v9890 = vld [vmem:[#allocation11 + $0x11c] sm:$0xf]
        %v9891 = vld [vmem:[#allocation11 + $0x120] sm:$0xf]
        %v9892 = vld [vmem:[#allocation11 + $0x124] sm:$0xf]
        %v9893 = vld [vmem:[#allocation11 + $0x128] sm:$0xf]
        %v9894 = vld [vmem:[#allocation11 + $0x12c] sm:$0xf]
        %v9895 = vld [vmem:[#allocation11 + $0x130] sm:$0xf]
        %v9896 = vld [vmem:[#allocation11 + $0x134] sm:$0xf]
        %v9897 = vld [vmem:[#allocation11 + $0x138] sm:$0xf]
        %v9898 = vld [vmem:[#allocation11 + $0x13c] sm:$0xf]
        %v9899 = vld [vmem:[#allocation11 + $0x140] sm:$0xf]
        %v9900 = vld [vmem:[#allocation11 + $0x144] sm:$0xf]
        %v9901 = vld [vmem:[#allocation11 + $0x148] sm:$0xf]
        %v9902 = vld [vmem:[#allocation11 + $0x14c] sm:$0xf]
        %v9903 = vld [vmem:[#allocation11 + $0x150] sm:$0xf]
        %v9904 = vld [vmem:[#allocation11 + $0x154] sm:$0xf]
        %v9905 = vld [vmem:[#allocation11 + $0x158] sm:$0xf]
        %v9906 = vld [vmem:[#allocation11 + $0x15c] sm:$0xf]
        %v9907 = vld [vmem:[#allocation11 + $0x160] sm:$0xf]
        %v9908 = vld [vmem:[#allocation11 + $0x164] sm:$0xf]
        %v9909 = vld [vmem:[#allocation11 + $0x168] sm:$0xf]
        %v9910 = vld [vmem:[#allocation11 + $0x16c] sm:$0xf]
        %v9911 = vld [vmem:[#allocation11 + $0x170] sm:$0xf]
        %v9912 = vld [vmem:[#allocation11 + $0x174] sm:$0xf]
        %v9913 = vld [vmem:[#allocation11 + $0x178] sm:$0xf]
        %v9914 = vld [vmem:[#allocation11 + $0x17c] sm:$0xf]
        %v9915 = vld [vmem:[#allocation11 + $0x180] sm:$0xf]
        %v9916 = vld [vmem:[#allocation11 + $0x184] sm:$0xf]
        %v9917 = vld [vmem:[#allocation11 + $0x188] sm:$0xf]
        %v9918 = vld [vmem:[#allocation11 + $0x18c] sm:$0xf]
        %v9919 = vld [vmem:[#allocation11 + $0x190] sm:$0xf]
        %v9920 = vld [vmem:[#allocation11 + $0x194] sm:$0xf]
        %v9921 = vld [vmem:[#allocation11 + $0x198] sm:$0xf]
        %v9922 = vld [vmem:[#allocation11 + $0x19c] sm:$0xf]
        %v9923 = vld [vmem:[#allocation11 + $0x1a0] sm:$0xf]
        %v9924 = vld [vmem:[#allocation11 + $0x1a4] sm:$0xf]
        %v9925 = vld [vmem:[#allocation11 + $0x1a8] sm:$0xf]
        %v9926 = vld [vmem:[#allocation11 + $0x1ac] sm:$0xf]
        %v9927 = vld [vmem:[#allocation11 + $0x1b0] sm:$0xf]
        %v9928 = vld [vmem:[#allocation11 + $0x1b4] sm:$0xf]
        %v9929 = vld [vmem:[#allocation11 + $0x1b8] sm:$0xf]
        %v9930 = vld [vmem:[#allocation11 + $0x1bc] sm:$0xf]
        %v9931 = vld [vmem:[#allocation11 + $0x1c0] sm:$0xf]
        %v9932 = vld [vmem:[#allocation11 + $0x1c4] sm:$0xf]
        %v9933 = vld [vmem:[#allocation11 + $0x1c8] sm:$0xf]
        %v9934 = vld [vmem:[#allocation11 + $0x1cc] sm:$0xf]
        %v9935 = vld [vmem:[#allocation11 + $0x1d0] sm:$0xf]
        %v9936 = vld [vmem:[#allocation11 + $0x1d4] sm:$0xf]
        %v9937 = vld [vmem:[#allocation11 + $0x1d8] sm:$0xf]
        %v9938 = vld [vmem:[#allocation11 + $0x1dc] sm:$0xf]
        %v9939 = vld [vmem:[#allocation11 + $0x1e0] sm:$0xf]
        %v9940 = vld [vmem:[#allocation11 + $0x1e4] sm:$0xf]
        %v9941 = vld [vmem:[#allocation11 + $0x1e8] sm:$0xf]
        %v9942 = vld [vmem:[#allocation11 + $0x1ec] sm:$0xf]
        %v9943 = vld [vmem:[#allocation11 + $0x1f0] sm:$0xf]
        %v9944 = vld [vmem:[#allocation11 + $0x1f4] sm:$0xf]
        %v9945 = vld [vmem:[#allocation11 + $0x1f8] sm:$0xf]
        %v9946 = vld [vmem:[#allocation11 + $0x1fc] sm:$0xf]
        %v9947 = vld [vmem:[#allocation11 + $0x200] sm:$0xf]
        %v9948 = vld [vmem:[#allocation11 + $0x204] sm:$0xf]
        %v9949 = vld [vmem:[#allocation11 + $0x208] sm:$0xf]
        %v9950 = vld [vmem:[#allocation11 + $0x20c] sm:$0xf]
        %v9951 = vld [vmem:[#allocation11 + $0x210] sm:$0xf]
        %v9952 = vld [vmem:[#allocation11 + $0x214] sm:$0xf]
        %v9953 = vld [vmem:[#allocation11 + $0x218] sm:$0xf]
        %v9954 = vld [vmem:[#allocation11 + $0x21c] sm:$0xf]
        %v9955 = vld [vmem:[#allocation11 + $0x220] sm:$0xf]
        %v9956 = vld [vmem:[#allocation11 + $0x224] sm:$0xf]
        %v9957 = vld [vmem:[#allocation11 + $0x228] sm:$0xf]
        %v9958 = vld [vmem:[#allocation11 + $0x22c] sm:$0xf]
        %v9959 = vld [vmem:[#allocation11 + $0x230] sm:$0xf]
        %v9960 = vld [vmem:[#allocation11 + $0x234] sm:$0xf]
        %v9961 = vld [vmem:[#allocation11 + $0x238] sm:$0xf]
        %v9962 = vld [vmem:[#allocation11 + $0x23c] sm:$0xf]
        %v9963 = vld [vmem:[%s16] sm:$0x1]
        %v9965 = vperm.slane %v9963, 0
        %v9967 = vpack.c.b16 %v9795, %v8670
        %v9968 = vpack.c.b16 %v9796, %v8670
        %v9969 = vpack.c.b16 %v9797, %v8670
        %v9970 = vpack.c.b16 %v9798, %v9795
        %v9971 = vpack.c.b16 %v9799, %v9796
        %v9972 = vpack.c.b16 %v9800, %v9797
        %v9973 = vpack.c.b16 %v9801, %v9798
        %v9974 = vpack.c.b16 %v9802, %v9799
        %v9975 = vpack.c.b16 %v9803, %v9800
        %v9976 = vpack.c.b16 %v9804, %v9801
        %v9977 = vpack.c.b16 %v9805, %v9802
        %v9978 = vpack.c.b16 %v9806, %v9803
        %v9979 = vpack.c.b16 %v9807, %v9804
        %v9980 = vpack.c.b16 %v9808, %v9805
        %v9981 = vpack.c.b16 %v9809, %v9806
        %v9982 = vpack.c.b16 %v9810, %v9807
        %v9983 = vpack.c.b16 %v9811, %v9808
        %v9984 = vpack.c.b16 %v9812, %v9809
        %v9985 = vpack.c.b16 %v9813, %v9810
        %v9986 = vpack.c.b16 %v9814, %v9811
        %v9987 = vpack.c.b16 %v9815, %v9812
        %v9988 = vpack.c.b16 %v9816, %v9813
        %v9989 = vpack.c.b16 %v9817, %v9814
        %v9990 = vpack.c.b16 %v9818, %v9815
        %v9991 = vpack.c.b16 %v8670, %v9816
        %v9992 = vpack.c.b16 %v8670, %v9817
        %v9993 = vpack.c.b16 %v8670, %v9818
        %v10165 = vunpack.c.l.b16 %v9819
        %v10166 = vunpack.c.l.b16 %v9820
        %v10167 = vunpack.c.l.b16 %v9821
        %v10168 = vunpack.c.l.b16 %v9822
        %v10169 = vunpack.c.l.b16 %v9823
        %v10170 = vunpack.c.l.b16 %v9824
        %v10171 = vunpack.c.l.b16 %v9825
        %v10172 = vunpack.c.l.b16 %v9826
        %v10173 = vunpack.c.l.b16 %v9827
        %v10174 = vunpack.c.l.b16 %v9828
        %v10175 = vunpack.c.l.b16 %v9829
        %v10176 = vunpack.c.l.b16 %v9830
        %v10177 = vunpack.c.l.b16 %v9831
        %v10178 = vunpack.c.l.b16 %v9832
        %v10179 = vunpack.c.l.b16 %v9833
        %v10180 = vunpack.c.l.b16 %v9834
        %v10181 = vunpack.c.l.b16 %v9835
        %v10182 = vunpack.c.l.b16 %v9836
        %v10183 = vunpack.c.l.b16 %v9837
        %v10184 = vunpack.c.l.b16 %v9838
        %v10185 = vunpack.c.l.b16 %v9839
        %v10186 = vunpack.c.l.b16 %v9840
        %v10187 = vunpack.c.l.b16 %v9841
        %v10188 = vunpack.c.l.b16 %v9842
        %v10189 = vunpack.c.l.b16 %v9843
        %v10190 = vunpack.c.l.b16 %v9844
        %v10191 = vunpack.c.l.b16 %v9845
        %v10192 = vunpack.c.l.b16 %v9846
        %v10193 = vunpack.c.l.b16 %v9847
        %v10194 = vunpack.c.l.b16 %v9848
        %v10195 = vunpack.c.l.b16 %v9849
        %v10196 = vunpack.c.l.b16 %v9850
        %v10197 = vunpack.c.l.b16 %v9851
        %v10198 = vunpack.c.l.b16 %v9852
        %v10199 = vunpack.c.l.b16 %v9853
        %v10200 = vunpack.c.l.b16 %v9854
        %v10201 = vunpack.c.l.b16 %v9855
        %v10202 = vunpack.c.l.b16 %v9856
        %v10203 = vunpack.c.l.b16 %v9857
        %v10204 = vunpack.c.l.b16 %v9858
        %v10205 = vunpack.c.l.b16 %v9859
        %v10206 = vunpack.c.l.b16 %v9860
        %v10207 = vunpack.c.l.b16 %v9861
        %v10208 = vunpack.c.l.b16 %v9862
        %v10209 = vunpack.c.l.b16 %v9863
        %v10210 = vunpack.c.l.b16 %v9864
        %v10211 = vunpack.c.l.b16 %v9865
        %v10212 = vunpack.c.l.b16 %v9866
        %v10213 = vunpack.c.l.b16 %v9867
        %v10214 = vunpack.c.l.b16 %v9868
        %v10215 = vunpack.c.l.b16 %v9869
        %v10216 = vunpack.c.l.b16 %v9870
        %v10217 = vunpack.c.l.b16 %v9871
        %v10218 = vunpack.c.l.b16 %v9872
        %v10219 = vunpack.c.l.b16 %v9873
        %v10220 = vunpack.c.l.b16 %v9874
        %v10221 = vunpack.c.l.b16 %v9875
        %v10222 = vunpack.c.l.b16 %v9876
        %v10223 = vunpack.c.l.b16 %v9877
        %v10224 = vunpack.c.l.b16 %v9878
        %v10225 = vunpack.c.l.b16 %v9879
        %v10226 = vunpack.c.l.b16 %v9880
        %v10227 = vunpack.c.l.b16 %v9881
        %v10228 = vunpack.c.l.b16 %v9882
        %v10229 = vunpack.c.l.b16 %v9883
        %v10230 = vunpack.c.l.b16 %v9884
        %v10231 = vunpack.c.l.b16 %v9885
        %v10232 = vunpack.c.l.b16 %v9886
        %v10233 = vunpack.c.l.b16 %v9887
        %v10234 = vunpack.c.l.b16 %v9888
        %v10235 = vunpack.c.l.b16 %v9889
        %v10236 = vunpack.c.l.b16 %v9890
        %v10237 = vunpack.c.l.b16 %v9891
        %v10238 = vunpack.c.l.b16 %v9892
        %v10239 = vunpack.c.l.b16 %v9893
        %v10240 = vunpack.c.l.b16 %v9894
        %v10241 = vunpack.c.l.b16 %v9895
        %v10242 = vunpack.c.l.b16 %v9896
        %v10243 = vunpack.c.l.b16 %v9897
        %v10244 = vunpack.c.l.b16 %v9898
        %v10245 = vunpack.c.l.b16 %v9899
        %v10246 = vunpack.c.l.b16 %v9900
        %v10247 = vunpack.c.l.b16 %v9901
        %v10248 = vunpack.c.l.b16 %v9902
        %v10249 = vunpack.c.l.b16 %v9903
        %v10250 = vunpack.c.l.b16 %v9904
        %v10251 = vunpack.c.l.b16 %v9905
        %v10252 = vunpack.c.l.b16 %v9906
        %v10253 = vunpack.c.l.b16 %v9907
        %v10254 = vunpack.c.l.b16 %v9908
        %v10255 = vunpack.c.l.b16 %v9909
        %v10256 = vunpack.c.l.b16 %v9910
        %v10257 = vunpack.c.l.b16 %v9911
        %v10258 = vunpack.c.l.b16 %v9912
        %v10259 = vunpack.c.l.b16 %v9913
        %v10260 = vunpack.c.l.b16 %v9914
        %v10261 = vunpack.c.l.b16 %v9915
        %v10262 = vunpack.c.l.b16 %v9916
        %v10263 = vunpack.c.l.b16 %v9917
        %v10264 = vunpack.c.l.b16 %v9918
        %v10265 = vunpack.c.l.b16 %v9919
        %v10266 = vunpack.c.l.b16 %v9920
        %v10267 = vunpack.c.l.b16 %v9921
        %v10268 = vunpack.c.l.b16 %v9922
        %v10269 = vunpack.c.l.b16 %v9923
        %v10270 = vunpack.c.l.b16 %v9924
        %v10271 = vunpack.c.l.b16 %v9925
        %v10272 = vunpack.c.l.b16 %v9926
        %v10273 = vunpack.c.l.b16 %v9927
        %v10274 = vunpack.c.l.b16 %v9928
        %v10275 = vunpack.c.l.b16 %v9929
        %v10276 = vunpack.c.l.b16 %v9930
        %v10277 = vunpack.c.l.b16 %v9931
        %v10278 = vunpack.c.l.b16 %v9932
        %v10279 = vunpack.c.l.b16 %v9933
        %v10280 = vunpack.c.l.b16 %v9934
        %v10281 = vunpack.c.l.b16 %v9935
        %v10282 = vunpack.c.l.b16 %v9936
        %v10283 = vunpack.c.l.b16 %v9937
        %v10284 = vunpack.c.l.b16 %v9938
        %v10285 = vunpack.c.l.b16 %v9939
        %v10286 = vunpack.c.l.b16 %v9940
        %v10287 = vunpack.c.l.b16 %v9941
        %v10288 = vunpack.c.l.b16 %v9942
        %v10289 = vunpack.c.l.b16 %v9943
        %v10290 = vunpack.c.l.b16 %v9944
        %v10291 = vunpack.c.l.b16 %v9945
        %v10292 = vunpack.c.l.b16 %v9946
        %v10293 = vunpack.c.l.b16 %v9947
        %v10294 = vunpack.c.l.b16 %v9948
        %v10295 = vunpack.c.l.b16 %v9949
        %v10296 = vunpack.c.l.b16 %v9950
        %v10297 = vunpack.c.l.b16 %v9951
        %v10298 = vunpack.c.l.b16 %v9952
        %v10299 = vunpack.c.l.b16 %v9953
        %v10300 = vunpack.c.l.b16 %v9954
        %v10301 = vunpack.c.l.b16 %v9955
        %v10302 = vunpack.c.l.b16 %v9956
        %v10303 = vunpack.c.l.b16 %v9957
        %v10304 = vunpack.c.l.b16 %v9958
        %v10305 = vunpack.c.l.b16 %v9959
        %v10306 = vunpack.c.l.b16 %v9960
        %v10307 = vunpack.c.l.b16 %v9961
        %v10308 = vunpack.c.l.b16 %v9962
        %v10309 = vpack.c.b16 %v10166, %v10165
        %v10310 = vpack.c.b16 %v10168, %v10167
        %v10311 = vpack.c.b16 %v10170, %v10169
        %v10312 = vpack.c.b16 %v10172, %v10171
        %v10313 = vpack.c.b16 %v10174, %v10173
        %v10314 = vpack.c.b16 %v10176, %v10175
        %v10315 = vpack.c.b16 %v10178, %v10177
        %v10316 = vpack.c.b16 %v10180, %v10179
        %v10317 = vpack.c.b16 %v10182, %v10181
        %v10318 = vpack.c.b16 %v10184, %v10183
        %v10319 = vpack.c.b16 %v10186, %v10185
        %v10320 = vpack.c.b16 %v10188, %v10187
        %v10321 = vpack.c.b16 %v10190, %v10189
        %v10322 = vpack.c.b16 %v10192, %v10191
        %v10323 = vpack.c.b16 %v10194, %v10193
        %v10324 = vpack.c.b16 %v10196, %v10195
        %v10325 = vpack.c.b16 %v10198, %v10197
        %v10326 = vpack.c.b16 %v10200, %v10199
        %v10327 = vpack.c.b16 %v10202, %v10201
        %v10328 = vpack.c.b16 %v10204, %v10203
        %v10329 = vpack.c.b16 %v10206, %v10205
        %v10330 = vpack.c.b16 %v10208, %v10207
        %v10331 = vpack.c.b16 %v10210, %v10209
        %v10332 = vpack.c.b16 %v10212, %v10211
        %v10333 = vpack.c.b16 %v10214, %v10213
        %v10334 = vpack.c.b16 %v10216, %v10215
        %v10335 = vpack.c.b16 %v10218, %v10217
        %v10336 = vpack.c.b16 %v10220, %v10219
        %v10337 = vpack.c.b16 %v10222, %v10221
        %v10338 = vpack.c.b16 %v10224, %v10223
        %v10339 = vpack.c.b16 %v10226, %v10225
        %v10340 = vpack.c.b16 %v10228, %v10227
        %v10341 = vpack.c.b16 %v10230, %v10229
        %v10342 = vpack.c.b16 %v10232, %v10231
        %v10343 = vpack.c.b16 %v10234, %v10233
        %v10344 = vpack.c.b16 %v10236, %v10235
        %v10345 = vpack.c.b16 %v10238, %v10237
        %v10346 = vpack.c.b16 %v10240, %v10239
        %v10347 = vpack.c.b16 %v10242, %v10241
        %v10348 = vpack.c.b16 %v10244, %v10243
        %v10349 = vpack.c.b16 %v10246, %v10245
        %v10350 = vpack.c.b16 %v10248, %v10247
        %v10351 = vpack.c.b16 %v10250, %v10249
        %v10352 = vpack.c.b16 %v10252, %v10251
        %v10353 = vpack.c.b16 %v10254, %v10253
        %v10354 = vpack.c.b16 %v10256, %v10255
        %v10355 = vpack.c.b16 %v10258, %v10257
        %v10356 = vpack.c.b16 %v10260, %v10259
        %v10357 = vpack.c.b16 %v10262, %v10261
        %v10358 = vpack.c.b16 %v10264, %v10263
        %v10359 = vpack.c.b16 %v10266, %v10265
        %v10360 = vpack.c.b16 %v10268, %v10267
        %v10361 = vpack.c.b16 %v10270, %v10269
        %v10362 = vpack.c.b16 %v10272, %v10271
        %v10363 = vpack.c.b16 %v10274, %v10273
        %v10364 = vpack.c.b16 %v10276, %v10275
        %v10365 = vpack.c.b16 %v10278, %v10277
        %v10366 = vpack.c.b16 %v10280, %v10279
        %v10367 = vpack.c.b16 %v10282, %v10281
        %v10368 = vpack.c.b16 %v10284, %v10283
        %v10369 = vpack.c.b16 %v10286, %v10285
        %v10370 = vpack.c.b16 %v10288, %v10287
        %v10371 = vpack.c.b16 %v10290, %v10289
        %v10372 = vpack.c.b16 %v10292, %v10291
        %v10373 = vpack.c.b16 %v10294, %v10293
        %v10374 = vpack.c.b16 %v10296, %v10295
        %v10375 = vpack.c.b16 %v10298, %v10297
        %v10376 = vpack.c.b16 %v10300, %v10299
        %v10377 = vpack.c.b16 %v10302, %v10301
        %v10378 = vpack.c.b16 %v10304, %v10303
        %v10379 = vpack.c.b16 %v10306, %v10305
        %v10380 = vpack.c.b16 %v10308, %v10307
        %10453 = vmatpush.bf16.msra.mxu0 %v10316
        %10454 = vmatpush.bf16.msra.mxu0 %v10315
        %10455 = vmatpush.bf16.msra.mxu0 %v10314
        %10456 = vmatpush.bf16.msra.mxu0 %v10313
        %10457 = vmatpush.bf16.msra.mxu0 %v10312
        %10458 = vmatpush.bf16.msra.mxu0 %v10311
        %10459 = vmatpush.bf16.msra.mxu0 %v10310
        %10460 = vmatpush.bf16.msra.mxu0 %v10309
        %10461 = vmatmul.bf16.gmra.mxu0 %v9967
        %v10462 = vpop.f32.mrf.mxu0
        %v10463 = vadd.f32 %v9965, %v10462
        %v10464 = vpop.f32.mrf.mxu0
        %v10465 = vadd.f32 %v9965, %v10464
        %10466 = vmatmul.bf16.gmra.mxu0 %v9973
        %v10467 = vpop.f32.mrf.mxu0
        %v10468 = vadd.f32 %v9965, %v10467
        %v10469 = vpop.f32.mrf.mxu0
        %v10470 = vadd.f32 %v9965, %v10469
        %10471 = vmatmul.bf16.gmra.mxu0 %v9979
        %v10472 = vpop.f32.mrf.mxu0
        %v10473 = vadd.f32 %v9965, %v10472
        %v10474 = vpop.f32.mrf.mxu0
        %v10475 = vadd.f32 %v9965, %v10474
        %10476 = vmatmul.bf16.gmra.mxu0 %v9985
        %v10477 = vpop.f32.mrf.mxu0
        %v10478 = vadd.f32 %v9965, %v10477
        %v10479 = vpop.f32.mrf.mxu0
        %v10480 = vadd.f32 %v9965, %v10479
        %10481 = vdwg.mxu0
        %10482 = vmatpush.bf16.msra.mxu0 %v10324
        %10483 = vmatpush.bf16.msra.mxu0 %v10323
        %10484 = vmatpush.bf16.msra.mxu0 %v10322
        %10485 = vmatpush.bf16.msra.mxu0 %v10321
        %10486 = vmatpush.bf16.msra.mxu0 %v10320
        %10487 = vmatpush.bf16.msra.mxu0 %v10319
        %10488 = vmatpush.bf16.msra.mxu0 %v10318
        %10489 = vmatpush.bf16.msra.mxu0 %v10317
        %10490 = vmatmul.bf16.gmra.mxu0 %v9968
        %v10491 = vpop.f32.mrf.mxu0
        %v10492 = vadd.f32 %v10463, %v10491
        %v10493 = vpop.f32.mrf.mxu0
        %v10494 = vadd.f32 %v10465, %v10493
        %10495 = vmatmul.bf16.gmra.mxu0 %v9974
        %v10496 = vpop.f32.mrf.mxu0
        %v10497 = vadd.f32 %v10468, %v10496
        %v10498 = vpop.f32.mrf.mxu0
        %v10499 = vadd.f32 %v10470, %v10498
        %10500 = vmatmul.bf16.gmra.mxu0 %v9980
        %v10501 = vpop.f32.mrf.mxu0
        %v10502 = vadd.f32 %v10473, %v10501
        %v10503 = vpop.f32.mrf.mxu0
        %v10504 = vadd.f32 %v10475, %v10503
        %10505 = vmatmul.bf16.gmra.mxu0 %v9986
        %v10506 = vpop.f32.mrf.mxu0
        %v10507 = vadd.f32 %v10478, %v10506
        %v10508 = vpop.f32.mrf.mxu0
        %v10509 = vadd.f32 %v10480, %v10508
        %10510 = vdwg.mxu0
        %10511 = vmatpush.bf16.msra.mxu0 %v10332
        %10512 = vmatpush.bf16.msra.mxu0 %v10331
        %10513 = vmatpush.bf16.msra.mxu0 %v10330
        %10514 = vmatpush.bf16.msra.mxu0 %v10329
        %10515 = vmatpush.bf16.msra.mxu0 %v10328
        %10516 = vmatpush.bf16.msra.mxu0 %v10327
        %10517 = vmatpush.bf16.msra.mxu0 %v10326
        %10518 = vmatpush.bf16.msra.mxu0 %v10325
        %10519 = vmatmul.bf16.gmra.mxu0 %v9969
        %v10520 = vpop.f32.mrf.mxu0
        %v10521 = vadd.f32 %v10492, %v10520
        %v10522 = vpop.f32.mrf.mxu0
        %v10523 = vadd.f32 %v10494, %v10522
        %10524 = vmatmul.bf16.gmra.mxu0 %v9975
        %v10525 = vpop.f32.mrf.mxu0
        %v10526 = vadd.f32 %v10497, %v10525
        %v10527 = vpop.f32.mrf.mxu0
        %v10528 = vadd.f32 %v10499, %v10527
        %10529 = vmatmul.bf16.gmra.mxu0 %v9981
        %v10530 = vpop.f32.mrf.mxu0
        %v10531 = vadd.f32 %v10502, %v10530
        %v10532 = vpop.f32.mrf.mxu0
        %v10533 = vadd.f32 %v10504, %v10532
        %10534 = vmatmul.bf16.gmra.mxu0 %v9987
        %v10535 = vpop.f32.mrf.mxu0
        %v10536 = vadd.f32 %v10507, %v10535
        %v10537 = vpop.f32.mrf.mxu0
        %v10538 = vadd.f32 %v10509, %v10537
        %10539 = vdwg.mxu0
        %10540 = vmatpush.bf16.msra.mxu0 %v10340
        %10541 = vmatpush.bf16.msra.mxu0 %v10339
        %10542 = vmatpush.bf16.msra.mxu0 %v10338
        %10543 = vmatpush.bf16.msra.mxu0 %v10337
        %10544 = vmatpush.bf16.msra.mxu0 %v10336
        %10545 = vmatpush.bf16.msra.mxu0 %v10335
        %10546 = vmatpush.bf16.msra.mxu0 %v10334
        %10547 = vmatpush.bf16.msra.mxu0 %v10333
        %10548 = vmatmul.bf16.gmra.mxu0 %v9970
        %v10549 = vpop.f32.mrf.mxu0
        %v10550 = vadd.f32 %v10521, %v10549
        %v10551 = vpop.f32.mrf.mxu0
        %v10552 = vadd.f32 %v10523, %v10551
        %10553 = vmatmul.bf16.gmra.mxu0 %v9976
        %v10554 = vpop.f32.mrf.mxu0
        %v10555 = vadd.f32 %v10526, %v10554
        %v10556 = vpop.f32.mrf.mxu0
        %v10557 = vadd.f32 %v10528, %v10556
        %10558 = vmatmul.bf16.gmra.mxu0 %v9982
        %v10559 = vpop.f32.mrf.mxu0
        %v10560 = vadd.f32 %v10531, %v10559
        %v10561 = vpop.f32.mrf.mxu0
        %v10562 = vadd.f32 %v10533, %v10561
        %10563 = vmatmul.bf16.gmra.mxu0 %v9988
        %v10564 = vpop.f32.mrf.mxu0
        %v10565 = vadd.f32 %v10536, %v10564
        %v10566 = vpop.f32.mrf.mxu0
        %v10567 = vadd.f32 %v10538, %v10566
        %10568 = vdwg.mxu0
        %10569 = vmatpush.bf16.msra.mxu0 %v10348
        %10570 = vmatpush.bf16.msra.mxu0 %v10347
        %10571 = vmatpush.bf16.msra.mxu0 %v10346
        %10572 = vmatpush.bf16.msra.mxu0 %v10345
        %10573 = vmatpush.bf16.msra.mxu0 %v10344
        %10574 = vmatpush.bf16.msra.mxu0 %v10343
        %10575 = vmatpush.bf16.msra.mxu0 %v10342
        %10576 = vmatpush.bf16.msra.mxu0 %v10341
        %10577 = vmatmul.bf16.gmra.mxu0 %v9971
        %v10578 = vpop.f32.mrf.mxu0
        %v10579 = vadd.f32 %v10550, %v10578
        %v10580 = vpop.f32.mrf.mxu0
        %v10581 = vadd.f32 %v10552, %v10580
        %10582 = vmatmul.bf16.gmra.mxu0 %v9977
        %v10583 = vpop.f32.mrf.mxu0
        %v10584 = vadd.f32 %v10555, %v10583
        %v10585 = vpop.f32.mrf.mxu0
        %v10586 = vadd.f32 %v10557, %v10585
        %10587 = vmatmul.bf16.gmra.mxu0 %v9983
        %v10588 = vpop.f32.mrf.mxu0
        %v10589 = vadd.f32 %v10560, %v10588
        %v10590 = vpop.f32.mrf.mxu0
        %v10591 = vadd.f32 %v10562, %v10590
        %10592 = vmatmul.bf16.gmra.mxu0 %v9989
        %v10593 = vpop.f32.mrf.mxu0
        %v10594 = vadd.f32 %v10565, %v10593
        %v10595 = vpop.f32.mrf.mxu0
        %v10596 = vadd.f32 %v10567, %v10595
        %10597 = vdwg.mxu0
        %10598 = vmatpush.bf16.msra.mxu0 %v10356
        %10599 = vmatpush.bf16.msra.mxu0 %v10355
        %10600 = vmatpush.bf16.msra.mxu0 %v10354
        %10601 = vmatpush.bf16.msra.mxu0 %v10353
        %10602 = vmatpush.bf16.msra.mxu0 %v10352
        %10603 = vmatpush.bf16.msra.mxu0 %v10351
        %10604 = vmatpush.bf16.msra.mxu0 %v10350
        %10605 = vmatpush.bf16.msra.mxu0 %v10349
        %10606 = vmatmul.bf16.gmra.mxu0 %v9972
        %v10607 = vpop.f32.mrf.mxu0
        %v10608 = vadd.f32 %v10579, %v10607
        %v10609 = vpop.f32.mrf.mxu0
        %v10610 = vadd.f32 %v10581, %v10609
        %10611 = vmatmul.bf16.gmra.mxu0 %v9978
        %v10612 = vpop.f32.mrf.mxu0
        %v10613 = vadd.f32 %v10584, %v10612
        %v10614 = vpop.f32.mrf.mxu0
        %v10615 = vadd.f32 %v10586, %v10614
        %10616 = vmatmul.bf16.gmra.mxu0 %v9984
        %v10617 = vpop.f32.mrf.mxu0
        %v10618 = vadd.f32 %v10589, %v10617
        %v10619 = vpop.f32.mrf.mxu0
        %v10620 = vadd.f32 %v10591, %v10619
        %10621 = vmatmul.bf16.gmra.mxu0 %v9990
        %v10622 = vpop.f32.mrf.mxu0
        %v10623 = vadd.f32 %v10594, %v10622
        %v10624 = vpop.f32.mrf.mxu0
        %v10625 = vadd.f32 %v10596, %v10624
        %10626 = vdwg.mxu0
        %10627 = vmatpush.bf16.msra.mxu0 %v10364
        %10628 = vmatpush.bf16.msra.mxu0 %v10363
        %10629 = vmatpush.bf16.msra.mxu0 %v10362
        %10630 = vmatpush.bf16.msra.mxu0 %v10361
        %10631 = vmatpush.bf16.msra.mxu0 %v10360
        %10632 = vmatpush.bf16.msra.mxu0 %v10359
        %10633 = vmatpush.bf16.msra.mxu0 %v10358
        %10634 = vmatpush.bf16.msra.mxu0 %v10357
        %10635 = vmatmul.bf16.gmra.mxu0 %v9973
        %v10636 = vpop.f32.mrf.mxu0
        %v10637 = vadd.f32 %v10608, %v10636
        %v10638 = vpop.f32.mrf.mxu0
        %v10639 = vadd.f32 %v10610, %v10638
        %10640 = vmatmul.bf16.gmra.mxu0 %v9979
        %v10641 = vpop.f32.mrf.mxu0
        %v10642 = vadd.f32 %v10613, %v10641
        %v10643 = vpop.f32.mrf.mxu0
        %v10644 = vadd.f32 %v10615, %v10643
        %10645 = vmatmul.bf16.gmra.mxu0 %v9985
        %v10646 = vpop.f32.mrf.mxu0
        %v10647 = vadd.f32 %v10618, %v10646
        %v10648 = vpop.f32.mrf.mxu0
        %v10649 = vadd.f32 %v10620, %v10648
        %10650 = vmatmul.bf16.gmra.mxu0 %v9991
        %v10651 = vpop.f32.mrf.mxu0
        %v10652 = vadd.f32 %v10623, %v10651
        %v10653 = vpop.f32.mrf.mxu0
        %v10654 = vadd.f32 %v10625, %v10653
        %10655 = vdwg.mxu0
        %10656 = vmatpush.bf16.msra.mxu0 %v10372
        %10657 = vmatpush.bf16.msra.mxu0 %v10371
        %10658 = vmatpush.bf16.msra.mxu0 %v10370
        %10659 = vmatpush.bf16.msra.mxu0 %v10369
        %10660 = vmatpush.bf16.msra.mxu0 %v10368
        %10661 = vmatpush.bf16.msra.mxu0 %v10367
        %10662 = vmatpush.bf16.msra.mxu0 %v10366
        %10663 = vmatpush.bf16.msra.mxu0 %v10365
        %10664 = vmatmul.bf16.gmra.mxu0 %v9974
        %v10665 = vpop.f32.mrf.mxu0
        %v10666 = vadd.f32 %v10637, %v10665
        %v10667 = vpop.f32.mrf.mxu0
        %v10668 = vadd.f32 %v10639, %v10667
        %10669 = vmatmul.bf16.gmra.mxu0 %v9980
        %v10670 = vpop.f32.mrf.mxu0
        %v10671 = vadd.f32 %v10642, %v10670
        %v10672 = vpop.f32.mrf.mxu0
        %v10673 = vadd.f32 %v10644, %v10672
        %10674 = vmatmul.bf16.gmra.mxu0 %v9986
        %v10675 = vpop.f32.mrf.mxu0
        %v10676 = vadd.f32 %v10647, %v10675
        %v10677 = vpop.f32.mrf.mxu0
        %v10678 = vadd.f32 %v10649, %v10677
        %10679 = vmatmul.bf16.gmra.mxu0 %v9992
        %v10680 = vpop.f32.mrf.mxu0
        %v10681 = vadd.f32 %v10652, %v10680
        %v10682 = vpop.f32.mrf.mxu0
        %v10683 = vadd.f32 %v10654, %v10682
        %10684 = vdwg.mxu0
        %10685 = vmatpush.bf16.msra.mxu0 %v10380
        %10686 = vmatpush.bf16.msra.mxu0 %v10379
        %10687 = vmatpush.bf16.msra.mxu0 %v10378
        %10688 = vmatpush.bf16.msra.mxu0 %v10377
        %10689 = vmatpush.bf16.msra.mxu0 %v10376
        %10690 = vmatpush.bf16.msra.mxu0 %v10375
        %10691 = vmatpush.bf16.msra.mxu0 %v10374
        %10692 = vmatpush.bf16.msra.mxu0 %v10373
        %10693 = vmatmul.bf16.gmra.mxu0 %v9975
        %v10694 = vpop.f32.mrf.mxu0
        %v10695 = vadd.f32 %v10666, %v10694
        %v10696 = vpop.f32.mrf.mxu0
        %v10697 = vadd.f32 %v10668, %v10696
        %10698 = vmatmul.bf16.gmra.mxu0 %v9981
        %v10699 = vpop.f32.mrf.mxu0
        %v10700 = vadd.f32 %v10671, %v10699
        %v10701 = vpop.f32.mrf.mxu0
        %v10702 = vadd.f32 %v10673, %v10701
        %10703 = vmatmul.bf16.gmra.mxu0 %v9987
        %v10704 = vpop.f32.mrf.mxu0
        %v10705 = vadd.f32 %v10676, %v10704
        %v10706 = vpop.f32.mrf.mxu0
        %v10707 = vadd.f32 %v10678, %v10706
        %10708 = vmatmul.bf16.gmra.mxu0 %v9993
        %v10709 = vpop.f32.mrf.mxu0
        %v10710 = vadd.f32 %v10681, %v10709
        %v10711 = vpop.f32.mrf.mxu0
        %v10712 = vadd.f32 %v10683, %v10711
        %10713 = vdwg.mxu0
        %v10714 = vmax.f32 %v10695, 0.0
        %v10715 = vmax.f32 %v10697, 0.0
        %v10716 = vmax.f32 %v10700, 0.0
        %v10717 = vmax.f32 %v10702, 0.0
        %v10718 = vmax.f32 %v10705, 0.0
        %v10719 = vmax.f32 %v10707, 0.0
        %v10720 = vmax.f32 %v10710, 0.0
        %v10721 = vmax.f32 %v10712, 0.0
        %v10730 = vrot.slane %v10714, 7
        %v10731 = vrot.slane %v10715, 7
        %v10732 = vrot.slane %v10716, 7
        %v10733 = vrot.slane %v10717, 7
        %v10734 = vrot.slane %v10718, 7
        %v10735 = vrot.slane %v10719, 7
        %v10736 = vrot.slane %v10720, 7
        %v10737 = vrot.slane %v10721, 7
        %v10746 = vsel %vm1025, 0.0, %v10730
        %v10747 = vsel %vm1025, 0.0, %v10731
        %v10748 = vsel %vm1025, 0.0, %v10732
        %v10749 = vsel %vm1025, 0.0, %v10733
        %v10750 = vsel %vm1025, 0.0, %v10734
        %v10751 = vsel %vm1025, 0.0, %v10735
        %v10752 = vsel %vm1025, 0.0, %v10736
        %v10753 = vsel %vm1025, 0.0, %v10737
        %v10754 = vrot.slane %v10714, 1
        %v10755 = vrot.slane %v10715, 1
        %v10756 = vrot.slane %v10716, 1
        %v10757 = vrot.slane %v10717, 1
        %v10758 = vrot.slane %v10718, 1
        %v10759 = vrot.slane %v10719, 1
        %v10760 = vrot.slane %v10720, 1
        %v10761 = vrot.slane %v10721, 1
        %v10770 = vsel %vm1122, %v10754, 0.0
        %v10771 = vsel %vm1122, %v10755, 0.0
        %v10772 = vsel %vm1122, %v10756, 0.0
        %v10773 = vsel %vm1122, %v10757, 0.0
        %v10774 = vsel %vm1122, %v10758, 0.0
        %v10775 = vsel %vm1122, %v10759, 0.0
        %v10776 = vsel %vm1122, %v10760, 0.0
        %v10777 = vsel %vm1122, %v10761, 0.0
        %v10778 = vpack.c.bf16 %v10746, %v10746
        %v10779 = vpack.c.bf16 %v10747, %v10747
        %v10780 = vpack.c.bf16 %v10748, %v10748
        %v10781 = vpack.c.bf16 %v10749, %v10749
        %v10782 = vpack.c.bf16 %v10750, %v10750
        %v10783 = vpack.c.bf16 %v10751, %v10751
        %v10784 = vpack.c.bf16 %v10752, %v10752
        %v10785 = vpack.c.bf16 %v10753, %v10753
        %v10786 = vpack.c.bf16 %v10714, %v10714
        %v10787 = vpack.c.bf16 %v10715, %v10715
        %v10788 = vpack.c.bf16 %v10716, %v10716
        %v10789 = vpack.c.bf16 %v10717, %v10717
        %v10790 = vpack.c.bf16 %v10718, %v10718
        %v10791 = vpack.c.bf16 %v10719, %v10719
        %v10792 = vpack.c.bf16 %v10720, %v10720
        %v10793 = vpack.c.bf16 %v10721, %v10721
        %v10794 = vpack.c.bf16 %v10770, %v10770
        %v10795 = vpack.c.bf16 %v10771, %v10771
        %v10796 = vpack.c.bf16 %v10772, %v10772
        %v10797 = vpack.c.bf16 %v10773, %v10773
        %v10798 = vpack.c.bf16 %v10774, %v10774
        %v10799 = vpack.c.bf16 %v10775, %v10775
        %v10800 = vpack.c.bf16 %v10776, %v10776
        %v10801 = vpack.c.bf16 %v10777, %v10777
        %v10826 = vunpack.c.l.b16 %v10778
        %v10827 = vunpack.c.l.b16 %v10786
        %v10828 = vunpack.c.l.b16 %v10794
        %v10829 = vunpack.c.l.b16 %v10779
        %v10830 = vunpack.c.l.b16 %v10787
        %v10831 = vunpack.c.l.b16 %v10795
        %v10832 = vunpack.c.l.b16 %v10780
        %v10833 = vunpack.c.l.b16 %v10788
        %v10834 = vunpack.c.l.b16 %v10796
        %v10835 = vunpack.c.l.b16 %v10781
        %v10836 = vunpack.c.l.b16 %v10789
        %v10837 = vunpack.c.l.b16 %v10797
        %v10838 = vunpack.c.l.b16 %v10782
        %v10839 = vunpack.c.l.b16 %v10790
        %v10840 = vunpack.c.l.b16 %v10798
        %v10841 = vunpack.c.l.b16 %v10783
        %v10842 = vunpack.c.l.b16 %v10791
        %v10843 = vunpack.c.l.b16 %v10799
        %v10844 = vunpack.c.l.b16 %v10784
        %v10845 = vunpack.c.l.b16 %v10792
        %v10846 = vunpack.c.l.b16 %v10800
        %v10847 = vunpack.c.l.b16 %v10785
        %v10848 = vunpack.c.l.b16 %v10793
        %v10849 = vunpack.c.l.b16 %v10801
        %v10850 = vld [vmem:[%s17] sm:$0xf]
        %v10851 = vld [vmem:[%s17 + $0x4] sm:$0xf]
        %v10852 = vld [vmem:[%s17 + $0x8] sm:$0xf]
        %v10853 = vld [vmem:[%s17 + $0xc] sm:$0xf]
        %v10854 = vld [vmem:[%s17 + $0x10] sm:$0xf]
        %v10855 = vld [vmem:[%s17 + $0x14] sm:$0xf]
        %v10856 = vld [vmem:[%s17 + $0x18] sm:$0xf]
        %v10857 = vld [vmem:[%s17 + $0x1c] sm:$0xf]
        %v10858 = vld [vmem:[%s17 + $0x20] sm:$0xf]
        %v10859 = vld [vmem:[%s17 + $0x24] sm:$0xf]
        %v10860 = vld [vmem:[%s17 + $0x28] sm:$0xf]
        %v10861 = vld [vmem:[%s17 + $0x2c] sm:$0xf]
        %v10862 = vld [vmem:[%s17 + $0x30] sm:$0xf]
        %v10863 = vld [vmem:[%s17 + $0x34] sm:$0xf]
        %v10864 = vld [vmem:[%s17 + $0x38] sm:$0xf]
        %v10865 = vld [vmem:[%s17 + $0x3c] sm:$0xf]
        %v10866 = vld [vmem:[%s17 + $0x40] sm:$0xf]
        %v10867 = vld [vmem:[%s17 + $0x44] sm:$0xf]
        %v10868 = vld [vmem:[%s17 + $0x48] sm:$0xf]
        %v10869 = vld [vmem:[%s17 + $0x4c] sm:$0xf]
        %v10870 = vld [vmem:[%s17 + $0x50] sm:$0xf]
        %v10871 = vld [vmem:[%s17 + $0x54] sm:$0xf]
        %v10872 = vld [vmem:[%s17 + $0x58] sm:$0xf]
        %v10873 = vld [vmem:[%s17 + $0x5c] sm:$0xf]
        %v10874 = vld [vmem:[%s17 + $0x60] sm:$0xf]
        %v10875 = vld [vmem:[%s17 + $0x64] sm:$0xf]
        %v10876 = vld [vmem:[%s17 + $0x68] sm:$0xf]
        %v10877 = vld [vmem:[%s17 + $0x6c] sm:$0xf]
        %v10878 = vld [vmem:[%s17 + $0x70] sm:$0xf]
        %v10879 = vld [vmem:[%s17 + $0x74] sm:$0xf]
        %v10880 = vld [vmem:[%s17 + $0x78] sm:$0xf]
        %v10881 = vld [vmem:[%s17 + $0x7c] sm:$0xf]
        %v10882 = vld [vmem:[%s17 + $0x80] sm:$0xf]
        %v10883 = vld [vmem:[%s17 + $0x84] sm:$0xf]
        %v10884 = vld [vmem:[%s17 + $0x88] sm:$0xf]
        %v10885 = vld [vmem:[%s17 + $0x8c] sm:$0xf]
        %v10886 = vld [vmem:[%s17 + $0x90] sm:$0xf]
        %v10887 = vld [vmem:[%s17 + $0x94] sm:$0xf]
        %v10888 = vld [vmem:[%s17 + $0x98] sm:$0xf]
        %v10889 = vld [vmem:[%s17 + $0x9c] sm:$0xf]
        %v10890 = vld [vmem:[%s17 + $0xa0] sm:$0xf]
        %v10891 = vld [vmem:[%s17 + $0xa4] sm:$0xf]
        %v10892 = vld [vmem:[%s17 + $0xa8] sm:$0xf]
        %v10893 = vld [vmem:[%s17 + $0xac] sm:$0xf]
        %v10894 = vld [vmem:[%s17 + $0xb0] sm:$0xf]
        %v10895 = vld [vmem:[%s17 + $0xb4] sm:$0xf]
        %v10896 = vld [vmem:[%s17 + $0xb8] sm:$0xf]
        %v10897 = vld [vmem:[%s17 + $0xbc] sm:$0xf]
        %v10898 = vld [vmem:[%s17 + $0xc0] sm:$0xf]
        %v10899 = vld [vmem:[%s17 + $0xc4] sm:$0xf]
        %v10900 = vld [vmem:[%s17 + $0xc8] sm:$0xf]
        %v10901 = vld [vmem:[%s17 + $0xcc] sm:$0xf]
        %v10902 = vld [vmem:[%s17 + $0xd0] sm:$0xf]
        %v10903 = vld [vmem:[%s17 + $0xd4] sm:$0xf]
        %v10904 = vld [vmem:[%s17 + $0xd8] sm:$0xf]
        %v10905 = vld [vmem:[%s17 + $0xdc] sm:$0xf]
        %v10906 = vld [vmem:[%s17 + $0xe0] sm:$0xf]
        %v10907 = vld [vmem:[%s17 + $0xe4] sm:$0xf]
        %v10908 = vld [vmem:[%s17 + $0xe8] sm:$0xf]
        %v10909 = vld [vmem:[%s17 + $0xec] sm:$0xf]
        %v10910 = vld [vmem:[%s17 + $0xf0] sm:$0xf]
        %v10911 = vld [vmem:[%s17 + $0xf4] sm:$0xf]
        %v10912 = vld [vmem:[%s17 + $0xf8] sm:$0xf]
        %v10913 = vld [vmem:[%s17 + $0xfc] sm:$0xf]
        %v10914 = vld [vmem:[%s17 + $0x100] sm:$0xf]
        %v10915 = vld [vmem:[%s17 + $0x104] sm:$0xf]
        %v10916 = vld [vmem:[%s17 + $0x108] sm:$0xf]
        %v10917 = vld [vmem:[%s17 + $0x10c] sm:$0xf]
        %v10918 = vld [vmem:[%s17 + $0x110] sm:$0xf]
        %v10919 = vld [vmem:[%s17 + $0x114] sm:$0xf]
        %v10920 = vld [vmem:[%s17 + $0x118] sm:$0xf]
        %v10921 = vld [vmem:[%s17 + $0x11c] sm:$0xf]
        %v10922 = vld [vmem:[%s17 + $0x120] sm:$0xf]
        %v10923 = vld [vmem:[%s17 + $0x124] sm:$0xf]
        %v10924 = vld [vmem:[%s17 + $0x128] sm:$0xf]
        %v10925 = vld [vmem:[%s17 + $0x12c] sm:$0xf]
        %v10926 = vld [vmem:[%s17 + $0x130] sm:$0xf]
        %v10927 = vld [vmem:[%s17 + $0x134] sm:$0xf]
        %v10928 = vld [vmem:[%s17 + $0x138] sm:$0xf]
        %v10929 = vld [vmem:[%s17 + $0x13c] sm:$0xf]
        %v10930 = vld [vmem:[%s17 + $0x140] sm:$0xf]
        %v10931 = vld [vmem:[%s17 + $0x144] sm:$0xf]
        %v10932 = vld [vmem:[%s17 + $0x148] sm:$0xf]
        %v10933 = vld [vmem:[%s17 + $0x14c] sm:$0xf]
        %v10934 = vld [vmem:[%s17 + $0x150] sm:$0xf]
        %v10935 = vld [vmem:[%s17 + $0x154] sm:$0xf]
        %v10936 = vld [vmem:[%s17 + $0x158] sm:$0xf]
        %v10937 = vld [vmem:[%s17 + $0x15c] sm:$0xf]
        %v10938 = vld [vmem:[%s17 + $0x160] sm:$0xf]
        %v10939 = vld [vmem:[%s17 + $0x164] sm:$0xf]
        %v10940 = vld [vmem:[%s17 + $0x168] sm:$0xf]
        %v10941 = vld [vmem:[%s17 + $0x16c] sm:$0xf]
        %v10942 = vld [vmem:[%s17 + $0x170] sm:$0xf]
        %v10943 = vld [vmem:[%s17 + $0x174] sm:$0xf]
        %v10944 = vld [vmem:[%s17 + $0x178] sm:$0xf]
        %v10945 = vld [vmem:[%s17 + $0x17c] sm:$0xf]
        %v10946 = vld [vmem:[%s17 + $0x180] sm:$0xf]
        %v10947 = vld [vmem:[%s17 + $0x184] sm:$0xf]
        %v10948 = vld [vmem:[%s17 + $0x188] sm:$0xf]
        %v10949 = vld [vmem:[%s17 + $0x18c] sm:$0xf]
        %v10950 = vld [vmem:[%s17 + $0x190] sm:$0xf]
        %v10951 = vld [vmem:[%s17 + $0x194] sm:$0xf]
        %v10952 = vld [vmem:[%s17 + $0x198] sm:$0xf]
        %v10953 = vld [vmem:[%s17 + $0x19c] sm:$0xf]
        %v10954 = vld [vmem:[%s17 + $0x1a0] sm:$0xf]
        %v10955 = vld [vmem:[%s17 + $0x1a4] sm:$0xf]
        %v10956 = vld [vmem:[%s17 + $0x1a8] sm:$0xf]
        %v10957 = vld [vmem:[%s17 + $0x1ac] sm:$0xf]
        %v10958 = vld [vmem:[%s17 + $0x1b0] sm:$0xf]
        %v10959 = vld [vmem:[%s17 + $0x1b4] sm:$0xf]
        %v10960 = vld [vmem:[%s17 + $0x1b8] sm:$0xf]
        %v10961 = vld [vmem:[%s17 + $0x1bc] sm:$0xf]
        %v10962 = vld [vmem:[%s17 + $0x1c0] sm:$0xf]
        %v10963 = vld [vmem:[%s17 + $0x1c4] sm:$0xf]
        %v10964 = vld [vmem:[%s17 + $0x1c8] sm:$0xf]
        %v10965 = vld [vmem:[%s17 + $0x1cc] sm:$0xf]
        %v10966 = vld [vmem:[%s17 + $0x1d0] sm:$0xf]
        %v10967 = vld [vmem:[%s17 + $0x1d4] sm:$0xf]
        %v10968 = vld [vmem:[%s17 + $0x1d8] sm:$0xf]
        %v10969 = vld [vmem:[%s17 + $0x1dc] sm:$0xf]
        %v10970 = vld [vmem:[%s17 + $0x1e0] sm:$0xf]
        %v10971 = vld [vmem:[%s17 + $0x1e4] sm:$0xf]
        %v10972 = vld [vmem:[%s17 + $0x1e8] sm:$0xf]
        %v10973 = vld [vmem:[%s17 + $0x1ec] sm:$0xf]
        %v10974 = vld [vmem:[%s17 + $0x1f0] sm:$0xf]
        %v10975 = vld [vmem:[%s17 + $0x1f4] sm:$0xf]
        %v10976 = vld [vmem:[%s17 + $0x1f8] sm:$0xf]
        %v10977 = vld [vmem:[%s17 + $0x1fc] sm:$0xf]
        %v10978 = vld [vmem:[%s17 + $0x200] sm:$0xf]
        %v10979 = vld [vmem:[%s17 + $0x204] sm:$0xf]
        %v10980 = vld [vmem:[%s17 + $0x208] sm:$0xf]
        %v10981 = vld [vmem:[%s17 + $0x20c] sm:$0xf]
        %v10982 = vld [vmem:[%s17 + $0x210] sm:$0xf]
        %v10983 = vld [vmem:[%s17 + $0x214] sm:$0xf]
        %v10984 = vld [vmem:[%s17 + $0x218] sm:$0xf]
        %v10985 = vld [vmem:[%s17 + $0x21c] sm:$0xf]
        %v10986 = vld [vmem:[%s17 + $0x220] sm:$0xf]
        %v10987 = vld [vmem:[%s17 + $0x224] sm:$0xf]
        %v10988 = vld [vmem:[%s17 + $0x228] sm:$0xf]
        %v10989 = vld [vmem:[%s17 + $0x22c] sm:$0xf]
        %v10990 = vld [vmem:[%s17 + $0x230] sm:$0xf]
        %v10991 = vld [vmem:[%s17 + $0x234] sm:$0xf]
        %v10992 = vld [vmem:[%s17 + $0x238] sm:$0xf]
        %v10993 = vld [vmem:[%s17 + $0x23c] sm:$0xf]
        %v10994 = vld [vmem:[%s18] sm:$0x1]
        %v10996 = vperm.slane %v10994, 0
        %v10998 = vpack.c.b16 %v10826, %v8670
        %v10999 = vpack.c.b16 %v10827, %v8670
        %v11000 = vpack.c.b16 %v10828, %v8670
        %v11001 = vpack.c.b16 %v10829, %v10826
        %v11002 = vpack.c.b16 %v10830, %v10827
        %v11003 = vpack.c.b16 %v10831, %v10828
        %v11004 = vpack.c.b16 %v10832, %v10829
        %v11005 = vpack.c.b16 %v10833, %v10830
        %v11006 = vpack.c.b16 %v10834, %v10831
        %v11007 = vpack.c.b16 %v10835, %v10832
        %v11008 = vpack.c.b16 %v10836, %v10833
        %v11009 = vpack.c.b16 %v10837, %v10834
        %v11010 = vpack.c.b16 %v10838, %v10835
        %v11011 = vpack.c.b16 %v10839, %v10836
        %v11012 = vpack.c.b16 %v10840, %v10837
        %v11013 = vpack.c.b16 %v10841, %v10838
        %v11014 = vpack.c.b16 %v10842, %v10839
        %v11015 = vpack.c.b16 %v10843, %v10840
        %v11016 = vpack.c.b16 %v10844, %v10841
        %v11017 = vpack.c.b16 %v10845, %v10842
        %v11018 = vpack.c.b16 %v10846, %v10843
        %v11019 = vpack.c.b16 %v10847, %v10844
        %v11020 = vpack.c.b16 %v10848, %v10845
        %v11021 = vpack.c.b16 %v10849, %v10846
        %v11022 = vpack.c.b16 %v8670, %v10847
        %v11023 = vpack.c.b16 %v8670, %v10848
        %v11024 = vpack.c.b16 %v8670, %v10849
        %v11196 = vunpack.c.l.b16 %v10850
        %v11197 = vunpack.c.l.b16 %v10851
        %v11198 = vunpack.c.l.b16 %v10852
        %v11199 = vunpack.c.l.b16 %v10853
        %v11200 = vunpack.c.l.b16 %v10854
        %v11201 = vunpack.c.l.b16 %v10855
        %v11202 = vunpack.c.l.b16 %v10856
        %v11203 = vunpack.c.l.b16 %v10857
        %v11204 = vunpack.c.l.b16 %v10858
        %v11205 = vunpack.c.l.b16 %v10859
        %v11206 = vunpack.c.l.b16 %v10860
        %v11207 = vunpack.c.l.b16 %v10861
        %v11208 = vunpack.c.l.b16 %v10862
        %v11209 = vunpack.c.l.b16 %v10863
        %v11210 = vunpack.c.l.b16 %v10864
        %v11211 = vunpack.c.l.b16 %v10865
        %v11212 = vunpack.c.l.b16 %v10866
        %v11213 = vunpack.c.l.b16 %v10867
        %v11214 = vunpack.c.l.b16 %v10868
        %v11215 = vunpack.c.l.b16 %v10869
        %v11216 = vunpack.c.l.b16 %v10870
        %v11217 = vunpack.c.l.b16 %v10871
        %v11218 = vunpack.c.l.b16 %v10872
        %v11219 = vunpack.c.l.b16 %v10873
        %v11220 = vunpack.c.l.b16 %v10874
        %v11221 = vunpack.c.l.b16 %v10875
        %v11222 = vunpack.c.l.b16 %v10876
        %v11223 = vunpack.c.l.b16 %v10877
        %v11224 = vunpack.c.l.b16 %v10878
        %v11225 = vunpack.c.l.b16 %v10879
        %v11226 = vunpack.c.l.b16 %v10880
        %v11227 = vunpack.c.l.b16 %v10881
        %v11228 = vunpack.c.l.b16 %v10882
        %v11229 = vunpack.c.l.b16 %v10883
        %v11230 = vunpack.c.l.b16 %v10884
        %v11231 = vunpack.c.l.b16 %v10885
        %v11232 = vunpack.c.l.b16 %v10886
        %v11233 = vunpack.c.l.b16 %v10887
        %v11234 = vunpack.c.l.b16 %v10888
        %v11235 = vunpack.c.l.b16 %v10889
        %v11236 = vunpack.c.l.b16 %v10890
        %v11237 = vunpack.c.l.b16 %v10891
        %v11238 = vunpack.c.l.b16 %v10892
        %v11239 = vunpack.c.l.b16 %v10893
        %v11240 = vunpack.c.l.b16 %v10894
        %v11241 = vunpack.c.l.b16 %v10895
        %v11242 = vunpack.c.l.b16 %v10896
        %v11243 = vunpack.c.l.b16 %v10897
        %v11244 = vunpack.c.l.b16 %v10898
        %v11245 = vunpack.c.l.b16 %v10899
        %v11246 = vunpack.c.l.b16 %v10900
        %v11247 = vunpack.c.l.b16 %v10901
        %v11248 = vunpack.c.l.b16 %v10902
        %v11249 = vunpack.c.l.b16 %v10903
        %v11250 = vunpack.c.l.b16 %v10904
        %v11251 = vunpack.c.l.b16 %v10905
        %v11252 = vunpack.c.l.b16 %v10906
        %v11253 = vunpack.c.l.b16 %v10907
        %v11254 = vunpack.c.l.b16 %v10908
        %v11255 = vunpack.c.l.b16 %v10909
        %v11256 = vunpack.c.l.b16 %v10910
        %v11257 = vunpack.c.l.b16 %v10911
        %v11258 = vunpack.c.l.b16 %v10912
        %v11259 = vunpack.c.l.b16 %v10913
        %v11260 = vunpack.c.l.b16 %v10914
        %v11261 = vunpack.c.l.b16 %v10915
        %v11262 = vunpack.c.l.b16 %v10916
        %v11263 = vunpack.c.l.b16 %v10917
        %v11264 = vunpack.c.l.b16 %v10918
        %v11265 = vunpack.c.l.b16 %v10919
        %v11266 = vunpack.c.l.b16 %v10920
        %v11267 = vunpack.c.l.b16 %v10921
        %v11268 = vunpack.c.l.b16 %v10922
        %v11269 = vunpack.c.l.b16 %v10923
        %v11270 = vunpack.c.l.b16 %v10924
        %v11271 = vunpack.c.l.b16 %v10925
        %v11272 = vunpack.c.l.b16 %v10926
        %v11273 = vunpack.c.l.b16 %v10927
        %v11274 = vunpack.c.l.b16 %v10928
        %v11275 = vunpack.c.l.b16 %v10929
        %v11276 = vunpack.c.l.b16 %v10930
        %v11277 = vunpack.c.l.b16 %v10931
        %v11278 = vunpack.c.l.b16 %v10932
        %v11279 = vunpack.c.l.b16 %v10933
        %v11280 = vunpack.c.l.b16 %v10934
        %v11281 = vunpack.c.l.b16 %v10935
        %v11282 = vunpack.c.l.b16 %v10936
        %v11283 = vunpack.c.l.b16 %v10937
        %v11284 = vunpack.c.l.b16 %v10938
        %v11285 = vunpack.c.l.b16 %v10939
        %v11286 = vunpack.c.l.b16 %v10940
        %v11287 = vunpack.c.l.b16 %v10941
        %v11288 = vunpack.c.l.b16 %v10942
        %v11289 = vunpack.c.l.b16 %v10943
        %v11290 = vunpack.c.l.b16 %v10944
        %v11291 = vunpack.c.l.b16 %v10945
        %v11292 = vunpack.c.l.b16 %v10946
        %v11293 = vunpack.c.l.b16 %v10947
        %v11294 = vunpack.c.l.b16 %v10948
        %v11295 = vunpack.c.l.b16 %v10949
        %v11296 = vunpack.c.l.b16 %v10950
        %v11297 = vunpack.c.l.b16 %v10951
        %v11298 = vunpack.c.l.b16 %v10952
        %v11299 = vunpack.c.l.b16 %v10953
        %v11300 = vunpack.c.l.b16 %v10954
        %v11301 = vunpack.c.l.b16 %v10955
        %v11302 = vunpack.c.l.b16 %v10956
        %v11303 = vunpack.c.l.b16 %v10957
        %v11304 = vunpack.c.l.b16 %v10958
        %v11305 = vunpack.c.l.b16 %v10959
        %v11306 = vunpack.c.l.b16 %v10960
        %v11307 = vunpack.c.l.b16 %v10961
        %v11308 = vunpack.c.l.b16 %v10962
        %v11309 = vunpack.c.l.b16 %v10963
        %v11310 = vunpack.c.l.b16 %v10964
        %v11311 = vunpack.c.l.b16 %v10965
        %v11312 = vunpack.c.l.b16 %v10966
        %v11313 = vunpack.c.l.b16 %v10967
        %v11314 = vunpack.c.l.b16 %v10968
        %v11315 = vunpack.c.l.b16 %v10969
        %v11316 = vunpack.c.l.b16 %v10970
        %v11317 = vunpack.c.l.b16 %v10971
        %v11318 = vunpack.c.l.b16 %v10972
        %v11319 = vunpack.c.l.b16 %v10973
        %v11320 = vunpack.c.l.b16 %v10974
        %v11321 = vunpack.c.l.b16 %v10975
        %v11322 = vunpack.c.l.b16 %v10976
        %v11323 = vunpack.c.l.b16 %v10977
        %v11324 = vunpack.c.l.b16 %v10978
        %v11325 = vunpack.c.l.b16 %v10979
        %v11326 = vunpack.c.l.b16 %v10980
        %v11327 = vunpack.c.l.b16 %v10981
        %v11328 = vunpack.c.l.b16 %v10982
        %v11329 = vunpack.c.l.b16 %v10983
        %v11330 = vunpack.c.l.b16 %v10984
        %v11331 = vunpack.c.l.b16 %v10985
        %v11332 = vunpack.c.l.b16 %v10986
        %v11333 = vunpack.c.l.b16 %v10987
        %v11334 = vunpack.c.l.b16 %v10988
        %v11335 = vunpack.c.l.b16 %v10989
        %v11336 = vunpack.c.l.b16 %v10990
        %v11337 = vunpack.c.l.b16 %v10991
        %v11338 = vunpack.c.l.b16 %v10992
        %v11339 = vunpack.c.l.b16 %v10993
        %v11340 = vpack.c.b16 %v11197, %v11196
        %v11341 = vpack.c.b16 %v11199, %v11198
        %v11342 = vpack.c.b16 %v11201, %v11200
        %v11343 = vpack.c.b16 %v11203, %v11202
        %v11344 = vpack.c.b16 %v11205, %v11204
        %v11345 = vpack.c.b16 %v11207, %v11206
        %v11346 = vpack.c.b16 %v11209, %v11208
        %v11347 = vpack.c.b16 %v11211, %v11210
        %v11348 = vpack.c.b16 %v11213, %v11212
        %v11349 = vpack.c.b16 %v11215, %v11214
        %v11350 = vpack.c.b16 %v11217, %v11216
        %v11351 = vpack.c.b16 %v11219, %v11218
        %v11352 = vpack.c.b16 %v11221, %v11220
        %v11353 = vpack.c.b16 %v11223, %v11222
        %v11354 = vpack.c.b16 %v11225, %v11224
        %v11355 = vpack.c.b16 %v11227, %v11226
        %v11356 = vpack.c.b16 %v11229, %v11228
        %v11357 = vpack.c.b16 %v11231, %v11230
        %v11358 = vpack.c.b16 %v11233, %v11232
        %v11359 = vpack.c.b16 %v11235, %v11234
        %v11360 = vpack.c.b16 %v11237, %v11236
        %v11361 = vpack.c.b16 %v11239, %v11238
        %v11362 = vpack.c.b16 %v11241, %v11240
        %v11363 = vpack.c.b16 %v11243, %v11242
        %v11364 = vpack.c.b16 %v11245, %v11244
        %v11365 = vpack.c.b16 %v11247, %v11246
        %v11366 = vpack.c.b16 %v11249, %v11248
        %v11367 = vpack.c.b16 %v11251, %v11250
        %v11368 = vpack.c.b16 %v11253, %v11252
        %v11369 = vpack.c.b16 %v11255, %v11254
        %v11370 = vpack.c.b16 %v11257, %v11256
        %v11371 = vpack.c.b16 %v11259, %v11258
        %v11372 = vpack.c.b16 %v11261, %v11260
        %v11373 = vpack.c.b16 %v11263, %v11262
        %v11374 = vpack.c.b16 %v11265, %v11264
        %v11375 = vpack.c.b16 %v11267, %v11266
        %v11376 = vpack.c.b16 %v11269, %v11268
        %v11377 = vpack.c.b16 %v11271, %v11270
        %v11378 = vpack.c.b16 %v11273, %v11272
        %v11379 = vpack.c.b16 %v11275, %v11274
        %v11380 = vpack.c.b16 %v11277, %v11276
        %v11381 = vpack.c.b16 %v11279, %v11278
        %v11382 = vpack.c.b16 %v11281, %v11280
        %v11383 = vpack.c.b16 %v11283, %v11282
        %v11384 = vpack.c.b16 %v11285, %v11284
        %v11385 = vpack.c.b16 %v11287, %v11286
        %v11386 = vpack.c.b16 %v11289, %v11288
        %v11387 = vpack.c.b16 %v11291, %v11290
        %v11388 = vpack.c.b16 %v11293, %v11292
        %v11389 = vpack.c.b16 %v11295, %v11294
        %v11390 = vpack.c.b16 %v11297, %v11296
        %v11391 = vpack.c.b16 %v11299, %v11298
        %v11392 = vpack.c.b16 %v11301, %v11300
        %v11393 = vpack.c.b16 %v11303, %v11302
        %v11394 = vpack.c.b16 %v11305, %v11304
        %v11395 = vpack.c.b16 %v11307, %v11306
        %v11396 = vpack.c.b16 %v11309, %v11308
        %v11397 = vpack.c.b16 %v11311, %v11310
        %v11398 = vpack.c.b16 %v11313, %v11312
        %v11399 = vpack.c.b16 %v11315, %v11314
        %v11400 = vpack.c.b16 %v11317, %v11316
        %v11401 = vpack.c.b16 %v11319, %v11318
        %v11402 = vpack.c.b16 %v11321, %v11320
        %v11403 = vpack.c.b16 %v11323, %v11322
        %v11404 = vpack.c.b16 %v11325, %v11324
        %v11405 = vpack.c.b16 %v11327, %v11326
        %v11406 = vpack.c.b16 %v11329, %v11328
        %v11407 = vpack.c.b16 %v11331, %v11330
        %v11408 = vpack.c.b16 %v11333, %v11332
        %v11409 = vpack.c.b16 %v11335, %v11334
        %v11410 = vpack.c.b16 %v11337, %v11336
        %v11411 = vpack.c.b16 %v11339, %v11338
        %11484 = vmatpush.bf16.msra.mxu0 %v11347
        %11485 = vmatpush.bf16.msra.mxu0 %v11346
        %11486 = vmatpush.bf16.msra.mxu0 %v11345
        %11487 = vmatpush.bf16.msra.mxu0 %v11344
        %11488 = vmatpush.bf16.msra.mxu0 %v11343
        %11489 = vmatpush.bf16.msra.mxu0 %v11342
        %11490 = vmatpush.bf16.msra.mxu0 %v11341
        %11491 = vmatpush.bf16.msra.mxu0 %v11340
        %11492 = vmatmul.bf16.gmra.mxu0 %v10998
        %v11493 = vpop.f32.mrf.mxu0
        %v11494 = vadd.f32 %v10996, %v11493
        %v11495 = vpop.f32.mrf.mxu0
        %v11496 = vadd.f32 %v10996, %v11495
        %11497 = vmatmul.bf16.gmra.mxu0 %v11004
        %v11498 = vpop.f32.mrf.mxu0
        %v11499 = vadd.f32 %v10996, %v11498
        %v11500 = vpop.f32.mrf.mxu0
        %v11501 = vadd.f32 %v10996, %v11500
        %11502 = vmatmul.bf16.gmra.mxu0 %v11010
        %v11503 = vpop.f32.mrf.mxu0
        %v11504 = vadd.f32 %v10996, %v11503
        %v11505 = vpop.f32.mrf.mxu0
        %v11506 = vadd.f32 %v10996, %v11505
        %11507 = vmatmul.bf16.gmra.mxu0 %v11016
        %v11508 = vpop.f32.mrf.mxu0
        %v11509 = vadd.f32 %v10996, %v11508
        %v11510 = vpop.f32.mrf.mxu0
        %v11511 = vadd.f32 %v10996, %v11510
        %11512 = vdwg.mxu0
        %11513 = vmatpush.bf16.msra.mxu0 %v11355
        %11514 = vmatpush.bf16.msra.mxu0 %v11354
        %11515 = vmatpush.bf16.msra.mxu0 %v11353
        %11516 = vmatpush.bf16.msra.mxu0 %v11352
        %11517 = vmatpush.bf16.msra.mxu0 %v11351
        %11518 = vmatpush.bf16.msra.mxu0 %v11350
        %11519 = vmatpush.bf16.msra.mxu0 %v11349
        %11520 = vmatpush.bf16.msra.mxu0 %v11348
        %11521 = vmatmul.bf16.gmra.mxu0 %v10999
        %v11522 = vpop.f32.mrf.mxu0
        %v11523 = vadd.f32 %v11494, %v11522
        %v11524 = vpop.f32.mrf.mxu0
        %v11525 = vadd.f32 %v11496, %v11524
        %11526 = vmatmul.bf16.gmra.mxu0 %v11005
        %v11527 = vpop.f32.mrf.mxu0
        %v11528 = vadd.f32 %v11499, %v11527
        %v11529 = vpop.f32.mrf.mxu0
        %v11530 = vadd.f32 %v11501, %v11529
        %11531 = vmatmul.bf16.gmra.mxu0 %v11011
        %v11532 = vpop.f32.mrf.mxu0
        %v11533 = vadd.f32 %v11504, %v11532
        %v11534 = vpop.f32.mrf.mxu0
        %v11535 = vadd.f32 %v11506, %v11534
        %11536 = vmatmul.bf16.gmra.mxu0 %v11017
        %v11537 = vpop.f32.mrf.mxu0
        %v11538 = vadd.f32 %v11509, %v11537
        %v11539 = vpop.f32.mrf.mxu0
        %v11540 = vadd.f32 %v11511, %v11539
        %11541 = vdwg.mxu0
        %11542 = vmatpush.bf16.msra.mxu0 %v11363
        %11543 = vmatpush.bf16.msra.mxu0 %v11362
        %11544 = vmatpush.bf16.msra.mxu0 %v11361
        %11545 = vmatpush.bf16.msra.mxu0 %v11360
        %11546 = vmatpush.bf16.msra.mxu0 %v11359
        %11547 = vmatpush.bf16.msra.mxu0 %v11358
        %11548 = vmatpush.bf16.msra.mxu0 %v11357
        %11549 = vmatpush.bf16.msra.mxu0 %v11356
        %11550 = vmatmul.bf16.gmra.mxu0 %v11000
        %v11551 = vpop.f32.mrf.mxu0
        %v11552 = vadd.f32 %v11523, %v11551
        %v11553 = vpop.f32.mrf.mxu0
        %v11554 = vadd.f32 %v11525, %v11553
        %11555 = vmatmul.bf16.gmra.mxu0 %v11006
        %v11556 = vpop.f32.mrf.mxu0
        %v11557 = vadd.f32 %v11528, %v11556
        %v11558 = vpop.f32.mrf.mxu0
        %v11559 = vadd.f32 %v11530, %v11558
        %11560 = vmatmul.bf16.gmra.mxu0 %v11012
        %v11561 = vpop.f32.mrf.mxu0
        %v11562 = vadd.f32 %v11533, %v11561
        %v11563 = vpop.f32.mrf.mxu0
        %v11564 = vadd.f32 %v11535, %v11563
        %11565 = vmatmul.bf16.gmra.mxu0 %v11018
        %v11566 = vpop.f32.mrf.mxu0
        %v11567 = vadd.f32 %v11538, %v11566
        %v11568 = vpop.f32.mrf.mxu0
        %v11569 = vadd.f32 %v11540, %v11568
        %11570 = vdwg.mxu0
        %11571 = vmatpush.bf16.msra.mxu0 %v11371
        %11572 = vmatpush.bf16.msra.mxu0 %v11370
        %11573 = vmatpush.bf16.msra.mxu0 %v11369
        %11574 = vmatpush.bf16.msra.mxu0 %v11368
        %11575 = vmatpush.bf16.msra.mxu0 %v11367
        %11576 = vmatpush.bf16.msra.mxu0 %v11366
        %11577 = vmatpush.bf16.msra.mxu0 %v11365
        %11578 = vmatpush.bf16.msra.mxu0 %v11364
        %11579 = vmatmul.bf16.gmra.mxu0 %v11001
        %v11580 = vpop.f32.mrf.mxu0
        %v11581 = vadd.f32 %v11552, %v11580
        %v11582 = vpop.f32.mrf.mxu0
        %v11583 = vadd.f32 %v11554, %v11582
        %11584 = vmatmul.bf16.gmra.mxu0 %v11007
        %v11585 = vpop.f32.mrf.mxu0
        %v11586 = vadd.f32 %v11557, %v11585
        %v11587 = vpop.f32.mrf.mxu0
        %v11588 = vadd.f32 %v11559, %v11587
        %11589 = vmatmul.bf16.gmra.mxu0 %v11013
        %v11590 = vpop.f32.mrf.mxu0
        %v11591 = vadd.f32 %v11562, %v11590
        %v11592 = vpop.f32.mrf.mxu0
        %v11593 = vadd.f32 %v11564, %v11592
        %11594 = vmatmul.bf16.gmra.mxu0 %v11019
        %v11595 = vpop.f32.mrf.mxu0
        %v11596 = vadd.f32 %v11567, %v11595
        %v11597 = vpop.f32.mrf.mxu0
        %v11598 = vadd.f32 %v11569, %v11597
        %11599 = vdwg.mxu0
        %11600 = vmatpush.bf16.msra.mxu0 %v11379
        %11601 = vmatpush.bf16.msra.mxu0 %v11378
        %11602 = vmatpush.bf16.msra.mxu0 %v11377
        %11603 = vmatpush.bf16.msra.mxu0 %v11376
        %11604 = vmatpush.bf16.msra.mxu0 %v11375
        %11605 = vmatpush.bf16.msra.mxu0 %v11374
        %11606 = vmatpush.bf16.msra.mxu0 %v11373
        %11607 = vmatpush.bf16.msra.mxu0 %v11372
        %11608 = vmatmul.bf16.gmra.mxu0 %v11002
        %v11609 = vpop.f32.mrf.mxu0
        %v11610 = vadd.f32 %v11581, %v11609
        %v11611 = vpop.f32.mrf.mxu0
        %v11612 = vadd.f32 %v11583, %v11611
        %11613 = vmatmul.bf16.gmra.mxu0 %v11008
        %v11614 = vpop.f32.mrf.mxu0
        %v11615 = vadd.f32 %v11586, %v11614
        %v11616 = vpop.f32.mrf.mxu0
        %v11617 = vadd.f32 %v11588, %v11616
        %11618 = vmatmul.bf16.gmra.mxu0 %v11014
        %v11619 = vpop.f32.mrf.mxu0
        %v11620 = vadd.f32 %v11591, %v11619
        %v11621 = vpop.f32.mrf.mxu0
        %v11622 = vadd.f32 %v11593, %v11621
        %11623 = vmatmul.bf16.gmra.mxu0 %v11020
        %v11624 = vpop.f32.mrf.mxu0
        %v11625 = vadd.f32 %v11596, %v11624
        %v11626 = vpop.f32.mrf.mxu0
        %v11627 = vadd.f32 %v11598, %v11626
        %11628 = vdwg.mxu0
        %11629 = vmatpush.bf16.msra.mxu0 %v11387
        %11630 = vmatpush.bf16.msra.mxu0 %v11386
        %11631 = vmatpush.bf16.msra.mxu0 %v11385
        %11632 = vmatpush.bf16.msra.mxu0 %v11384
        %11633 = vmatpush.bf16.msra.mxu0 %v11383
        %11634 = vmatpush.bf16.msra.mxu0 %v11382
        %11635 = vmatpush.bf16.msra.mxu0 %v11381
        %11636 = vmatpush.bf16.msra.mxu0 %v11380
        %11637 = vmatmul.bf16.gmra.mxu0 %v11003
        %v11638 = vpop.f32.mrf.mxu0
        %v11639 = vadd.f32 %v11610, %v11638
        %v11640 = vpop.f32.mrf.mxu0
        %v11641 = vadd.f32 %v11612, %v11640
        %11642 = vmatmul.bf16.gmra.mxu0 %v11009
        %v11643 = vpop.f32.mrf.mxu0
        %v11644 = vadd.f32 %v11615, %v11643
        %v11645 = vpop.f32.mrf.mxu0
        %v11646 = vadd.f32 %v11617, %v11645
        %11647 = vmatmul.bf16.gmra.mxu0 %v11015
        %v11648 = vpop.f32.mrf.mxu0
        %v11649 = vadd.f32 %v11620, %v11648
        %v11650 = vpop.f32.mrf.mxu0
        %v11651 = vadd.f32 %v11622, %v11650
        %11652 = vmatmul.bf16.gmra.mxu0 %v11021
        %v11653 = vpop.f32.mrf.mxu0
        %v11654 = vadd.f32 %v11625, %v11653
        %v11655 = vpop.f32.mrf.mxu0
        %v11656 = vadd.f32 %v11627, %v11655
        %11657 = vdwg.mxu0
        %11658 = vmatpush.bf16.msra.mxu0 %v11395
        %11659 = vmatpush.bf16.msra.mxu0 %v11394
        %11660 = vmatpush.bf16.msra.mxu0 %v11393
        %11661 = vmatpush.bf16.msra.mxu0 %v11392
        %11662 = vmatpush.bf16.msra.mxu0 %v11391
        %11663 = vmatpush.bf16.msra.mxu0 %v11390
        %11664 = vmatpush.bf16.msra.mxu0 %v11389
        %11665 = vmatpush.bf16.msra.mxu0 %v11388
        %11666 = vmatmul.bf16.gmra.mxu0 %v11004
        %v11667 = vpop.f32.mrf.mxu0
        %v11668 = vadd.f32 %v11639, %v11667
        %v11669 = vpop.f32.mrf.mxu0
        %v11670 = vadd.f32 %v11641, %v11669
        %11671 = vmatmul.bf16.gmra.mxu0 %v11010
        %v11672 = vpop.f32.mrf.mxu0
        %v11673 = vadd.f32 %v11644, %v11672
        %v11674 = vpop.f32.mrf.mxu0
        %v11675 = vadd.f32 %v11646, %v11674
        %11676 = vmatmul.bf16.gmra.mxu0 %v11016
        %v11677 = vpop.f32.mrf.mxu0
        %v11678 = vadd.f32 %v11649, %v11677
        %v11679 = vpop.f32.mrf.mxu0
        %v11680 = vadd.f32 %v11651, %v11679
        %11681 = vmatmul.bf16.gmra.mxu0 %v11022
        %v11682 = vpop.f32.mrf.mxu0
        %v11683 = vadd.f32 %v11654, %v11682
        %v11684 = vpop.f32.mrf.mxu0
        %v11685 = vadd.f32 %v11656, %v11684
        %11686 = vdwg.mxu0
        %11687 = vmatpush.bf16.msra.mxu0 %v11403
        %11688 = vmatpush.bf16.msra.mxu0 %v11402
        %11689 = vmatpush.bf16.msra.mxu0 %v11401
        %11690 = vmatpush.bf16.msra.mxu0 %v11400
        %11691 = vmatpush.bf16.msra.mxu0 %v11399
        %11692 = vmatpush.bf16.msra.mxu0 %v11398
        %11693 = vmatpush.bf16.msra.mxu0 %v11397
        %11694 = vmatpush.bf16.msra.mxu0 %v11396
        %11695 = vmatmul.bf16.gmra.mxu0 %v11005
        %v11696 = vpop.f32.mrf.mxu0
        %v11697 = vadd.f32 %v11668, %v11696
        %v11698 = vpop.f32.mrf.mxu0
        %v11699 = vadd.f32 %v11670, %v11698
        %11700 = vmatmul.bf16.gmra.mxu0 %v11011
        %v11701 = vpop.f32.mrf.mxu0
        %v11702 = vadd.f32 %v11673, %v11701
        %v11703 = vpop.f32.mrf.mxu0
        %v11704 = vadd.f32 %v11675, %v11703
        %11705 = vmatmul.bf16.gmra.mxu0 %v11017
        %v11706 = vpop.f32.mrf.mxu0
        %v11707 = vadd.f32 %v11678, %v11706
        %v11708 = vpop.f32.mrf.mxu0
        %v11709 = vadd.f32 %v11680, %v11708
        %11710 = vmatmul.bf16.gmra.mxu0 %v11023
        %v11711 = vpop.f32.mrf.mxu0
        %v11712 = vadd.f32 %v11683, %v11711
        %v11713 = vpop.f32.mrf.mxu0
        %v11714 = vadd.f32 %v11685, %v11713
        %11715 = vdwg.mxu0
        %11716 = vmatpush.bf16.msra.mxu0 %v11411
        %11717 = vmatpush.bf16.msra.mxu0 %v11410
        %11718 = vmatpush.bf16.msra.mxu0 %v11409
        %11719 = vmatpush.bf16.msra.mxu0 %v11408
        %11720 = vmatpush.bf16.msra.mxu0 %v11407
        %11721 = vmatpush.bf16.msra.mxu0 %v11406
        %11722 = vmatpush.bf16.msra.mxu0 %v11405
        %11723 = vmatpush.bf16.msra.mxu0 %v11404
        %11724 = vmatmul.bf16.gmra.mxu0 %v11006
        %v11725 = vpop.f32.mrf.mxu0
        %v11726 = vadd.f32 %v11697, %v11725
        %v11727 = vpop.f32.mrf.mxu0
        %v11728 = vadd.f32 %v11699, %v11727
        %11729 = vmatmul.bf16.gmra.mxu0 %v11012
        %v11730 = vpop.f32.mrf.mxu0
        %v11731 = vadd.f32 %v11702, %v11730
        %v11732 = vpop.f32.mrf.mxu0
        %v11733 = vadd.f32 %v11704, %v11732
        %11734 = vmatmul.bf16.gmra.mxu0 %v11018
        %v11735 = vpop.f32.mrf.mxu0
        %v11736 = vadd.f32 %v11707, %v11735
        %v11737 = vpop.f32.mrf.mxu0
        %v11738 = vadd.f32 %v11709, %v11737
        %11739 = vmatmul.bf16.gmra.mxu0 %v11024
        %v11740 = vpop.f32.mrf.mxu0
        %v11741 = vadd.f32 %v11712, %v11740
        %v11742 = vpop.f32.mrf.mxu0
        %v11743 = vadd.f32 %v11714, %v11742
        %11744 = vdwg.mxu0
        %v11745 = vadd.f32 %v11726, %v9683
        %v11746 = vadd.f32 %v11728, %v9684
        %v11747 = vadd.f32 %v11731, %v9685
        %v11748 = vadd.f32 %v11733, %v9686
        %v11749 = vadd.f32 %v11736, %v9687
        %v11750 = vadd.f32 %v11738, %v9688
        %v11751 = vadd.f32 %v11741, %v9689
        %v11752 = vadd.f32 %v11743, %v9690
        %v11753 = vmax.f32 %v11745, 0.0
        %v11754 = vmax.f32 %v11746, 0.0
        %v11755 = vmax.f32 %v11747, 0.0
        %v11756 = vmax.f32 %v11748, 0.0
        %v11757 = vmax.f32 %v11749, 0.0
        %v11758 = vmax.f32 %v11750, 0.0
        %v11759 = vmax.f32 %v11751, 0.0
        %v11760 = vmax.f32 %v11752, 0.0
        %11761 = vst [vmem:[%s678] sm:$0xff] %v11753
        %11762 = vst [vmem:[%s678 + $0x8] sm:$0xff] %v11754
        %11763 = vst [vmem:[%s678 + $0x10] sm:$0xff] %v11755
        %11764 = vst [vmem:[%s678 + $0x18] sm:$0xff] %v11756
        %11765 = vst [vmem:[%s678 + $0x20] sm:$0xff] %v11757
        %11766 = vst [vmem:[%s678 + $0x28] sm:$0xff] %v11758
        %11767 = vst [vmem:[%s678 + $0x30] sm:$0xff] %v11759
        %11768 = vst [vmem:[%s678 + $0x38] sm:$0xff] %v11760
        %s11769 = sand.u32 %s448, 1
        %s11770 = scalar_lea.sflag [#allocation5], %s11769
        %s11771 = sand.u32 %s448, 1
        %s11772 = smul.addr %s11771, 64
        %s11773 = scalar_lea.vmem [#allocation12], %s11772
        // Predicated region
        $region117: #{_lambda_.1} parent=95 // pred_check
          %p11774 = pneg %p458
        $region118: #{_lambda_.1} parent=95 // pred_check_branch
          %11776 = sbr.rel (%p11774) target = $region120
        $region119: #{_lambda_.1} parent=95 // pred_region
          %11778 = vsyncadd %s11770, 0
          %s11779 = smul.addr %s36, 8
          %s11780 = smul.addr %s11779, 8
          %s11781 = scalar_lea.hbm %s19, %s11780
          %s11782 = sshll.u32 %s11773, 4
          %s11783 = int_to_ptr.vmem [resolvable:$true] %s11782
          %s11784 = sshll.u32 %s11781, 4
          %s11785 = int_to_ptr.hbm [resolvable:$true] %s11784
          %11790 = dma.vmem_to_hbm [thread:$0]  %s11783, 1024, %s11785, %s11770, 128, 128, 8
        $region120: #{_lambda_.1} parent=95 // pred_fallthru
          _
      $region96: #{_lambda_.1} parent=5 // pred_fallthru
        _
      %p11791 = scmp.le.s32.totalorder 2, %s31
      // Predicated region
      $region121: #{_lambda_.1} parent=5 // pred_check
        %p11792 = pneg %p11791
      $region122: #{_lambda_.1} parent=5 // pred_check_branch
        %11794 = sbr.rel (%p11792) target = $region124
      $region123: #{_lambda_.1} parent=5 // pred_region
        %s11795 = ssub.s32 %s31, 2
        // Predicated region
        $region125: #{_lambda_.1} parent=123 // pred_check
          %p11796 = pneg %p464
        $region126: #{_lambda_.1} parent=123 // pred_check_branch
          %11798 = sbr.rel (%p11796) target = $region128
        $region127: #{_lambda_.1} parent=123 // pred_region
          %s11799 = sand.u32 %s449, 1
          %s11800 = scalar_lea.sflag [#allocation5], %s11799
          %s11801 = sand.u32 %s449, 1
          %s11802 = smul.addr %s11801, 64
          %s11803 = scalar_lea.vmem [#allocation12], %s11802
          %11805 = dma.done %s11800, 1024
        $region128: #{_lambda_.1} parent=123 // pred_fallthru
          _
      $region124: #{_lambda_.1} parent=5 // pred_fallthru
        _
    $region6: #{_lambda_.1} parent=1 // loop_footer
      %s35 = sadd.s32 1, %s31
    $region7: #{_lambda_.1} parent=1 // loop_footer_branch
      %30 = sbr.rel target = $region3
    $region8: #{_lambda_.1} parent=1 // loop_exit
      _
    %11806 = vsyncpa [#allocation4], 1
    %s11807 = scalar_lea.sflag [#allocation4], 1
    %11808 = vsyncpa %s11807, 1
    %11809 = vsyncpa [#allocation7], 1
    %11810 = vsyncpa [#allocation10], 1
    %11811 = vsyncpa [#allocation5], 1
    %s11812 = scalar_lea.sflag [#allocation5], 1
    %11813 = vsyncpa %s11812, 1

</llo_original>
